<compile_context>
chip_gen: v6e
topology: v6e:2x2x1
jax: 0.10.0
libtpu: 0.0.40
codegen_flags: <defaults>
</compile_context>

<pallas_src>
import functools

import jax
import jax.numpy as jnp
from jax.experimental import pallas as pl
from jax.experimental.pallas import tpu as pltpu

# ----- DINOv2 ViT-S/14 architecture constants -----
EMBED_DIM = 384
NUM_HEADS = 6
HEAD_DIM = EMBED_DIM // NUM_HEADS          # 64
DEPTH = 12
MLP_HIDDEN = EMBED_DIM * 4                 # 1536
PATCH = 14
LN_EPS = 1e-6                              # dinov2 LayerNorm eps
LS_INIT = 1e-5                             # LayerScale init
CLS_HIDDEN = 256                           # classifier hidden width

# grid over batch is embarrassingly parallel; keep scoped VMEM under the
# v7x 64 MiB/TC ceiling while allowing deep pipelining on v5e/v6e.
_CPARAMS = pltpu.CompilerParams(
    dimension_semantics=("parallel",),
    vmem_limit_bytes=48 * 1024 * 1024,
)


# --------------------------- in-kernel helpers ---------------------------
def _erf(x):
    # Abramowitz & Stegun 7.1.26 polynomial (|err| < 1.5e-7); exp + arithmetic
    # only, so it lowers cleanly in Mosaic. Used for exact (erf-based) GELU.
    a1, a2, a3, a4, a5 = 0.254829592, -0.284496736, 1.421413741, -1.453152027, 1.061405429
    p = 0.3275911
    ax = jnp.where(x >= 0.0, x, -x)
    t = 1.0 / (1.0 + p * ax)
    poly = ((((a5 * t + a4) * t + a3) * t + a2) * t + a1) * t
    y = 1.0 - poly * jnp.exp(-ax * ax)
    return jnp.where(x >= 0.0, y, -y)


def _gelu(x):
    # nn.GELU() default: exact erf-based GELU (f32)
    return 0.5 * x * (1.0 + _erf(x * 0.7071067811865476))


def _layernorm_val(x, g, b):
    mu = jnp.mean(x, axis=-1, keepdims=True)
    xc = x - mu
    var = jnp.mean(xc * xc, axis=-1, keepdims=True)
    return xc * jax.lax.rsqrt(var + LN_EPS) * g + b


# ------------------------------ Pallas kernels ------------------------------
def _patch_embed_kernel(p_ref, w_ref, b_ref, o_ref):
    # one batch element per grid step: (1, Np, C*14*14) @ (C*14*14, 384)
    o_ref[0] = jnp.dot(p_ref[0].astype(jnp.bfloat16), w_ref[...],
                       preferred_element_type=jnp.float32) + b_ref[...]


def _ln_linear_kernel(x_ref, g_ref, b_ref, w_ref, wb_ref, o_ref):
    # fused LayerNorm (f32) + matmul (bf16 on MXU, f32 accumulate)
    n = _layernorm_val(x_ref[0], g_ref[...], b_ref[...])
    o_ref[0] = jnp.dot(n.astype(jnp.bfloat16), w_ref[...],
                       preferred_element_type=jnp.float32) + wb_ref[...]


def _attn_proj_res_kernel(qkv_ref, pw_ref, pb_ref, ls_ref, x_ref, o_ref, *, scale):
    # One batch element (all 6 heads) per grid step.
    # Per-head score matrices are computed in an inner loop so the (T, T)
    # buffer is per-head (v7x VMEM-friendly for large T).
    qkv = qkv_ref[0]                                        # (T, 1152) f32
    outs = []
    for h in range(NUM_HEADS):
        q = qkv[:, h * HEAD_DIM:(h + 1) * HEAD_DIM] * scale
        k = qkv[:, EMBED_DIM + h * HEAD_DIM:EMBED_DIM + (h + 1) * HEAD_DIM]
        v = qkv[:, 2 * EMBED_DIM + h * HEAD_DIM:2 * EMBED_DIM + (h + 1) * HEAD_DIM]
        # contract last dims directly (no explicit K transpose / XLU pass)
        s = jnp.einsum("qd,kd->qk", q.astype(jnp.bfloat16), k.astype(jnp.bfloat16),
                       preferred_element_type=jnp.float32)  # (T, T) f32
        m = jnp.max(s, axis=-1, keepdims=True)
        p = jnp.exp(s - m)
        p = p * pl.reciprocal(jnp.sum(p, axis=-1, keepdims=True), approx=True)
        outs.append(jnp.dot(p.astype(jnp.bfloat16), v.astype(jnp.bfloat16),
                            preferred_element_type=jnp.float32))       # (T, 64)
    attn = jnp.concatenate(outs, axis=-1)                   # (T, 384) lane-dense
    y = jnp.dot(attn.astype(jnp.bfloat16), pw_ref[...],
                preferred_element_type=jnp.float32) + pb_ref[...]
    # residual + LayerScale, written in place (output aliases x)
    o_ref[0] = x_ref[0] + ls_ref[...] * y


def _ln_mlp_res_kernel(x_ref, g_ref, b_ref, w1_ref, b1_ref, w2_ref, b2_ref,
                       ls_ref, o_ref):
    # fused LN + fc1 + GELU + fc2 + LayerScale + residual; the (T, 1536)
    # hidden activation never leaves VMEM.
    x = x_ref[0]
    n = _layernorm_val(x, g_ref[...], b_ref[...])
    h = jnp.dot(n.astype(jnp.bfloat16), w1_ref[...],
                preferred_element_type=jnp.float32) + b1_ref[...]
    h = _gelu(h)
    y = jnp.dot(h.astype(jnp.bfloat16), w2_ref[...],
                preferred_element_type=jnp.float32) + b2_ref[...]
    o_ref[0] = x + ls_ref[...] * y


def _head_kernel(x_ref, g_ref, b_ref, w1_ref, b1_ref, w2_ref, b2_ref, o_ref):
    # norm(norm(cls)) -> Linear(384,256) -> ReLU -> Linear(256,num_classes)
    # (the module applies transformer.norm a second time to the already
    #  normalized CLS token returned by the dinov2 forward)
    z = _layernorm_val(_layernorm_val(x_ref[...], g_ref[...], b_ref[...]),
                       g_ref[...], b_ref[...])
    h = jnp.dot(z.astype(jnp.bfloat16), w1_ref[...],
                preferred_element_type=jnp.float32) + b1_ref[...]
    h = jnp.maximum(h, 0.0)
    o_ref[...] = jnp.dot(h.astype(jnp.bfloat16), w2_ref[...],
                         preferred_element_type=jnp.float32) + b2_ref[...]


# ------------------------------ kernel wrappers ------------------------------
def patch_embed(patches, w, b):
    B, Np, K = patches.shape
    D = w.shape[1]
    return pl.pallas_call(
        _patch_embed_kernel,
        grid=(B,),
        in_specs=[pl.BlockSpec((1, Np, K), lambda i: (i, 0, 0)),
                  pl.BlockSpec((K, D), lambda i: (0, 0)),
                  pl.BlockSpec((1, D), lambda i: (0, 0))],
        out_specs=pl.BlockSpec((1, Np, D), lambda i: (i, 0, 0)),
        out_shape=jax.ShapeDtypeStruct((B, Np, D), jnp.float32),
        compiler_params=_CPARAMS,
    )(patches, w, b.reshape(1, D))


def ln_linear(x, g, b, w, wb):
    B, T, D = x.shape
    N = w.shape[1]
    return pl.pallas_call(
        _ln_linear_kernel,
        grid=(B,),
        in_specs=[pl.BlockSpec((1, T, D), lambda i: (i, 0, 0)),
                  pl.BlockSpec((1, D), lambda i: (0, 0)),
                  pl.BlockSpec((1, D), lambda i: (0, 0)),
                  pl.BlockSpec((D, N), lambda i: (0, 0)),
                  pl.BlockSpec((1, N), lambda i: (0, 0))],
        out_specs=pl.BlockSpec((1, T, N), lambda i: (i, 0, 0)),
        out_shape=jax.ShapeDtypeStruct((B, T, N), jnp.float32),
        compiler_params=_CPARAMS,
    )(x, g.reshape(1, D), b.reshape(1, D), w, wb.reshape(1, N))


def attn_proj_residual(qkv, pw, pb, ls, x):
    B, T, _ = qkv.shape
    D = EMBED_DIM
    return pl.pallas_call(
        functools.partial(_attn_proj_res_kernel, scale=HEAD_DIM ** -0.5),
        grid=(B,),
        in_specs=[pl.BlockSpec((1, T, 3 * D), lambda i: (i, 0, 0)),
                  pl.BlockSpec((D, D), lambda i: (0, 0)),
                  pl.BlockSpec((1, D), lambda i: (0, 0)),
                  pl.BlockSpec((1, D), lambda i: (0, 0)),
                  pl.BlockSpec((1, T, D), lambda i: (i, 0, 0))],
        out_specs=pl.BlockSpec((1, T, D), lambda i: (i, 0, 0)),
        out_shape=jax.ShapeDtypeStruct((B, T, D), jnp.float32),
        input_output_aliases={4: 0},     # residual stream updated in place
        compiler_params=_CPARAMS,
    )(qkv, pw, pb.reshape(1, D), ls.reshape(1, D), x)


def ln_mlp_residual(x, g, b, w1, b1, w2, b2, ls):
    B, T, D = x.shape
    N = w1.shape[1]
    return pl.pallas_call(
        _ln_mlp_res_kernel,
        grid=(B,),
        in_specs=[pl.BlockSpec((1, T, D), lambda i: (i, 0, 0)),
                  pl.BlockSpec((1, D), lambda i: (0, 0)),
                  pl.BlockSpec((1, D), lambda i: (0, 0)),
                  pl.BlockSpec((D, N), lambda i: (0, 0)),
                  pl.BlockSpec((1, N), lambda i: (0, 0)),
                  pl.BlockSpec((N, D), lambda i: (0, 0)),
                  pl.BlockSpec((1, D), lambda i: (0, 0)),
                  pl.BlockSpec((1, D), lambda i: (0, 0))],
        out_specs=pl.BlockSpec((1, T, D), lambda i: (i, 0, 0)),
        out_shape=jax.ShapeDtypeStruct((B, T, D), jnp.float32),
        input_output_aliases={0: 0},     # residual stream updated in place
        compiler_params=_CPARAMS,
    )(x, g.reshape(1, D), b.reshape(1, D), w1, b1.reshape(1, N), w2,
      b2.reshape(1, D), ls.reshape(1, D))


def classifier_head(x, g, b, w1, b1, w2, b2):
    B, D = x.shape
    C = w2.shape[1]
    return pl.pallas_call(
        _head_kernel,
        out_shape=jax.ShapeDtypeStruct((B, C), jnp.float32),
    )(x, g.reshape(1, D), b.reshape(1, D), w1, b1.reshape(1, CLS_HIDDEN),
      w2, b2.reshape(1, C))


# ------------------------------ parameters ------------------------------
def init_params(key, num_classes, num_patches):
    n_tokens = num_patches + 1
    ks = jax.random.split(key, 16)

    def nrm(k, shape, scale=0.02, dtype=jnp.float32):
        return (scale * jax.random.normal(k, shape, jnp.float32)).astype(dtype)

    bf16 = jnp.bfloat16
    blocks = {
        "n1_g": jnp.ones((DEPTH, EMBED_DIM), jnp.float32),
        "n1_b": jnp.zeros((DEPTH, EMBED_DIM), jnp.float32),
        "qkv_w": nrm(ks[0], (DEPTH, EMBED_DIM, 3 * EMBED_DIM), dtype=bf16),
        "qkv_b": jnp.zeros((DEPTH, 3 * EMBED_DIM), jnp.float32),
        "proj_w": nrm(ks[1], (DEPTH, EMBED_DIM, EMBED_DIM), dtype=bf16),
        "proj_b": jnp.zeros((DEPTH, EMBED_DIM), jnp.float32),
        "ls1": jnp.full((DEPTH, EMBED_DIM), LS_INIT, jnp.float32),
        "n2_g": jnp.ones((DEPTH, EMBED_DIM), jnp.float32),
        "n2_b": jnp.zeros((DEPTH, EMBED_DIM), jnp.float32),
        "fc1_w": nrm(ks[2], (DEPTH, EMBED_DIM, MLP_HIDDEN), dtype=bf16),
        "fc1_b": jnp.zeros((DEPTH, MLP_HIDDEN), jnp.float32),
        "fc2_w": nrm(ks[3], (DEPTH, MLP_HIDDEN, EMBED_DIM), dtype=bf16),
        "fc2_b": jnp.zeros((DEPTH, EMBED_DIM), jnp.float32),
        "ls2": jnp.full((DEPTH, EMBED_DIM), LS_INIT, jnp.float32),
    }
    return {
        # Conv2d(3,384,14,14) weight stored pre-flattened as (C*14*14, 384) bf16
        # with im2col column order (c, kh, kw).
        "patch_w": nrm(ks[4], (3 * PATCH * PATCH, EMBED_DIM), dtype=bf16),
        "patch_b": jnp.zeros((EMBED_DIM,), jnp.float32),
        "cls_token": nrm(ks[5], (1, 1, EMBED_DIM)),
        # TODO(synk): dinov2 bicubically interpolates a pretrained pos_embed;
        # here pos_embed is created directly at the runtime token count.
        "pos_embed": nrm(ks[6], (1, n_tokens, EMBED_DIM)),
        "blocks": blocks,
        "norm_g": jnp.ones((EMBED_DIM,), jnp.float32),
        "norm_b": jnp.zeros((EMBED_DIM,), jnp.float32),
        "c1_w": nrm(ks[7], (EMBED_DIM, CLS_HIDDEN), dtype=bf16),
        "c1_b": jnp.zeros((CLS_HIDDEN,), jnp.float32),
        "c2_w": nrm(ks[8], (CLS_HIDDEN, num_classes), dtype=bf16),
        "c2_b": jnp.zeros((num_classes,), jnp.float32),
    }


# ------------------------------ forward pass ------------------------------
def forward(params, x):
    # layout: x is NCHW float32 (B, 3, H, W), H and W multiples of 14.
    B, C, H, W = x.shape
    Hp, Wp = H // PATCH, W // PATCH

    # patch embed as im2col (XLA glue) + per-batch Pallas matmul
    patches = x.reshape(B, C, Hp, PATCH, Wp, PATCH)
    patches = patches.transpose(0, 2, 4, 1, 3, 5).reshape(B, Hp * Wp, C * PATCH * PATCH)
    tok = patch_embed(patches, params["patch_w"], params["patch_b"])   # (B, Np, 384)

    cls = jnp.broadcast_to(params["cls_token"], (B, 1, EMBED_DIM))
    h = jnp.concatenate([cls, tok], axis=1) + params["pos_embed"]      # (B, T, 384)

    def block_step(hc, bp):
        # attention branch: fused LN+QKV, then fused MHA+proj+LS+residual
        qkv = ln_linear(hc, bp["n1_g"], bp["n1_b"], bp["qkv_w"], bp["qkv_b"])
        hc = attn_proj_residual(qkv, bp["proj_w"], bp["proj_b"], bp["ls1"], hc)
        # MLP branch: fused LN+fc1+GELU+fc2+LS+residual
        hc = ln_mlp_residual(hc, bp["n2_g"], bp["n2_b"], bp["fc1_w"], bp["fc1_b"],
                             bp["fc2_w"], bp["fc2_b"], bp["ls2"])
        return hc, None

    h, _ = jax.lax.scan(block_step, h, params["blocks"])

    # transformer(x) returns norm(x)[:, 0]; LN is row-wise so norm only the CLS
    # row, then the module applies transformer.norm a second time + classifier
    # (all fused in the head kernel).
    cls_out = h[:, 0, :]                                               # (B, 384)
    return classifier_head(cls_out, params["norm_g"], params["norm_b"],
                           params["c1_w"], params["c1_b"],
                           params["c2_w"], params["c2_b"])


# ------------------------------ main ------------------------------
if __name__ == "__main__":
    num_classes = 10
    B, C, H, W = 2, 3, 28, 28                       # 2x2 = 4 patches + CLS
    key = jax.random.PRNGKey(0)
    pkey, xkey = jax.random.split(key)

    num_patches = (H // PATCH) * (W // PATCH)
    params = init_params(pkey, num_classes, num_patches)
    x = jax.random.normal(xkey, (B, C, H, W), jnp.float32)

    out = jax.jit(forward)(params, x)
    out = jax.block_until_ready(out)
    assert out.shape == (B, num_classes) and out.dtype == jnp.float32
    print("KERNEL_OK")
</pallas_src>

<mosaic_0001>
module attributes {stable_mosaic.version = 11 : i64} {
  func.func @_patch_embed_kernel(%arg0: i32, %arg1: memref<1x4x588xf32, #tpu.memory_space<vmem>>, %arg2: memref<588x384xbf16, #tpu.memory_space<vmem>>, %arg3: memref<1x384xf32, #tpu.memory_space<vmem>>, %arg4: memref<1x4x384xf32, #tpu.memory_space<vmem>>) attributes {dimension_semantics = [#tpu.dimension_semantics<parallel>], iteration_bounds = array<i64: 2>, scalar_prefetch = 0 : i64, scratch_operands = 0 : i64, tpu.core_type = #tpu.core_type<tc>, window_params = [{transform_indices = @transform_0, window_bounds = array<i64: 1, 4, 588>}, {pipeline_mode = #tpu.pipeline_mode<synchronous>, transform_indices = @transform_1, window_bounds = array<i64: 588, 384>}, {pipeline_mode = #tpu.pipeline_mode<synchronous>, transform_indices = @transform_2, window_bounds = array<i64: 1, 384>}, {transform_indices = @transform_3, window_bounds = array<i64: 1, 4, 384>}]} {
    %c0 = arith.constant 0 : index
    %c0_0 = arith.constant 0 : index
    %c0_1 = arith.constant 0 : index
    %0 = vector.load %arg1[%c0, %c0_0, %c0_1] : memref<1x4x588xf32, #tpu.memory_space<vmem>>, vector<1x4x588xf32>
    %1 = vector.shape_cast %0 : vector<1x4x588xf32> to vector<4x588xf32>
    %2 = arith.truncf %1 : vector<4x588xf32> to vector<4x588xbf16>
    %c0_2 = arith.constant 0 : index
    %c0_3 = arith.constant 0 : index
    %3 = vector.load %arg2[%c0_2, %c0_3] : memref<588x384xbf16, #tpu.memory_space<vmem>>, vector<588x384xbf16>
    %cst = arith.constant dense<0.000000e+00> : vector<4x384xf32>
    %4 = tpu.matmul %2, %3, %cst {dimension_numbers = #tpu.dot_dimension_numbers<[1], [0], [0], [1], [0, 0, 1, 1], [], []>} : vector<4x588xbf16>, vector<588x384xbf16>, vector<4x384xf32> -> vector<4x384xf32>
    %c0_4 = arith.constant 0 : index
    %c0_5 = arith.constant 0 : index
    %5 = vector.load %arg3[%c0_4, %c0_5] : memref<1x384xf32, #tpu.memory_space<vmem>>, vector<1x384xf32>
    %6 = vector.broadcast %5 : vector<1x384xf32> to vector<4x384xf32>
    %7 = arith.addf %4, %6 : vector<4x384xf32>
    %c0_6 = arith.constant 0 : index
    %c0_7 = arith.constant 0 : index
    %c0_8 = arith.constant 0 : index
    %8 = vector.load %arg4[%c0_6, %c0_7, %c0_8] : memref<1x4x384xf32, #tpu.memory_space<vmem>>, vector<1x4x384xf32>
    %9 = vector.shape_cast %8 : vector<1x4x384xf32> to vector<4x384xf32>
    %10 = vector.shape_cast %7 : vector<4x384xf32> to vector<1x4x384xf32>
    tpu.vector_store %arg4[%c0_6, %c0_7, %c0_8], %10 {strides = array<i32>} : memref<1x4x384xf32, #tpu.memory_space<vmem>>, vector<1x4x384xf32>,
    return
  }
  func.func @transform_0(%arg0: i32) -> (i32, i32, i32) {
    %c0_i32 = arith.constant 0 : i32
    %c0_i32_0 = arith.constant 0 : i32
    %c0_i32_1 = arith.constant 0 : i32
    return %arg0, %c0_i32, %c0_i32_0 : i32, i32, i32
  }
  func.func @transform_1(%arg0: i32) -> (i32, i32) {
    %c0_i32 = arith.constant 0 : i32
    %c0_i32_0 = arith.constant 0 : i32
    %c0_i32_1 = arith.constant 0 : i32
    return %c0_i32, %c0_i32_0 : i32, i32
  }
  func.func @transform_2(%arg0: i32) -> (i32, i32) {
    %c0_i32 = arith.constant 0 : i32
    %c0_i32_0 = arith.constant 0 : i32
    %c0_i32_1 = arith.constant 0 : i32
    return %c0_i32, %c0_i32_0 : i32, i32
  }
  func.func @transform_3(%arg0: i32) -> (i32, i32, i32) {
    %c0_i32 = arith.constant 0 : i32
    %c0_i32_0 = arith.constant 0 : i32
    %c0_i32_1 = arith.constant 0 : i32
    return %arg0, %c0_i32, %c0_i32_0 : i32, i32, i32
  }
}

module attributes {stable_mosaic.version = 11 : i64} {
  func.func @_ln_linear_kernel(%arg0: i32, %arg1: memref<1x5x384xf32, #tpu.memory_space<vmem>>, %arg2: memref<1x384xf32, #tpu.memory_space<vmem>>, %arg3: memref<1x384xf32, #tpu.memory_space<vmem>>, %arg4: memref<384x1152xbf16, #tpu.memory_space<vmem>>, %arg5: memref<1x1152xf32, #tpu.memory_space<vmem>>, %arg6: memref<1x5x1152xf32, #tpu.memory_space<vmem>>) attributes {dimension_semantics = [#tpu.dimension_semantics<parallel>], iteration_bounds = array<i64: 2>, scalar_prefetch = 0 : i64, scratch_operands = 0 : i64, tpu.core_type = #tpu.core_type<tc>, window_params = [{transform_indices = @transform_0, window_bounds = array<i64: 1, 5, 384>}, {pipeline_mode = #tpu.pipeline_mode<synchronous>, transform_indices = @transform_1, window_bounds = array<i64: 1, 384>}, {pipeline_mode = #tpu.pipeline_mode<synchronous>, transform_indices = @transform_2, window_bounds = array<i64: 1, 384>}, {pipeline_mode = #tpu.pipeline_mode<synchronous>, transform_indices = @transform_3, window_bounds = array<i64: 384, 1152>}, {pipeline_mode = #tpu.pipeline_mode<synchronous>, transform_indices = @transform_4, window_bounds = array<i64: 1, 1152>}, {transform_indices = @transform_5, window_bounds = array<i64: 1, 5, 1152>}]} {
    %c0 = arith.constant 0 : index
    %c0_0 = arith.constant 0 : index
    %c0_1 = arith.constant 0 : index
    %0 = vector.load %arg1[%c0, %c0_0, %c0_1] : memref<1x5x384xf32, #tpu.memory_space<vmem>>, vector<1x5x384xf32>
    %1 = vector.shape_cast %0 : vector<1x5x384xf32> to vector<5x384xf32>
    %c0_2 = arith.constant 0 : index
    %c0_3 = arith.constant 0 : index
    %2 = vector.load %arg2[%c0_2, %c0_3] : memref<1x384xf32, #tpu.memory_space<vmem>>, vector<1x384xf32>
    %c0_4 = arith.constant 0 : index
    %c0_5 = arith.constant 0 : index
    %3 = vector.load %arg3[%c0_4, %c0_5] : memref<1x384xf32, #tpu.memory_space<vmem>>, vector<1x384xf32>
    %cst = arith.constant dense<0.000000e+00> : vector<5xf32>
    %4 = vector.multi_reduction <add>, %1, %cst [1] : vector<5x384xf32> to vector<5xf32>
    %5 = vector.shape_cast %4 : vector<5xf32> to vector<5x1xf32>
    %cst_6 = arith.constant 3.840000e+02 : f32
    %6 = vector.broadcast %cst_6 : f32 to vector<5x1xf32>
    %7 = arith.divf %5, %6 : vector<5x1xf32>
    %8 = vector.broadcast %7 : vector<5x1xf32> to vector<5x384xf32>
    %9 = arith.subf %1, %8 : vector<5x384xf32>
    %10 = arith.mulf %9, %9 : vector<5x384xf32>
    %cst_7 = arith.constant dense<0.000000e+00> : vector<5xf32>
    %11 = vector.multi_reduction <add>, %10, %cst_7 [1] : vector<5x384xf32> to vector<5xf32>
    %12 = vector.shape_cast %11 : vector<5xf32> to vector<5x1xf32>
    %cst_8 = arith.constant 3.840000e+02 : f32
    %13 = vector.broadcast %cst_8 : f32 to vector<5x1xf32>
    %14 = arith.divf %12, %13 : vector<5x1xf32>
    %cst_9 = arith.constant 9.99999997E-7 : f32
    %15 = vector.broadcast %cst_9 : f32 to vector<5x1xf32>
    %16 = arith.addf %14, %15 : vector<5x1xf32>
    %17 = math.rsqrt %16 : vector<5x1xf32>
    %18 = vector.broadcast %17 : vector<5x1xf32> to vector<5x384xf32>
    %19 = arith.mulf %9, %18 : vector<5x384xf32>
    %20 = vector.broadcast %2 : vector<1x384xf32> to vector<5x384xf32>
    %21 = arith.mulf %19, %20 : vector<5x384xf32>
    %22 = vector.broadcast %3 : vector<1x384xf32> to vector<5x384xf32>
    %23 = arith.addf %21, %22 : vector<5x384xf32>
    %24 = arith.truncf %23 : vector<5x384xf32> to vector<5x384xbf16>
    %c0_10 = arith.constant 0 : index
    %c0_11 = arith.constant 0 : index
    %25 = vector.load %arg4[%c0_10, %c0_11] : memref<384x1152xbf16, #tpu.memory_space<vmem>>, vector<384x1152xbf16>
    %cst_12 = arith.constant dense<0.000000e+00> : vector<5x1152xf32>
    %26 = tpu.matmul %24, %25, %cst_12 {dimension_numbers = #tpu.dot_dimension_numbers<[1], [0], [0], [1], [0, 0, 1, 1], [], []>} : vector<5x384xbf16>, vector<384x1152xbf16>, vector<5x1152xf32> -> vector<5x1152xf32>
    %c0_13 = arith.constant 0 : index
    %c0_14 = arith.constant 0 : index
    %27 = vector.load %arg5[%c0_13, %c0_14] : memref<1x1152xf32, #tpu.memory_space<vmem>>, vector<1x1152xf32>
    %28 = vector.broadcast %27 : vector<1x1152xf32> to vector<5x1152xf32>
    %29 = arith.addf %26, %28 : vector<5x1152xf32>
    %c0_15 = arith.constant 0 : index
    %c0_16 = arith.constant 0 : index
    %c0_17 = arith.constant 0 : index
    %30 = vector.load %arg6[%c0_15, %c0_16, %c0_17] : memref<1x5x1152xf32, #tpu.memory_space<vmem>>, vector<1x5x1152xf32>
    %31 = vector.shape_cast %30 : vector<1x5x1152xf32> to vector<5x1152xf32>
    %32 = vector.shape_cast %29 : vector<5x1152xf32> to vector<1x5x1152xf32>
    tpu.vector_store %arg6[%c0_15, %c0_16, %c0_17], %32 {strides = array<i32>} : memref<1x5x1152xf32, #tpu.memory_space<vmem>>, vector<1x5x1152xf32>,
    return
  }
  func.func @transform_0(%arg0: i32) -> (i32, i32, i32) {
    %c0_i32 = arith.constant 0 : i32
    %c0_i32_0 = arith.constant 0 : i32
    %c0_i32_1 = arith.constant 0 : i32
    return %arg0, %c0_i32, %c0_i32_0 : i32, i32, i32
  }
  func.func @transform_1(%arg0: i32) -> (i32, i32) {
    %c0_i32 = arith.constant 0 : i32
    %c0_i32_0 = arith.constant 0 : i32
    %c0_i32_1 = arith.constant 0 : i32
    return %c0_i32, %c0_i32_0 : i32, i32
  }
  func.func @transform_2(%arg0: i32) -> (i32, i32) {
    %c0_i32 = arith.constant 0 : i32
    %c0_i32_0 = arith.constant 0 : i32
    %c0_i32_1 = arith.constant 0 : i32
    return %c0_i32, %c0_i32_0 : i32, i32
  }
  func.func @transform_3(%arg0: i32) -> (i32, i32) {
    %c0_i32 = arith.constant 0 : i32
    %c0_i32_0 = arith.constant 0 : i32
    %c0_i32_1 = arith.constant 0 : i32
    return %c0_i32, %c0_i32_0 : i32, i32
  }
  func.func @transform_4(%arg0: i32) -> (i32, i32) {
    %c0_i32 = arith.constant 0 : i32
    %c0_i32_0 = arith.constant 0 : i32
    %c0_i32_1 = arith.constant 0 : i32
    return %c0_i32, %c0_i32_0 : i32, i32
  }
  func.func @transform_5(%arg0: i32) -> (i32, i32, i32) {
    %c0_i32 = arith.constant 0 : i32
    %c0_i32_0 = arith.constant 0 : i32
    %c0_i32_1 = arith.constant 0 : i32
    return %arg0, %c0_i32, %c0_i32_0 : i32, i32, i32
  }
}

module attributes {stable_mosaic.version = 11 : i64} {
  func.func @_attn_proj_res_kernel(%arg0: i32, %arg1: memref<1x5x1152xf32, #tpu.memory_space<vmem>>, %arg2: memref<384x384xbf16, #tpu.memory_space<vmem>>, %arg3: memref<1x384xf32, #tpu.memory_space<vmem>>, %arg4: memref<1x384xf32, #tpu.memory_space<vmem>>, %arg5: memref<1x5x384xf32, #tpu.memory_space<vmem>>, %arg6: memref<1x5x384xf32, #tpu.memory_space<vmem>>) attributes {dimension_semantics = [#tpu.dimension_semantics<parallel>], iteration_bounds = array<i64: 2>, scalar_prefetch = 0 : i64, scratch_operands = 0 : i64, tpu.core_type = #tpu.core_type<tc>, window_params = [{transform_indices = @transform_0, window_bounds = array<i64: 1, 5, 1152>}, {pipeline_mode = #tpu.pipeline_mode<synchronous>, transform_indices = @transform_1, window_bounds = array<i64: 384, 384>}, {pipeline_mode = #tpu.pipeline_mode<synchronous>, transform_indices = @transform_2, window_bounds = array<i64: 1, 384>}, {pipeline_mode = #tpu.pipeline_mode<synchronous>, transform_indices = @transform_3, window_bounds = array<i64: 1, 384>}, {transform_indices = @transform_4, window_bounds = array<i64: 1, 5, 384>}, {transform_indices = @transform_5, window_bounds = array<i64: 1, 5, 384>}]} {
    %c0 = arith.constant 0 : index
    %c0_0 = arith.constant 0 : index
    %c0_1 = arith.constant 0 : index
    %0 = vector.load %arg1[%c0, %c0_0, %c0_1] : memref<1x5x1152xf32, #tpu.memory_space<vmem>>, vector<1x5x1152xf32>
    %1 = vector.shape_cast %0 : vector<1x5x1152xf32> to vector<5x1152xf32>
    %2 = vector.extract_strided_slice %1 {offsets = [0, 0], sizes = [5, 64], strides = [1, 1]} : vector<5x1152xf32> to vector<5x64xf32>
    %cst = arith.constant 1.250000e-01 : f32
    %3 = vector.broadcast %cst : f32 to vector<5x64xf32>
    %4 = arith.mulf %2, %3 : vector<5x64xf32>
    %5 = vector.extract_strided_slice %1 {offsets = [0, 384], sizes = [5, 64], strides = [1, 1]} : vector<5x1152xf32> to vector<5x64xf32>
    %6 = vector.extract_strided_slice %1 {offsets = [0, 768], sizes = [5, 64], strides = [1, 1]} : vector<5x1152xf32> to vector<5x64xf32>
    %7 = arith.truncf %4 : vector<5x64xf32> to vector<5x64xbf16>
    %8 = arith.truncf %5 : vector<5x64xf32> to vector<5x64xbf16>
    "tpu.trace_start"() <{level = 10 : i32, message = "qd,kd->qk"}> : () -> ()
    %cst_2 = arith.constant dense<0.000000e+00> : vector<5x5xf32>
    %9 = tpu.matmul %7, %8, %cst_2 {dimension_numbers = #tpu.dot_dimension_numbers<[1], [1], [0], [0], [0, 0, 1, 0], [], []>} : vector<5x64xbf16>, vector<5x64xbf16>, vector<5x5xf32> -> vector<5x5xf32>
    "tpu.trace_stop"() : () -> ()
    %cst_3 = arith.constant dense<0xFF800000> : vector<5xf32>
    %10 = vector.multi_reduction <maximumf>, %9, %cst_3 [1] : vector<5x5xf32> to vector<5xf32>
    %11 = vector.shape_cast %10 : vector<5xf32> to vector<5x1xf32>
    %12 = vector.broadcast %11 : vector<5x1xf32> to vector<5x5xf32>
    %13 = arith.subf %9, %12 : vector<5x5xf32>
    %14 = math.exp %13 : vector<5x5xf32>
    %cst_4 = arith.constant dense<0.000000e+00> : vector<5xf32>
    %15 = vector.multi_reduction <add>, %14, %cst_4 [1] : vector<5x5xf32> to vector<5xf32>
    %16 = vector.shape_cast %15 : vector<5xf32> to vector<5x1xf32>
    %17 = tpu.reciprocal %16 {approx = true} : vector<5x1xf32> -> vector<5x1xf32>
    %18 = vector.broadcast %17 : vector<5x1xf32> to vector<5x5xf32>
    %19 = arith.mulf %14, %18 : vector<5x5xf32>
    %20 = arith.truncf %19 : vector<5x5xf32> to vector<5x5xbf16>
    %21 = arith.truncf %6 : vector<5x64xf32> to vector<5x64xbf16>
    %cst_5 = arith.constant dense<0.000000e+00> : vector<5x64xf32>
    %22 = tpu.matmul %20, %21, %cst_5 {dimension_numbers = #tpu.dot_dimension_numbers<[1], [0], [0], [1], [0, 0, 1, 1], [], []>} : vector<5x5xbf16>, vector<5x64xbf16>, vector<5x64xf32> -> vector<5x64xf32>
    %23 = vector.extract_strided_slice %1 {offsets = [0, 64], sizes = [5, 64], strides = [1, 1]} : vector<5x1152xf32> to vector<5x64xf32>
    %cst_6 = arith.constant 1.250000e-01 : f32
    %24 = vector.broadcast %cst_6 : f32 to vector<5x64xf32>
    %25 = arith.mulf %23, %24 : vector<5x64xf32>
    %26 = vector.extract_strided_slice %1 {offsets = [0, 448], sizes = [5, 64], strides = [1, 1]} : vector<5x1152xf32> to vector<5x64xf32>
    %27 = vector.extract_strided_slice %1 {offsets = [0, 832], sizes = [5, 64], strides = [1, 1]} : vector<5x1152xf32> to vector<5x64xf32>
    %28 = arith.truncf %25 : vector<5x64xf32> to vector<5x64xbf16>
    %29 = arith.truncf %26 : vector<5x64xf32> to vector<5x64xbf16>
    "tpu.trace_start"() <{level = 10 : i32, message = "qd,kd->qk"}> : () -> ()
    %cst_7 = arith.constant dense<0.000000e+00> : vector<5x5xf32>
    %30 = tpu.matmul %28, %29, %cst_7 {dimension_numbers = #tpu.dot_dimension_numbers<[1], [1], [0], [0], [0, 0, 1, 0], [], []>} : vector<5x64xbf16>, vector<5x64xbf16>, vector<5x5xf32> -> vector<5x5xf32>
    "tpu.trace_stop"() : () -> ()
    %cst_8 = arith.constant dense<0xFF800000> : vector<5xf32>
    %31 = vector.multi_reduction <maximumf>, %30, %cst_8 [1] : vector<5x5xf32> to vector<5xf32>
    %32 = vector.shape_cast %31 : vector<5xf32> to vector<5x1xf32>
    %33 = vector.broadcast %32 : vector<5x1xf32> to vector<5x5xf32>
    %34 = arith.subf %30, %33 : vector<5x5xf32>
    %35 = math.exp %34 : vector<5x5xf32>
    %cst_9 = arith.constant dense<0.000000e+00> : vector<5xf32>
    %36 = vector.multi_reduction <add>, %35, %cst_9 [1] : vector<5x5xf32> to vector<5xf32>
    %37 = vector.shape_cast %36 : vector<5xf32> to vector<5x1xf32>
    %38 = tpu.reciprocal %37 {approx = true} : vector<5x1xf32> -> vector<5x1xf32>
    %39 = vector.broadcast %38 : vector<5x1xf32> to vector<5x5xf32>
    %40 = arith.mulf %35, %39 : vector<5x5xf32>
    %41 = arith.truncf %40 : vector<5x5xf32> to vector<5x5xbf16>
    %42 = arith.truncf %27 : vector<5x64xf32> to vector<5x64xbf16>
    %cst_10 = arith.constant dense<0.000000e+00> : vector<5x64xf32>
    %43 = tpu.matmul %41, %42, %cst_10 {dimension_numbers = #tpu.dot_dimension_numbers<[1], [0], [0], [1], [0, 0, 1, 1], [], []>} : vector<5x5xbf16>, vector<5x64xbf16>, vector<5x64xf32> -> vector<5x64xf32>
    %44 = vector.extract_strided_slice %1 {offsets = [0, 128], sizes = [5, 64], strides = [1, 1]} : vector<5x1152xf32> to vector<5x64xf32>
    %cst_11 = arith.constant 1.250000e-01 : f32
    %45 = vector.broadcast %cst_11 : f32 to vector<5x64xf32>
    %46 = arith.mulf %44, %45 : vector<5x64xf32>
    %47 = vector.extract_strided_slice %1 {offsets = [0, 512], sizes = [5, 64], strides = [1, 1]} : vector<5x1152xf32> to vector<5x64xf32>
    %48 = vector.extract_strided_slice %1 {offsets = [0, 896], sizes = [5, 64], strides = [1, 1]} : vector<5x1152xf32> to vector<5x64xf32>
    %49 = arith.truncf %46 : vector<5x64xf32> to vector<5x64xbf16>
    %50 = arith.truncf %47 : vector<5x64xf32> to vector<5x64xbf16>
    "tpu.trace_start"() <{level = 10 : i32, message = "qd,kd->qk"}> : () -> ()
    %cst_12 = arith.constant dense<0.000000e+00> : vector<5x5xf32>
    %51 = tpu.matmul %49, %50, %cst_12 {dimension_numbers = #tpu.dot_dimension_numbers<[1], [1], [0], [0], [0, 0, 1, 0], [], []>} : vector<5x64xbf16>, vector<5x64xbf16>, vector<5x5xf32> -> vector<5x5xf32>
    "tpu.trace_stop"() : () -> ()
    %cst_13 = arith.constant dense<0xFF800000> : vector<5xf32>
    %52 = vector.multi_reduction <maximumf>, %51, %cst_13 [1] : vector<5x5xf32> to vector<5xf32>
    %53 = vector.shape_cast %52 : vector<5xf32> to vector<5x1xf32>
    %54 = vector.broadcast %53 : vector<5x1xf32> to vector<5x5xf32>
    %55 = arith.subf %51, %54 : vector<5x5xf32>
    %56 = math.exp %55 : vector<5x5xf32>
    %cst_14 = arith.constant dense<0.000000e+00> : vector<5xf32>
    %57 = vector.multi_reduction <add>, %56, %cst_14 [1] : vector<5x5xf32> to vector<5xf32>
    %58 = vector.shape_cast %57 : vector<5xf32> to vector<5x1xf32>
    %59 = tpu.reciprocal %58 {approx = true} : vector<5x1xf32> -> vector<5x1xf32>
    %60 = vector.broadcast %59 : vector<5x1xf32> to vector<5x5xf32>
    %61 = arith.mulf %56, %60 : vector<5x5xf32>
    %62 = arith.truncf %61 : vector<5x5xf32> to vector<5x5xbf16>
    %63 = arith.truncf %48 : vector<5x64xf32> to vector<5x64xbf16>
    %cst_15 = arith.constant dense<0.000000e+00> : vector<5x64xf32>
    %64 = tpu.matmul %62, %63, %cst_15 {dimension_numbers = #tpu.dot_dimension_numbers<[1], [0], [0], [1], [0, 0, 1, 1], [], []>} : vector<5x5xbf16>, vector<5x64xbf16>, vector<5x64xf32> -> vector<5x64xf32>
    %65 = vector.extract_strided_slice %1 {offsets = [0, 192], sizes = [5, 64], strides = [1, 1]} : vector<5x1152xf32> to vector<5x64xf32>
    %cst_16 = arith.constant 1.250000e-01 : f32
    %66 = vector.broadcast %cst_16 : f32 to vector<5x64xf32>
    %67 = arith.mulf %65, %66 : vector<5x64xf32>
    %68 = vector.extract_strided_slice %1 {offsets = [0, 576], sizes = [5, 64], strides = [1, 1]} : vector<5x1152xf32> to vector<5x64xf32>
    %69 = vector.extract_strided_slice %1 {offsets = [0, 960], sizes = [5, 64], strides = [1, 1]} : vector<5x1152xf32> to vector<5x64xf32>
    %70 = arith.truncf %67 : vector<5x64xf32> to vector<5x64xbf16>
    %71 = arith.truncf %68 : vector<5x64xf32> to vector<5x64xbf16>
    "tpu.trace_start"() <{level = 10 : i32, message = "qd,kd->qk"}> : () -> ()
    %cst_17 = arith.constant dense<0.000000e+00> : vector<5x5xf32>
    %72 = tpu.matmul %70, %71, %cst_17 {dimension_numbers = #tpu.dot_dimension_numbers<[1], [1], [0], [0], [0, 0, 1, 0], [], []>} : vector<5x64xbf16>, vector<5x64xbf16>, vector<5x5xf32> -> vector<5x5xf32>
    "tpu.trace_stop"() : () -> ()
    %cst_18 = arith.constant dense<0xFF800000> : vector<5xf32>
    %73 = vector.multi_reduction <maximumf>, %72, %cst_18 [1] : vector<5x5xf32> to vector<5xf32>
    %74 = vector.shape_cast %73 : vector<5xf32> to vector<5x1xf32>
    %75 = vector.broadcast %74 : vector<5x1xf32> to vector<5x5xf32>
    %76 = arith.subf %72, %75 : vector<5x5xf32>
    %77 = math.exp %76 : vector<5x5xf32>
    %cst_19 = arith.constant dense<0.000000e+00> : vector<5xf32>
    %78 = vector.multi_reduction <add>, %77, %cst_19 [1] : vector<5x5xf32> to vector<5xf32>
    %79 = vector.shape_cast %78 : vector<5xf32> to vector<5x1xf32>
    %80 = tpu.reciprocal %79 {approx = true} : vector<5x1xf32> -> vector<5x1xf32>
    %81 = vector.broadcast %80 : vector<5x1xf32> to vector<5x5xf32>
    %82 = arith.mulf %77, %81 : vector<5x5xf32>
    %83 = arith.truncf %82 : vector<5x5xf32> to vector<5x5xbf16>
    %84 = arith.truncf %69 : vector<5x64xf32> to vector<5x64xbf16>
    %cst_20 = arith.constant dense<0.000000e+00> : vector<5x64xf32>
    %85 = tpu.matmul %83, %84, %cst_20 {dimension_numbers = #tpu.dot_dimension_numbers<[1], [0], [0], [1], [0, 0, 1, 1], [], []>} : vector<5x5xbf16>, vector<5x64xbf16>, vector<5x64xf32> -> vector<5x64xf32>
    %86 = vector.extract_strided_slice %1 {offsets = [0, 256], sizes = [5, 64], strides = [1, 1]} : vector<5x1152xf32> to vector<5x64xf32>
    %cst_21 = arith.constant 1.250000e-01 : f32
    %87 = vector.broadcast %cst_21 : f32 to vector<5x64xf32>
    %88 = arith.mulf %86, %87 : vector<5x64xf32>
    %89 = vector.extract_strided_slice %1 {offsets = [0, 640], sizes = [5, 64], strides = [1, 1]} : vector<5x1152xf32> to vector<5x64xf32>
    %90 = vector.extract_strided_slice %1 {offsets = [0, 1024], sizes = [5, 64], strides = [1, 1]} : vector<5x1152xf32> to vector<5x64xf32>
    %91 = arith.truncf %88 : vector<5x64xf32> to vector<5x64xbf16>
    %92 = arith.truncf %89 : vector<5x64xf32> to vector<5x64xbf16>
    "tpu.trace_start"() <{level = 10 : i32, message = "qd,kd->qk"}> : () -> ()
    %cst_22 = arith.constant dense<0.000000e+00> : vector<5x5xf32>
    %93 = tpu.matmul %91, %92, %cst_22 {dimension_numbers = #tpu.dot_dimension_numbers<[1], [1], [0], [0], [0, 0, 1, 0], [], []>} : vector<5x64xbf16>, vector<5x64xbf16>, vector<5x5xf32> -> vector<5x5xf32>
    "tpu.trace_stop"() : () -> ()
    %cst_23 = arith.constant dense<0xFF800000> : vector<5xf32>
    %94 = vector.multi_reduction <maximumf>, %93, %cst_23 [1] : vector<5x5xf32> to vector<5xf32>
    %95 = vector.shape_cast %94 : vector<5xf32> to vector<5x1xf32>
    %96 = vector.broadcast %95 : vector<5x1xf32> to vector<5x5xf32>
    %97 = arith.subf %93, %96 : vector<5x5xf32>
    %98 = math.exp %97 : vector<5x5xf32>
    %cst_24 = arith.constant dense<0.000000e+00> : vector<5xf32>
    %99 = vector.multi_reduction <add>, %98, %cst_24 [1] : vector<5x5xf32> to vector<5xf32>
    %100 = vector.shape_cast %99 : vector<5xf32> to vector<5x1xf32>
    %101 = tpu.reciprocal %100 {approx = true} : vector<5x1xf32> -> vector<5x1xf32>
    %102 = vector.broadcast %101 : vector<5x1xf32> to vector<5x5xf32>
    %103 = arith.mulf %98, %102 : vector<5x5xf32>
    %104 = arith.truncf %103 : vector<5x5xf32> to vector<5x5xbf16>
    %105 = arith.truncf %90 : vector<5x64xf32> to vector<5x64xbf16>
    %cst_25 = arith.constant dense<0.000000e+00> : vector<5x64xf32>
    %106 = tpu.matmul %104, %105, %cst_25 {dimension_numbers = #tpu.dot_dimension_numbers<[1], [0], [0], [1], [0, 0, 1, 1], [], []>} : vector<5x5xbf16>, vector<5x64xbf16>, vector<5x64xf32> -> vector<5x64xf32>
    %107 = vector.extract_strided_slice %1 {offsets = [0, 320], sizes = [5, 64], strides = [1, 1]} : vector<5x1152xf32> to vector<5x64xf32>
    %cst_26 = arith.constant 1.250000e-01 : f32
    %108 = vector.broadcast %cst_26 : f32 to vector<5x64xf32>
    %109 = arith.mulf %107, %108 : vector<5x64xf32>
    %110 = vector.extract_strided_slice %1 {offsets = [0, 704], sizes = [5, 64], strides = [1, 1]} : vector<5x1152xf32> to vector<5x64xf32>
    %111 = vector.extract_strided_slice %1 {offsets = [0, 1088], sizes = [5, 64], strides = [1, 1]} : vector<5x1152xf32> to vector<5x64xf32>
    %112 = arith.truncf %109 : vector<5x64xf32> to vector<5x64xbf16>
    %113 = arith.truncf %110 : vector<5x64xf32> to vector<5x64xbf16>
    "tpu.trace_start"() <{level = 10 : i32, message = "qd,kd->qk"}> : () -> ()
    %cst_27 = arith.constant dense<0.000000e+00> : vector<5x5xf32>
    %114 = tpu.matmul %112, %113, %cst_27 {dimension_numbers = #tpu.dot_dimension_numbers<[1], [1], [0], [0], [0, 0, 1, 0], [], []>} : vector<5x64xbf16>, vector<5x64xbf16>, vector<5x5xf32> -> vector<5x5xf32>
    "tpu.trace_stop"() : () -> ()
    %cst_28 = arith.constant dense<0xFF800000> : vector<5xf32>
    %115 = vector.multi_reduction <maximumf>, %114, %cst_28 [1] : vector<5x5xf32> to vector<5xf32>
    %116 = vector.shape_cast %115 : vector<5xf32> to vector<5x1xf32>
    %117 = vector.broadcast %116 : vector<5x1xf32> to vector<5x5xf32>
    %118 = arith.subf %114, %117 : vector<5x5xf32>
    %119 = math.exp %118 : vector<5x5xf32>
    %cst_29 = arith.constant dense<0.000000e+00> : vector<5xf32>
    %120 = vector.multi_reduction <add>, %119, %cst_29 [1] : vector<5x5xf32> to vector<5xf32>
    %121 = vector.shape_cast %120 : vector<5xf32> to vector<5x1xf32>
    %122 = tpu.reciprocal %121 {approx = true} : vector<5x1xf32> -> vector<5x1xf32>
    %123 = vector.broadcast %122 : vector<5x1xf32> to vector<5x5xf32>
    %124 = arith.mulf %119, %123 : vector<5x5xf32>
    %125 = arith.truncf %124 : vector<5x5xf32> to vector<5x5xbf16>
    %126 = arith.truncf %111 : vector<5x64xf32> to vector<5x64xbf16>
    %cst_30 = arith.constant dense<0.000000e+00> : vector<5x64xf32>
    %127 = tpu.matmul %125, %126, %cst_30 {dimension_numbers = #tpu.dot_dimension_numbers<[1], [0], [0], [1], [0, 0, 1, 1], [], []>} : vector<5x5xbf16>, vector<5x64xbf16>, vector<5x64xf32> -> vector<5x64xf32>
    %128 = tpu.concatenate %22, %43, %64, %85, %106, %127 in 1 : vector<5x64xf32>, vector<5x64xf32>, vector<5x64xf32>, vector<5x64xf32>, vector<5x64xf32>, vector<5x64xf32> -> vector<5x384xf32>
    %129 = arith.truncf %128 : vector<5x384xf32> to vector<5x384xbf16>
    %c0_31 = arith.constant 0 : index
    %c0_32 = arith.constant 0 : index
    %130 = vector.load %arg2[%c0_31, %c0_32] : memref<384x384xbf16, #tpu.memory_space<vmem>>, vector<384x384xbf16>
    %cst_33 = arith.constant dense<0.000000e+00> : vector<5x384xf32>
    %131 = tpu.matmul %129, %130, %cst_33 {dimension_numbers = #tpu.dot_dimension_numbers<[1], [0], [0], [1], [0, 0, 1, 1], [], []>} : vector<5x384xbf16>, vector<384x384xbf16>, vector<5x384xf32> -> vector<5x384xf32>
    %c0_34 = arith.constant 0 : index
    %c0_35 = arith.constant 0 : index
    %132 = vector.load %arg3[%c0_34, %c0_35] : memref<1x384xf32, #tpu.memory_space<vmem>>, vector<1x384xf32>
    %133 = vector.broadcast %132 : vector<1x384xf32> to vector<5x384xf32>
    %134 = arith.addf %131, %133 : vector<5x384xf32>
    %c0_36 = arith.constant 0 : index
    %c0_37 = arith.constant 0 : index
    %c0_38 = arith.constant 0 : index
    %135 = vector.load %arg5[%c0_36, %c0_37, %c0_38] : memref<1x5x384xf32, #tpu.memory_space<vmem>>, vector<1x5x384xf32>
    %136 = vector.shape_cast %135 : vector<1x5x384xf32> to vector<5x384xf32>
    %c0_39 = arith.constant 0 : index
    %c0_40 = arith.constant 0 : index
    %137 = vector.load %arg4[%c0_39, %c0_40] : memref<1x384xf32, #tpu.memory_space<vmem>>, vector<1x384xf32>
    %138 = vector.broadcast %137 : vector<1x384xf32> to vector<5x384xf32>
    %139 = arith.mulf %138, %134 : vector<5x384xf32>
    %140 = arith.addf %136, %139 : vector<5x384xf32>
    %c0_41 = arith.constant 0 : index
    %c0_42 = arith.constant 0 : index
    %c0_43 = arith.constant 0 : index
    %141 = vector.load %arg6[%c0_41, %c0_42, %c0_43] : memref<1x5x384xf32, #tpu.memory_space<vmem>>, vector<1x5x384xf32>
    %142 = vector.shape_cast %141 : vector<1x5x384xf32> to vector<5x384xf32>
    %143 = vector.shape_cast %140 : vector<5x384xf32> to vector<1x5x384xf32>
    tpu.vector_store %arg6[%c0_41, %c0_42, %c0_43], %143 {strides = array<i32>} : memref<1x5x384xf32, #tpu.memory_space<vmem>>, vector<1x5x384xf32>,
    return
  }
  func.func @transform_0(%arg0: i32) -> (i32, i32, i32) {
    %c0_i32 = arith.constant 0 : i32
    %c0_i32_0 = arith.constant 0 : i32
    %c0_i32_1 = arith.constant 0 : i32
    return %arg0, %c0_i32, %c0_i32_0 : i32, i32, i32
  }
  func.func @transform_1(%arg0: i32) -> (i32, i32) {
    %c0_i32 = arith.constant 0 : i32
    %c0_i32_0 = arith.constant 0 : i32
    %c0_i32_1 = arith.constant 0 : i32
    return %c0_i32, %c0_i32_0 : i32, i32
  }
  func.func @transform_2(%arg0: i32) -> (i32, i32) {
    %c0_i32 = arith.constant 0 : i32
    %c0_i32_0 = arith.constant 0 : i32
    %c0_i32_1 = arith.constant 0 : i32
    return %c0_i32, %c0_i32_0 : i32, i32
  }
  func.func @transform_3(%arg0: i32) -> (i32, i32) {
    %c0_i32 = arith.constant 0 : i32
    %c0_i32_0 = arith.constant 0 : i32
    %c0_i32_1 = arith.constant 0 : i32
    return %c0_i32, %c0_i32_0 : i32, i32
  }
  func.func @transform_4(%arg0: i32) -> (i32, i32, i32) {
    %c0_i32 = arith.constant 0 : i32
    %c0_i32_0 = arith.constant 0 : i32
    %c0_i32_1 = arith.constant 0 : i32
    return %arg0, %c0_i32, %c0_i32_0 : i32, i32, i32
  }
  func.func @transform_5(%arg0: i32) -> (i32, i32, i32) {
    %c0_i32 = arith.constant 0 : i32
    %c0_i32_0 = arith.constant 0 : i32
    %c0_i32_1 = arith.constant 0 : i32
    return %arg0, %c0_i32, %c0_i32_0 : i32, i32, i32
  }
}

module attributes {stable_mosaic.version = 11 : i64} {
  func.func @_ln_mlp_res_kernel(%arg0: i32, %arg1: memref<1x5x384xf32, #tpu.memory_space<vmem>>, %arg2: memref<1x384xf32, #tpu.memory_space<vmem>>, %arg3: memref<1x384xf32, #tpu.memory_space<vmem>>, %arg4: memref<384x1536xbf16, #tpu.memory_space<vmem>>, %arg5: memref<1x1536xf32, #tpu.memory_space<vmem>>, %arg6: memref<1536x384xbf16, #tpu.memory_space<vmem>>, %arg7: memref<1x384xf32, #tpu.memory_space<vmem>>, %arg8: memref<1x384xf32, #tpu.memory_space<vmem>>, %arg9: memref<1x5x384xf32, #tpu.memory_space<vmem>>) attributes {dimension_semantics = [#tpu.dimension_semantics<parallel>], iteration_bounds = array<i64: 2>, scalar_prefetch = 0 : i64, scratch_operands = 0 : i64, tpu.core_type = #tpu.core_type<tc>, window_params = [{transform_indices = @transform_0, window_bounds = array<i64: 1, 5, 384>}, {pipeline_mode = #tpu.pipeline_mode<synchronous>, transform_indices = @transform_1, window_bounds = array<i64: 1, 384>}, {pipeline_mode = #tpu.pipeline_mode<synchronous>, transform_indices = @transform_2, window_bounds = array<i64: 1, 384>}, {pipeline_mode = #tpu.pipeline_mode<synchronous>, transform_indices = @transform_3, window_bounds = array<i64: 384, 1536>}, {pipeline_mode = #tpu.pipeline_mode<synchronous>, transform_indices = @transform_4, window_bounds = array<i64: 1, 1536>}, {pipeline_mode = #tpu.pipeline_mode<synchronous>, transform_indices = @transform_5, window_bounds = array<i64: 1536, 384>}, {pipeline_mode = #tpu.pipeline_mode<synchronous>, transform_indices = @transform_6, window_bounds = array<i64: 1, 384>}, {pipeline_mode = #tpu.pipeline_mode<synchronous>, transform_indices = @transform_7, window_bounds = array<i64: 1, 384>}, {transform_indices = @transform_8, window_bounds = array<i64: 1, 5, 384>}]} {
    %c0 = arith.constant 0 : index
    %c0_0 = arith.constant 0 : index
    %c0_1 = arith.constant 0 : index
    %0 = vector.load %arg1[%c0, %c0_0, %c0_1] : memref<1x5x384xf32, #tpu.memory_space<vmem>>, vector<1x5x384xf32>
    %1 = vector.shape_cast %0 : vector<1x5x384xf32> to vector<5x384xf32>
    %c0_2 = arith.constant 0 : index
    %c0_3 = arith.constant 0 : index
    %2 = vector.load %arg2[%c0_2, %c0_3] : memref<1x384xf32, #tpu.memory_space<vmem>>, vector<1x384xf32>
    %c0_4 = arith.constant 0 : index
    %c0_5 = arith.constant 0 : index
    %3 = vector.load %arg3[%c0_4, %c0_5] : memref<1x384xf32, #tpu.memory_space<vmem>>, vector<1x384xf32>
    %cst = arith.constant dense<0.000000e+00> : vector<5xf32>
    %4 = vector.multi_reduction <add>, %1, %cst [1] : vector<5x384xf32> to vector<5xf32>
    %5 = vector.shape_cast %4 : vector<5xf32> to vector<5x1xf32>
    %cst_6 = arith.constant 3.840000e+02 : f32
    %6 = vector.broadcast %cst_6 : f32 to vector<5x1xf32>
    %7 = arith.divf %5, %6 : vector<5x1xf32>
    %8 = vector.broadcast %7 : vector<5x1xf32> to vector<5x384xf32>
    %9 = arith.subf %1, %8 : vector<5x384xf32>
    %10 = arith.mulf %9, %9 : vector<5x384xf32>
    %cst_7 = arith.constant dense<0.000000e+00> : vector<5xf32>
    %11 = vector.multi_reduction <add>, %10, %cst_7 [1] : vector<5x384xf32> to vector<5xf32>
    %12 = vector.shape_cast %11 : vector<5xf32> to vector<5x1xf32>
    %cst_8 = arith.constant 3.840000e+02 : f32
    %13 = vector.broadcast %cst_8 : f32 to vector<5x1xf32>
    %14 = arith.divf %12, %13 : vector<5x1xf32>
    %cst_9 = arith.constant 9.99999997E-7 : f32
    %15 = vector.broadcast %cst_9 : f32 to vector<5x1xf32>
    %16 = arith.addf %14, %15 : vector<5x1xf32>
    %17 = math.rsqrt %16 : vector<5x1xf32>
    %18 = vector.broadcast %17 : vector<5x1xf32> to vector<5x384xf32>
    %19 = arith.mulf %9, %18 : vector<5x384xf32>
    %20 = vector.broadcast %2 : vector<1x384xf32> to vector<5x384xf32>
    %21 = arith.mulf %19, %20 : vector<5x384xf32>
    %22 = vector.broadcast %3 : vector<1x384xf32> to vector<5x384xf32>
    %23 = arith.addf %21, %22 : vector<5x384xf32>
    %24 = arith.truncf %23 : vector<5x384xf32> to vector<5x384xbf16>
    %c0_10 = arith.constant 0 : index
    %c0_11 = arith.constant 0 : index
    %25 = vector.load %arg4[%c0_10, %c0_11] : memref<384x1536xbf16, #tpu.memory_space<vmem>>, vector<384x1536xbf16>
    %cst_12 = arith.constant dense<0.000000e+00> : vector<5x1536xf32>
    %26 = tpu.matmul %24, %25, %cst_12 {dimension_numbers = #tpu.dot_dimension_numbers<[1], [0], [0], [1], [0, 0, 1, 1], [], []>} : vector<5x384xbf16>, vector<384x1536xbf16>, vector<5x1536xf32> -> vector<5x1536xf32>
    %c0_13 = arith.constant 0 : index
    %c0_14 = arith.constant 0 : index
    %27 = vector.load %arg5[%c0_13, %c0_14] : memref<1x1536xf32, #tpu.memory_space<vmem>>, vector<1x1536xf32>
    %28 = vector.broadcast %27 : vector<1x1536xf32> to vector<5x1536xf32>
    %29 = arith.addf %26, %28 : vector<5x1536xf32>
    %cst_15 = arith.constant 5.000000e-01 : f32
    %30 = vector.broadcast %cst_15 : f32 to vector<5x1536xf32>
    %31 = arith.mulf %30, %29 : vector<5x1536xf32>
    %cst_16 = arith.constant 0.707106769 : f32
    %32 = vector.broadcast %cst_16 : f32 to vector<5x1536xf32>
    %33 = arith.mulf %29, %32 : vector<5x1536xf32>
    %cst_17 = arith.constant 0.000000e+00 : f32
    %34 = vector.broadcast %cst_17 : f32 to vector<5x1536xf32>
    %35 = arith.cmpf oge, %33, %34 : vector<5x1536xf32>
    %cst_18 = arith.constant 0.000000e+00 : f32
    %36 = vector.broadcast %cst_18 : f32 to vector<5x1536xf32>
    %37 = arith.subf %36, %33 : vector<5x1536xf32>
    %38 = arith.select %35, %33, %37 : vector<5x1536xi1>, vector<5x1536xf32>
    %cst_19 = arith.constant 0.327591091 : f32
    %39 = vector.broadcast %cst_19 : f32 to vector<5x1536xf32>
    %40 = arith.mulf %39, %38 : vector<5x1536xf32>
    %cst_20 = arith.constant 1.000000e+00 : f32
    %41 = vector.broadcast %cst_20 : f32 to vector<5x1536xf32>
    %42 = arith.addf %41, %40 : vector<5x1536xf32>
    %cst_21 = arith.constant 1.000000e+00 : f32
    %43 = vector.broadcast %cst_21 : f32 to vector<5x1536xf32>
    %44 = arith.divf %43, %42 : vector<5x1536xf32>
    %cst_22 = arith.constant 1.06140542 : f32
    %45 = vector.broadcast %cst_22 : f32 to vector<5x1536xf32>
    %46 = arith.mulf %45, %44 : vector<5x1536xf32>
    %cst_23 = arith.constant -1.45315206 : f32
    %47 = vector.broadcast %cst_23 : f32 to vector<5x1536xf32>
    %48 = arith.addf %46, %47 : vector<5x1536xf32>
    %49 = arith.mulf %48, %44 : vector<5x1536xf32>
    %cst_24 = arith.constant 1.42141378 : f32
    %50 = vector.broadcast %cst_24 : f32 to vector<5x1536xf32>
    %51 = arith.addf %49, %50 : vector<5x1536xf32>
    %52 = arith.mulf %51, %44 : vector<5x1536xf32>
    %cst_25 = arith.constant -0.284496725 : f32
    %53 = vector.broadcast %cst_25 : f32 to vector<5x1536xf32>
    %54 = arith.addf %52, %53 : vector<5x1536xf32>
    %55 = arith.mulf %54, %44 : vector<5x1536xf32>
    %cst_26 = arith.constant 0.254829586 : f32
    %56 = vector.broadcast %cst_26 : f32 to vector<5x1536xf32>
    %57 = arith.addf %55, %56 : vector<5x1536xf32>
    %58 = arith.mulf %57, %44 : vector<5x1536xf32>
    %cst_27 = arith.constant 0.000000e+00 : f32
    %59 = vector.broadcast %cst_27 : f32 to vector<5x1536xf32>
    %60 = arith.subf %59, %38 : vector<5x1536xf32>
    %61 = arith.mulf %60, %38 : vector<5x1536xf32>
    %62 = math.exp %61 : vector<5x1536xf32>
    %63 = arith.mulf %58, %62 : vector<5x1536xf32>
    %cst_28 = arith.constant 1.000000e+00 : f32
    %64 = vector.broadcast %cst_28 : f32 to vector<5x1536xf32>
    %65 = arith.subf %64, %63 : vector<5x1536xf32>
    %cst_29 = arith.constant 0.000000e+00 : f32
    %66 = vector.broadcast %cst_29 : f32 to vector<5x1536xf32>
    %67 = arith.cmpf oge, %33, %66 : vector<5x1536xf32>
    %cst_30 = arith.constant 0.000000e+00 : f32
    %68 = vector.broadcast %cst_30 : f32 to vector<5x1536xf32>
    %69 = arith.subf %68, %65 : vector<5x1536xf32>
    %70 = arith.select %67, %65, %69 : vector<5x1536xi1>, vector<5x1536xf32>
    %cst_31 = arith.constant 1.000000e+00 : f32
    %71 = vector.broadcast %cst_31 : f32 to vector<5x1536xf32>
    %72 = arith.addf %71, %70 : vector<5x1536xf32>
    %73 = arith.mulf %31, %72 : vector<5x1536xf32>
    %74 = arith.truncf %73 : vector<5x1536xf32> to vector<5x1536xbf16>
    %c0_32 = arith.constant 0 : index
    %c0_33 = arith.constant 0 : index
    %75 = vector.load %arg6[%c0_32, %c0_33] : memref<1536x384xbf16, #tpu.memory_space<vmem>>, vector<1536x384xbf16>
    %cst_34 = arith.constant dense<0.000000e+00> : vector<5x384xf32>
    %76 = tpu.matmul %74, %75, %cst_34 {dimension_numbers = #tpu.dot_dimension_numbers<[1], [0], [0], [1], [0, 0, 1, 1], [], []>} : vector<5x1536xbf16>, vector<1536x384xbf16>, vector<5x384xf32> -> vector<5x384xf32>
    %c0_35 = arith.constant 0 : index
    %c0_36 = arith.constant 0 : index
    %77 = vector.load %arg7[%c0_35, %c0_36] : memref<1x384xf32, #tpu.memory_space<vmem>>, vector<1x384xf32>
    %78 = vector.broadcast %77 : vector<1x384xf32> to vector<5x384xf32>
    %79 = arith.addf %76, %78 : vector<5x384xf32>
    %c0_37 = arith.constant 0 : index
    %c0_38 = arith.constant 0 : index
    %80 = vector.load %arg8[%c0_37, %c0_38] : memref<1x384xf32, #tpu.memory_space<vmem>>, vector<1x384xf32>
    %81 = vector.broadcast %80 : vector<1x384xf32> to vector<5x384xf32>
    %82 = arith.mulf %81, %79 : vector<5x384xf32>
    %83 = arith.addf %1, %82 : vector<5x384xf32>
    %c0_39 = arith.constant 0 : index
    %c0_40 = arith.constant 0 : index
    %c0_41 = arith.constant 0 : index
    %84 = vector.load %arg9[%c0_39, %c0_40, %c0_41] : memref<1x5x384xf32, #tpu.memory_space<vmem>>, vector<1x5x384xf32>
    %85 = vector.shape_cast %84 : vector<1x5x384xf32> to vector<5x384xf32>
    %86 = vector.shape_cast %83 : vector<5x384xf32> to vector<1x5x384xf32>
    tpu.vector_store %arg9[%c0_39, %c0_40, %c0_41], %86 {strides = array<i32>} : memref<1x5x384xf32, #tpu.memory_space<vmem>>, vector<1x5x384xf32>,
    return
  }
  func.func @transform_0(%arg0: i32) -> (i32, i32, i32) {
    %c0_i32 = arith.constant 0 : i32
    %c0_i32_0 = arith.constant 0 : i32
    %c0_i32_1 = arith.constant 0 : i32
    return %arg0, %c0_i32, %c0_i32_0 : i32, i32, i32
  }
  func.func @transform_1(%arg0: i32) -> (i32, i32) {
    %c0_i32 = arith.constant 0 : i32
    %c0_i32_0 = arith.constant 0 : i32
    %c0_i32_1 = arith.constant 0 : i32
    return %c0_i32, %c0_i32_0 : i32, i32
  }
  func.func @transform_2(%arg0: i32) -> (i32, i32) {
    %c0_i32 = arith.constant 0 : i32
    %c0_i32_0 = arith.constant 0 : i32
    %c0_i32_1 = arith.constant 0 : i32
    return %c0_i32, %c0_i32_0 : i32, i32
  }
  func.func @transform_3(%arg0: i32) -> (i32, i32) {
    %c0_i32 = arith.constant 0 : i32
    %c0_i32_0 = arith.constant 0 : i32
    %c0_i32_1 = arith.constant 0 : i32
    return %c0_i32, %c0_i32_0 : i32, i32
  }
  func.func @transform_4(%arg0: i32) -> (i32, i32) {
    %c0_i32 = arith.constant 0 : i32
    %c0_i32_0 = arith.constant 0 : i32
    %c0_i32_1 = arith.constant 0 : i32
    return %c0_i32, %c0_i32_0 : i32, i32
  }
  func.func @transform_5(%arg0: i32) -> (i32, i32) {
    %c0_i32 = arith.constant 0 : i32
    %c0_i32_0 = arith.constant 0 : i32
    %c0_i32_1 = arith.constant 0 : i32
    return %c0_i32, %c0_i32_0 : i32, i32
  }
  func.func @transform_6(%arg0: i32) -> (i32, i32) {
    %c0_i32 = arith.constant 0 : i32
    %c0_i32_0 = arith.constant 0 : i32
    %c0_i32_1 = arith.constant 0 : i32
    return %c0_i32, %c0_i32_0 : i32, i32
  }
  func.func @transform_7(%arg0: i32) -> (i32, i32) {
    %c0_i32 = arith.constant 0 : i32
    %c0_i32_0 = arith.constant 0 : i32
    %c0_i32_1 = arith.constant 0 : i32
    return %c0_i32, %c0_i32_0 : i32, i32
  }
  func.func @transform_8(%arg0: i32) -> (i32, i32, i32) {
    %c0_i32 = arith.constant 0 : i32
    %c0_i32_0 = arith.constant 0 : i32
    %c0_i32_1 = arith.constant 0 : i32
    return %arg0, %c0_i32, %c0_i32_0 : i32, i32, i32
  }
}

module attributes {stable_mosaic.version = 11 : i64} {
  func.func @_head_kernel(%arg0: memref<2x384xf32, #tpu.memory_space<vmem>>, %arg1: memref<1x384xf32, #tpu.memory_space<vmem>>, %arg2: memref<1x384xf32, #tpu.memory_space<vmem>>, %arg3: memref<384x256xbf16, #tpu.memory_space<vmem>>, %arg4: memref<1x256xf32, #tpu.memory_space<vmem>>, %arg5: memref<256x10xbf16, #tpu.memory_space<vmem>>, %arg6: memref<1x10xf32, #tpu.memory_space<vmem>>, %arg7: memref<2x10xf32, #tpu.memory_space<vmem>>) attributes {dimension_semantics = [], scalar_prefetch = 0 : i64, scratch_operands = 0 : i64, tpu.core_type = #tpu.core_type<tc>} {
    %c0 = arith.constant 0 : index
    %c0_0 = arith.constant 0 : index
    %0 = vector.load %arg0[%c0, %c0_0] : memref<2x384xf32, #tpu.memory_space<vmem>>, vector<2x384xf32>
    %c0_1 = arith.constant 0 : index
    %c0_2 = arith.constant 0 : index
    %1 = vector.load %arg1[%c0_1, %c0_2] : memref<1x384xf32, #tpu.memory_space<vmem>>, vector<1x384xf32>
    %c0_3 = arith.constant 0 : index
    %c0_4 = arith.constant 0 : index
    %2 = vector.load %arg2[%c0_3, %c0_4] : memref<1x384xf32, #tpu.memory_space<vmem>>, vector<1x384xf32>
    %cst = arith.constant dense<0.000000e+00> : vector<2xf32>
    %3 = vector.multi_reduction <add>, %0, %cst [1] : vector<2x384xf32> to vector<2xf32>
    %4 = vector.shape_cast %3 : vector<2xf32> to vector<2x1xf32>
    %cst_5 = arith.constant 3.840000e+02 : f32
    %5 = vector.broadcast %cst_5 : f32 to vector<2x1xf32>
    %6 = arith.divf %4, %5 : vector<2x1xf32>
    %7 = vector.broadcast %6 : vector<2x1xf32> to vector<2x384xf32>
    %8 = arith.subf %0, %7 : vector<2x384xf32>
    %9 = arith.mulf %8, %8 : vector<2x384xf32>
    %cst_6 = arith.constant dense<0.000000e+00> : vector<2xf32>
    %10 = vector.multi_reduction <add>, %9, %cst_6 [1] : vector<2x384xf32> to vector<2xf32>
    %11 = vector.shape_cast %10 : vector<2xf32> to vector<2x1xf32>
    %cst_7 = arith.constant 3.840000e+02 : f32
    %12 = vector.broadcast %cst_7 : f32 to vector<2x1xf32>
    %13 = arith.divf %11, %12 : vector<2x1xf32>
    %cst_8 = arith.constant 9.99999997E-7 : f32
    %14 = vector.broadcast %cst_8 : f32 to vector<2x1xf32>
    %15 = arith.addf %13, %14 : vector<2x1xf32>
    %16 = math.rsqrt %15 : vector<2x1xf32>
    %17 = vector.broadcast %16 : vector<2x1xf32> to vector<2x384xf32>
    %18 = arith.mulf %8, %17 : vector<2x384xf32>
    %19 = vector.broadcast %1 : vector<1x384xf32> to vector<2x384xf32>
    %20 = arith.mulf %18, %19 : vector<2x384xf32>
    %21 = vector.broadcast %2 : vector<1x384xf32> to vector<2x384xf32>
    %22 = arith.addf %20, %21 : vector<2x384xf32>
    %c0_9 = arith.constant 0 : index
    %c0_10 = arith.constant 0 : index
    %23 = vector.load %arg1[%c0_9, %c0_10] : memref<1x384xf32, #tpu.memory_space<vmem>>, vector<1x384xf32>
    %c0_11 = arith.constant 0 : index
    %c0_12 = arith.constant 0 : index
    %24 = vector.load %arg2[%c0_11, %c0_12] : memref<1x384xf32, #tpu.memory_space<vmem>>, vector<1x384xf32>
    %cst_13 = arith.constant dense<0.000000e+00> : vector<2xf32>
    %25 = vector.multi_reduction <add>, %22, %cst_13 [1] : vector<2x384xf32> to vector<2xf32>
    %26 = vector.shape_cast %25 : vector<2xf32> to vector<2x1xf32>
    %cst_14 = arith.constant 3.840000e+02 : f32
    %27 = vector.broadcast %cst_14 : f32 to vector<2x1xf32>
    %28 = arith.divf %26, %27 : vector<2x1xf32>
    %29 = vector.broadcast %28 : vector<2x1xf32> to vector<2x384xf32>
    %30 = arith.subf %22, %29 : vector<2x384xf32>
    %31 = arith.mulf %30, %30 : vector<2x384xf32>
    %cst_15 = arith.constant dense<0.000000e+00> : vector<2xf32>
    %32 = vector.multi_reduction <add>, %31, %cst_15 [1] : vector<2x384xf32> to vector<2xf32>
    %33 = vector.shape_cast %32 : vector<2xf32> to vector<2x1xf32>
    %cst_16 = arith.constant 3.840000e+02 : f32
    %34 = vector.broadcast %cst_16 : f32 to vector<2x1xf32>
    %35 = arith.divf %33, %34 : vector<2x1xf32>
    %cst_17 = arith.constant 9.99999997E-7 : f32
    %36 = vector.broadcast %cst_17 : f32 to vector<2x1xf32>
    %37 = arith.addf %35, %36 : vector<2x1xf32>
    %38 = math.rsqrt %37 : vector<2x1xf32>
    %39 = vector.broadcast %38 : vector<2x1xf32> to vector<2x384xf32>
    %40 = arith.mulf %30, %39 : vector<2x384xf32>
    %41 = vector.broadcast %23 : vector<1x384xf32> to vector<2x384xf32>
    %42 = arith.mulf %40, %41 : vector<2x384xf32>
    %43 = vector.broadcast %24 : vector<1x384xf32> to vector<2x384xf32>
    %44 = arith.addf %42, %43 : vector<2x384xf32>
    %45 = arith.truncf %44 : vector<2x384xf32> to vector<2x384xbf16>
    %c0_18 = arith.constant 0 : index
    %c0_19 = arith.constant 0 : index
    %46 = vector.load %arg3[%c0_18, %c0_19] : memref<384x256xbf16, #tpu.memory_space<vmem>>, vector<384x256xbf16>
    %cst_20 = arith.constant dense<0.000000e+00> : vector<2x256xf32>
    %47 = tpu.matmul %45, %46, %cst_20 {dimension_numbers = #tpu.dot_dimension_numbers<[1], [0], [0], [1], [0, 0, 1, 1], [], []>} : vector<2x384xbf16>, vector<384x256xbf16>, vector<2x256xf32> -> vector<2x256xf32>
    %c0_21 = arith.constant 0 : index
    %c0_22 = arith.constant 0 : index
    %48 = vector.load %arg4[%c0_21, %c0_22] : memref<1x256xf32, #tpu.memory_space<vmem>>, vector<1x256xf32>
    %49 = vector.broadcast %48 : vector<1x256xf32> to vector<2x256xf32>
    %50 = arith.addf %47, %49 : vector<2x256xf32>
    %cst_23 = arith.constant 0.000000e+00 : f32
    %51 = vector.broadcast %cst_23 : f32 to vector<2x256xf32>
    %52 = arith.maximumf %50, %51 : vector<2x256xf32>
    %53 = arith.truncf %52 : vector<2x256xf32> to vector<2x256xbf16>
    %c0_24 = arith.constant 0 : index
    %c0_25 = arith.constant 0 : index
    %54 = vector.load %arg5[%c0_24, %c0_25] : memref<256x10xbf16, #tpu.memory_space<vmem>>, vector<256x10xbf16>
    %cst_26 = arith.constant dense<0.000000e+00> : vector<2x10xf32>
    %55 = tpu.matmul %53, %54, %cst_26 {dimension_numbers = #tpu.dot_dimension_numbers<[1], [0], [0], [1], [0, 0, 1, 1], [], []>} : vector<2x256xbf16>, vector<256x10xbf16>, vector<2x10xf32> -> vector<2x10xf32>
    %c0_27 = arith.constant 0 : index
    %c0_28 = arith.constant 0 : index
    %56 = vector.load %arg6[%c0_27, %c0_28] : memref<1x10xf32, #tpu.memory_space<vmem>>, vector<1x10xf32>
    %57 = vector.broadcast %56 : vector<1x10xf32> to vector<2x10xf32>
    %58 = arith.addf %55, %57 : vector<2x10xf32>
    %c0_29 = arith.constant 0 : index
    %c0_30 = arith.constant 0 : index
    %59 = vector.load %arg7[%c0_29, %c0_30] : memref<2x10xf32, #tpu.memory_space<vmem>>, vector<2x10xf32>
    tpu.vector_store %arg7[%c0_29, %c0_30], %58 {strides = array<i32>} : memref<2x10xf32, #tpu.memory_space<vmem>>, vector<2x10xf32>,
    return
  }
}

</mosaic_0001>

<llo_original>
// kernel: forward.2
$region0: #{forward.2}
  #allocation0 [shape = 'u32[]', space=smem, size = 0x4, offset = 0x4, fixed_abs, tag = 'smem constant byte address 0x4 - core index']
  #allocation1 [shape = 'u32[144,128]{1,0:T(1,128)}', space=vmem, size = 0x12000, scoped, tag = 'internal scratch']
  %s0 = inlined_call_operand.vmem [shape: f32[2,4,588], index: 0, kind: input, shape index: {}]
  %s1 = inlined_call_operand.hbm [shape: bf16[588,384], index: 1, kind: input, shape index: {}]
  %s2 = inlined_call_operand.vmem [shape: f32[1,384], index: 2, kind: input, shape index: {}]
  %s3 = inlined_call_operand.vmem [shape: f32[2,4,384], index: 3, kind: output, shape index: {}]
  %s4 = sld [smem:[#allocation0]]
  $region49: #{forward.2} parent=0
    _
  %s6 = ssub.s32 1, %s4
  %s7 = scalar_select 0, %s6, %s4
  $region1: #{forward.2} parent=0
    #allocation2 [shape = 'u8[454656]{0}', space=vmem, size = 0x6f000, scoped, tag = 'input window, operand 1, single buffered']
    #allocation3 [shape = 's32[2]{0}', space=sflag, size = 0x8, scoped, tag = 'scoped memory for forward.2']
    %8 = vsyncpa [#allocation3], 0
    loop: start=0, step=1, limit=4
    $region2: #{forward.2} parent=1 // loop_pre_header
      _
    $region3: #{forward.2} parent=1 // loop_header
      %s10 = sphi 0, %s14
      %p11 = scmp.ge.s32.totalorder %s10, 4
      %s20 = sphi 0, %s22
      %s23 = sphi 0, %s20
      %s24 = sphi 0, %s23
      %s40 = sphi 0, %s24
      %s44 = sphi 0, %s44
      %s46 = sphi 0, %s44
      %s47 = sphi 0, %s46
      %s61 = sphi 0, %s47
      %s65 = sphi 0, %s65
      %s67 = sphi 0, %s65
      %s68 = sphi 0, %s67
      %s82 = sphi 0, %s68
      %s88 = sphi 0, %s90
      %s91 = sphi 0, %s88
      %s92 = sphi 0, %s91
      %s108 = sphi 0, %s92
    $region4: #{forward.2} parent=1 // loop_header_branch
      %13 = sbr.rel (%p11) target = $region8
    $region5: #{forward.2} parent=1 // loop_body
      %s15 = ssub.s32 %s10, 1
      %s16 = ssub.s32 %s10, 2
      %s17 = sadd.s32 %s10, 1
      %s18 = ssub.s32 %s10, %s17
      %p19 = scmp.eq.s32.totalorder %s18, 0
      %s21 = sadd.s32 %s20, 1
      %s22 = scalar_select %p19, %s20, %s21
      %p25 = pneg %p19
      %p26 = scmp.eq.s32.totalorder %s10, 1
      %p27 = por %p25, %p26
      %p28 = scmp.ne.s32.totalorder %s20, %s23
      %p29 = scmp.eq.s32.totalorder %s10, 0
      %p30 = por %p28, %p29
      %p31 = scmp.ne.s32.totalorder %s20, %s23
      %p32 = scmp.eq.s32.totalorder %s15, 1
      %p33 = por %p31, %p32
      %p34 = scmp.ne.s32.totalorder %s23, %s24
      %p35 = scmp.eq.s32.totalorder %s15, 0
      %p36 = por %p34, %p35
      %p37 = scmp.ne.s32.totalorder %s23, %s24
      %p38 = scmp.eq.s32.totalorder %s16, 1
      %p39 = por %p37, %p38
      %p41 = scmp.ne.s32.totalorder %s24, %s40
      %p42 = scmp.eq.s32.totalorder %s16, 0
      %p43 = por %p41, %p42
      %s45 = sadd.s32 %s44, 1
      %p48 = scmp.eq.s32.totalorder %s10, 1
      %p49 = scmp.ne.s32.totalorder %s44, %s46
      %p50 = scmp.eq.s32.totalorder %s10, 0
      %p51 = por %p49, %p50
      %p52 = scmp.ne.s32.totalorder %s44, %s46
      %p53 = scmp.eq.s32.totalorder %s15, 1
      %p54 = por %p52, %p53
      %p55 = scmp.ne.s32.totalorder %s46, %s47
      %p56 = scmp.eq.s32.totalorder %s15, 0
      %p57 = por %p55, %p56
      %p58 = scmp.ne.s32.totalorder %s46, %s47
      %p59 = scmp.eq.s32.totalorder %s16, 1
      %p60 = por %p58, %p59
      %p62 = scmp.ne.s32.totalorder %s47, %s61
      %p63 = scmp.eq.s32.totalorder %s16, 0
      %p64 = por %p62, %p63
      %s66 = sadd.s32 %s65, 1
      %p69 = scmp.eq.s32.totalorder %s10, 1
      %p70 = scmp.ne.s32.totalorder %s65, %s67
      %p71 = scmp.eq.s32.totalorder %s10, 0
      %p72 = por %p70, %p71
      %p73 = scmp.ne.s32.totalorder %s65, %s67
      %p74 = scmp.eq.s32.totalorder %s15, 1
      %p75 = por %p73, %p74
      %p76 = scmp.ne.s32.totalorder %s67, %s68
      %p77 = scmp.eq.s32.totalorder %s15, 0
      %p78 = por %p76, %p77
      %p79 = scmp.ne.s32.totalorder %s67, %s68
      %p80 = scmp.eq.s32.totalorder %s16, 1
      %p81 = por %p79, %p80
      %p83 = scmp.ne.s32.totalorder %s68, %s82
      %p84 = scmp.eq.s32.totalorder %s16, 0
      %p85 = por %p83, %p84
      %s86 = ssub.s32 %s10, %s17
      %p87 = scmp.eq.s32.totalorder %s86, 0
      %s89 = sadd.s32 %s88, 1
      %s90 = scalar_select %p87, %s88, %s89
      %p93 = pneg %p87
      %p94 = scmp.eq.s32.totalorder %s10, 1
      %p95 = por %p93, %p94
      %p96 = scmp.ne.s32.totalorder %s88, %s91
      %p97 = scmp.eq.s32.totalorder %s10, 0
      %p98 = por %p96, %p97
      %p99 = scmp.ne.s32.totalorder %s88, %s91
      %p100 = scmp.eq.s32.totalorder %s15, 1
      %p101 = por %p99, %p100
      %p102 = scmp.ne.s32.totalorder %s91, %s92
      %p103 = scmp.eq.s32.totalorder %s15, 0
      %p104 = por %p102, %p103
      %p105 = scmp.ne.s32.totalorder %s91, %s92
      %p106 = scmp.eq.s32.totalorder %s16, 1
      %p107 = por %p105, %p106
      %p109 = scmp.ne.s32.totalorder %s92, %s108
      %p110 = scmp.eq.s32.totalorder %s16, 0
      %p111 = por %p109, %p110
      %p112 = scmp.le.s32.totalorder 1, %s10
      %p113 = scmp.lt.s32.totalorder %s10, 3
      %p114 = pnand %p112, %p113
      %p115 = pneg %p114
      // Predicated region
      $region9: #{forward.2} parent=5 // pred_check
        _
      $region10: #{forward.2} parent=5 // pred_check_branch
        %117 = sbr.rel (%p114) target = $region12
      $region11: #{forward.2} parent=5 // pred_region
        %s118 = ssub.s32 %s10, 1
        // Predicated region
        $region13: #{forward.2} parent=11 // pred_check
          %p119 = pneg %p57
        $region14: #{forward.2} parent=11 // pred_check_branch
          %121 = sbr.rel (%p119) target = $region16
        $region15: #{forward.2} parent=11 // pred_region
          %s123 = ssub.s32 14208, 14208
          %124 = vsyncadd [#allocation3], %s123
          %s125 = sshll.u32 [#allocation2], 4
          %s126 = int_to_ptr.vmem [resolvable:$true] %s125
          %131 = dma.hbm_to_vmem [thread:$0]  %s1, 14208, %s126, [#allocation3], 192, 192, 12
        $region16: #{forward.2} parent=11 // pred_fallthru
          _
        // Predicated region
        $region17: #{forward.2} parent=11 // pred_check
          %p132 = pneg %p78
        $region18: #{forward.2} parent=11 // pred_check_branch
          %134 = sbr.rel (%p132) target = $region20
        $region19: #{forward.2} parent=11 // pred_region
          _
        $region20: #{forward.2} parent=11 // pred_fallthru
          _
      $region12: #{forward.2} parent=5 // pred_fallthru
        _
      %p135 = scmp.lt.s32.totalorder %s10, 2
      // Predicated region
      $region21: #{forward.2} parent=5 // pred_check
        %p136 = pneg %p135
      $region22: #{forward.2} parent=5 // pred_check_branch
        %138 = sbr.rel (%p136) target = $region24
      $region23: #{forward.2} parent=5 // pred_region
        // Predicated region
        $region25: #{forward.2} parent=23 // pred_check
          %p139 = pneg %p30
        $region26: #{forward.2} parent=23 // pred_check_branch
          %141 = sbr.rel (%p139) target = $region28
        $region27: #{forward.2} parent=23 // pred_region
          %p142 = scmp.lt.s32.totalorder %s10, 1
          %s143 = scalar_select %p142, %s10, 1
          %s144 = smul.addr %s143, 5
          %s145 = smul.addr %s144, 4
          %s146 = scalar_lea.vmem %s0, %s145
        $region28: #{forward.2} parent=23 // pred_fallthru
          _
      $region24: #{forward.2} parent=5 // pred_fallthru
        _
      %p147 = scmp.le.s32.totalorder 1, %s10
      %p148 = scmp.lt.s32.totalorder %s10, 3
      %p149 = pnand %p147, %p148
      %p150 = pneg %p149
      // Predicated region
      $region29: #{forward.2} parent=5 // pred_check
        _
      $region30: #{forward.2} parent=5 // pred_check_branch
        %152 = sbr.rel (%p149) target = $region32
      $region31: #{forward.2} parent=5 // pred_region
        %s153 = ssub.s32 %s10, 1
        // Predicated region
        $region33: #{forward.2} parent=31 // pred_check
          %p154 = pneg %p57
        $region34: #{forward.2} parent=31 // pred_check_branch
          %156 = sbr.rel (%p154) target = $region36
        $region35: #{forward.2} parent=31 // pred_region
          %157 = dma.done [#allocation3], 14208
        $region36: #{forward.2} parent=31 // pred_fallthru
          _
        %p158 = scmp.lt.s32.totalorder %s15, 1
        %s159 = scalar_select %p158, %s15, 1
        %s160 = smul.addr %s159, 5
        %s161 = smul.addr %s160, 4
        %s162 = scalar_lea.vmem %s0, %s161
        %p163 = pneg %p36
        %p164 = pneg %p33
        %p165 = pneg %p57
        %p166 = pneg %p54
        %p167 = pneg %p78
        %p168 = pneg %p75
        %p169 = pneg %p104
        %p170 = pneg %p101
        %p171 = scmp.lt.s32.totalorder %s15, 1
        %s172 = scalar_select %p171, %s15, 1
        %s173 = smul.addr %s172, 3
        %s174 = smul.addr %s173, 4
        %s175 = scalar_lea.vmem %s3, %s174
        %p176 = scmp.lt.s32.totalorder %s15, 1
        %s177 = scalar_select %p176, %s15, 1
        %s178 = smul.addr %s177, 5
        %s179 = smul.addr %s178, 4
        %s180 = scalar_lea.vmem %s0, %s179
        %p181 = scmp.lt.s32.totalorder %s15, 1
        %s182 = scalar_select %p181, %s15, 1
        %s183 = smul.addr %s182, 3
        %s184 = smul.addr %s183, 4
        %s185 = scalar_lea.vmem %s3, %s184
        %v187 = vld [vmem:[%s180] sm:$0xff]
        %v188 = vld [vmem:[%s180 + $0x8] sm:$0xff]
        %v189 = vld [vmem:[%s180 + $0x10] sm:$0xf]
        %v192 = vcombine.high %v187, %v187
        %v193 = vcombine.high %v188, %v188
        %v196 = vpack.c.bf16 %v187, %v187
        %v197 = vpack.c.bf16 %v192, %v192
        %v198 = vpack.c.bf16 %v188, %v188
        %v199 = vpack.c.bf16 %v193, %v193
        %v200 = vpack.c.bf16 %v189, %v189
        %v201 = vld [vmem:[#allocation2] sm:$0xff]
        %v202 = vld [vmem:[#allocation2 + $0x8] sm:$0xf]
        %v203 = vld [vmem:[#allocation2 + $0xc] sm:$0xff]
        %v204 = vld [vmem:[#allocation2 + $0x14] sm:$0xf]
        %v205 = vld [vmem:[#allocation2 + $0x18] sm:$0xff]
        %v206 = vld [vmem:[#allocation2 + $0x20] sm:$0xf]
        %v207 = vld [vmem:[#allocation2 + $0x24] sm:$0xff]
        %v208 = vld [vmem:[#allocation2 + $0x2c] sm:$0xf]
        %v209 = vld [vmem:[#allocation2 + $0x30] sm:$0xff]
        %v210 = vld [vmem:[#allocation2 + $0x38] sm:$0xf]
        %v211 = vld [vmem:[#allocation2 + $0x3c] sm:$0xff]
        %v212 = vld [vmem:[#allocation2 + $0x44] sm:$0xf]
        %v213 = vld [vmem:[#allocation2 + $0x48] sm:$0xff]
        %v214 = vld [vmem:[#allocation2 + $0x50] sm:$0xf]
        %v215 = vld [vmem:[#allocation2 + $0x54] sm:$0xff]
        %v216 = vld [vmem:[#allocation2 + $0x5c] sm:$0xf]
        %v217 = vld [vmem:[#allocation2 + $0x60] sm:$0xff]
        %v218 = vld [vmem:[#allocation2 + $0x68] sm:$0xf]
        %v219 = vld [vmem:[#allocation2 + $0x6c] sm:$0xff]
        %v220 = vld [vmem:[#allocation2 + $0x74] sm:$0xf]
        %v221 = vld [vmem:[#allocation2 + $0x78] sm:$0xff]
        %v222 = vld [vmem:[#allocation2 + $0x80] sm:$0xf]
        %v223 = vld [vmem:[#allocation2 + $0x84] sm:$0xff]
        %v224 = vld [vmem:[#allocation2 + $0x8c] sm:$0xf]
        %v225 = vld [vmem:[#allocation2 + $0x90] sm:$0xff]
        %v226 = vld [vmem:[#allocation2 + $0x98] sm:$0xf]
        %v227 = vld [vmem:[#allocation2 + $0x9c] sm:$0xff]
        %v228 = vld [vmem:[#allocation2 + $0xa4] sm:$0xf]
        %v229 = vld [vmem:[#allocation2 + $0xa8] sm:$0xff]
        %v230 = vld [vmem:[#allocation2 + $0xb0] sm:$0xf]
        %v231 = vld [vmem:[#allocation2 + $0xb4] sm:$0xff]
        %v232 = vld [vmem:[#allocation2 + $0xbc] sm:$0xf]
        %v233 = vld [vmem:[#allocation2 + $0xc0] sm:$0xff]
        %v234 = vld [vmem:[#allocation2 + $0xc8] sm:$0xf]
        %v235 = vld [vmem:[#allocation2 + $0xcc] sm:$0xff]
        %v236 = vld [vmem:[#allocation2 + $0xd4] sm:$0xf]
        %v237 = vld [vmem:[#allocation2 + $0xd8] sm:$0xff]
        %v238 = vld [vmem:[#allocation2 + $0xe0] sm:$0xf]
        %v239 = vld [vmem:[#allocation2 + $0xe4] sm:$0xff]
        %v240 = vld [vmem:[#allocation2 + $0xec] sm:$0xf]
        %v241 = vld [vmem:[#allocation2 + $0xf0] sm:$0xff]
        %v242 = vld [vmem:[#allocation2 + $0xf8] sm:$0xf]
        %v243 = vld [vmem:[#allocation2 + $0xfc] sm:$0xff]
        %v244 = vld [vmem:[#allocation2 + $0x104] sm:$0xf]
        %v245 = vld [vmem:[#allocation2 + $0x108] sm:$0xff]
        %v246 = vld [vmem:[#allocation2 + $0x110] sm:$0xf]
        %v247 = vld [vmem:[#allocation2 + $0x114] sm:$0xff]
        %v248 = vld [vmem:[#allocation2 + $0x11c] sm:$0xf]
        %v249 = vld [vmem:[#allocation2 + $0x120] sm:$0xff]
        %v250 = vld [vmem:[#allocation2 + $0x128] sm:$0xf]
        %v251 = vld [vmem:[#allocation2 + $0x12c] sm:$0xff]
        %v252 = vld [vmem:[#allocation2 + $0x134] sm:$0xf]
        %v253 = vld [vmem:[#allocation2 + $0x138] sm:$0xff]
        %v254 = vld [vmem:[#allocation2 + $0x140] sm:$0xf]
        %v255 = vld [vmem:[#allocation2 + $0x144] sm:$0xff]
        %v256 = vld [vmem:[#allocation2 + $0x14c] sm:$0xf]
        %v257 = vld [vmem:[#allocation2 + $0x150] sm:$0xff]
        %v258 = vld [vmem:[#allocation2 + $0x158] sm:$0xf]
        %v259 = vld [vmem:[#allocation2 + $0x15c] sm:$0xff]
        %v260 = vld [vmem:[#allocation2 + $0x164] sm:$0xf]
        %v261 = vld [vmem:[#allocation2 + $0x168] sm:$0xff]
        %v262 = vld [vmem:[#allocation2 + $0x170] sm:$0xf]
        %v263 = vld [vmem:[#allocation2 + $0x174] sm:$0xff]
        %v264 = vld [vmem:[#allocation2 + $0x17c] sm:$0xf]
        %v265 = vld [vmem:[#allocation2 + $0x180] sm:$0xff]
        %v266 = vld [vmem:[#allocation2 + $0x188] sm:$0xf]
        %v267 = vld [vmem:[#allocation2 + $0x18c] sm:$0xff]
        %v268 = vld [vmem:[#allocation2 + $0x194] sm:$0xf]
        %v269 = vld [vmem:[#allocation2 + $0x198] sm:$0xff]
        %v270 = vld [vmem:[#allocation2 + $0x1a0] sm:$0xf]
        %v271 = vld [vmem:[#allocation2 + $0x1a4] sm:$0xff]
        %v272 = vld [vmem:[#allocation2 + $0x1ac] sm:$0xf]
        %v273 = vld [vmem:[#allocation2 + $0x1b0] sm:$0xff]
        %v274 = vld [vmem:[#allocation2 + $0x1b8] sm:$0xf]
        %v275 = vld [vmem:[#allocation2 + $0x1bc] sm:$0xff]
        %v276 = vld [vmem:[#allocation2 + $0x1c4] sm:$0xf]
        %v277 = vld [vmem:[#allocation2 + $0x1c8] sm:$0xff]
        %v278 = vld [vmem:[#allocation2 + $0x1d0] sm:$0xf]
        %v279 = vld [vmem:[#allocation2 + $0x1d4] sm:$0xff]
        %v280 = vld [vmem:[#allocation2 + $0x1dc] sm:$0xf]
        %v281 = vld [vmem:[#allocation2 + $0x1e0] sm:$0xff]
        %v282 = vld [vmem:[#allocation2 + $0x1e8] sm:$0xf]
        %v283 = vld [vmem:[#allocation2 + $0x1ec] sm:$0xff]
        %v284 = vld [vmem:[#allocation2 + $0x1f4] sm:$0xf]
        %v285 = vld [vmem:[#allocation2 + $0x1f8] sm:$0xff]
        %v286 = vld [vmem:[#allocation2 + $0x200] sm:$0xf]
        %v287 = vld [vmem:[#allocation2 + $0x204] sm:$0xff]
        %v288 = vld [vmem:[#allocation2 + $0x20c] sm:$0xf]
        %v289 = vld [vmem:[#allocation2 + $0x210] sm:$0xff]
        %v290 = vld [vmem:[#allocation2 + $0x218] sm:$0xf]
        %v291 = vld [vmem:[#allocation2 + $0x21c] sm:$0xff]
        %v292 = vld [vmem:[#allocation2 + $0x224] sm:$0xf]
        %v293 = vld [vmem:[#allocation2 + $0x228] sm:$0xff]
        %v294 = vld [vmem:[#allocation2 + $0x230] sm:$0xf]
        %v295 = vld [vmem:[#allocation2 + $0x234] sm:$0xff]
        %v296 = vld [vmem:[#allocation2 + $0x23c] sm:$0xf]
        %v297 = vld [vmem:[#allocation2 + $0x240] sm:$0xff]
        %v298 = vld [vmem:[#allocation2 + $0x248] sm:$0xf]
        %v299 = vld [vmem:[#allocation2 + $0x24c] sm:$0xff]
        %v300 = vld [vmem:[#allocation2 + $0x254] sm:$0xf]
        %v301 = vld [vmem:[#allocation2 + $0x258] sm:$0xff]
        %v302 = vld [vmem:[#allocation2 + $0x260] sm:$0xf]
        %v303 = vld [vmem:[#allocation2 + $0x264] sm:$0xff]
        %v304 = vld [vmem:[#allocation2 + $0x26c] sm:$0xf]
        %v305 = vld [vmem:[#allocation2 + $0x270] sm:$0xff]
        %v306 = vld [vmem:[#allocation2 + $0x278] sm:$0xf]
        %v307 = vld [vmem:[#allocation2 + $0x27c] sm:$0xff]
        %v308 = vld [vmem:[#allocation2 + $0x284] sm:$0xf]
        %v309 = vld [vmem:[#allocation2 + $0x288] sm:$0xff]
        %v310 = vld [vmem:[#allocation2 + $0x290] sm:$0xf]
        %v311 = vld [vmem:[#allocation2 + $0x294] sm:$0xff]
        %v312 = vld [vmem:[#allocation2 + $0x29c] sm:$0xf]
        %v313 = vld [vmem:[#allocation2 + $0x2a0] sm:$0xff]
        %v314 = vld [vmem:[#allocation2 + $0x2a8] sm:$0xf]
        %v315 = vld [vmem:[#allocation2 + $0x2ac] sm:$0xff]
        %v316 = vld [vmem:[#allocation2 + $0x2b4] sm:$0xf]
        %v317 = vld [vmem:[#allocation2 + $0x2b8] sm:$0xff]
        %v318 = vld [vmem:[#allocation2 + $0x2c0] sm:$0xf]
        %v319 = vld [vmem:[#allocation2 + $0x2c4] sm:$0xff]
        %v320 = vld [vmem:[#allocation2 + $0x2cc] sm:$0xf]
        %v321 = vld [vmem:[#allocation2 + $0x2d0] sm:$0xff]
        %v322 = vld [vmem:[#allocation2 + $0x2d8] sm:$0xf]
        %v323 = vld [vmem:[#allocation2 + $0x2dc] sm:$0xff]
        %v324 = vld [vmem:[#allocation2 + $0x2e4] sm:$0xf]
        %v325 = vld [vmem:[#allocation2 + $0x2e8] sm:$0xff]
        %v326 = vld [vmem:[#allocation2 + $0x2f0] sm:$0xf]
        %v327 = vld [vmem:[#allocation2 + $0x2f4] sm:$0xff]
        %v328 = vld [vmem:[#allocation2 + $0x2fc] sm:$0xf]
        %v329 = vld [vmem:[#allocation2 + $0x300] sm:$0xff]
        %v330 = vld [vmem:[#allocation2 + $0x308] sm:$0xf]
        %v331 = vld [vmem:[#allocation2 + $0x30c] sm:$0xff]
        %v332 = vld [vmem:[#allocation2 + $0x314] sm:$0xf]
        %v333 = vld [vmem:[#allocation2 + $0x318] sm:$0xff]
        %v334 = vld [vmem:[#allocation2 + $0x320] sm:$0xf]
        %v335 = vld [vmem:[#allocation2 + $0x324] sm:$0xff]
        %v336 = vld [vmem:[#allocation2 + $0x32c] sm:$0xf]
        %v337 = vld [vmem:[#allocation2 + $0x330] sm:$0xff]
        %v338 = vld [vmem:[#allocation2 + $0x338] sm:$0xf]
        %v339 = vld [vmem:[#allocation2 + $0x33c] sm:$0xff]
        %v340 = vld [vmem:[#allocation2 + $0x344] sm:$0xf]
        %v341 = vld [vmem:[#allocation2 + $0x348] sm:$0xff]
        %v342 = vld [vmem:[#allocation2 + $0x350] sm:$0xf]
        %v343 = vld [vmem:[#allocation2 + $0x354] sm:$0xff]
        %v344 = vld [vmem:[#allocation2 + $0x35c] sm:$0xf]
        %v345 = vld [vmem:[#allocation2 + $0x360] sm:$0xff]
        %v346 = vld [vmem:[#allocation2 + $0x368] sm:$0xf]
        %v347 = vld [vmem:[#allocation2 + $0x36c] sm:$0x33]
        %v348 = vld [vmem:[#allocation2 + $0x374] sm:$0x3]
        %v349 = vld [vmem:[%s2] sm:$0x7]
        %v351 = vlaneseq
        %v352 = vshrl.u32 %v351, 7
        %v353 = vsub.s32 0, %v352
        %v354 = vrot.slane %v349, %v353
        %v355 = vlaneseq
        %v356 = vshrl.u32 %v355, 7
        %v357 = vsub.s32 1, %v356
        %v358 = vrot.slane %v349, %v357
        %v359 = vlaneseq
        %v360 = vshrl.u32 %v359, 7
        %v361 = vsub.s32 2, %v360
        %v362 = vrot.slane %v349, %v361
        %v514 = vunpack.c.l.b16 %v201
        %v515 = vunpack.c.h.b16 %v201
        %v516 = vunpack.c.l.b16 %v202
        %v517 = vunpack.c.l.b16 %v203
        %v518 = vunpack.c.h.b16 %v203
        %v519 = vunpack.c.l.b16 %v204
        %v520 = vunpack.c.l.b16 %v205
        %v521 = vunpack.c.h.b16 %v205
        %v522 = vunpack.c.l.b16 %v206
        %v523 = vunpack.c.l.b16 %v207
        %v524 = vunpack.c.h.b16 %v207
        %v525 = vunpack.c.l.b16 %v208
        %v526 = vunpack.c.l.b16 %v209
        %v527 = vunpack.c.h.b16 %v209
        %v528 = vunpack.c.l.b16 %v210
        %v529 = vunpack.c.l.b16 %v211
        %v530 = vunpack.c.h.b16 %v211
        %v531 = vunpack.c.l.b16 %v212
        %v532 = vunpack.c.l.b16 %v213
        %v533 = vunpack.c.h.b16 %v213
        %v534 = vunpack.c.l.b16 %v214
        %v535 = vunpack.c.l.b16 %v215
        %v536 = vunpack.c.h.b16 %v215
        %v537 = vunpack.c.l.b16 %v216
        %v538 = vunpack.c.l.b16 %v217
        %v539 = vunpack.c.h.b16 %v217
        %v540 = vunpack.c.l.b16 %v218
        %v541 = vunpack.c.l.b16 %v219
        %v542 = vunpack.c.h.b16 %v219
        %v543 = vunpack.c.l.b16 %v220
        %v544 = vunpack.c.l.b16 %v221
        %v545 = vunpack.c.h.b16 %v221
        %v546 = vunpack.c.l.b16 %v222
        %v547 = vunpack.c.l.b16 %v223
        %v548 = vunpack.c.h.b16 %v223
        %v549 = vunpack.c.l.b16 %v224
        %v550 = vunpack.c.l.b16 %v225
        %v551 = vunpack.c.h.b16 %v225
        %v552 = vunpack.c.l.b16 %v226
        %v553 = vunpack.c.l.b16 %v227
        %v554 = vunpack.c.h.b16 %v227
        %v555 = vunpack.c.l.b16 %v228
        %v556 = vunpack.c.l.b16 %v229
        %v557 = vunpack.c.h.b16 %v229
        %v558 = vunpack.c.l.b16 %v230
        %v559 = vunpack.c.l.b16 %v231
        %v560 = vunpack.c.h.b16 %v231
        %v561 = vunpack.c.l.b16 %v232
        %v562 = vunpack.c.l.b16 %v233
        %v563 = vunpack.c.h.b16 %v233
        %v564 = vunpack.c.l.b16 %v234
        %v565 = vunpack.c.l.b16 %v235
        %v566 = vunpack.c.h.b16 %v235
        %v567 = vunpack.c.l.b16 %v236
        %v568 = vunpack.c.l.b16 %v237
        %v569 = vunpack.c.h.b16 %v237
        %v570 = vunpack.c.l.b16 %v238
        %v571 = vunpack.c.l.b16 %v239
        %v572 = vunpack.c.h.b16 %v239
        %v573 = vunpack.c.l.b16 %v240
        %v574 = vunpack.c.l.b16 %v241
        %v575 = vunpack.c.h.b16 %v241
        %v576 = vunpack.c.l.b16 %v242
        %v577 = vunpack.c.l.b16 %v243
        %v578 = vunpack.c.h.b16 %v243
        %v579 = vunpack.c.l.b16 %v244
        %v580 = vunpack.c.l.b16 %v245
        %v581 = vunpack.c.h.b16 %v245
        %v582 = vunpack.c.l.b16 %v246
        %v583 = vunpack.c.l.b16 %v247
        %v584 = vunpack.c.h.b16 %v247
        %v585 = vunpack.c.l.b16 %v248
        %v586 = vunpack.c.l.b16 %v249
        %v587 = vunpack.c.h.b16 %v249
        %v588 = vunpack.c.l.b16 %v250
        %v589 = vunpack.c.l.b16 %v251
        %v590 = vunpack.c.h.b16 %v251
        %v591 = vunpack.c.l.b16 %v252
        %v592 = vunpack.c.l.b16 %v253
        %v593 = vunpack.c.h.b16 %v253
        %v594 = vunpack.c.l.b16 %v254
        %v595 = vunpack.c.l.b16 %v255
        %v596 = vunpack.c.h.b16 %v255
        %v597 = vunpack.c.l.b16 %v256
        %v598 = vunpack.c.l.b16 %v257
        %v599 = vunpack.c.h.b16 %v257
        %v600 = vunpack.c.l.b16 %v258
        %v601 = vunpack.c.l.b16 %v259
        %v602 = vunpack.c.h.b16 %v259
        %v603 = vunpack.c.l.b16 %v260
        %v604 = vunpack.c.l.b16 %v261
        %v605 = vunpack.c.h.b16 %v261
        %v606 = vunpack.c.l.b16 %v262
        %v607 = vunpack.c.l.b16 %v263
        %v608 = vunpack.c.h.b16 %v263
        %v609 = vunpack.c.l.b16 %v264
        %v610 = vunpack.c.l.b16 %v265
        %v611 = vunpack.c.h.b16 %v265
        %v612 = vunpack.c.l.b16 %v266
        %v613 = vunpack.c.l.b16 %v267
        %v614 = vunpack.c.h.b16 %v267
        %v615 = vunpack.c.l.b16 %v268
        %v616 = vunpack.c.l.b16 %v269
        %v617 = vunpack.c.h.b16 %v269
        %v618 = vunpack.c.l.b16 %v270
        %v619 = vunpack.c.l.b16 %v271
        %v620 = vunpack.c.h.b16 %v271
        %v621 = vunpack.c.l.b16 %v272
        %v622 = vunpack.c.l.b16 %v273
        %v623 = vunpack.c.h.b16 %v273
        %v624 = vunpack.c.l.b16 %v274
        %v625 = vunpack.c.l.b16 %v275
        %v626 = vunpack.c.h.b16 %v275
        %v627 = vunpack.c.l.b16 %v276
        %v628 = vunpack.c.l.b16 %v277
        %v629 = vunpack.c.h.b16 %v277
        %v630 = vunpack.c.l.b16 %v278
        %v631 = vunpack.c.l.b16 %v279
        %v632 = vunpack.c.h.b16 %v279
        %v633 = vunpack.c.l.b16 %v280
        %v634 = vunpack.c.l.b16 %v281
        %v635 = vunpack.c.h.b16 %v281
        %v636 = vunpack.c.l.b16 %v282
        %v637 = vunpack.c.l.b16 %v283
        %v638 = vunpack.c.h.b16 %v283
        %v639 = vunpack.c.l.b16 %v284
        %v640 = vunpack.c.l.b16 %v285
        %v641 = vunpack.c.h.b16 %v285
        %v642 = vunpack.c.l.b16 %v286
        %v643 = vunpack.c.l.b16 %v287
        %v644 = vunpack.c.h.b16 %v287
        %v645 = vunpack.c.l.b16 %v288
        %v646 = vunpack.c.l.b16 %v289
        %v647 = vunpack.c.h.b16 %v289
        %v648 = vunpack.c.l.b16 %v290
        %v649 = vunpack.c.l.b16 %v291
        %v650 = vunpack.c.h.b16 %v291
        %v651 = vunpack.c.l.b16 %v292
        %v652 = vunpack.c.l.b16 %v293
        %v653 = vunpack.c.h.b16 %v293
        %v654 = vunpack.c.l.b16 %v294
        %v655 = vunpack.c.l.b16 %v295
        %v656 = vunpack.c.h.b16 %v295
        %v657 = vunpack.c.l.b16 %v296
        %v658 = vunpack.c.l.b16 %v297
        %v659 = vunpack.c.h.b16 %v297
        %v660 = vunpack.c.l.b16 %v298
        %v661 = vunpack.c.l.b16 %v299
        %v662 = vunpack.c.h.b16 %v299
        %v663 = vunpack.c.l.b16 %v300
        %v664 = vunpack.c.l.b16 %v301
        %v665 = vunpack.c.h.b16 %v301
        %v666 = vunpack.c.l.b16 %v302
        %v667 = vunpack.c.l.b16 %v303
        %v668 = vunpack.c.h.b16 %v303
        %v669 = vunpack.c.l.b16 %v304
        %v670 = vunpack.c.l.b16 %v305
        %v671 = vunpack.c.h.b16 %v305
        %v672 = vunpack.c.l.b16 %v306
        %v673 = vunpack.c.l.b16 %v307
        %v674 = vunpack.c.h.b16 %v307
        %v675 = vunpack.c.l.b16 %v308
        %v676 = vunpack.c.l.b16 %v309
        %v677 = vunpack.c.h.b16 %v309
        %v678 = vunpack.c.l.b16 %v310
        %v679 = vunpack.c.l.b16 %v311
        %v680 = vunpack.c.h.b16 %v311
        %v681 = vunpack.c.l.b16 %v312
        %v682 = vunpack.c.l.b16 %v313
        %v683 = vunpack.c.h.b16 %v313
        %v684 = vunpack.c.l.b16 %v314
        %v685 = vunpack.c.l.b16 %v315
        %v686 = vunpack.c.h.b16 %v315
        %v687 = vunpack.c.l.b16 %v316
        %v688 = vunpack.c.l.b16 %v317
        %v689 = vunpack.c.h.b16 %v317
        %v690 = vunpack.c.l.b16 %v318
        %v691 = vunpack.c.l.b16 %v319
        %v692 = vunpack.c.h.b16 %v319
        %v693 = vunpack.c.l.b16 %v320
        %v694 = vunpack.c.l.b16 %v321
        %v695 = vunpack.c.h.b16 %v321
        %v696 = vunpack.c.l.b16 %v322
        %v697 = vunpack.c.l.b16 %v323
        %v698 = vunpack.c.h.b16 %v323
        %v699 = vunpack.c.l.b16 %v324
        %v700 = vunpack.c.l.b16 %v325
        %v701 = vunpack.c.h.b16 %v325
        %v702 = vunpack.c.l.b16 %v326
        %v703 = vunpack.c.l.b16 %v327
        %v704 = vunpack.c.h.b16 %v327
        %v705 = vunpack.c.l.b16 %v328
        %v706 = vunpack.c.l.b16 %v329
        %v707 = vunpack.c.h.b16 %v329
        %v708 = vunpack.c.l.b16 %v330
        %v709 = vunpack.c.l.b16 %v331
        %v710 = vunpack.c.h.b16 %v331
        %v711 = vunpack.c.l.b16 %v332
        %v712 = vunpack.c.l.b16 %v333
        %v713 = vunpack.c.h.b16 %v333
        %v714 = vunpack.c.l.b16 %v334
        %v715 = vunpack.c.l.b16 %v335
        %v716 = vunpack.c.h.b16 %v335
        %v717 = vunpack.c.l.b16 %v336
        %v718 = vunpack.c.l.b16 %v337
        %v719 = vunpack.c.h.b16 %v337
        %v720 = vunpack.c.l.b16 %v338
        %v721 = vunpack.c.l.b16 %v339
        %v722 = vunpack.c.h.b16 %v339
        %v723 = vunpack.c.l.b16 %v340
        %v724 = vunpack.c.l.b16 %v341
        %v725 = vunpack.c.h.b16 %v341
        %v726 = vunpack.c.l.b16 %v342
        %v727 = vunpack.c.l.b16 %v343
        %v728 = vunpack.c.h.b16 %v343
        %v729 = vunpack.c.l.b16 %v344
        %v730 = vunpack.c.l.b16 %v345
        %v731 = vunpack.c.h.b16 %v345
        %v732 = vunpack.c.l.b16 %v346
        %v733 = vunpack.c.l.b16 %v347
        %v734 = vunpack.c.h.b16 %v347
        %v735 = vunpack.c.l.b16 %v348
        %v736 = vpack.c.b16 %v517, %v514
        %v737 = vpack.c.b16 %v518, %v515
        %v738 = vpack.c.b16 %v519, %v516
        %v739 = vpack.c.b16 %v523, %v520
        %v740 = vpack.c.b16 %v524, %v521
        %v741 = vpack.c.b16 %v525, %v522
        %v742 = vpack.c.b16 %v529, %v526
        %v743 = vpack.c.b16 %v530, %v527
        %v744 = vpack.c.b16 %v531, %v528
        %v745 = vpack.c.b16 %v535, %v532
        %v746 = vpack.c.b16 %v536, %v533
        %v747 = vpack.c.b16 %v537, %v534
        %v748 = vpack.c.b16 %v541, %v538
        %v749 = vpack.c.b16 %v542, %v539
        %v750 = vpack.c.b16 %v543, %v540
        %v751 = vpack.c.b16 %v547, %v544
        %v752 = vpack.c.b16 %v548, %v545
        %v753 = vpack.c.b16 %v549, %v546
        %v754 = vpack.c.b16 %v553, %v550
        %v755 = vpack.c.b16 %v554, %v551
        %v756 = vpack.c.b16 %v555, %v552
        %v757 = vpack.c.b16 %v559, %v556
        %v758 = vpack.c.b16 %v560, %v557
        %v759 = vpack.c.b16 %v561, %v558
        %v760 = vpack.c.b16 %v565, %v562
        %v761 = vpack.c.b16 %v566, %v563
        %v762 = vpack.c.b16 %v567, %v564
        %v763 = vpack.c.b16 %v571, %v568
        %v764 = vpack.c.b16 %v572, %v569
        %v765 = vpack.c.b16 %v573, %v570
        %v766 = vpack.c.b16 %v577, %v574
        %v767 = vpack.c.b16 %v578, %v575
        %v768 = vpack.c.b16 %v579, %v576
        %v769 = vpack.c.b16 %v583, %v580
        %v770 = vpack.c.b16 %v584, %v581
        %v771 = vpack.c.b16 %v585, %v582
        %v772 = vpack.c.b16 %v589, %v586
        %v773 = vpack.c.b16 %v590, %v587
        %v774 = vpack.c.b16 %v591, %v588
        %v775 = vpack.c.b16 %v595, %v592
        %v776 = vpack.c.b16 %v596, %v593
        %v777 = vpack.c.b16 %v597, %v594
        %v778 = vpack.c.b16 %v601, %v598
        %v779 = vpack.c.b16 %v602, %v599
        %v780 = vpack.c.b16 %v603, %v600
        %v781 = vpack.c.b16 %v607, %v604
        %v782 = vpack.c.b16 %v608, %v605
        %v783 = vpack.c.b16 %v609, %v606
        %v784 = vpack.c.b16 %v613, %v610
        %v785 = vpack.c.b16 %v614, %v611
        %v786 = vpack.c.b16 %v615, %v612
        %v787 = vpack.c.b16 %v619, %v616
        %v788 = vpack.c.b16 %v620, %v617
        %v789 = vpack.c.b16 %v621, %v618
        %v790 = vpack.c.b16 %v625, %v622
        %v791 = vpack.c.b16 %v626, %v623
        %v792 = vpack.c.b16 %v627, %v624
        %v793 = vpack.c.b16 %v631, %v628
        %v794 = vpack.c.b16 %v632, %v629
        %v795 = vpack.c.b16 %v633, %v630
        %v796 = vpack.c.b16 %v637, %v634
        %v797 = vpack.c.b16 %v638, %v635
        %v798 = vpack.c.b16 %v639, %v636
        %v799 = vpack.c.b16 %v643, %v640
        %v800 = vpack.c.b16 %v644, %v641
        %v801 = vpack.c.b16 %v645, %v642
        %v802 = vpack.c.b16 %v649, %v646
        %v803 = vpack.c.b16 %v650, %v647
        %v804 = vpack.c.b16 %v651, %v648
        %v805 = vpack.c.b16 %v655, %v652
        %v806 = vpack.c.b16 %v656, %v653
        %v807 = vpack.c.b16 %v657, %v654
        %v808 = vpack.c.b16 %v661, %v658
        %v809 = vpack.c.b16 %v662, %v659
        %v810 = vpack.c.b16 %v663, %v660
        %v811 = vpack.c.b16 %v667, %v664
        %v812 = vpack.c.b16 %v668, %v665
        %v813 = vpack.c.b16 %v669, %v666
        %v814 = vpack.c.b16 %v673, %v670
        %v815 = vpack.c.b16 %v674, %v671
        %v816 = vpack.c.b16 %v675, %v672
        %v817 = vpack.c.b16 %v679, %v676
        %v818 = vpack.c.b16 %v680, %v677
        %v819 = vpack.c.b16 %v681, %v678
        %v820 = vpack.c.b16 %v685, %v682
        %v821 = vpack.c.b16 %v686, %v683
        %v822 = vpack.c.b16 %v687, %v684
        %v823 = vpack.c.b16 %v691, %v688
        %v824 = vpack.c.b16 %v692, %v689
        %v825 = vpack.c.b16 %v693, %v690
        %v826 = vpack.c.b16 %v697, %v694
        %v827 = vpack.c.b16 %v698, %v695
        %v828 = vpack.c.b16 %v699, %v696
        %v829 = vpack.c.b16 %v703, %v700
        %v830 = vpack.c.b16 %v704, %v701
        %v831 = vpack.c.b16 %v705, %v702
        %v832 = vpack.c.b16 %v709, %v706
        %v833 = vpack.c.b16 %v710, %v707
        %v834 = vpack.c.b16 %v711, %v708
        %v835 = vpack.c.b16 %v715, %v712
        %v836 = vpack.c.b16 %v716, %v713
        %v837 = vpack.c.b16 %v717, %v714
        %v838 = vpack.c.b16 %v721, %v718
        %v839 = vpack.c.b16 %v722, %v719
        %v840 = vpack.c.b16 %v723, %v720
        %v841 = vpack.c.b16 %v727, %v724
        %v842 = vpack.c.b16 %v728, %v725
        %v843 = vpack.c.b16 %v729, %v726
        %v844 = vpack.c.b16 %v733, %v730
        %v845 = vpack.c.b16 %v734, %v731
        %v846 = vpack.c.b16 %v735, %v732
        %vm955 = vcmask 621568
        %v957 = vsel %vm955, %v200, 0
        %vm959 = vcmask 1045504
        %v961 = vsel %vm959, %v844, 0
        %v964 = vsel %vm959, %v845, 0
        %v967 = vsel %vm959, %v846, 0
        %969 = vmatprep.subr.bf16.mxu0 %v758
        %970 = vmatpush1.bf16.msra.mxu0 %v757
        %971 = vmatprep.subr.bf16.mxu0 %v755
        %972 = vmatpush1.bf16.msra.mxu0 %v754
        %973 = vmatprep.subr.bf16.mxu0 %v752
        %974 = vmatpush1.bf16.msra.mxu0 %v751
        %975 = vmatprep.subr.bf16.mxu0 %v749
        %976 = vmatpush1.bf16.msra.mxu0 %v748
        %977 = vmatprep.subr.bf16.mxu0 %v746
        %978 = vmatpush1.bf16.msra.mxu0 %v745
        %979 = vmatprep.subr.bf16.mxu0 %v743
        %980 = vmatpush1.bf16.msra.mxu0 %v742
        %981 = vmatprep.subr.bf16.mxu0 %v740
        %982 = vmatpush1.bf16.msra.mxu0 %v739
        %983 = vmatprep.subr.bf16.mxu0 %v737
        %984 = vmatpush1.bf16.msra.mxu0 %v736
        %985 = vmatprep.subr.bf16.mxu0 %v782
        %986 = vmatpush2.bf16.msra.mxu0 %v781
        %987 = vmatprep.subr.bf16.mxu0 %v779
        %988 = vmatpush2.bf16.msra.mxu0 %v778
        %989 = vmatprep.subr.bf16.mxu0 %v776
        %990 = vmatpush2.bf16.msra.mxu0 %v775
        %991 = vmatprep.subr.bf16.mxu0 %v773
        %992 = vmatpush2.bf16.msra.mxu0 %v772
        %993 = vmatprep.subr.bf16.mxu0 %v770
        %994 = vmatpush2.bf16.msra.mxu0 %v769
        %995 = vmatprep.subr.bf16.mxu0 %v767
        %996 = vmatpush2.bf16.msra.mxu0 %v766
        %997 = vmatprep.subr.bf16.mxu0 %v764
        %998 = vmatpush2.bf16.msra.mxu0 %v763
        %999 = vmatprep.subr.bf16.mxu0 %v761
        %1000 = vmatpush2.bf16.msra.mxu0 %v760
        %1001 = vmatprep.mubr.bf16.mxu0 %v197
        %1002 = vmatmul.mubr.bf16.gmra.mxu0 %v196
        %v1003 = vpop.f32.mrf.mxu0
        %v1004 = vadd.f32 %v354, %v1003
        %v1005 = vpop.f32.mrf.mxu0
        %v1006 = vadd.f32 %v358, %v1005
        %v1007 = vpop.f32.mrf.mxu0
        %v1008 = vpop.f32.mrf.mxu0
        %1009 = vdwg.mxu0
        %1010 = vmatprep.subr.bf16.mxu0 %v806
        %1011 = vmatpush1.bf16.msra.mxu0 %v805
        %1012 = vmatprep.subr.bf16.mxu0 %v803
        %1013 = vmatpush1.bf16.msra.mxu0 %v802
        %1014 = vmatprep.subr.bf16.mxu0 %v800
        %1015 = vmatpush1.bf16.msra.mxu0 %v799
        %1016 = vmatprep.subr.bf16.mxu0 %v797
        %1017 = vmatpush1.bf16.msra.mxu0 %v796
        %1018 = vmatprep.subr.bf16.mxu0 %v794
        %1019 = vmatpush1.bf16.msra.mxu0 %v793
        %1020 = vmatprep.subr.bf16.mxu0 %v791
        %1021 = vmatpush1.bf16.msra.mxu0 %v790
        %1022 = vmatprep.subr.bf16.mxu0 %v788
        %1023 = vmatpush1.bf16.msra.mxu0 %v787
        %1024 = vmatprep.subr.bf16.mxu0 %v785
        %1025 = vmatpush1.bf16.msra.mxu0 %v784
        %1026 = vmatprep.subr.bf16.mxu0 %v830
        %1027 = vmatpush2.bf16.msra.mxu0 %v829
        %1028 = vmatprep.subr.bf16.mxu0 %v827
        %1029 = vmatpush2.bf16.msra.mxu0 %v826
        %1030 = vmatprep.subr.bf16.mxu0 %v824
        %1031 = vmatpush2.bf16.msra.mxu0 %v823
        %1032 = vmatprep.subr.bf16.mxu0 %v821
        %1033 = vmatpush2.bf16.msra.mxu0 %v820
        %1034 = vmatprep.subr.bf16.mxu0 %v818
        %1035 = vmatpush2.bf16.msra.mxu0 %v817
        %1036 = vmatprep.subr.bf16.mxu0 %v815
        %1037 = vmatpush2.bf16.msra.mxu0 %v814
        %1038 = vmatprep.subr.bf16.mxu0 %v812
        %1039 = vmatpush2.bf16.msra.mxu0 %v811
        %1040 = vmatprep.subr.bf16.mxu0 %v809
        %1041 = vmatpush2.bf16.msra.mxu0 %v808
        %1042 = vmatprep.mubr.bf16.mxu0 %v199
        %1043 = vmatmul.mubr.bf16.gmra.mxu0 %v198
        %v1044 = vpop.f32.mrf.mxu0
        %v1045 = vadd.f32 %v1004, %v1044
        %v1046 = vpop.f32.mrf.mxu0
        %v1047 = vadd.f32 %v1006, %v1046
        %v1048 = vpop.f32.mrf.mxu0
        %v1049 = vpop.f32.mrf.mxu0
        %1050 = vdwg.mxu0
        %1051 = vmatprep.subr.bf16.mxu0 0
        %1052 = vmatpush1.bf16.msra.mxu0 0
        %1053 = vmatprep.subr.bf16.mxu0 0
        %1054 = vmatpush1.bf16.msra.mxu0 0
        %1055 = vmatprep.subr.bf16.mxu0 0
        %1056 = vmatpush1.bf16.msra.mxu0 0
        %1057 = vmatprep.subr.bf16.mxu0 %v964
        %1058 = vmatpush1.bf16.msra.mxu0 %v961
        %1059 = vmatprep.subr.bf16.mxu0 %v842
        %1060 = vmatpush1.bf16.msra.mxu0 %v841
        %1061 = vmatprep.subr.bf16.mxu0 %v839
        %1062 = vmatpush1.bf16.msra.mxu0 %v838
        %1063 = vmatprep.subr.bf16.mxu0 %v836
        %1064 = vmatpush1.bf16.msra.mxu0 %v835
        %1065 = vmatprep.subr.bf16.mxu0 %v833
        %1066 = vmatpush1.bf16.msra.mxu0 %v832
        %1067 = vmatprep.subr.bf16.mxu0 0
        %1068 = vmatpush2.bf16.msra.mxu0 0
        %1069 = vmatprep.subr.bf16.mxu0 0
        %1070 = vmatpush2.bf16.msra.mxu0 0
        %1071 = vmatprep.subr.bf16.mxu0 0
        %1072 = vmatpush2.bf16.msra.mxu0 0
        %1073 = vmatprep.subr.bf16.mxu0 0
        %1074 = vmatpush2.bf16.msra.mxu0 0
        %1075 = vmatprep.subr.bf16.mxu0 0
        %1076 = vmatpush2.bf16.msra.mxu0 0
        %1077 = vmatprep.subr.bf16.mxu0 0
        %1078 = vmatpush2.bf16.msra.mxu0 0
        %1079 = vmatprep.subr.bf16.mxu0 0
        %1080 = vmatpush2.bf16.msra.mxu0 0
        %1081 = vmatprep.subr.bf16.mxu0 0
        %1082 = vmatpush2.bf16.msra.mxu0 0
        %1083 = vmatprep.mubr.bf16.mxu0 0
        %1084 = vmatmul.mubr.bf16.gmra.mxu0 %v957
        %v1085 = vpop.f32.mrf.mxu0
        %v1086 = vadd.f32 %v1045, %v1085
        %v1087 = vpop.f32.mrf.mxu0
        %v1088 = vadd.f32 %v1047, %v1087
        %v1089 = vpop.f32.mrf.mxu0
        %v1090 = vpop.f32.mrf.mxu0
        %1091 = vdwg.mxu0
        %1092 = vmatprep.subr.bf16.mxu0 0
        %1093 = vmatpush1.bf16.msra.mxu0 %v759
        %1094 = vmatprep.subr.bf16.mxu0 0
        %1095 = vmatpush1.bf16.msra.mxu0 %v756
        %1096 = vmatprep.subr.bf16.mxu0 0
        %1097 = vmatpush1.bf16.msra.mxu0 %v753
        %1098 = vmatprep.subr.bf16.mxu0 0
        %1099 = vmatpush1.bf16.msra.mxu0 %v750
        %1100 = vmatprep.subr.bf16.mxu0 0
        %1101 = vmatpush1.bf16.msra.mxu0 %v747
        %1102 = vmatprep.subr.bf16.mxu0 0
        %1103 = vmatpush1.bf16.msra.mxu0 %v744
        %1104 = vmatprep.subr.bf16.mxu0 0
        %1105 = vmatpush1.bf16.msra.mxu0 %v741
        %1106 = vmatprep.subr.bf16.mxu0 0
        %1107 = vmatpush1.bf16.msra.mxu0 %v738
        %1108 = vmatprep.subr.bf16.mxu0 0
        %1109 = vmatpush2.bf16.msra.mxu0 %v783
        %1110 = vmatprep.subr.bf16.mxu0 0
        %1111 = vmatpush2.bf16.msra.mxu0 %v780
        %1112 = vmatprep.subr.bf16.mxu0 0
        %1113 = vmatpush2.bf16.msra.mxu0 %v777
        %1114 = vmatprep.subr.bf16.mxu0 0
        %1115 = vmatpush2.bf16.msra.mxu0 %v774
        %1116 = vmatprep.subr.bf16.mxu0 0
        %1117 = vmatpush2.bf16.msra.mxu0 %v771
        %1118 = vmatprep.subr.bf16.mxu0 0
        %1119 = vmatpush2.bf16.msra.mxu0 %v768
        %1120 = vmatprep.subr.bf16.mxu0 0
        %1121 = vmatpush2.bf16.msra.mxu0 %v765
        %1122 = vmatprep.subr.bf16.mxu0 0
        %1123 = vmatpush2.bf16.msra.mxu0 %v762
        %1124 = vmatprep.mubr.bf16.mxu0 %v197
        %1125 = vmatmul.mubr.bf16.gmra.mxu0 %v196
        %v1126 = vpop.f32.mrf.mxu0
        %v1127 = vadd.f32 %v362, %v1126
        %v1128 = vpop.f32.mrf.mxu0
        %v1129 = vpop.f32.mrf.mxu0
        %v1130 = vpop.f32.mrf.mxu0
        %1131 = vdwg.mxu0
        %1132 = vmatprep.subr.bf16.mxu0 0
        %1133 = vmatpush1.bf16.msra.mxu0 %v807
        %1134 = vmatprep.subr.bf16.mxu0 0
        %1135 = vmatpush1.bf16.msra.mxu0 %v804
        %1136 = vmatprep.subr.bf16.mxu0 0
        %1137 = vmatpush1.bf16.msra.mxu0 %v801
        %1138 = vmatprep.subr.bf16.mxu0 0
        %1139 = vmatpush1.bf16.msra.mxu0 %v798
        %1140 = vmatprep.subr.bf16.mxu0 0
        %1141 = vmatpush1.bf16.msra.mxu0 %v795
        %1142 = vmatprep.subr.bf16.mxu0 0
        %1143 = vmatpush1.bf16.msra.mxu0 %v792
        %1144 = vmatprep.subr.bf16.mxu0 0
        %1145 = vmatpush1.bf16.msra.mxu0 %v789
        %1146 = vmatprep.subr.bf16.mxu0 0
        %1147 = vmatpush1.bf16.msra.mxu0 %v786
        %1148 = vmatprep.subr.bf16.mxu0 0
        %1149 = vmatpush2.bf16.msra.mxu0 %v831
        %1150 = vmatprep.subr.bf16.mxu0 0
        %1151 = vmatpush2.bf16.msra.mxu0 %v828
        %1152 = vmatprep.subr.bf16.mxu0 0
        %1153 = vmatpush2.bf16.msra.mxu0 %v825
        %1154 = vmatprep.subr.bf16.mxu0 0
        %1155 = vmatpush2.bf16.msra.mxu0 %v822
        %1156 = vmatprep.subr.bf16.mxu0 0
        %1157 = vmatpush2.bf16.msra.mxu0 %v819
        %1158 = vmatprep.subr.bf16.mxu0 0
        %1159 = vmatpush2.bf16.msra.mxu0 %v816
        %1160 = vmatprep.subr.bf16.mxu0 0
        %1161 = vmatpush2.bf16.msra.mxu0 %v813
        %1162 = vmatprep.subr.bf16.mxu0 0
        %1163 = vmatpush2.bf16.msra.mxu0 %v810
        %1164 = vmatprep.mubr.bf16.mxu0 %v199
        %1165 = vmatmul.mubr.bf16.gmra.mxu0 %v198
        %v1166 = vpop.f32.mrf.mxu0
        %v1167 = vadd.f32 %v1127, %v1166
        %v1168 = vpop.f32.mrf.mxu0
        %v1169 = vpop.f32.mrf.mxu0
        %v1170 = vpop.f32.mrf.mxu0
        %1171 = vdwg.mxu0
        %1172 = vmatprep.subr.bf16.mxu0 0
        %1173 = vmatpush1.bf16.msra.mxu0 0
        %1174 = vmatprep.subr.bf16.mxu0 0
        %1175 = vmatpush1.bf16.msra.mxu0 0
        %1176 = vmatprep.subr.bf16.mxu0 0
        %1177 = vmatpush1.bf16.msra.mxu0 0
        %1178 = vmatprep.subr.bf16.mxu0 0
        %1179 = vmatpush1.bf16.msra.mxu0 %v967
        %1180 = vmatprep.subr.bf16.mxu0 0
        %1181 = vmatpush1.bf16.msra.mxu0 %v843
        %1182 = vmatprep.subr.bf16.mxu0 0
        %1183 = vmatpush1.bf16.msra.mxu0 %v840
        %1184 = vmatprep.subr.bf16.mxu0 0
        %1185 = vmatpush1.bf16.msra.mxu0 %v837
        %1186 = vmatprep.subr.bf16.mxu0 0
        %1187 = vmatpush1.bf16.msra.mxu0 %v834
        %1188 = vmatprep.subr.bf16.mxu0 0
        %1189 = vmatpush2.bf16.msra.mxu0 0
        %1190 = vmatprep.subr.bf16.mxu0 0
        %1191 = vmatpush2.bf16.msra.mxu0 0
        %1192 = vmatprep.subr.bf16.mxu0 0
        %1193 = vmatpush2.bf16.msra.mxu0 0
        %1194 = vmatprep.subr.bf16.mxu0 0
        %1195 = vmatpush2.bf16.msra.mxu0 0
        %1196 = vmatprep.subr.bf16.mxu0 0
        %1197 = vmatpush2.bf16.msra.mxu0 0
        %1198 = vmatprep.subr.bf16.mxu0 0
        %1199 = vmatpush2.bf16.msra.mxu0 0
        %1200 = vmatprep.subr.bf16.mxu0 0
        %1201 = vmatpush2.bf16.msra.mxu0 0
        %1202 = vmatprep.subr.bf16.mxu0 0
        %1203 = vmatpush2.bf16.msra.mxu0 0
        %1204 = vmatprep.mubr.bf16.mxu0 0
        %1205 = vmatmul.mubr.bf16.gmra.mxu0 %v957
        %v1206 = vpop.f32.mrf.mxu0
        %v1207 = vadd.f32 %v1167, %v1206
        %v1208 = vpop.f32.mrf.mxu0
        %v1209 = vpop.f32.mrf.mxu0
        %v1210 = vpop.f32.mrf.mxu0
        %1211 = vdwg.mxu0
        %v1214 = vcombine.low %v1086, %v1088
        %1216 = vst [vmem:[%s185] sm:$0xff] %v1214
        %1217 = vst [vmem:[%s185 + $0x8] sm:$0xf] %v1207
        %p1218 = scmp.lt.s32.totalorder %s15, 1
        %s1219 = scalar_select %p1218, %s15, 1
        %s1220 = smul.addr %s1219, 3
        %s1221 = smul.addr %s1220, 4
        %s1222 = scalar_lea.vmem %s3, %s1221
        // Predicated region
        $region37: #{forward.2} parent=31 // pred_check
          %p1223 = pneg %p101
        $region38: #{forward.2} parent=31 // pred_check_branch
          %1225 = sbr.rel (%p1223) target = $region40
        $region39: #{forward.2} parent=31 // pred_region
          _
        $region40: #{forward.2} parent=31 // pred_fallthru
          _
      $region32: #{forward.2} parent=5 // pred_fallthru
        _
      %p1226 = scmp.le.s32.totalorder 2, %s10
      // Predicated region
      $region41: #{forward.2} parent=5 // pred_check
        %p1227 = pneg %p1226
      $region42: #{forward.2} parent=5 // pred_check_branch
        %1229 = sbr.rel (%p1227) target = $region44
      $region43: #{forward.2} parent=5 // pred_region
        %s1230 = ssub.s32 %s10, 2
        // Predicated region
        $region45: #{forward.2} parent=43 // pred_check
          %p1231 = pneg %p107
        $region46: #{forward.2} parent=43 // pred_check_branch
          %1233 = sbr.rel (%p1231) target = $region48
        $region47: #{forward.2} parent=43 // pred_region
          %p1234 = scmp.lt.s32.totalorder %s16, 1
          %s1235 = scalar_select %p1234, %s16, 1
          %s1236 = smul.addr %s1235, 3
          %s1237 = smul.addr %s1236, 4
          %s1238 = scalar_lea.vmem %s3, %s1237
        $region48: #{forward.2} parent=43 // pred_fallthru
          _
      $region44: #{forward.2} parent=5 // pred_fallthru
        _
    $region6: #{forward.2} parent=1 // loop_footer
      %s14 = sadd.s32 1, %s10
    $region7: #{forward.2} parent=1 // loop_footer_branch
      %9 = sbr.rel target = $region3
    $region8: #{forward.2} parent=1 // loop_exit
      _
    %1239 = vsyncpa [#allocation3], 1
    %s1240 = scalar_lea.sflag [#allocation3], 1
    %1241 = vsyncpa %s1240, 1

// kernel: closed_call.11
$region0: #{closed_call.11}
  #allocation0 [shape = 'u32[]', space=smem, size = 0x4, offset = 0x4, fixed_abs, tag = 'smem constant byte address 0x4 - core index']
  #allocation1 [shape = 'u32[144,128]{1,0:T(1,128)}', space=vmem, size = 0x12000, scoped, tag = 'internal scratch']
  %s0 = inlined_call_operand.vmem [shape: f32[2,5,1152], index: 0, kind: input, shape index: {}]
  %s1 = inlined_call_operand.vmem [shape: bf16[384,384], index: 1, kind: input, shape index: {}]
  %s2 = inlined_call_operand.vmem [shape: f32[1,384], index: 2, kind: input, shape index: {}]
  %s3 = inlined_call_operand.vmem [shape: f32[1,384], index: 3, kind: input, shape index: {}]
  %s4 = inlined_call_operand.vmem [shape: f32[2,5,384], index: 4, kind: input, shape index: {}, may-alias: {4,5}]
  %s5 = inlined_call_operand.vmem [shape: f32[2,5,384], index: 5, kind: output, shape index: {}, may-alias: {4,5}]
  %s6 = sld [smem:[#allocation0]]
  $region53: #{closed_call.11} parent=0
    _
  %s8 = ssub.s32 1, %s6
  %s9 = scalar_select 0, %s8, %s6
  loop: start=0, step=1, limit=4
  $region2: #{closed_call.11} parent=0 // loop_pre_header
    _
  $region3: #{closed_call.11} parent=0 // loop_header
    %s11 = sphi 0, %s15
    %p12 = scmp.ge.s32.totalorder %s11, 4
    %s21 = sphi 0, %s23
    %s24 = sphi 0, %s21
    %s25 = sphi 0, %s24
    %s41 = sphi 0, %s25
    %s45 = sphi 0, %s45
    %s47 = sphi 0, %s45
    %s48 = sphi 0, %s47
    %s62 = sphi 0, %s48
    %s66 = sphi 0, %s66
    %s68 = sphi 0, %s66
    %s69 = sphi 0, %s68
    %s83 = sphi 0, %s69
    %s87 = sphi 0, %s87
    %s89 = sphi 0, %s87
    %s90 = sphi 0, %s89
    %s104 = sphi 0, %s90
    %s110 = sphi 0, %s112
    %s113 = sphi 0, %s110
    %s114 = sphi 0, %s113
    %s130 = sphi 0, %s114
    %s136 = sphi 0, %s138
    %s139 = sphi 0, %s136
    %s140 = sphi 0, %s139
    %s156 = sphi 0, %s140
  $region4: #{closed_call.11} parent=0 // loop_header_branch
    %14 = sbr.rel (%p12) target = $region8
  $region5: #{closed_call.11} parent=0 // loop_body
    %s16 = ssub.s32 %s11, 1
    %s17 = ssub.s32 %s11, 2
    %s18 = sadd.s32 %s11, 1
    %s19 = ssub.s32 %s11, %s18
    %p20 = scmp.eq.s32.totalorder %s19, 0
    %s22 = sadd.s32 %s21, 1
    %s23 = scalar_select %p20, %s21, %s22
    %p26 = pneg %p20
    %p27 = scmp.eq.s32.totalorder %s11, 1
    %p28 = por %p26, %p27
    %p29 = scmp.ne.s32.totalorder %s21, %s24
    %p30 = scmp.eq.s32.totalorder %s11, 0
    %p31 = por %p29, %p30
    %p32 = scmp.ne.s32.totalorder %s21, %s24
    %p33 = scmp.eq.s32.totalorder %s16, 1
    %p34 = por %p32, %p33
    %p35 = scmp.ne.s32.totalorder %s24, %s25
    %p36 = scmp.eq.s32.totalorder %s16, 0
    %p37 = por %p35, %p36
    %p38 = scmp.ne.s32.totalorder %s24, %s25
    %p39 = scmp.eq.s32.totalorder %s17, 1
    %p40 = por %p38, %p39
    %p42 = scmp.ne.s32.totalorder %s25, %s41
    %p43 = scmp.eq.s32.totalorder %s17, 0
    %p44 = por %p42, %p43
    %s46 = sadd.s32 %s45, 1
    %p49 = scmp.eq.s32.totalorder %s11, 1
    %p50 = scmp.ne.s32.totalorder %s45, %s47
    %p51 = scmp.eq.s32.totalorder %s11, 0
    %p52 = por %p50, %p51
    %p53 = scmp.ne.s32.totalorder %s45, %s47
    %p54 = scmp.eq.s32.totalorder %s16, 1
    %p55 = por %p53, %p54
    %p56 = scmp.ne.s32.totalorder %s47, %s48
    %p57 = scmp.eq.s32.totalorder %s16, 0
    %p58 = por %p56, %p57
    %p59 = scmp.ne.s32.totalorder %s47, %s48
    %p60 = scmp.eq.s32.totalorder %s17, 1
    %p61 = por %p59, %p60
    %p63 = scmp.ne.s32.totalorder %s48, %s62
    %p64 = scmp.eq.s32.totalorder %s17, 0
    %p65 = por %p63, %p64
    %s67 = sadd.s32 %s66, 1
    %p70 = scmp.eq.s32.totalorder %s11, 1
    %p71 = scmp.ne.s32.totalorder %s66, %s68
    %p72 = scmp.eq.s32.totalorder %s11, 0
    %p73 = por %p71, %p72
    %p74 = scmp.ne.s32.totalorder %s66, %s68
    %p75 = scmp.eq.s32.totalorder %s16, 1
    %p76 = por %p74, %p75
    %p77 = scmp.ne.s32.totalorder %s68, %s69
    %p78 = scmp.eq.s32.totalorder %s16, 0
    %p79 = por %p77, %p78
    %p80 = scmp.ne.s32.totalorder %s68, %s69
    %p81 = scmp.eq.s32.totalorder %s17, 1
    %p82 = por %p80, %p81
    %p84 = scmp.ne.s32.totalorder %s69, %s83
    %p85 = scmp.eq.s32.totalorder %s17, 0
    %p86 = por %p84, %p85
    %s88 = sadd.s32 %s87, 1
    %p91 = scmp.eq.s32.totalorder %s11, 1
    %p92 = scmp.ne.s32.totalorder %s87, %s89
    %p93 = scmp.eq.s32.totalorder %s11, 0
    %p94 = por %p92, %p93
    %p95 = scmp.ne.s32.totalorder %s87, %s89
    %p96 = scmp.eq.s32.totalorder %s16, 1
    %p97 = por %p95, %p96
    %p98 = scmp.ne.s32.totalorder %s89, %s90
    %p99 = scmp.eq.s32.totalorder %s16, 0
    %p100 = por %p98, %p99
    %p101 = scmp.ne.s32.totalorder %s89, %s90
    %p102 = scmp.eq.s32.totalorder %s17, 1
    %p103 = por %p101, %p102
    %p105 = scmp.ne.s32.totalorder %s90, %s104
    %p106 = scmp.eq.s32.totalorder %s17, 0
    %p107 = por %p105, %p106
    %s108 = ssub.s32 %s11, %s18
    %p109 = scmp.eq.s32.totalorder %s108, 0
    %s111 = sadd.s32 %s110, 1
    %s112 = scalar_select %p109, %s110, %s111
    %p115 = pneg %p109
    %p116 = scmp.eq.s32.totalorder %s11, 1
    %p117 = por %p115, %p116
    %p118 = scmp.ne.s32.totalorder %s110, %s113
    %p119 = scmp.eq.s32.totalorder %s11, 0
    %p120 = por %p118, %p119
    %p121 = scmp.ne.s32.totalorder %s110, %s113
    %p122 = scmp.eq.s32.totalorder %s16, 1
    %p123 = por %p121, %p122
    %p124 = scmp.ne.s32.totalorder %s113, %s114
    %p125 = scmp.eq.s32.totalorder %s16, 0
    %p126 = por %p124, %p125
    %p127 = scmp.ne.s32.totalorder %s113, %s114
    %p128 = scmp.eq.s32.totalorder %s17, 1
    %p129 = por %p127, %p128
    %p131 = scmp.ne.s32.totalorder %s114, %s130
    %p132 = scmp.eq.s32.totalorder %s17, 0
    %p133 = por %p131, %p132
    %s134 = ssub.s32 %s11, %s18
    %p135 = scmp.eq.s32.totalorder %s134, 0
    %s137 = sadd.s32 %s136, 1
    %s138 = scalar_select %p135, %s136, %s137
    %p141 = pneg %p135
    %p142 = scmp.eq.s32.totalorder %s11, 1
    %p143 = por %p141, %p142
    %p144 = scmp.ne.s32.totalorder %s136, %s139
    %p145 = scmp.eq.s32.totalorder %s11, 0
    %p146 = por %p144, %p145
    %p147 = scmp.ne.s32.totalorder %s136, %s139
    %p148 = scmp.eq.s32.totalorder %s16, 1
    %p149 = por %p147, %p148
    %p150 = scmp.ne.s32.totalorder %s139, %s140
    %p151 = scmp.eq.s32.totalorder %s16, 0
    %p152 = por %p150, %p151
    %p153 = scmp.ne.s32.totalorder %s139, %s140
    %p154 = scmp.eq.s32.totalorder %s17, 1
    %p155 = por %p153, %p154
    %p157 = scmp.ne.s32.totalorder %s140, %s156
    %p158 = scmp.eq.s32.totalorder %s17, 0
    %p159 = por %p157, %p158
    %p160 = scmp.le.s32.totalorder 1, %s11
    %p161 = scmp.lt.s32.totalorder %s11, 3
    %p162 = pnand %p160, %p161
    %p163 = pneg %p162
    // Predicated region
    $region9: #{closed_call.11} parent=5 // pred_check
      _
    $region10: #{closed_call.11} parent=5 // pred_check_branch
      %165 = sbr.rel (%p162) target = $region12
    $region11: #{closed_call.11} parent=5 // pred_region
      %s166 = ssub.s32 %s11, 1
      // Predicated region
      $region13: #{closed_call.11} parent=11 // pred_check
        %p167 = pneg %p58
      $region14: #{closed_call.11} parent=11 // pred_check_branch
        %169 = sbr.rel (%p167) target = $region16
      $region15: #{closed_call.11} parent=11 // pred_region
        _
      $region16: #{closed_call.11} parent=11 // pred_fallthru
        _
      // Predicated region
      $region17: #{closed_call.11} parent=11 // pred_check
        %p170 = pneg %p79
      $region18: #{closed_call.11} parent=11 // pred_check_branch
        %172 = sbr.rel (%p170) target = $region20
      $region19: #{closed_call.11} parent=11 // pred_region
        _
      $region20: #{closed_call.11} parent=11 // pred_fallthru
        _
      // Predicated region
      $region21: #{closed_call.11} parent=11 // pred_check
        %p173 = pneg %p100
      $region22: #{closed_call.11} parent=11 // pred_check_branch
        %175 = sbr.rel (%p173) target = $region24
      $region23: #{closed_call.11} parent=11 // pred_region
        _
      $region24: #{closed_call.11} parent=11 // pred_fallthru
        _
    $region12: #{closed_call.11} parent=5 // pred_fallthru
      _
    %p176 = scmp.lt.s32.totalorder %s11, 2
    // Predicated region
    $region25: #{closed_call.11} parent=5 // pred_check
      %p177 = pneg %p176
    $region26: #{closed_call.11} parent=5 // pred_check_branch
      %179 = sbr.rel (%p177) target = $region28
    $region27: #{closed_call.11} parent=5 // pred_region
      // Predicated region
      $region29: #{closed_call.11} parent=27 // pred_check
        %p180 = pneg %p31
      $region30: #{closed_call.11} parent=27 // pred_check_branch
        %182 = sbr.rel (%p180) target = $region32
      $region31: #{closed_call.11} parent=27 // pred_region
        %p183 = scmp.lt.s32.totalorder %s11, 1
        %s184 = scalar_select %p183, %s11, 1
        %s185 = smul.addr %s184, 9
        %s186 = smul.addr %s185, 8
        %s187 = scalar_lea.vmem %s0, %s186
      $region32: #{closed_call.11} parent=27 // pred_fallthru
        _
      // Predicated region
      $region33: #{closed_call.11} parent=27 // pred_check
        %p188 = pneg %p120
      $region34: #{closed_call.11} parent=27 // pred_check_branch
        %190 = sbr.rel (%p188) target = $region36
      $region35: #{closed_call.11} parent=27 // pred_region
        %p191 = scmp.lt.s32.totalorder %s11, 1
        %s192 = scalar_select %p191, %s11, 1
        %s193 = smul.addr %s192, 3
        %s194 = smul.addr %s193, 8
        %s195 = scalar_lea.vmem %s4, %s194
      $region36: #{closed_call.11} parent=27 // pred_fallthru
        _
    $region28: #{closed_call.11} parent=5 // pred_fallthru
      _
    %p196 = scmp.le.s32.totalorder 1, %s11
    %p197 = scmp.lt.s32.totalorder %s11, 3
    %p198 = pnand %p196, %p197
    %p199 = pneg %p198
    // Predicated region
    $region37: #{closed_call.11} parent=5 // pred_check
      _
    $region38: #{closed_call.11} parent=5 // pred_check_branch
      %201 = sbr.rel (%p198) target = $region40
    $region39: #{closed_call.11} parent=5 // pred_region
      %s202 = ssub.s32 %s11, 1
      %p203 = scmp.lt.s32.totalorder %s16, 1
      %s204 = scalar_select %p203, %s16, 1
      %s205 = smul.addr %s204, 9
      %s206 = smul.addr %s205, 8
      %s207 = scalar_lea.vmem %s0, %s206
      %p208 = pneg %p37
      %p209 = pneg %p34
      %p210 = pneg %p58
      %p211 = pneg %p55
      %p212 = pneg %p79
      %p213 = pneg %p76
      %p214 = pneg %p100
      %p215 = pneg %p97
      %p216 = scmp.lt.s32.totalorder %s16, 1
      %s217 = scalar_select %p216, %s16, 1
      %s218 = smul.addr %s217, 3
      %s219 = smul.addr %s218, 8
      %s220 = scalar_lea.vmem %s4, %s219
      %p221 = pneg %p126
      %p222 = pneg %p123
      %p223 = pneg %p152
      %p224 = pneg %p149
      %p225 = scmp.lt.s32.totalorder %s16, 1
      %s226 = scalar_select %p225, %s16, 1
      %s227 = smul.addr %s226, 3
      %s228 = smul.addr %s227, 8
      %s229 = scalar_lea.vmem %s5, %s228
      %p230 = scmp.lt.s32.totalorder %s16, 1
      %s231 = scalar_select %p230, %s16, 1
      %s232 = smul.addr %s231, 9
      %s233 = smul.addr %s232, 8
      %s234 = scalar_lea.vmem %s0, %s233
      %p235 = scmp.lt.s32.totalorder %s16, 1
      %s236 = scalar_select %p235, %s16, 1
      %s237 = smul.addr %s236, 3
      %s238 = smul.addr %s237, 8
      %s239 = scalar_lea.vmem %s4, %s238
      %p240 = scmp.lt.s32.totalorder %s16, 1
      %s241 = scalar_select %p240, %s16, 1
      %s242 = smul.addr %s241, 3
      %s243 = smul.addr %s242, 8
      %s244 = scalar_lea.vmem %s5, %s243
      %v246 = vld [vmem:[%s234] sm:$0x1f]
      %v247 = vld [vmem:[%s234 + $0x8] sm:$0x1f]
      %v248 = vld [vmem:[%s234 + $0x10] sm:$0x1f]
      %v249 = vld [vmem:[%s234 + $0x18] sm:$0x1f]
      %v250 = vld [vmem:[%s234 + $0x20] sm:$0x1f]
      %v251 = vld [vmem:[%s234 + $0x28] sm:$0x1f]
      %v252 = vld [vmem:[%s234 + $0x30] sm:$0x1f]
      %v253 = vld [vmem:[%s234 + $0x38] sm:$0x1f]
      %v254 = vld [vmem:[%s234 + $0x40] sm:$0x1f]
      %v255 = vmul.f32 %v246, 0.125
      %v256 = vpack.c.bf16 %v255, %v255
      %v257 = vpack.c.bf16 %v249, %v249
      %vm258 = vcmask 523264
      %v260 = vsel %vm258, %v256, 0
      %v263 = vsel %vm258, %v257, 0
      %265 = vmatprep.subr.bf16.mxu0 0
      %266 = vmatpush1.bf16.xpose.msra.mxu0 0
      %267 = vmatprep.subr.bf16.mxu0 0
      %268 = vmatpush1.bf16.xpose.msra.mxu0 0
      %269 = vmatprep.subr.bf16.mxu0 0
      %270 = vmatpush1.bf16.xpose.msra.mxu0 0
      %271 = vmatprep.subr.bf16.mxu0 0
      %272 = vmatpush1.bf16.xpose.msra.mxu0 0
      %273 = vmatprep.subr.bf16.mxu0 0
      %274 = vmatpush1.bf16.xpose.msra.mxu0 0
      %275 = vmatprep.subr.bf16.mxu0 0
      %276 = vmatpush1.bf16.xpose.msra.mxu0 0
      %277 = vmatprep.subr.bf16.mxu0 0
      %278 = vmatpush1.bf16.xpose.msra.mxu0 0
      %279 = vmatprep.subr.bf16.mxu0 0
      %280 = vmatpush1.bf16.xpose.msra.mxu0 %v263
      %281 = vmatprep.subr.bf16.mxu0 0
      %282 = vmatpush2.bf16.xpose.msra.mxu0 0
      %283 = vmatprep.subr.bf16.mxu0 0
      %284 = vmatpush2.bf16.xpose.msra.mxu0 0
      %285 = vmatprep.subr.bf16.mxu0 0
      %286 = vmatpush2.bf16.xpose.msra.mxu0 0
      %287 = vmatprep.subr.bf16.mxu0 0
      %288 = vmatpush2.bf16.xpose.msra.mxu0 0
      %289 = vmatprep.subr.bf16.mxu0 0
      %290 = vmatpush2.bf16.xpose.msra.mxu0 0
      %291 = vmatprep.subr.bf16.mxu0 0
      %292 = vmatpush2.bf16.xpose.msra.mxu0 0
      %293 = vmatprep.subr.bf16.mxu0 0
      %294 = vmatpush2.bf16.xpose.msra.mxu0 0
      %295 = vmatprep.subr.bf16.mxu0 0
      %296 = vmatpush2.bf16.xpose.msra.mxu0 0
      %297 = vmatprep.mubr.bf16.mxu0 0
      %298 = vmatmul.mubr.bf16.gmra.mxu0 %v260
      %v299 = vpop.f32.mrf.mxu0
      %v300 = vadd.f32 0.0, %v299
      %v301 = vpop.f32.mrf.mxu0
      %v302 = vpop.f32.mrf.mxu0
      %v303 = vpop.f32.mrf.mxu0
      %304 = vdwg.mxu0
      %vm305 = vcmask 36864
      %v306 = vsel %vm305, %v300, -inf
      %307 = vmax.xlane.f32.xlu0 %v306
      %v308 = vpop.xlane.xlu0 %307
      %v309 = vsub.f32 %v300, %v308
      %v310 = vmul.f32 %v309, 1.442695
      %v311 = vpow.pop %v310
      %v312 = vsel %vm305, %v311, 0.0
      %313 = vadd.xlane.f32.xlu0 %v312
      %v314 = vpop.xlane.xlu0 %313
      %v315 = vrcp.pop %v314
      %v316 = vmul.f32 %v311, %v315
      %v317 = vpack.c.bf16 %v316, %v316
      %v318 = vpack.c.bf16 %v252, %v252
      %vm319 = vcmask 39936
      %v321 = vsel %vm319, %v317, 0
      %vm323 = vcmask 1041408
      %vm324 = vcmask 1042432
      %v325 = vsel %vm323, 4294967295, 65535
      %v326 = vsel %vm324, %v325, 0
      %v328 = vand.u32 %v318, %v326
      %330 = vmatprep.subr.bf16.mxu0 0
      %331 = vmatpush1.bf16.msra.mxu0 0
      %332 = vmatprep.subr.bf16.mxu0 0
      %333 = vmatpush1.bf16.msra.mxu0 0
      %334 = vmatprep.subr.bf16.mxu0 0
      %335 = vmatpush1.bf16.msra.mxu0 0
      %336 = vmatprep.subr.bf16.mxu0 0
      %337 = vmatpush1.bf16.msra.mxu0 0
      %338 = vmatprep.subr.bf16.mxu0 0
      %339 = vmatpush1.bf16.msra.mxu0 0
      %340 = vmatprep.subr.bf16.mxu0 0
      %341 = vmatpush1.bf16.msra.mxu0 0
      %342 = vmatprep.subr.bf16.mxu0 0
      %343 = vmatpush1.bf16.msra.mxu0 0
      %344 = vmatprep.subr.bf16.mxu0 0
      %345 = vmatpush1.bf16.msra.mxu0 %v328
      %346 = vmatprep.subr.bf16.mxu0 0
      %347 = vmatpush2.bf16.msra.mxu0 0
      %348 = vmatprep.subr.bf16.mxu0 0
      %349 = vmatpush2.bf16.msra.mxu0 0
      %350 = vmatprep.subr.bf16.mxu0 0
      %351 = vmatpush2.bf16.msra.mxu0 0
      %352 = vmatprep.subr.bf16.mxu0 0
      %353 = vmatpush2.bf16.msra.mxu0 0
      %354 = vmatprep.subr.bf16.mxu0 0
      %355 = vmatpush2.bf16.msra.mxu0 0
      %356 = vmatprep.subr.bf16.mxu0 0
      %357 = vmatpush2.bf16.msra.mxu0 0
      %358 = vmatprep.subr.bf16.mxu0 0
      %359 = vmatpush2.bf16.msra.mxu0 0
      %360 = vmatprep.subr.bf16.mxu0 0
      %361 = vmatpush2.bf16.msra.mxu0 0
      %362 = vmatprep.mubr.bf16.mxu0 0
      %363 = vmatmul.mubr.bf16.gmra.mxu0 %v321
      %v364 = vpop.f32.mrf.mxu0
      %v365 = vadd.f32 0.0, %v364
      %v366 = vpop.f32.mrf.mxu0
      %v367 = vpop.f32.mrf.mxu0
      %v368 = vpop.f32.mrf.mxu0
      %369 = vdwg.mxu0
      %371 = vrot.lane.b32.xlu0 %v256, 64
      %v372 = vpop.permute.xlu0 %371
      %374 = vrot.lane.b32.xlu0 %v257, 64
      %v375 = vpop.permute.xlu0 %374
      %v377 = vsel %vm258, %v372, 0
      %v380 = vsel %vm258, %v375, 0
      %382 = vmatprep.subr.bf16.mxu0 0
      %383 = vmatpush1.bf16.xpose.msra.mxu0 0
      %384 = vmatprep.subr.bf16.mxu0 0
      %385 = vmatpush1.bf16.xpose.msra.mxu0 0
      %386 = vmatprep.subr.bf16.mxu0 0
      %387 = vmatpush1.bf16.xpose.msra.mxu0 0
      %388 = vmatprep.subr.bf16.mxu0 0
      %389 = vmatpush1.bf16.xpose.msra.mxu0 0
      %390 = vmatprep.subr.bf16.mxu0 0
      %391 = vmatpush1.bf16.xpose.msra.mxu0 0
      %392 = vmatprep.subr.bf16.mxu0 0
      %393 = vmatpush1.bf16.xpose.msra.mxu0 0
      %394 = vmatprep.subr.bf16.mxu0 0
      %395 = vmatpush1.bf16.xpose.msra.mxu0 0
      %396 = vmatprep.subr.bf16.mxu0 0
      %397 = vmatpush1.bf16.xpose.msra.mxu0 %v380
      %398 = vmatprep.subr.bf16.mxu0 0
      %399 = vmatpush2.bf16.xpose.msra.mxu0 0
      %400 = vmatprep.subr.bf16.mxu0 0
      %401 = vmatpush2.bf16.xpose.msra.mxu0 0
      %402 = vmatprep.subr.bf16.mxu0 0
      %403 = vmatpush2.bf16.xpose.msra.mxu0 0
      %404 = vmatprep.subr.bf16.mxu0 0
      %405 = vmatpush2.bf16.xpose.msra.mxu0 0
      %406 = vmatprep.subr.bf16.mxu0 0
      %407 = vmatpush2.bf16.xpose.msra.mxu0 0
      %408 = vmatprep.subr.bf16.mxu0 0
      %409 = vmatpush2.bf16.xpose.msra.mxu0 0
      %410 = vmatprep.subr.bf16.mxu0 0
      %411 = vmatpush2.bf16.xpose.msra.mxu0 0
      %412 = vmatprep.subr.bf16.mxu0 0
      %413 = vmatpush2.bf16.xpose.msra.mxu0 0
      %414 = vmatprep.mubr.bf16.mxu0 0
      %415 = vmatmul.mubr.bf16.gmra.mxu0 %v377
      %v416 = vpop.f32.mrf.mxu0
      %v417 = vadd.f32 0.0, %v416
      %v418 = vpop.f32.mrf.mxu0
      %v419 = vpop.f32.mrf.mxu0
      %v420 = vpop.f32.mrf.mxu0
      %421 = vdwg.mxu0
      %v422 = vsel %vm305, %v417, -inf
      %423 = vmax.xlane.f32.xlu0 %v422
      %v424 = vpop.xlane.xlu0 %423
      %v425 = vsub.f32 %v417, %v424
      %v426 = vmul.f32 %v425, 1.442695
      %v427 = vpow.pop %v426
      %v428 = vsel %vm305, %v427, 0.0
      %429 = vadd.xlane.f32.xlu0 %v428
      %v430 = vpop.xlane.xlu0 %429
      %v431 = vrcp.pop %v430
      %v432 = vmul.f32 %v427, %v431
      %v433 = vpack.c.bf16 %v432, %v432
      %435 = vrot.lane.b32.xlu0 %v318, 64
      %v436 = vpop.permute.xlu0 %435
      %v438 = vsel %vm319, %v433, 0
      %v441 = vand.u32 %v436, %v326
      %443 = vmatprep.subr.bf16.mxu0 0
      %444 = vmatpush1.bf16.msra.mxu0 0
      %445 = vmatprep.subr.bf16.mxu0 0
      %446 = vmatpush1.bf16.msra.mxu0 0
      %447 = vmatprep.subr.bf16.mxu0 0
      %448 = vmatpush1.bf16.msra.mxu0 0
      %449 = vmatprep.subr.bf16.mxu0 0
      %450 = vmatpush1.bf16.msra.mxu0 0
      %451 = vmatprep.subr.bf16.mxu0 0
      %452 = vmatpush1.bf16.msra.mxu0 0
      %453 = vmatprep.subr.bf16.mxu0 0
      %454 = vmatpush1.bf16.msra.mxu0 0
      %455 = vmatprep.subr.bf16.mxu0 0
      %456 = vmatpush1.bf16.msra.mxu0 0
      %457 = vmatprep.subr.bf16.mxu0 0
      %458 = vmatpush1.bf16.msra.mxu0 %v441
      %459 = vmatprep.subr.bf16.mxu0 0
      %460 = vmatpush2.bf16.msra.mxu0 0
      %461 = vmatprep.subr.bf16.mxu0 0
      %462 = vmatpush2.bf16.msra.mxu0 0
      %463 = vmatprep.subr.bf16.mxu0 0
      %464 = vmatpush2.bf16.msra.mxu0 0
      %465 = vmatprep.subr.bf16.mxu0 0
      %466 = vmatpush2.bf16.msra.mxu0 0
      %467 = vmatprep.subr.bf16.mxu0 0
      %468 = vmatpush2.bf16.msra.mxu0 0
      %469 = vmatprep.subr.bf16.mxu0 0
      %470 = vmatpush2.bf16.msra.mxu0 0
      %471 = vmatprep.subr.bf16.mxu0 0
      %472 = vmatpush2.bf16.msra.mxu0 0
      %473 = vmatprep.subr.bf16.mxu0 0
      %474 = vmatpush2.bf16.msra.mxu0 0
      %475 = vmatprep.mubr.bf16.mxu0 0
      %476 = vmatmul.mubr.bf16.gmra.mxu0 %v438
      %v477 = vpop.f32.mrf.mxu0
      %v478 = vadd.f32 0.0, %v477
      %v479 = vpop.f32.mrf.mxu0
      %v480 = vpop.f32.mrf.mxu0
      %v481 = vpop.f32.mrf.mxu0
      %482 = vdwg.mxu0
      %v483 = vmul.f32 %v247, 0.125
      %v484 = vpack.c.bf16 %v483, %v483
      %v485 = vpack.c.bf16 %v250, %v250
      %v487 = vsel %vm258, %v484, 0
      %v490 = vsel %vm258, %v485, 0
      %492 = vmatprep.subr.bf16.mxu0 0
      %493 = vmatpush1.bf16.xpose.msra.mxu0 0
      %494 = vmatprep.subr.bf16.mxu0 0
      %495 = vmatpush1.bf16.xpose.msra.mxu0 0
      %496 = vmatprep.subr.bf16.mxu0 0
      %497 = vmatpush1.bf16.xpose.msra.mxu0 0
      %498 = vmatprep.subr.bf16.mxu0 0
      %499 = vmatpush1.bf16.xpose.msra.mxu0 0
      %500 = vmatprep.subr.bf16.mxu0 0
      %501 = vmatpush1.bf16.xpose.msra.mxu0 0
      %502 = vmatprep.subr.bf16.mxu0 0
      %503 = vmatpush1.bf16.xpose.msra.mxu0 0
      %504 = vmatprep.subr.bf16.mxu0 0
      %505 = vmatpush1.bf16.xpose.msra.mxu0 0
      %506 = vmatprep.subr.bf16.mxu0 0
      %507 = vmatpush1.bf16.xpose.msra.mxu0 %v490
      %508 = vmatprep.subr.bf16.mxu0 0
      %509 = vmatpush2.bf16.xpose.msra.mxu0 0
      %510 = vmatprep.subr.bf16.mxu0 0
      %511 = vmatpush2.bf16.xpose.msra.mxu0 0
      %512 = vmatprep.subr.bf16.mxu0 0
      %513 = vmatpush2.bf16.xpose.msra.mxu0 0
      %514 = vmatprep.subr.bf16.mxu0 0
      %515 = vmatpush2.bf16.xpose.msra.mxu0 0
      %516 = vmatprep.subr.bf16.mxu0 0
      %517 = vmatpush2.bf16.xpose.msra.mxu0 0
      %518 = vmatprep.subr.bf16.mxu0 0
      %519 = vmatpush2.bf16.xpose.msra.mxu0 0
      %520 = vmatprep.subr.bf16.mxu0 0
      %521 = vmatpush2.bf16.xpose.msra.mxu0 0
      %522 = vmatprep.subr.bf16.mxu0 0
      %523 = vmatpush2.bf16.xpose.msra.mxu0 0
      %524 = vmatprep.mubr.bf16.mxu0 0
      %525 = vmatmul.mubr.bf16.gmra.mxu0 %v487
      %v526 = vpop.f32.mrf.mxu0
      %v527 = vadd.f32 0.0, %v526
      %v528 = vpop.f32.mrf.mxu0
      %v529 = vpop.f32.mrf.mxu0
      %v530 = vpop.f32.mrf.mxu0
      %531 = vdwg.mxu0
      %v532 = vsel %vm305, %v527, -inf
      %533 = vmax.xlane.f32.xlu0 %v532
      %v534 = vpop.xlane.xlu0 %533
      %v535 = vsub.f32 %v527, %v534
      %v536 = vmul.f32 %v535, 1.442695
      %v537 = vpow.pop %v536
      %v538 = vsel %vm305, %v537, 0.0
      %539 = vadd.xlane.f32.xlu0 %v538
      %v540 = vpop.xlane.xlu0 %539
      %v541 = vrcp.pop %v540
      %v542 = vmul.f32 %v537, %v541
      %v543 = vpack.c.bf16 %v542, %v542
      %v544 = vpack.c.bf16 %v253, %v253
      %v546 = vsel %vm319, %v543, 0
      %v549 = vand.u32 %v544, %v326
      %551 = vmatprep.subr.bf16.mxu0 0
      %552 = vmatpush1.bf16.msra.mxu0 0
      %553 = vmatprep.subr.bf16.mxu0 0
      %554 = vmatpush1.bf16.msra.mxu0 0
      %555 = vmatprep.subr.bf16.mxu0 0
      %556 = vmatpush1.bf16.msra.mxu0 0
      %557 = vmatprep.subr.bf16.mxu0 0
      %558 = vmatpush1.bf16.msra.mxu0 0
      %559 = vmatprep.subr.bf16.mxu0 0
      %560 = vmatpush1.bf16.msra.mxu0 0
      %561 = vmatprep.subr.bf16.mxu0 0
      %562 = vmatpush1.bf16.msra.mxu0 0
      %563 = vmatprep.subr.bf16.mxu0 0
      %564 = vmatpush1.bf16.msra.mxu0 0
      %565 = vmatprep.subr.bf16.mxu0 0
      %566 = vmatpush1.bf16.msra.mxu0 %v549
      %567 = vmatprep.subr.bf16.mxu0 0
      %568 = vmatpush2.bf16.msra.mxu0 0
      %569 = vmatprep.subr.bf16.mxu0 0
      %570 = vmatpush2.bf16.msra.mxu0 0
      %571 = vmatprep.subr.bf16.mxu0 0
      %572 = vmatpush2.bf16.msra.mxu0 0
      %573 = vmatprep.subr.bf16.mxu0 0
      %574 = vmatpush2.bf16.msra.mxu0 0
      %575 = vmatprep.subr.bf16.mxu0 0
      %576 = vmatpush2.bf16.msra.mxu0 0
      %577 = vmatprep.subr.bf16.mxu0 0
      %578 = vmatpush2.bf16.msra.mxu0 0
      %579 = vmatprep.subr.bf16.mxu0 0
      %580 = vmatpush2.bf16.msra.mxu0 0
      %581 = vmatprep.subr.bf16.mxu0 0
      %582 = vmatpush2.bf16.msra.mxu0 0
      %583 = vmatprep.mubr.bf16.mxu0 0
      %584 = vmatmul.mubr.bf16.gmra.mxu0 %v546
      %v585 = vpop.f32.mrf.mxu0
      %v586 = vadd.f32 0.0, %v585
      %v587 = vpop.f32.mrf.mxu0
      %v588 = vpop.f32.mrf.mxu0
      %v589 = vpop.f32.mrf.mxu0
      %590 = vdwg.mxu0
      %592 = vrot.lane.b32.xlu0 %v484, 64
      %v593 = vpop.permute.xlu0 %592
      %595 = vrot.lane.b32.xlu0 %v485, 64
      %v596 = vpop.permute.xlu0 %595
      %v598 = vsel %vm258, %v593, 0
      %v601 = vsel %vm258, %v596, 0
      %603 = vmatprep.subr.bf16.mxu0 0
      %604 = vmatpush1.bf16.xpose.msra.mxu0 0
      %605 = vmatprep.subr.bf16.mxu0 0
      %606 = vmatpush1.bf16.xpose.msra.mxu0 0
      %607 = vmatprep.subr.bf16.mxu0 0
      %608 = vmatpush1.bf16.xpose.msra.mxu0 0
      %609 = vmatprep.subr.bf16.mxu0 0
      %610 = vmatpush1.bf16.xpose.msra.mxu0 0
      %611 = vmatprep.subr.bf16.mxu0 0
      %612 = vmatpush1.bf16.xpose.msra.mxu0 0
      %613 = vmatprep.subr.bf16.mxu0 0
      %614 = vmatpush1.bf16.xpose.msra.mxu0 0
      %615 = vmatprep.subr.bf16.mxu0 0
      %616 = vmatpush1.bf16.xpose.msra.mxu0 0
      %617 = vmatprep.subr.bf16.mxu0 0
      %618 = vmatpush1.bf16.xpose.msra.mxu0 %v601
      %619 = vmatprep.subr.bf16.mxu0 0
      %620 = vmatpush2.bf16.xpose.msra.mxu0 0
      %621 = vmatprep.subr.bf16.mxu0 0
      %622 = vmatpush2.bf16.xpose.msra.mxu0 0
      %623 = vmatprep.subr.bf16.mxu0 0
      %624 = vmatpush2.bf16.xpose.msra.mxu0 0
      %625 = vmatprep.subr.bf16.mxu0 0
      %626 = vmatpush2.bf16.xpose.msra.mxu0 0
      %627 = vmatprep.subr.bf16.mxu0 0
      %628 = vmatpush2.bf16.xpose.msra.mxu0 0
      %629 = vmatprep.subr.bf16.mxu0 0
      %630 = vmatpush2.bf16.xpose.msra.mxu0 0
      %631 = vmatprep.subr.bf16.mxu0 0
      %632 = vmatpush2.bf16.xpose.msra.mxu0 0
      %633 = vmatprep.subr.bf16.mxu0 0
      %634 = vmatpush2.bf16.xpose.msra.mxu0 0
      %635 = vmatprep.mubr.bf16.mxu0 0
      %636 = vmatmul.mubr.bf16.gmra.mxu0 %v598
      %v637 = vpop.f32.mrf.mxu0
      %v638 = vadd.f32 0.0, %v637
      %v639 = vpop.f32.mrf.mxu0
      %v640 = vpop.f32.mrf.mxu0
      %v641 = vpop.f32.mrf.mxu0
      %642 = vdwg.mxu0
      %v643 = vsel %vm305, %v638, -inf
      %644 = vmax.xlane.f32.xlu0 %v643
      %v645 = vpop.xlane.xlu0 %644
      %v646 = vsub.f32 %v638, %v645
      %v647 = vmul.f32 %v646, 1.442695
      %v648 = vpow.pop %v647
      %v649 = vsel %vm305, %v648, 0.0
      %650 = vadd.xlane.f32.xlu0 %v649
      %v651 = vpop.xlane.xlu0 %650
      %v652 = vrcp.pop %v651
      %v653 = vmul.f32 %v648, %v652
      %v654 = vpack.c.bf16 %v653, %v653
      %656 = vrot.lane.b32.xlu0 %v544, 64
      %v657 = vpop.permute.xlu0 %656
      %v659 = vsel %vm319, %v654, 0
      %v662 = vand.u32 %v657, %v326
      %664 = vmatprep.subr.bf16.mxu0 0
      %665 = vmatpush1.bf16.msra.mxu0 0
      %666 = vmatprep.subr.bf16.mxu0 0
      %667 = vmatpush1.bf16.msra.mxu0 0
      %668 = vmatprep.subr.bf16.mxu0 0
      %669 = vmatpush1.bf16.msra.mxu0 0
      %670 = vmatprep.subr.bf16.mxu0 0
      %671 = vmatpush1.bf16.msra.mxu0 0
      %672 = vmatprep.subr.bf16.mxu0 0
      %673 = vmatpush1.bf16.msra.mxu0 0
      %674 = vmatprep.subr.bf16.mxu0 0
      %675 = vmatpush1.bf16.msra.mxu0 0
      %676 = vmatprep.subr.bf16.mxu0 0
      %677 = vmatpush1.bf16.msra.mxu0 0
      %678 = vmatprep.subr.bf16.mxu0 0
      %679 = vmatpush1.bf16.msra.mxu0 %v662
      %680 = vmatprep.subr.bf16.mxu0 0
      %681 = vmatpush2.bf16.msra.mxu0 0
      %682 = vmatprep.subr.bf16.mxu0 0
      %683 = vmatpush2.bf16.msra.mxu0 0
      %684 = vmatprep.subr.bf16.mxu0 0
      %685 = vmatpush2.bf16.msra.mxu0 0
      %686 = vmatprep.subr.bf16.mxu0 0
      %687 = vmatpush2.bf16.msra.mxu0 0
      %688 = vmatprep.subr.bf16.mxu0 0
      %689 = vmatpush2.bf16.msra.mxu0 0
      %690 = vmatprep.subr.bf16.mxu0 0
      %691 = vmatpush2.bf16.msra.mxu0 0
      %692 = vmatprep.subr.bf16.mxu0 0
      %693 = vmatpush2.bf16.msra.mxu0 0
      %694 = vmatprep.subr.bf16.mxu0 0
      %695 = vmatpush2.bf16.msra.mxu0 0
      %696 = vmatprep.mubr.bf16.mxu0 0
      %697 = vmatmul.mubr.bf16.gmra.mxu0 %v659
      %v698 = vpop.f32.mrf.mxu0
      %v699 = vadd.f32 0.0, %v698
      %v700 = vpop.f32.mrf.mxu0
      %v701 = vpop.f32.mrf.mxu0
      %v702 = vpop.f32.mrf.mxu0
      %703 = vdwg.mxu0
      %v704 = vmul.f32 %v248, 0.125
      %v705 = vpack.c.bf16 %v704, %v704
      %v706 = vpack.c.bf16 %v251, %v251
      %v708 = vsel %vm258, %v705, 0
      %v711 = vsel %vm258, %v706, 0
      %713 = vmatprep.subr.bf16.mxu0 0
      %714 = vmatpush1.bf16.xpose.msra.mxu0 0
      %715 = vmatprep.subr.bf16.mxu0 0
      %716 = vmatpush1.bf16.xpose.msra.mxu0 0
      %717 = vmatprep.subr.bf16.mxu0 0
      %718 = vmatpush1.bf16.xpose.msra.mxu0 0
      %719 = vmatprep.subr.bf16.mxu0 0
      %720 = vmatpush1.bf16.xpose.msra.mxu0 0
      %721 = vmatprep.subr.bf16.mxu0 0
      %722 = vmatpush1.bf16.xpose.msra.mxu0 0
      %723 = vmatprep.subr.bf16.mxu0 0
      %724 = vmatpush1.bf16.xpose.msra.mxu0 0
      %725 = vmatprep.subr.bf16.mxu0 0
      %726 = vmatpush1.bf16.xpose.msra.mxu0 0
      %727 = vmatprep.subr.bf16.mxu0 0
      %728 = vmatpush1.bf16.xpose.msra.mxu0 %v711
      %729 = vmatprep.subr.bf16.mxu0 0
      %730 = vmatpush2.bf16.xpose.msra.mxu0 0
      %731 = vmatprep.subr.bf16.mxu0 0
      %732 = vmatpush2.bf16.xpose.msra.mxu0 0
      %733 = vmatprep.subr.bf16.mxu0 0
      %734 = vmatpush2.bf16.xpose.msra.mxu0 0
      %735 = vmatprep.subr.bf16.mxu0 0
      %736 = vmatpush2.bf16.xpose.msra.mxu0 0
      %737 = vmatprep.subr.bf16.mxu0 0
      %738 = vmatpush2.bf16.xpose.msra.mxu0 0
      %739 = vmatprep.subr.bf16.mxu0 0
      %740 = vmatpush2.bf16.xpose.msra.mxu0 0
      %741 = vmatprep.subr.bf16.mxu0 0
      %742 = vmatpush2.bf16.xpose.msra.mxu0 0
      %743 = vmatprep.subr.bf16.mxu0 0
      %744 = vmatpush2.bf16.xpose.msra.mxu0 0
      %745 = vmatprep.mubr.bf16.mxu0 0
      %746 = vmatmul.mubr.bf16.gmra.mxu0 %v708
      %v747 = vpop.f32.mrf.mxu0
      %v748 = vadd.f32 0.0, %v747
      %v749 = vpop.f32.mrf.mxu0
      %v750 = vpop.f32.mrf.mxu0
      %v751 = vpop.f32.mrf.mxu0
      %752 = vdwg.mxu0
      %v753 = vsel %vm305, %v748, -inf
      %754 = vmax.xlane.f32.xlu0 %v753
      %v755 = vpop.xlane.xlu0 %754
      %v756 = vsub.f32 %v748, %v755
      %v757 = vmul.f32 %v756, 1.442695
      %v758 = vpow.pop %v757
      %v759 = vsel %vm305, %v758, 0.0
      %760 = vadd.xlane.f32.xlu0 %v759
      %v761 = vpop.xlane.xlu0 %760
      %v762 = vrcp.pop %v761
      %v763 = vmul.f32 %v758, %v762
      %v764 = vpack.c.bf16 %v763, %v763
      %v765 = vpack.c.bf16 %v254, %v254
      %v767 = vsel %vm319, %v764, 0
      %v770 = vand.u32 %v765, %v326
      %772 = vmatprep.subr.bf16.mxu0 0
      %773 = vmatpush1.bf16.msra.mxu0 0
      %774 = vmatprep.subr.bf16.mxu0 0
      %775 = vmatpush1.bf16.msra.mxu0 0
      %776 = vmatprep.subr.bf16.mxu0 0
      %777 = vmatpush1.bf16.msra.mxu0 0
      %778 = vmatprep.subr.bf16.mxu0 0
      %779 = vmatpush1.bf16.msra.mxu0 0
      %780 = vmatprep.subr.bf16.mxu0 0
      %781 = vmatpush1.bf16.msra.mxu0 0
      %782 = vmatprep.subr.bf16.mxu0 0
      %783 = vmatpush1.bf16.msra.mxu0 0
      %784 = vmatprep.subr.bf16.mxu0 0
      %785 = vmatpush1.bf16.msra.mxu0 0
      %786 = vmatprep.subr.bf16.mxu0 0
      %787 = vmatpush1.bf16.msra.mxu0 %v770
      %788 = vmatprep.subr.bf16.mxu0 0
      %789 = vmatpush2.bf16.msra.mxu0 0
      %790 = vmatprep.subr.bf16.mxu0 0
      %791 = vmatpush2.bf16.msra.mxu0 0
      %792 = vmatprep.subr.bf16.mxu0 0
      %793 = vmatpush2.bf16.msra.mxu0 0
      %794 = vmatprep.subr.bf16.mxu0 0
      %795 = vmatpush2.bf16.msra.mxu0 0
      %796 = vmatprep.subr.bf16.mxu0 0
      %797 = vmatpush2.bf16.msra.mxu0 0
      %798 = vmatprep.subr.bf16.mxu0 0
      %799 = vmatpush2.bf16.msra.mxu0 0
      %800 = vmatprep.subr.bf16.mxu0 0
      %801 = vmatpush2.bf16.msra.mxu0 0
      %802 = vmatprep.subr.bf16.mxu0 0
      %803 = vmatpush2.bf16.msra.mxu0 0
      %804 = vmatprep.mubr.bf16.mxu0 0
      %805 = vmatmul.mubr.bf16.gmra.mxu0 %v767
      %v806 = vpop.f32.mrf.mxu0
      %v807 = vadd.f32 0.0, %v806
      %v808 = vpop.f32.mrf.mxu0
      %v809 = vpop.f32.mrf.mxu0
      %v810 = vpop.f32.mrf.mxu0
      %811 = vdwg.mxu0
      %813 = vrot.lane.b32.xlu0 %v705, 64
      %v814 = vpop.permute.xlu0 %813
      %816 = vrot.lane.b32.xlu0 %v706, 64
      %v817 = vpop.permute.xlu0 %816
      %v819 = vsel %vm258, %v814, 0
      %v822 = vsel %vm258, %v817, 0
      %824 = vmatprep.subr.bf16.mxu0 0
      %825 = vmatpush1.bf16.xpose.msra.mxu0 0
      %826 = vmatprep.subr.bf16.mxu0 0
      %827 = vmatpush1.bf16.xpose.msra.mxu0 0
      %828 = vmatprep.subr.bf16.mxu0 0
      %829 = vmatpush1.bf16.xpose.msra.mxu0 0
      %830 = vmatprep.subr.bf16.mxu0 0
      %831 = vmatpush1.bf16.xpose.msra.mxu0 0
      %832 = vmatprep.subr.bf16.mxu0 0
      %833 = vmatpush1.bf16.xpose.msra.mxu0 0
      %834 = vmatprep.subr.bf16.mxu0 0
      %835 = vmatpush1.bf16.xpose.msra.mxu0 0
      %836 = vmatprep.subr.bf16.mxu0 0
      %837 = vmatpush1.bf16.xpose.msra.mxu0 0
      %838 = vmatprep.subr.bf16.mxu0 0
      %839 = vmatpush1.bf16.xpose.msra.mxu0 %v822
      %840 = vmatprep.subr.bf16.mxu0 0
      %841 = vmatpush2.bf16.xpose.msra.mxu0 0
      %842 = vmatprep.subr.bf16.mxu0 0
      %843 = vmatpush2.bf16.xpose.msra.mxu0 0
      %844 = vmatprep.subr.bf16.mxu0 0
      %845 = vmatpush2.bf16.xpose.msra.mxu0 0
      %846 = vmatprep.subr.bf16.mxu0 0
      %847 = vmatpush2.bf16.xpose.msra.mxu0 0
      %848 = vmatprep.subr.bf16.mxu0 0
      %849 = vmatpush2.bf16.xpose.msra.mxu0 0
      %850 = vmatprep.subr.bf16.mxu0 0
      %851 = vmatpush2.bf16.xpose.msra.mxu0 0
      %852 = vmatprep.subr.bf16.mxu0 0
      %853 = vmatpush2.bf16.xpose.msra.mxu0 0
      %854 = vmatprep.subr.bf16.mxu0 0
      %855 = vmatpush2.bf16.xpose.msra.mxu0 0
      %856 = vmatprep.mubr.bf16.mxu0 0
      %857 = vmatmul.mubr.bf16.gmra.mxu0 %v819
      %v858 = vpop.f32.mrf.mxu0
      %v859 = vadd.f32 0.0, %v858
      %v860 = vpop.f32.mrf.mxu0
      %v861 = vpop.f32.mrf.mxu0
      %v862 = vpop.f32.mrf.mxu0
      %863 = vdwg.mxu0
      %v864 = vsel %vm305, %v859, -inf
      %865 = vmax.xlane.f32.xlu0 %v864
      %v866 = vpop.xlane.xlu0 %865
      %v867 = vsub.f32 %v859, %v866
      %v868 = vmul.f32 %v867, 1.442695
      %v869 = vpow.pop %v868
      %v870 = vsel %vm305, %v869, 0.0
      %871 = vadd.xlane.f32.xlu0 %v870
      %v872 = vpop.xlane.xlu0 %871
      %v873 = vrcp.pop %v872
      %v874 = vmul.f32 %v869, %v873
      %v875 = vpack.c.bf16 %v874, %v874
      %877 = vrot.lane.b32.xlu0 %v765, 64
      %v878 = vpop.permute.xlu0 %877
      %v880 = vsel %vm319, %v875, 0
      %v883 = vand.u32 %v878, %v326
      %885 = vmatprep.subr.bf16.mxu0 0
      %886 = vmatpush1.bf16.msra.mxu0 0
      %887 = vmatprep.subr.bf16.mxu0 0
      %888 = vmatpush1.bf16.msra.mxu0 0
      %889 = vmatprep.subr.bf16.mxu0 0
      %890 = vmatpush1.bf16.msra.mxu0 0
      %891 = vmatprep.subr.bf16.mxu0 0
      %892 = vmatpush1.bf16.msra.mxu0 0
      %893 = vmatprep.subr.bf16.mxu0 0
      %894 = vmatpush1.bf16.msra.mxu0 0
      %895 = vmatprep.subr.bf16.mxu0 0
      %896 = vmatpush1.bf16.msra.mxu0 0
      %897 = vmatprep.subr.bf16.mxu0 0
      %898 = vmatpush1.bf16.msra.mxu0 0
      %899 = vmatprep.subr.bf16.mxu0 0
      %900 = vmatpush1.bf16.msra.mxu0 %v883
      %901 = vmatprep.subr.bf16.mxu0 0
      %902 = vmatpush2.bf16.msra.mxu0 0
      %903 = vmatprep.subr.bf16.mxu0 0
      %904 = vmatpush2.bf16.msra.mxu0 0
      %905 = vmatprep.subr.bf16.mxu0 0
      %906 = vmatpush2.bf16.msra.mxu0 0
      %907 = vmatprep.subr.bf16.mxu0 0
      %908 = vmatpush2.bf16.msra.mxu0 0
      %909 = vmatprep.subr.bf16.mxu0 0
      %910 = vmatpush2.bf16.msra.mxu0 0
      %911 = vmatprep.subr.bf16.mxu0 0
      %912 = vmatpush2.bf16.msra.mxu0 0
      %913 = vmatprep.subr.bf16.mxu0 0
      %914 = vmatpush2.bf16.msra.mxu0 0
      %915 = vmatprep.subr.bf16.mxu0 0
      %916 = vmatpush2.bf16.msra.mxu0 0
      %917 = vmatprep.mubr.bf16.mxu0 0
      %918 = vmatmul.mubr.bf16.gmra.mxu0 %v880
      %v919 = vpop.f32.mrf.mxu0
      %v920 = vadd.f32 0.0, %v919
      %v921 = vpop.f32.mrf.mxu0
      %v922 = vpop.f32.mrf.mxu0
      %v923 = vpop.f32.mrf.mxu0
      %924 = vdwg.mxu0
      %926 = vrot.lane.b32.xlu0 %v478, 64
      %v927 = vpop.permute.xlu0 %926
      %930 = vrot.lane.b32.xlu0 %v699, 64
      %v931 = vpop.permute.xlu0 %930
      %934 = vrot.lane.b32.xlu0 %v920, 64
      %v935 = vpop.permute.xlu0 %934
      %v937 = vsel %vm258, %v365, %v927
      %v938 = vsel %vm258, %v586, %v931
      %v939 = vsel %vm258, %v807, %v935
      %v940 = vpack.c.bf16 %v937, %v937
      %v941 = vpack.c.bf16 %v938, %v938
      %v942 = vpack.c.bf16 %v939, %v939
      %v943 = vld [vmem:[%s1] sm:$0xff]
      %v944 = vld [vmem:[%s1 + $0x8] sm:$0xf]
      %v945 = vld [vmem:[%s1 + $0xc] sm:$0xff]
      %v946 = vld [vmem:[%s1 + $0x14] sm:$0xf]
      %v947 = vld [vmem:[%s1 + $0x18] sm:$0xff]
      %v948 = vld [vmem:[%s1 + $0x20] sm:$0xf]
      %v949 = vld [vmem:[%s1 + $0x24] sm:$0xff]
      %v950 = vld [vmem:[%s1 + $0x2c] sm:$0xf]
      %v951 = vld [vmem:[%s1 + $0x30] sm:$0xff]
      %v952 = vld [vmem:[%s1 + $0x38] sm:$0xf]
      %v953 = vld [vmem:[%s1 + $0x3c] sm:$0xff]
      %v954 = vld [vmem:[%s1 + $0x44] sm:$0xf]
      %v955 = vld [vmem:[%s1 + $0x48] sm:$0xff]
      %v956 = vld [vmem:[%s1 + $0x50] sm:$0xf]
      %v957 = vld [vmem:[%s1 + $0x54] sm:$0xff]
      %v958 = vld [vmem:[%s1 + $0x5c] sm:$0xf]
      %v959 = vld [vmem:[%s1 + $0x60] sm:$0xff]
      %v960 = vld [vmem:[%s1 + $0x68] sm:$0xf]
      %v961 = vld [vmem:[%s1 + $0x6c] sm:$0xff]
      %v962 = vld [vmem:[%s1 + $0x74] sm:$0xf]
      %v963 = vld [vmem:[%s1 + $0x78] sm:$0xff]
      %v964 = vld [vmem:[%s1 + $0x80] sm:$0xf]
      %v965 = vld [vmem:[%s1 + $0x84] sm:$0xff]
      %v966 = vld [vmem:[%s1 + $0x8c] sm:$0xf]
      %v967 = vld [vmem:[%s1 + $0x90] sm:$0xff]
      %v968 = vld [vmem:[%s1 + $0x98] sm:$0xf]
      %v969 = vld [vmem:[%s1 + $0x9c] sm:$0xff]
      %v970 = vld [vmem:[%s1 + $0xa4] sm:$0xf]
      %v971 = vld [vmem:[%s1 + $0xa8] sm:$0xff]
      %v972 = vld [vmem:[%s1 + $0xb0] sm:$0xf]
      %v973 = vld [vmem:[%s1 + $0xb4] sm:$0xff]
      %v974 = vld [vmem:[%s1 + $0xbc] sm:$0xf]
      %v975 = vld [vmem:[%s1 + $0xc0] sm:$0xff]
      %v976 = vld [vmem:[%s1 + $0xc8] sm:$0xf]
      %v977 = vld [vmem:[%s1 + $0xcc] sm:$0xff]
      %v978 = vld [vmem:[%s1 + $0xd4] sm:$0xf]
      %v979 = vld [vmem:[%s1 + $0xd8] sm:$0xff]
      %v980 = vld [vmem:[%s1 + $0xe0] sm:$0xf]
      %v981 = vld [vmem:[%s1 + $0xe4] sm:$0xff]
      %v982 = vld [vmem:[%s1 + $0xec] sm:$0xf]
      %v983 = vld [vmem:[%s1 + $0xf0] sm:$0xff]
      %v984 = vld [vmem:[%s1 + $0xf8] sm:$0xf]
      %v985 = vld [vmem:[%s1 + $0xfc] sm:$0xff]
      %v986 = vld [vmem:[%s1 + $0x104] sm:$0xf]
      %v987 = vld [vmem:[%s1 + $0x108] sm:$0xff]
      %v988 = vld [vmem:[%s1 + $0x110] sm:$0xf]
      %v989 = vld [vmem:[%s1 + $0x114] sm:$0xff]
      %v990 = vld [vmem:[%s1 + $0x11c] sm:$0xf]
      %v991 = vld [vmem:[%s1 + $0x120] sm:$0xff]
      %v992 = vld [vmem:[%s1 + $0x128] sm:$0xf]
      %v993 = vld [vmem:[%s1 + $0x12c] sm:$0xff]
      %v994 = vld [vmem:[%s1 + $0x134] sm:$0xf]
      %v995 = vld [vmem:[%s1 + $0x138] sm:$0xff]
      %v996 = vld [vmem:[%s1 + $0x140] sm:$0xf]
      %v997 = vld [vmem:[%s1 + $0x144] sm:$0xff]
      %v998 = vld [vmem:[%s1 + $0x14c] sm:$0xf]
      %v999 = vld [vmem:[%s1 + $0x150] sm:$0xff]
      %v1000 = vld [vmem:[%s1 + $0x158] sm:$0xf]
      %v1001 = vld [vmem:[%s1 + $0x15c] sm:$0xff]
      %v1002 = vld [vmem:[%s1 + $0x164] sm:$0xf]
      %v1003 = vld [vmem:[%s1 + $0x168] sm:$0xff]
      %v1004 = vld [vmem:[%s1 + $0x170] sm:$0xf]
      %v1005 = vld [vmem:[%s1 + $0x174] sm:$0xff]
      %v1006 = vld [vmem:[%s1 + $0x17c] sm:$0xf]
      %v1007 = vld [vmem:[%s1 + $0x180] sm:$0xff]
      %v1008 = vld [vmem:[%s1 + $0x188] sm:$0xf]
      %v1009 = vld [vmem:[%s1 + $0x18c] sm:$0xff]
      %v1010 = vld [vmem:[%s1 + $0x194] sm:$0xf]
      %v1011 = vld [vmem:[%s1 + $0x198] sm:$0xff]
      %v1012 = vld [vmem:[%s1 + $0x1a0] sm:$0xf]
      %v1013 = vld [vmem:[%s1 + $0x1a4] sm:$0xff]
      %v1014 = vld [vmem:[%s1 + $0x1ac] sm:$0xf]
      %v1015 = vld [vmem:[%s1 + $0x1b0] sm:$0xff]
      %v1016 = vld [vmem:[%s1 + $0x1b8] sm:$0xf]
      %v1017 = vld [vmem:[%s1 + $0x1bc] sm:$0xff]
      %v1018 = vld [vmem:[%s1 + $0x1c4] sm:$0xf]
      %v1019 = vld [vmem:[%s1 + $0x1c8] sm:$0xff]
      %v1020 = vld [vmem:[%s1 + $0x1d0] sm:$0xf]
      %v1021 = vld [vmem:[%s1 + $0x1d4] sm:$0xff]
      %v1022 = vld [vmem:[%s1 + $0x1dc] sm:$0xf]
      %v1023 = vld [vmem:[%s1 + $0x1e0] sm:$0xff]
      %v1024 = vld [vmem:[%s1 + $0x1e8] sm:$0xf]
      %v1025 = vld [vmem:[%s1 + $0x1ec] sm:$0xff]
      %v1026 = vld [vmem:[%s1 + $0x1f4] sm:$0xf]
      %v1027 = vld [vmem:[%s1 + $0x1f8] sm:$0xff]
      %v1028 = vld [vmem:[%s1 + $0x200] sm:$0xf]
      %v1029 = vld [vmem:[%s1 + $0x204] sm:$0xff]
      %v1030 = vld [vmem:[%s1 + $0x20c] sm:$0xf]
      %v1031 = vld [vmem:[%s1 + $0x210] sm:$0xff]
      %v1032 = vld [vmem:[%s1 + $0x218] sm:$0xf]
      %v1033 = vld [vmem:[%s1 + $0x21c] sm:$0xff]
      %v1034 = vld [vmem:[%s1 + $0x224] sm:$0xf]
      %v1035 = vld [vmem:[%s1 + $0x228] sm:$0xff]
      %v1036 = vld [vmem:[%s1 + $0x230] sm:$0xf]
      %v1037 = vld [vmem:[%s1 + $0x234] sm:$0xff]
      %v1038 = vld [vmem:[%s1 + $0x23c] sm:$0xf]
      %v1039 = vld [vmem:[%s2] sm:$0x7]
      %v1041 = vlaneseq
      %v1042 = vshrl.u32 %v1041, 7
      %v1043 = vsub.s32 0, %v1042
      %v1044 = vrot.slane %v1039, %v1043
      %v1045 = vlaneseq
      %v1046 = vshrl.u32 %v1045, 7
      %v1047 = vsub.s32 1, %v1046
      %v1048 = vrot.slane %v1039, %v1047
      %v1049 = vlaneseq
      %v1050 = vshrl.u32 %v1049, 7
      %v1051 = vsub.s32 2, %v1050
      %v1052 = vrot.slane %v1039, %v1051
      %v1152 = vunpack.c.l.b16 %v943
      %v1153 = vunpack.c.h.b16 %v943
      %v1154 = vunpack.c.l.b16 %v944
      %v1155 = vunpack.c.l.b16 %v945
      %v1156 = vunpack.c.h.b16 %v945
      %v1157 = vunpack.c.l.b16 %v946
      %v1158 = vunpack.c.l.b16 %v947
      %v1159 = vunpack.c.h.b16 %v947
      %v1160 = vunpack.c.l.b16 %v948
      %v1161 = vunpack.c.l.b16 %v949
      %v1162 = vunpack.c.h.b16 %v949
      %v1163 = vunpack.c.l.b16 %v950
      %v1164 = vunpack.c.l.b16 %v951
      %v1165 = vunpack.c.h.b16 %v951
      %v1166 = vunpack.c.l.b16 %v952
      %v1167 = vunpack.c.l.b16 %v953
      %v1168 = vunpack.c.h.b16 %v953
      %v1169 = vunpack.c.l.b16 %v954
      %v1170 = vunpack.c.l.b16 %v955
      %v1171 = vunpack.c.h.b16 %v955
      %v1172 = vunpack.c.l.b16 %v956
      %v1173 = vunpack.c.l.b16 %v957
      %v1174 = vunpack.c.h.b16 %v957
      %v1175 = vunpack.c.l.b16 %v958
      %v1176 = vunpack.c.l.b16 %v959
      %v1177 = vunpack.c.h.b16 %v959
      %v1178 = vunpack.c.l.b16 %v960
      %v1179 = vunpack.c.l.b16 %v961
      %v1180 = vunpack.c.h.b16 %v961
      %v1181 = vunpack.c.l.b16 %v962
      %v1182 = vunpack.c.l.b16 %v963
      %v1183 = vunpack.c.h.b16 %v963
      %v1184 = vunpack.c.l.b16 %v964
      %v1185 = vunpack.c.l.b16 %v965
      %v1186 = vunpack.c.h.b16 %v965
      %v1187 = vunpack.c.l.b16 %v966
      %v1188 = vunpack.c.l.b16 %v967
      %v1189 = vunpack.c.h.b16 %v967
      %v1190 = vunpack.c.l.b16 %v968
      %v1191 = vunpack.c.l.b16 %v969
      %v1192 = vunpack.c.h.b16 %v969
      %v1193 = vunpack.c.l.b16 %v970
      %v1194 = vunpack.c.l.b16 %v971
      %v1195 = vunpack.c.h.b16 %v971
      %v1196 = vunpack.c.l.b16 %v972
      %v1197 = vunpack.c.l.b16 %v973
      %v1198 = vunpack.c.h.b16 %v973
      %v1199 = vunpack.c.l.b16 %v974
      %v1200 = vunpack.c.l.b16 %v975
      %v1201 = vunpack.c.h.b16 %v975
      %v1202 = vunpack.c.l.b16 %v976
      %v1203 = vunpack.c.l.b16 %v977
      %v1204 = vunpack.c.h.b16 %v977
      %v1205 = vunpack.c.l.b16 %v978
      %v1206 = vunpack.c.l.b16 %v979
      %v1207 = vunpack.c.h.b16 %v979
      %v1208 = vunpack.c.l.b16 %v980
      %v1209 = vunpack.c.l.b16 %v981
      %v1210 = vunpack.c.h.b16 %v981
      %v1211 = vunpack.c.l.b16 %v982
      %v1212 = vunpack.c.l.b16 %v983
      %v1213 = vunpack.c.h.b16 %v983
      %v1214 = vunpack.c.l.b16 %v984
      %v1215 = vunpack.c.l.b16 %v985
      %v1216 = vunpack.c.h.b16 %v985
      %v1217 = vunpack.c.l.b16 %v986
      %v1218 = vunpack.c.l.b16 %v987
      %v1219 = vunpack.c.h.b16 %v987
      %v1220 = vunpack.c.l.b16 %v988
      %v1221 = vunpack.c.l.b16 %v989
      %v1222 = vunpack.c.h.b16 %v989
      %v1223 = vunpack.c.l.b16 %v990
      %v1224 = vunpack.c.l.b16 %v991
      %v1225 = vunpack.c.h.b16 %v991
      %v1226 = vunpack.c.l.b16 %v992
      %v1227 = vunpack.c.l.b16 %v993
      %v1228 = vunpack.c.h.b16 %v993
      %v1229 = vunpack.c.l.b16 %v994
      %v1230 = vunpack.c.l.b16 %v995
      %v1231 = vunpack.c.h.b16 %v995
      %v1232 = vunpack.c.l.b16 %v996
      %v1233 = vunpack.c.l.b16 %v997
      %v1234 = vunpack.c.h.b16 %v997
      %v1235 = vunpack.c.l.b16 %v998
      %v1236 = vunpack.c.l.b16 %v999
      %v1237 = vunpack.c.h.b16 %v999
      %v1238 = vunpack.c.l.b16 %v1000
      %v1239 = vunpack.c.l.b16 %v1001
      %v1240 = vunpack.c.h.b16 %v1001
      %v1241 = vunpack.c.l.b16 %v1002
      %v1242 = vunpack.c.l.b16 %v1003
      %v1243 = vunpack.c.h.b16 %v1003
      %v1244 = vunpack.c.l.b16 %v1004
      %v1245 = vunpack.c.l.b16 %v1005
      %v1246 = vunpack.c.h.b16 %v1005
      %v1247 = vunpack.c.l.b16 %v1006
      %v1248 = vunpack.c.l.b16 %v1007
      %v1249 = vunpack.c.h.b16 %v1007
      %v1250 = vunpack.c.l.b16 %v1008
      %v1251 = vunpack.c.l.b16 %v1009
      %v1252 = vunpack.c.h.b16 %v1009
      %v1253 = vunpack.c.l.b16 %v1010
      %v1254 = vunpack.c.l.b16 %v1011
      %v1255 = vunpack.c.h.b16 %v1011
      %v1256 = vunpack.c.l.b16 %v1012
      %v1257 = vunpack.c.l.b16 %v1013
      %v1258 = vunpack.c.h.b16 %v1013
      %v1259 = vunpack.c.l.b16 %v1014
      %v1260 = vunpack.c.l.b16 %v1015
      %v1261 = vunpack.c.h.b16 %v1015
      %v1262 = vunpack.c.l.b16 %v1016
      %v1263 = vunpack.c.l.b16 %v1017
      %v1264 = vunpack.c.h.b16 %v1017
      %v1265 = vunpack.c.l.b16 %v1018
      %v1266 = vunpack.c.l.b16 %v1019
      %v1267 = vunpack.c.h.b16 %v1019
      %v1268 = vunpack.c.l.b16 %v1020
      %v1269 = vunpack.c.l.b16 %v1021
      %v1270 = vunpack.c.h.b16 %v1021
      %v1271 = vunpack.c.l.b16 %v1022
      %v1272 = vunpack.c.l.b16 %v1023
      %v1273 = vunpack.c.h.b16 %v1023
      %v1274 = vunpack.c.l.b16 %v1024
      %v1275 = vunpack.c.l.b16 %v1025
      %v1276 = vunpack.c.h.b16 %v1025
      %v1277 = vunpack.c.l.b16 %v1026
      %v1278 = vunpack.c.l.b16 %v1027
      %v1279 = vunpack.c.h.b16 %v1027
      %v1280 = vunpack.c.l.b16 %v1028
      %v1281 = vunpack.c.l.b16 %v1029
      %v1282 = vunpack.c.h.b16 %v1029
      %v1283 = vunpack.c.l.b16 %v1030
      %v1284 = vunpack.c.l.b16 %v1031
      %v1285 = vunpack.c.h.b16 %v1031
      %v1286 = vunpack.c.l.b16 %v1032
      %v1287 = vunpack.c.l.b16 %v1033
      %v1288 = vunpack.c.h.b16 %v1033
      %v1289 = vunpack.c.l.b16 %v1034
      %v1290 = vunpack.c.l.b16 %v1035
      %v1291 = vunpack.c.h.b16 %v1035
      %v1292 = vunpack.c.l.b16 %v1036
      %v1293 = vunpack.c.l.b16 %v1037
      %v1294 = vunpack.c.h.b16 %v1037
      %v1295 = vunpack.c.l.b16 %v1038
      %v1296 = vpack.c.b16 %v1155, %v1152
      %v1297 = vpack.c.b16 %v1156, %v1153
      %v1298 = vpack.c.b16 %v1157, %v1154
      %v1299 = vpack.c.b16 %v1161, %v1158
      %v1300 = vpack.c.b16 %v1162, %v1159
      %v1301 = vpack.c.b16 %v1163, %v1160
      %v1302 = vpack.c.b16 %v1167, %v1164
      %v1303 = vpack.c.b16 %v1168, %v1165
      %v1304 = vpack.c.b16 %v1169, %v1166
      %v1305 = vpack.c.b16 %v1173, %v1170
      %v1306 = vpack.c.b16 %v1174, %v1171
      %v1307 = vpack.c.b16 %v1175, %v1172
      %v1308 = vpack.c.b16 %v1179, %v1176
      %v1309 = vpack.c.b16 %v1180, %v1177
      %v1310 = vpack.c.b16 %v1181, %v1178
      %v1311 = vpack.c.b16 %v1185, %v1182
      %v1312 = vpack.c.b16 %v1186, %v1183
      %v1313 = vpack.c.b16 %v1187, %v1184
      %v1314 = vpack.c.b16 %v1191, %v1188
      %v1315 = vpack.c.b16 %v1192, %v1189
      %v1316 = vpack.c.b16 %v1193, %v1190
      %v1317 = vpack.c.b16 %v1197, %v1194
      %v1318 = vpack.c.b16 %v1198, %v1195
      %v1319 = vpack.c.b16 %v1199, %v1196
      %v1320 = vpack.c.b16 %v1203, %v1200
      %v1321 = vpack.c.b16 %v1204, %v1201
      %v1322 = vpack.c.b16 %v1205, %v1202
      %v1323 = vpack.c.b16 %v1209, %v1206
      %v1324 = vpack.c.b16 %v1210, %v1207
      %v1325 = vpack.c.b16 %v1211, %v1208
      %v1326 = vpack.c.b16 %v1215, %v1212
      %v1327 = vpack.c.b16 %v1216, %v1213
      %v1328 = vpack.c.b16 %v1217, %v1214
      %v1329 = vpack.c.b16 %v1221, %v1218
      %v1330 = vpack.c.b16 %v1222, %v1219
      %v1331 = vpack.c.b16 %v1223, %v1220
      %v1332 = vpack.c.b16 %v1227, %v1224
      %v1333 = vpack.c.b16 %v1228, %v1225
      %v1334 = vpack.c.b16 %v1229, %v1226
      %v1335 = vpack.c.b16 %v1233, %v1230
      %v1336 = vpack.c.b16 %v1234, %v1231
      %v1337 = vpack.c.b16 %v1235, %v1232
      %v1338 = vpack.c.b16 %v1239, %v1236
      %v1339 = vpack.c.b16 %v1240, %v1237
      %v1340 = vpack.c.b16 %v1241, %v1238
      %v1341 = vpack.c.b16 %v1245, %v1242
      %v1342 = vpack.c.b16 %v1246, %v1243
      %v1343 = vpack.c.b16 %v1247, %v1244
      %v1344 = vpack.c.b16 %v1251, %v1248
      %v1345 = vpack.c.b16 %v1252, %v1249
      %v1346 = vpack.c.b16 %v1253, %v1250
      %v1347 = vpack.c.b16 %v1257, %v1254
      %v1348 = vpack.c.b16 %v1258, %v1255
      %v1349 = vpack.c.b16 %v1259, %v1256
      %v1350 = vpack.c.b16 %v1263, %v1260
      %v1351 = vpack.c.b16 %v1264, %v1261
      %v1352 = vpack.c.b16 %v1265, %v1262
      %v1353 = vpack.c.b16 %v1269, %v1266
      %v1354 = vpack.c.b16 %v1270, %v1267
      %v1355 = vpack.c.b16 %v1271, %v1268
      %v1356 = vpack.c.b16 %v1275, %v1272
      %v1357 = vpack.c.b16 %v1276, %v1273
      %v1358 = vpack.c.b16 %v1277, %v1274
      %v1359 = vpack.c.b16 %v1281, %v1278
      %v1360 = vpack.c.b16 %v1282, %v1279
      %v1361 = vpack.c.b16 %v1283, %v1280
      %v1362 = vpack.c.b16 %v1287, %v1284
      %v1363 = vpack.c.b16 %v1288, %v1285
      %v1364 = vpack.c.b16 %v1289, %v1286
      %v1365 = vpack.c.b16 %v1293, %v1290
      %v1366 = vpack.c.b16 %v1294, %v1291
      %v1367 = vpack.c.b16 %v1295, %v1292
      %1440 = vmatprep.subr.bf16.mxu0 %v1318
      %1441 = vmatpush1.bf16.msra.mxu0 %v1317
      %1442 = vmatprep.subr.bf16.mxu0 %v1315
      %1443 = vmatpush1.bf16.msra.mxu0 %v1314
      %1444 = vmatprep.subr.bf16.mxu0 %v1312
      %1445 = vmatpush1.bf16.msra.mxu0 %v1311
      %1446 = vmatprep.subr.bf16.mxu0 %v1309
      %1447 = vmatpush1.bf16.msra.mxu0 %v1308
      %1448 = vmatprep.subr.bf16.mxu0 %v1306
      %1449 = vmatpush1.bf16.msra.mxu0 %v1305
      %1450 = vmatprep.subr.bf16.mxu0 %v1303
      %1451 = vmatpush1.bf16.msra.mxu0 %v1302
      %1452 = vmatprep.subr.bf16.mxu0 %v1300
      %1453 = vmatpush1.bf16.msra.mxu0 %v1299
      %1454 = vmatprep.subr.bf16.mxu0 %v1297
      %1455 = vmatpush1.bf16.msra.mxu0 %v1296
      %1456 = vmatprep.subr.bf16.mxu0 %v1342
      %1457 = vmatpush2.bf16.msra.mxu0 %v1341
      %1458 = vmatprep.subr.bf16.mxu0 %v1339
      %1459 = vmatpush2.bf16.msra.mxu0 %v1338
      %1460 = vmatprep.subr.bf16.mxu0 %v1336
      %1461 = vmatpush2.bf16.msra.mxu0 %v1335
      %1462 = vmatprep.subr.bf16.mxu0 %v1333
      %1463 = vmatpush2.bf16.msra.mxu0 %v1332
      %1464 = vmatprep.subr.bf16.mxu0 %v1330
      %1465 = vmatpush2.bf16.msra.mxu0 %v1329
      %1466 = vmatprep.subr.bf16.mxu0 %v1327
      %1467 = vmatpush2.bf16.msra.mxu0 %v1326
      %1468 = vmatprep.subr.bf16.mxu0 %v1324
      %1469 = vmatpush2.bf16.msra.mxu0 %v1323
      %1470 = vmatprep.subr.bf16.mxu0 %v1321
      %1471 = vmatpush2.bf16.msra.mxu0 %v1320
      %1472 = vmatprep.mubr.bf16.mxu0 %v941
      %1473 = vmatmul.mubr.bf16.gmra.mxu0 %v940
      %v1474 = vpop.f32.mrf.mxu0
      %v1475 = vadd.f32 %v1044, %v1474
      %v1476 = vpop.f32.mrf.mxu0
      %v1477 = vadd.f32 %v1048, %v1476
      %v1478 = vpop.f32.mrf.mxu0
      %v1479 = vpop.f32.mrf.mxu0
      %1480 = vdwg.mxu0
      %1481 = vmatprep.subr.bf16.mxu0 %v1366
      %1482 = vmatpush1.bf16.msra.mxu0 %v1365
      %1483 = vmatprep.subr.bf16.mxu0 %v1363
      %1484 = vmatpush1.bf16.msra.mxu0 %v1362
      %1485 = vmatprep.subr.bf16.mxu0 %v1360
      %1486 = vmatpush1.bf16.msra.mxu0 %v1359
      %1487 = vmatprep.subr.bf16.mxu0 %v1357
      %1488 = vmatpush1.bf16.msra.mxu0 %v1356
      %1489 = vmatprep.subr.bf16.mxu0 %v1354
      %1490 = vmatpush1.bf16.msra.mxu0 %v1353
      %1491 = vmatprep.subr.bf16.mxu0 %v1351
      %1492 = vmatpush1.bf16.msra.mxu0 %v1350
      %1493 = vmatprep.subr.bf16.mxu0 %v1348
      %1494 = vmatpush1.bf16.msra.mxu0 %v1347
      %1495 = vmatprep.subr.bf16.mxu0 %v1345
      %1496 = vmatpush1.bf16.msra.mxu0 %v1344
      %1497 = vmatprep.subr.bf16.mxu0 0
      %1498 = vmatpush2.bf16.msra.mxu0 0
      %1499 = vmatprep.subr.bf16.mxu0 0
      %1500 = vmatpush2.bf16.msra.mxu0 0
      %1501 = vmatprep.subr.bf16.mxu0 0
      %1502 = vmatpush2.bf16.msra.mxu0 0
      %1503 = vmatprep.subr.bf16.mxu0 0
      %1504 = vmatpush2.bf16.msra.mxu0 0
      %1505 = vmatprep.subr.bf16.mxu0 0
      %1506 = vmatpush2.bf16.msra.mxu0 0
      %1507 = vmatprep.subr.bf16.mxu0 0
      %1508 = vmatpush2.bf16.msra.mxu0 0
      %1509 = vmatprep.subr.bf16.mxu0 0
      %1510 = vmatpush2.bf16.msra.mxu0 0
      %1511 = vmatprep.subr.bf16.mxu0 0
      %1512 = vmatpush2.bf16.msra.mxu0 0
      %1513 = vmatprep.mubr.bf16.mxu0 0
      %1514 = vmatmul.mubr.bf16.gmra.mxu0 %v942
      %v1515 = vpop.f32.mrf.mxu0
      %v1516 = vadd.f32 %v1475, %v1515
      %v1517 = vpop.f32.mrf.mxu0
      %v1518 = vadd.f32 %v1477, %v1517
      %v1519 = vpop.f32.mrf.mxu0
      %v1520 = vpop.f32.mrf.mxu0
      %1521 = vdwg.mxu0
      %1522 = vmatprep.subr.bf16.mxu0 0
      %1523 = vmatpush1.bf16.msra.mxu0 %v1319
      %1524 = vmatprep.subr.bf16.mxu0 0
      %1525 = vmatpush1.bf16.msra.mxu0 %v1316
      %1526 = vmatprep.subr.bf16.mxu0 0
      %1527 = vmatpush1.bf16.msra.mxu0 %v1313
      %1528 = vmatprep.subr.bf16.mxu0 0
      %1529 = vmatpush1.bf16.msra.mxu0 %v1310
      %1530 = vmatprep.subr.bf16.mxu0 0
      %1531 = vmatpush1.bf16.msra.mxu0 %v1307
      %1532 = vmatprep.subr.bf16.mxu0 0
      %1533 = vmatpush1.bf16.msra.mxu0 %v1304
      %1534 = vmatprep.subr.bf16.mxu0 0
      %1535 = vmatpush1.bf16.msra.mxu0 %v1301
      %1536 = vmatprep.subr.bf16.mxu0 0
      %1537 = vmatpush1.bf16.msra.mxu0 %v1298
      %1538 = vmatprep.subr.bf16.mxu0 0
      %1539 = vmatpush2.bf16.msra.mxu0 %v1343
      %1540 = vmatprep.subr.bf16.mxu0 0
      %1541 = vmatpush2.bf16.msra.mxu0 %v1340
      %1542 = vmatprep.subr.bf16.mxu0 0
      %1543 = vmatpush2.bf16.msra.mxu0 %v1337
      %1544 = vmatprep.subr.bf16.mxu0 0
      %1545 = vmatpush2.bf16.msra.mxu0 %v1334
      %1546 = vmatprep.subr.bf16.mxu0 0
      %1547 = vmatpush2.bf16.msra.mxu0 %v1331
      %1548 = vmatprep.subr.bf16.mxu0 0
      %1549 = vmatpush2.bf16.msra.mxu0 %v1328
      %1550 = vmatprep.subr.bf16.mxu0 0
      %1551 = vmatpush2.bf16.msra.mxu0 %v1325
      %1552 = vmatprep.subr.bf16.mxu0 0
      %1553 = vmatpush2.bf16.msra.mxu0 %v1322
      %1554 = vmatprep.mubr.bf16.mxu0 %v941
      %1555 = vmatmul.mubr.bf16.gmra.mxu0 %v940
      %v1556 = vpop.f32.mrf.mxu0
      %v1557 = vadd.f32 %v1052, %v1556
      %v1558 = vpop.f32.mrf.mxu0
      %v1559 = vpop.f32.mrf.mxu0
      %v1560 = vpop.f32.mrf.mxu0
      %1561 = vdwg.mxu0
      %1562 = vmatprep.subr.bf16.mxu0 0
      %1563 = vmatpush1.bf16.msra.mxu0 %v1367
      %1564 = vmatprep.subr.bf16.mxu0 0
      %1565 = vmatpush1.bf16.msra.mxu0 %v1364
      %1566 = vmatprep.subr.bf16.mxu0 0
      %1567 = vmatpush1.bf16.msra.mxu0 %v1361
      %1568 = vmatprep.subr.bf16.mxu0 0
      %1569 = vmatpush1.bf16.msra.mxu0 %v1358
      %1570 = vmatprep.subr.bf16.mxu0 0
      %1571 = vmatpush1.bf16.msra.mxu0 %v1355
      %1572 = vmatprep.subr.bf16.mxu0 0
      %1573 = vmatpush1.bf16.msra.mxu0 %v1352
      %1574 = vmatprep.subr.bf16.mxu0 0
      %1575 = vmatpush1.bf16.msra.mxu0 %v1349
      %1576 = vmatprep.subr.bf16.mxu0 0
      %1577 = vmatpush1.bf16.msra.mxu0 %v1346
      %1578 = vmatprep.subr.bf16.mxu0 0
      %1579 = vmatpush2.bf16.msra.mxu0 0
      %1580 = vmatprep.subr.bf16.mxu0 0
      %1581 = vmatpush2.bf16.msra.mxu0 0
      %1582 = vmatprep.subr.bf16.mxu0 0
      %1583 = vmatpush2.bf16.msra.mxu0 0
      %1584 = vmatprep.subr.bf16.mxu0 0
      %1585 = vmatpush2.bf16.msra.mxu0 0
      %1586 = vmatprep.subr.bf16.mxu0 0
      %1587 = vmatpush2.bf16.msra.mxu0 0
      %1588 = vmatprep.subr.bf16.mxu0 0
      %1589 = vmatpush2.bf16.msra.mxu0 0
      %1590 = vmatprep.subr.bf16.mxu0 0
      %1591 = vmatpush2.bf16.msra.mxu0 0
      %1592 = vmatprep.subr.bf16.mxu0 0
      %1593 = vmatpush2.bf16.msra.mxu0 0
      %1594 = vmatprep.mubr.bf16.mxu0 0
      %1595 = vmatmul.mubr.bf16.gmra.mxu0 %v942
      %v1596 = vpop.f32.mrf.mxu0
      %v1597 = vadd.f32 %v1557, %v1596
      %v1598 = vpop.f32.mrf.mxu0
      %v1599 = vpop.f32.mrf.mxu0
      %v1600 = vpop.f32.mrf.mxu0
      %1601 = vdwg.mxu0
      %v1602 = vld [vmem:[%s239] sm:$0x1f]
      %v1603 = vld [vmem:[%s239 + $0x8] sm:$0x1f]
      %v1604 = vld [vmem:[%s239 + $0x10] sm:$0x1f]
      %v1605 = vld [vmem:[%s3] sm:$0x7]
      %v1607 = vlaneseq
      %v1608 = vshrl.u32 %v1607, 7
      %v1609 = vsub.s32 0, %v1608
      %v1610 = vrot.slane %v1605, %v1609
      %v1611 = vlaneseq
      %v1612 = vshrl.u32 %v1611, 7
      %v1613 = vsub.s32 1, %v1612
      %v1614 = vrot.slane %v1605, %v1613
      %v1615 = vlaneseq
      %v1616 = vshrl.u32 %v1615, 7
      %v1617 = vsub.s32 2, %v1616
      %v1618 = vrot.slane %v1605, %v1617
      %v1622 = vmul.f32 %v1610, %v1516
      %v1623 = vmul.f32 %v1614, %v1518
      %v1624 = vmul.f32 %v1618, %v1597
      %v1625 = vadd.f32 %v1602, %v1622
      %v1626 = vadd.f32 %v1603, %v1623
      %v1627 = vadd.f32 %v1604, %v1624
      %1628 = vst [vmem:[%s244] sm:$0x1f] %v1625
      %1629 = vst [vmem:[%s244 + $0x8] sm:$0x1f] %v1626
      %1630 = vst [vmem:[%s244 + $0x10] sm:$0x1f] %v1627
      %p1631 = scmp.lt.s32.totalorder %s16, 1
      %s1632 = scalar_select %p1631, %s16, 1
      %s1633 = smul.addr %s1632, 3
      %s1634 = smul.addr %s1633, 8
      %s1635 = scalar_lea.vmem %s5, %s1634
      // Predicated region
      $region41: #{closed_call.11} parent=39 // pred_check
        %p1636 = pneg %p149
      $region42: #{closed_call.11} parent=39 // pred_check_branch
        %1638 = sbr.rel (%p1636) target = $region44
      $region43: #{closed_call.11} parent=39 // pred_region
        _
      $region44: #{closed_call.11} parent=39 // pred_fallthru
        _
    $region40: #{closed_call.11} parent=5 // pred_fallthru
      _
    %p1639 = scmp.le.s32.totalorder 2, %s11
    // Predicated region
    $region45: #{closed_call.11} parent=5 // pred_check
      %p1640 = pneg %p1639
    $region46: #{closed_call.11} parent=5 // pred_check_branch
      %1642 = sbr.rel (%p1640) target = $region48
    $region47: #{closed_call.11} parent=5 // pred_region
      %s1643 = ssub.s32 %s11, 2
      // Predicated region
      $region49: #{closed_call.11} parent=47 // pred_check
        %p1644 = pneg %p155
      $region50: #{closed_call.11} parent=47 // pred_check_branch
        %1646 = sbr.rel (%p1644) target = $region52
      $region51: #{closed_call.11} parent=47 // pred_region
        %p1647 = scmp.lt.s32.totalorder %s17, 1
        %s1648 = scalar_select %p1647, %s17, 1
        %s1649 = smul.addr %s1648, 3
        %s1650 = smul.addr %s1649, 8
        %s1651 = scalar_lea.vmem %s5, %s1650
      $region52: #{closed_call.11} parent=47 // pred_fallthru
        _
    $region48: #{closed_call.11} parent=5 // pred_fallthru
      _
  $region6: #{closed_call.11} parent=0 // loop_footer
    %s15 = sadd.s32 1, %s11
  $region7: #{closed_call.11} parent=0 // loop_footer_branch
    %10 = sbr.rel target = $region3
  $region8: #{closed_call.11} parent=0 // loop_exit
    _

// kernel: closed_call.10
$region0: #{closed_call.10}
  #allocation0 [shape = 'u32[]', space=smem, size = 0x4, offset = 0x4, fixed_abs, tag = 'smem constant byte address 0x4 - core index']
  #allocation1 [shape = 'u32[144,128]{1,0:T(1,128)}', space=vmem, size = 0x12000, scoped, tag = 'internal scratch']
  %s0 = inlined_call_operand.vmem [shape: f32[2,5,384], index: 0, kind: input, shape index: {}]
  %s1 = inlined_call_operand.vmem [shape: f32[1,384], index: 1, kind: input, shape index: {}]
  %s2 = inlined_call_operand.vmem [shape: f32[1,384], index: 2, kind: input, shape index: {}]
  %s3 = inlined_call_operand.vmem [shape: bf16[384,1152], index: 3, kind: input, shape index: {}]
  %s4 = inlined_call_operand.vmem [shape: f32[1,1152], index: 4, kind: input, shape index: {}]
  %s5 = inlined_call_operand.vmem [shape: f32[2,5,1152], index: 5, kind: output, shape index: {}]
  %s6 = sld [smem:[#allocation0]]
  $region53: #{closed_call.10} parent=0
    _
  %s8 = ssub.s32 1, %s6
  %s9 = scalar_select 0, %s8, %s6
  loop: start=0, step=1, limit=4
  $region2: #{closed_call.10} parent=0 // loop_pre_header
    _
  $region3: #{closed_call.10} parent=0 // loop_header
    %s11 = sphi 0, %s15
    %p12 = scmp.ge.s32.totalorder %s11, 4
    %s21 = sphi 0, %s23
    %s24 = sphi 0, %s21
    %s25 = sphi 0, %s24
    %s41 = sphi 0, %s25
    %s45 = sphi 0, %s45
    %s47 = sphi 0, %s45
    %s48 = sphi 0, %s47
    %s62 = sphi 0, %s48
    %s66 = sphi 0, %s66
    %s68 = sphi 0, %s66
    %s69 = sphi 0, %s68
    %s83 = sphi 0, %s69
    %s87 = sphi 0, %s87
    %s89 = sphi 0, %s87
    %s90 = sphi 0, %s89
    %s104 = sphi 0, %s90
    %s108 = sphi 0, %s108
    %s110 = sphi 0, %s108
    %s111 = sphi 0, %s110
    %s125 = sphi 0, %s111
    %s131 = sphi 0, %s133
    %s134 = sphi 0, %s131
    %s135 = sphi 0, %s134
    %s151 = sphi 0, %s135
  $region4: #{closed_call.10} parent=0 // loop_header_branch
    %14 = sbr.rel (%p12) target = $region8
  $region5: #{closed_call.10} parent=0 // loop_body
    %s16 = ssub.s32 %s11, 1
    %s17 = ssub.s32 %s11, 2
    %s18 = sadd.s32 %s11, 1
    %s19 = ssub.s32 %s11, %s18
    %p20 = scmp.eq.s32.totalorder %s19, 0
    %s22 = sadd.s32 %s21, 1
    %s23 = scalar_select %p20, %s21, %s22
    %p26 = pneg %p20
    %p27 = scmp.eq.s32.totalorder %s11, 1
    %p28 = por %p26, %p27
    %p29 = scmp.ne.s32.totalorder %s21, %s24
    %p30 = scmp.eq.s32.totalorder %s11, 0
    %p31 = por %p29, %p30
    %p32 = scmp.ne.s32.totalorder %s21, %s24
    %p33 = scmp.eq.s32.totalorder %s16, 1
    %p34 = por %p32, %p33
    %p35 = scmp.ne.s32.totalorder %s24, %s25
    %p36 = scmp.eq.s32.totalorder %s16, 0
    %p37 = por %p35, %p36
    %p38 = scmp.ne.s32.totalorder %s24, %s25
    %p39 = scmp.eq.s32.totalorder %s17, 1
    %p40 = por %p38, %p39
    %p42 = scmp.ne.s32.totalorder %s25, %s41
    %p43 = scmp.eq.s32.totalorder %s17, 0
    %p44 = por %p42, %p43
    %s46 = sadd.s32 %s45, 1
    %p49 = scmp.eq.s32.totalorder %s11, 1
    %p50 = scmp.ne.s32.totalorder %s45, %s47
    %p51 = scmp.eq.s32.totalorder %s11, 0
    %p52 = por %p50, %p51
    %p53 = scmp.ne.s32.totalorder %s45, %s47
    %p54 = scmp.eq.s32.totalorder %s16, 1
    %p55 = por %p53, %p54
    %p56 = scmp.ne.s32.totalorder %s47, %s48
    %p57 = scmp.eq.s32.totalorder %s16, 0
    %p58 = por %p56, %p57
    %p59 = scmp.ne.s32.totalorder %s47, %s48
    %p60 = scmp.eq.s32.totalorder %s17, 1
    %p61 = por %p59, %p60
    %p63 = scmp.ne.s32.totalorder %s48, %s62
    %p64 = scmp.eq.s32.totalorder %s17, 0
    %p65 = por %p63, %p64
    %s67 = sadd.s32 %s66, 1
    %p70 = scmp.eq.s32.totalorder %s11, 1
    %p71 = scmp.ne.s32.totalorder %s66, %s68
    %p72 = scmp.eq.s32.totalorder %s11, 0
    %p73 = por %p71, %p72
    %p74 = scmp.ne.s32.totalorder %s66, %s68
    %p75 = scmp.eq.s32.totalorder %s16, 1
    %p76 = por %p74, %p75
    %p77 = scmp.ne.s32.totalorder %s68, %s69
    %p78 = scmp.eq.s32.totalorder %s16, 0
    %p79 = por %p77, %p78
    %p80 = scmp.ne.s32.totalorder %s68, %s69
    %p81 = scmp.eq.s32.totalorder %s17, 1
    %p82 = por %p80, %p81
    %p84 = scmp.ne.s32.totalorder %s69, %s83
    %p85 = scmp.eq.s32.totalorder %s17, 0
    %p86 = por %p84, %p85
    %s88 = sadd.s32 %s87, 1
    %p91 = scmp.eq.s32.totalorder %s11, 1
    %p92 = scmp.ne.s32.totalorder %s87, %s89
    %p93 = scmp.eq.s32.totalorder %s11, 0
    %p94 = por %p92, %p93
    %p95 = scmp.ne.s32.totalorder %s87, %s89
    %p96 = scmp.eq.s32.totalorder %s16, 1
    %p97 = por %p95, %p96
    %p98 = scmp.ne.s32.totalorder %s89, %s90
    %p99 = scmp.eq.s32.totalorder %s16, 0
    %p100 = por %p98, %p99
    %p101 = scmp.ne.s32.totalorder %s89, %s90
    %p102 = scmp.eq.s32.totalorder %s17, 1
    %p103 = por %p101, %p102
    %p105 = scmp.ne.s32.totalorder %s90, %s104
    %p106 = scmp.eq.s32.totalorder %s17, 0
    %p107 = por %p105, %p106
    %s109 = sadd.s32 %s108, 1
    %p112 = scmp.eq.s32.totalorder %s11, 1
    %p113 = scmp.ne.s32.totalorder %s108, %s110
    %p114 = scmp.eq.s32.totalorder %s11, 0
    %p115 = por %p113, %p114
    %p116 = scmp.ne.s32.totalorder %s108, %s110
    %p117 = scmp.eq.s32.totalorder %s16, 1
    %p118 = por %p116, %p117
    %p119 = scmp.ne.s32.totalorder %s110, %s111
    %p120 = scmp.eq.s32.totalorder %s16, 0
    %p121 = por %p119, %p120
    %p122 = scmp.ne.s32.totalorder %s110, %s111
    %p123 = scmp.eq.s32.totalorder %s17, 1
    %p124 = por %p122, %p123
    %p126 = scmp.ne.s32.totalorder %s111, %s125
    %p127 = scmp.eq.s32.totalorder %s17, 0
    %p128 = por %p126, %p127
    %s129 = ssub.s32 %s11, %s18
    %p130 = scmp.eq.s32.totalorder %s129, 0
    %s132 = sadd.s32 %s131, 1
    %s133 = scalar_select %p130, %s131, %s132
    %p136 = pneg %p130
    %p137 = scmp.eq.s32.totalorder %s11, 1
    %p138 = por %p136, %p137
    %p139 = scmp.ne.s32.totalorder %s131, %s134
    %p140 = scmp.eq.s32.totalorder %s11, 0
    %p141 = por %p139, %p140
    %p142 = scmp.ne.s32.totalorder %s131, %s134
    %p143 = scmp.eq.s32.totalorder %s16, 1
    %p144 = por %p142, %p143
    %p145 = scmp.ne.s32.totalorder %s134, %s135
    %p146 = scmp.eq.s32.totalorder %s16, 0
    %p147 = por %p145, %p146
    %p148 = scmp.ne.s32.totalorder %s134, %s135
    %p149 = scmp.eq.s32.totalorder %s17, 1
    %p150 = por %p148, %p149
    %p152 = scmp.ne.s32.totalorder %s135, %s151
    %p153 = scmp.eq.s32.totalorder %s17, 0
    %p154 = por %p152, %p153
    %p155 = scmp.le.s32.totalorder 1, %s11
    %p156 = scmp.lt.s32.totalorder %s11, 3
    %p157 = pnand %p155, %p156
    %p158 = pneg %p157
    // Predicated region
    $region9: #{closed_call.10} parent=5 // pred_check
      _
    $region10: #{closed_call.10} parent=5 // pred_check_branch
      %160 = sbr.rel (%p157) target = $region12
    $region11: #{closed_call.10} parent=5 // pred_region
      %s161 = ssub.s32 %s11, 1
      // Predicated region
      $region13: #{closed_call.10} parent=11 // pred_check
        %p162 = pneg %p58
      $region14: #{closed_call.10} parent=11 // pred_check_branch
        %164 = sbr.rel (%p162) target = $region16
      $region15: #{closed_call.10} parent=11 // pred_region
        _
      $region16: #{closed_call.10} parent=11 // pred_fallthru
        _
      // Predicated region
      $region17: #{closed_call.10} parent=11 // pred_check
        %p165 = pneg %p79
      $region18: #{closed_call.10} parent=11 // pred_check_branch
        %167 = sbr.rel (%p165) target = $region20
      $region19: #{closed_call.10} parent=11 // pred_region
        _
      $region20: #{closed_call.10} parent=11 // pred_fallthru
        _
      // Predicated region
      $region21: #{closed_call.10} parent=11 // pred_check
        %p168 = pneg %p100
      $region22: #{closed_call.10} parent=11 // pred_check_branch
        %170 = sbr.rel (%p168) target = $region24
      $region23: #{closed_call.10} parent=11 // pred_region
        _
      $region24: #{closed_call.10} parent=11 // pred_fallthru
        _
      // Predicated region
      $region25: #{closed_call.10} parent=11 // pred_check
        %p171 = pneg %p121
      $region26: #{closed_call.10} parent=11 // pred_check_branch
        %173 = sbr.rel (%p171) target = $region28
      $region27: #{closed_call.10} parent=11 // pred_region
        _
      $region28: #{closed_call.10} parent=11 // pred_fallthru
        _
    $region12: #{closed_call.10} parent=5 // pred_fallthru
      _
    %p174 = scmp.lt.s32.totalorder %s11, 2
    // Predicated region
    $region29: #{closed_call.10} parent=5 // pred_check
      %p175 = pneg %p174
    $region30: #{closed_call.10} parent=5 // pred_check_branch
      %177 = sbr.rel (%p175) target = $region32
    $region31: #{closed_call.10} parent=5 // pred_region
      // Predicated region
      $region33: #{closed_call.10} parent=31 // pred_check
        %p178 = pneg %p31
      $region34: #{closed_call.10} parent=31 // pred_check_branch
        %180 = sbr.rel (%p178) target = $region36
      $region35: #{closed_call.10} parent=31 // pred_region
        %p181 = scmp.lt.s32.totalorder %s11, 1
        %s182 = scalar_select %p181, %s11, 1
        %s183 = smul.addr %s182, 3
        %s184 = smul.addr %s183, 8
        %s185 = scalar_lea.vmem %s0, %s184
      $region36: #{closed_call.10} parent=31 // pred_fallthru
        _
    $region32: #{closed_call.10} parent=5 // pred_fallthru
      _
    %p186 = scmp.le.s32.totalorder 1, %s11
    %p187 = scmp.lt.s32.totalorder %s11, 3
    %p188 = pnand %p186, %p187
    %p189 = pneg %p188
    // Predicated region
    $region37: #{closed_call.10} parent=5 // pred_check
      _
    $region38: #{closed_call.10} parent=5 // pred_check_branch
      %191 = sbr.rel (%p188) target = $region40
    $region39: #{closed_call.10} parent=5 // pred_region
      %s192 = ssub.s32 %s11, 1
      %p193 = scmp.lt.s32.totalorder %s16, 1
      %s194 = scalar_select %p193, %s16, 1
      %s195 = smul.addr %s194, 3
      %s196 = smul.addr %s195, 8
      %s197 = scalar_lea.vmem %s0, %s196
      %p198 = pneg %p37
      %p199 = pneg %p34
      %p200 = pneg %p58
      %p201 = pneg %p55
      %p202 = pneg %p79
      %p203 = pneg %p76
      %p204 = pneg %p100
      %p205 = pneg %p97
      %p206 = pneg %p121
      %p207 = pneg %p118
      %p208 = pneg %p147
      %p209 = pneg %p144
      %p210 = scmp.lt.s32.totalorder %s16, 1
      %s211 = scalar_select %p210, %s16, 1
      %s212 = smul.addr %s211, 9
      %s213 = smul.addr %s212, 8
      %s214 = scalar_lea.vmem %s5, %s213
      %p215 = scmp.lt.s32.totalorder %s16, 1
      %s216 = scalar_select %p215, %s16, 1
      %s217 = smul.addr %s216, 3
      %s218 = smul.addr %s217, 8
      %s219 = scalar_lea.vmem %s0, %s218
      %p220 = scmp.lt.s32.totalorder %s16, 1
      %s221 = scalar_select %p220, %s16, 1
      %s222 = smul.addr %s221, 9
      %s223 = smul.addr %s222, 8
      %s224 = scalar_lea.vmem %s5, %s223
      %v226 = vld [vmem:[%s219] sm:$0x1f]
      %v227 = vld [vmem:[%s219 + $0x8] sm:$0x1f]
      %v228 = vld [vmem:[%s219 + $0x10] sm:$0x1f]
      %v229 = vld [vmem:[%s1] sm:$0x7]
      %v230 = vld [vmem:[%s2] sm:$0x7]
      %vm231 = vcmask 1044480
      %v232 = vsel %vm231, %v226, 0.0
      %v233 = vsel %vm231, %v227, 0.0
      %v234 = vadd.f32 %v232, %v233
      %v235 = vsel %vm231, %v228, 0.0
      %v236 = vadd.f32 %v234, %v235
      %237 = vadd.xlane.f32.xlu0 %v236
      %v238 = vpop.xlane.xlu0 %237
      %v239 = vrcp.pop 384.0
      %v240 = vmul.f32 %v238, %v239
      %v241 = vsub.f32 %v226, %v240
      %v242 = vsub.f32 %v227, %v240
      %v243 = vsub.f32 %v228, %v240
      %v244 = vmul.f32 %v241, %v241
      %v245 = vmul.f32 %v242, %v242
      %v246 = vmul.f32 %v243, %v243
      %v247 = vsel %vm231, %v244, 0.0
      %v248 = vsel %vm231, %v245, 0.0
      %v249 = vadd.f32 %v247, %v248
      %v250 = vsel %vm231, %v246, 0.0
      %v251 = vadd.f32 %v249, %v250
      %252 = vadd.xlane.f32.xlu0 %v251
      %v253 = vpop.xlane.xlu0 %252
      %v254 = vmul.f32 %v253, %v239
      %v255 = vadd.f32 %v254, 1e-06
      %v256 = vrsqrt.pop %v255
      %v257 = vmul.f32 %v241, %v256
      %v258 = vmul.f32 %v242, %v256
      %v259 = vmul.f32 %v243, %v256
      %v261 = vlaneseq
      %v262 = vshrl.u32 %v261, 7
      %v263 = vsub.s32 0, %v262
      %v264 = vrot.slane %v229, %v263
      %v265 = vlaneseq
      %v266 = vshrl.u32 %v265, 7
      %v267 = vsub.s32 1, %v266
      %v268 = vrot.slane %v229, %v267
      %v269 = vlaneseq
      %v270 = vshrl.u32 %v269, 7
      %v271 = vsub.s32 2, %v270
      %v272 = vrot.slane %v229, %v271
      %v276 = vmul.f32 %v257, %v264
      %v277 = vmul.f32 %v258, %v268
      %v278 = vmul.f32 %v259, %v272
      %v280 = vlaneseq
      %v281 = vshrl.u32 %v280, 7
      %v282 = vsub.s32 0, %v281
      %v283 = vrot.slane %v230, %v282
      %v284 = vlaneseq
      %v285 = vshrl.u32 %v284, 7
      %v286 = vsub.s32 1, %v285
      %v287 = vrot.slane %v230, %v286
      %v288 = vlaneseq
      %v289 = vshrl.u32 %v288, 7
      %v290 = vsub.s32 2, %v289
      %v291 = vrot.slane %v230, %v290
      %v295 = vadd.f32 %v276, %v283
      %v296 = vadd.f32 %v277, %v287
      %v297 = vadd.f32 %v278, %v291
      %v298 = vpack.c.bf16 %v295, %v295
      %v299 = vpack.c.bf16 %v296, %v296
      %v300 = vpack.c.bf16 %v297, %v297
      %v301 = vld [vmem:[%s3] sm:$0xff]
      %v302 = vld [vmem:[%s3 + $0x8] sm:$0xff]
      %v303 = vld [vmem:[%s3 + $0x10] sm:$0xff]
      %v304 = vld [vmem:[%s3 + $0x18] sm:$0xff]
      %v305 = vld [vmem:[%s3 + $0x20] sm:$0xf]
      %v306 = vld [vmem:[%s3 + $0x24] sm:$0xff]
      %v307 = vld [vmem:[%s3 + $0x2c] sm:$0xff]
      %v308 = vld [vmem:[%s3 + $0x34] sm:$0xff]
      %v309 = vld [vmem:[%s3 + $0x3c] sm:$0xff]
      %v310 = vld [vmem:[%s3 + $0x44] sm:$0xf]
      %v311 = vld [vmem:[%s3 + $0x48] sm:$0xff]
      %v312 = vld [vmem:[%s3 + $0x50] sm:$0xff]
      %v313 = vld [vmem:[%s3 + $0x58] sm:$0xff]
      %v314 = vld [vmem:[%s3 + $0x60] sm:$0xff]
      %v315 = vld [vmem:[%s3 + $0x68] sm:$0xf]
      %v316 = vld [vmem:[%s3 + $0x6c] sm:$0xff]
      %v317 = vld [vmem:[%s3 + $0x74] sm:$0xff]
      %v318 = vld [vmem:[%s3 + $0x7c] sm:$0xff]
      %v319 = vld [vmem:[%s3 + $0x84] sm:$0xff]
      %v320 = vld [vmem:[%s3 + $0x8c] sm:$0xf]
      %v321 = vld [vmem:[%s3 + $0x90] sm:$0xff]
      %v322 = vld [vmem:[%s3 + $0x98] sm:$0xff]
      %v323 = vld [vmem:[%s3 + $0xa0] sm:$0xff]
      %v324 = vld [vmem:[%s3 + $0xa8] sm:$0xff]
      %v325 = vld [vmem:[%s3 + $0xb0] sm:$0xf]
      %v326 = vld [vmem:[%s3 + $0xb4] sm:$0xff]
      %v327 = vld [vmem:[%s3 + $0xbc] sm:$0xff]
      %v328 = vld [vmem:[%s3 + $0xc4] sm:$0xff]
      %v329 = vld [vmem:[%s3 + $0xcc] sm:$0xff]
      %v330 = vld [vmem:[%s3 + $0xd4] sm:$0xf]
      %v331 = vld [vmem:[%s3 + $0xd8] sm:$0xff]
      %v332 = vld [vmem:[%s3 + $0xe0] sm:$0xff]
      %v333 = vld [vmem:[%s3 + $0xe8] sm:$0xff]
      %v334 = vld [vmem:[%s3 + $0xf0] sm:$0xff]
      %v335 = vld [vmem:[%s3 + $0xf8] sm:$0xf]
      %v336 = vld [vmem:[%s3 + $0xfc] sm:$0xff]
      %v337 = vld [vmem:[%s3 + $0x104] sm:$0xff]
      %v338 = vld [vmem:[%s3 + $0x10c] sm:$0xff]
      %v339 = vld [vmem:[%s3 + $0x114] sm:$0xff]
      %v340 = vld [vmem:[%s3 + $0x11c] sm:$0xf]
      %v341 = vld [vmem:[%s3 + $0x120] sm:$0xff]
      %v342 = vld [vmem:[%s3 + $0x128] sm:$0xff]
      %v343 = vld [vmem:[%s3 + $0x130] sm:$0xff]
      %v344 = vld [vmem:[%s3 + $0x138] sm:$0xff]
      %v345 = vld [vmem:[%s3 + $0x140] sm:$0xf]
      %v346 = vld [vmem:[%s3 + $0x144] sm:$0xff]
      %v347 = vld [vmem:[%s3 + $0x14c] sm:$0xff]
      %v348 = vld [vmem:[%s3 + $0x154] sm:$0xff]
      %v349 = vld [vmem:[%s3 + $0x15c] sm:$0xff]
      %v350 = vld [vmem:[%s3 + $0x164] sm:$0xf]
      %v351 = vld [vmem:[%s3 + $0x168] sm:$0xff]
      %v352 = vld [vmem:[%s3 + $0x170] sm:$0xff]
      %v353 = vld [vmem:[%s3 + $0x178] sm:$0xff]
      %v354 = vld [vmem:[%s3 + $0x180] sm:$0xff]
      %v355 = vld [vmem:[%s3 + $0x188] sm:$0xf]
      %v356 = vld [vmem:[%s3 + $0x18c] sm:$0xff]
      %v357 = vld [vmem:[%s3 + $0x194] sm:$0xff]
      %v358 = vld [vmem:[%s3 + $0x19c] sm:$0xff]
      %v359 = vld [vmem:[%s3 + $0x1a4] sm:$0xff]
      %v360 = vld [vmem:[%s3 + $0x1ac] sm:$0xf]
      %v361 = vld [vmem:[%s3 + $0x1b0] sm:$0xff]
      %v362 = vld [vmem:[%s3 + $0x1b8] sm:$0xff]
      %v363 = vld [vmem:[%s3 + $0x1c0] sm:$0xff]
      %v364 = vld [vmem:[%s3 + $0x1c8] sm:$0xff]
      %v365 = vld [vmem:[%s3 + $0x1d0] sm:$0xf]
      %v366 = vld [vmem:[%s3 + $0x1d4] sm:$0xff]
      %v367 = vld [vmem:[%s3 + $0x1dc] sm:$0xff]
      %v368 = vld [vmem:[%s3 + $0x1e4] sm:$0xff]
      %v369 = vld [vmem:[%s3 + $0x1ec] sm:$0xff]
      %v370 = vld [vmem:[%s3 + $0x1f4] sm:$0xf]
      %v371 = vld [vmem:[%s3 + $0x1f8] sm:$0xff]
      %v372 = vld [vmem:[%s3 + $0x200] sm:$0xff]
      %v373 = vld [vmem:[%s3 + $0x208] sm:$0xff]
      %v374 = vld [vmem:[%s3 + $0x210] sm:$0xff]
      %v375 = vld [vmem:[%s3 + $0x218] sm:$0xf]
      %v376 = vld [vmem:[%s3 + $0x21c] sm:$0xff]
      %v377 = vld [vmem:[%s3 + $0x224] sm:$0xff]
      %v378 = vld [vmem:[%s3 + $0x22c] sm:$0xff]
      %v379 = vld [vmem:[%s3 + $0x234] sm:$0xff]
      %v380 = vld [vmem:[%s3 + $0x23c] sm:$0xf]
      %v381 = vld [vmem:[%s3 + $0x240] sm:$0xff]
      %v382 = vld [vmem:[%s3 + $0x248] sm:$0xff]
      %v383 = vld [vmem:[%s3 + $0x250] sm:$0xff]
      %v384 = vld [vmem:[%s3 + $0x258] sm:$0xff]
      %v385 = vld [vmem:[%s3 + $0x260] sm:$0xf]
      %v386 = vld [vmem:[%s3 + $0x264] sm:$0xff]
      %v387 = vld [vmem:[%s3 + $0x26c] sm:$0xff]
      %v388 = vld [vmem:[%s3 + $0x274] sm:$0xff]
      %v389 = vld [vmem:[%s3 + $0x27c] sm:$0xff]
      %v390 = vld [vmem:[%s3 + $0x284] sm:$0xf]
      %v391 = vld [vmem:[%s3 + $0x288] sm:$0xff]
      %v392 = vld [vmem:[%s3 + $0x290] sm:$0xff]
      %v393 = vld [vmem:[%s3 + $0x298] sm:$0xff]
      %v394 = vld [vmem:[%s3 + $0x2a0] sm:$0xff]
      %v395 = vld [vmem:[%s3 + $0x2a8] sm:$0xf]
      %v396 = vld [vmem:[%s3 + $0x2ac] sm:$0xff]
      %v397 = vld [vmem:[%s3 + $0x2b4] sm:$0xff]
      %v398 = vld [vmem:[%s3 + $0x2bc] sm:$0xff]
      %v399 = vld [vmem:[%s3 + $0x2c4] sm:$0xff]
      %v400 = vld [vmem:[%s3 + $0x2cc] sm:$0xf]
      %v401 = vld [vmem:[%s3 + $0x2d0] sm:$0xff]
      %v402 = vld [vmem:[%s3 + $0x2d8] sm:$0xff]
      %v403 = vld [vmem:[%s3 + $0x2e0] sm:$0xff]
      %v404 = vld [vmem:[%s3 + $0x2e8] sm:$0xff]
      %v405 = vld [vmem:[%s3 + $0x2f0] sm:$0xf]
      %v406 = vld [vmem:[%s3 + $0x2f4] sm:$0xff]
      %v407 = vld [vmem:[%s3 + $0x2fc] sm:$0xff]
      %v408 = vld [vmem:[%s3 + $0x304] sm:$0xff]
      %v409 = vld [vmem:[%s3 + $0x30c] sm:$0xff]
      %v410 = vld [vmem:[%s3 + $0x314] sm:$0xf]
      %v411 = vld [vmem:[%s3 + $0x318] sm:$0xff]
      %v412 = vld [vmem:[%s3 + $0x320] sm:$0xff]
      %v413 = vld [vmem:[%s3 + $0x328] sm:$0xff]
      %v414 = vld [vmem:[%s3 + $0x330] sm:$0xff]
      %v415 = vld [vmem:[%s3 + $0x338] sm:$0xf]
      %v416 = vld [vmem:[%s3 + $0x33c] sm:$0xff]
      %v417 = vld [vmem:[%s3 + $0x344] sm:$0xff]
      %v418 = vld [vmem:[%s3 + $0x34c] sm:$0xff]
      %v419 = vld [vmem:[%s3 + $0x354] sm:$0xff]
      %v420 = vld [vmem:[%s3 + $0x35c] sm:$0xf]
      %v421 = vld [vmem:[%s3 + $0x360] sm:$0xff]
      %v422 = vld [vmem:[%s3 + $0x368] sm:$0xff]
      %v423 = vld [vmem:[%s3 + $0x370] sm:$0xff]
      %v424 = vld [vmem:[%s3 + $0x378] sm:$0xff]
      %v425 = vld [vmem:[%s3 + $0x380] sm:$0xf]
      %v426 = vld [vmem:[%s3 + $0x384] sm:$0xff]
      %v427 = vld [vmem:[%s3 + $0x38c] sm:$0xff]
      %v428 = vld [vmem:[%s3 + $0x394] sm:$0xff]
      %v429 = vld [vmem:[%s3 + $0x39c] sm:$0xff]
      %v430 = vld [vmem:[%s3 + $0x3a4] sm:$0xf]
      %v431 = vld [vmem:[%s3 + $0x3a8] sm:$0xff]
      %v432 = vld [vmem:[%s3 + $0x3b0] sm:$0xff]
      %v433 = vld [vmem:[%s3 + $0x3b8] sm:$0xff]
      %v434 = vld [vmem:[%s3 + $0x3c0] sm:$0xff]
      %v435 = vld [vmem:[%s3 + $0x3c8] sm:$0xf]
      %v436 = vld [vmem:[%s3 + $0x3cc] sm:$0xff]
      %v437 = vld [vmem:[%s3 + $0x3d4] sm:$0xff]
      %v438 = vld [vmem:[%s3 + $0x3dc] sm:$0xff]
      %v439 = vld [vmem:[%s3 + $0x3e4] sm:$0xff]
      %v440 = vld [vmem:[%s3 + $0x3ec] sm:$0xf]
      %v441 = vld [vmem:[%s3 + $0x3f0] sm:$0xff]
      %v442 = vld [vmem:[%s3 + $0x3f8] sm:$0xff]
      %v443 = vld [vmem:[%s3 + $0x400] sm:$0xff]
      %v444 = vld [vmem:[%s3 + $0x408] sm:$0xff]
      %v445 = vld [vmem:[%s3 + $0x410] sm:$0xf]
      %v446 = vld [vmem:[%s3 + $0x414] sm:$0xff]
      %v447 = vld [vmem:[%s3 + $0x41c] sm:$0xff]
      %v448 = vld [vmem:[%s3 + $0x424] sm:$0xff]
      %v449 = vld [vmem:[%s3 + $0x42c] sm:$0xff]
      %v450 = vld [vmem:[%s3 + $0x434] sm:$0xf]
      %v451 = vld [vmem:[%s3 + $0x438] sm:$0xff]
      %v452 = vld [vmem:[%s3 + $0x440] sm:$0xff]
      %v453 = vld [vmem:[%s3 + $0x448] sm:$0xff]
      %v454 = vld [vmem:[%s3 + $0x450] sm:$0xff]
      %v455 = vld [vmem:[%s3 + $0x458] sm:$0xf]
      %v456 = vld [vmem:[%s3 + $0x45c] sm:$0xff]
      %v457 = vld [vmem:[%s3 + $0x464] sm:$0xff]
      %v458 = vld [vmem:[%s3 + $0x46c] sm:$0xff]
      %v459 = vld [vmem:[%s3 + $0x474] sm:$0xff]
      %v460 = vld [vmem:[%s3 + $0x47c] sm:$0xf]
      %v461 = vld [vmem:[%s3 + $0x480] sm:$0xff]
      %v462 = vld [vmem:[%s3 + $0x488] sm:$0xff]
      %v463 = vld [vmem:[%s3 + $0x490] sm:$0xff]
      %v464 = vld [vmem:[%s3 + $0x498] sm:$0xff]
      %v465 = vld [vmem:[%s3 + $0x4a0] sm:$0xf]
      %v466 = vld [vmem:[%s3 + $0x4a4] sm:$0xff]
      %v467 = vld [vmem:[%s3 + $0x4ac] sm:$0xff]
      %v468 = vld [vmem:[%s3 + $0x4b4] sm:$0xff]
      %v469 = vld [vmem:[%s3 + $0x4bc] sm:$0xff]
      %v470 = vld [vmem:[%s3 + $0x4c4] sm:$0xf]
      %v471 = vld [vmem:[%s3 + $0x4c8] sm:$0xff]
      %v472 = vld [vmem:[%s3 + $0x4d0] sm:$0xff]
      %v473 = vld [vmem:[%s3 + $0x4d8] sm:$0xff]
      %v474 = vld [vmem:[%s3 + $0x4e0] sm:$0xff]
      %v475 = vld [vmem:[%s3 + $0x4e8] sm:$0xf]
      %v476 = vld [vmem:[%s3 + $0x4ec] sm:$0xff]
      %v477 = vld [vmem:[%s3 + $0x4f4] sm:$0xff]
      %v478 = vld [vmem:[%s3 + $0x4fc] sm:$0xff]
      %v479 = vld [vmem:[%s3 + $0x504] sm:$0xff]
      %v480 = vld [vmem:[%s3 + $0x50c] sm:$0xf]
      %v481 = vld [vmem:[%s3 + $0x510] sm:$0xff]
      %v482 = vld [vmem:[%s3 + $0x518] sm:$0xff]
      %v483 = vld [vmem:[%s3 + $0x520] sm:$0xff]
      %v484 = vld [vmem:[%s3 + $0x528] sm:$0xff]
      %v485 = vld [vmem:[%s3 + $0x530] sm:$0xf]
      %v486 = vld [vmem:[%s3 + $0x534] sm:$0xff]
      %v487 = vld [vmem:[%s3 + $0x53c] sm:$0xff]
      %v488 = vld [vmem:[%s3 + $0x544] sm:$0xff]
      %v489 = vld [vmem:[%s3 + $0x54c] sm:$0xff]
      %v490 = vld [vmem:[%s3 + $0x554] sm:$0xf]
      %v491 = vld [vmem:[%s3 + $0x558] sm:$0xff]
      %v492 = vld [vmem:[%s3 + $0x560] sm:$0xff]
      %v493 = vld [vmem:[%s3 + $0x568] sm:$0xff]
      %v494 = vld [vmem:[%s3 + $0x570] sm:$0xff]
      %v495 = vld [vmem:[%s3 + $0x578] sm:$0xf]
      %v496 = vld [vmem:[%s3 + $0x57c] sm:$0xff]
      %v497 = vld [vmem:[%s3 + $0x584] sm:$0xff]
      %v498 = vld [vmem:[%s3 + $0x58c] sm:$0xff]
      %v499 = vld [vmem:[%s3 + $0x594] sm:$0xff]
      %v500 = vld [vmem:[%s3 + $0x59c] sm:$0xf]
      %v501 = vld [vmem:[%s3 + $0x5a0] sm:$0xff]
      %v502 = vld [vmem:[%s3 + $0x5a8] sm:$0xff]
      %v503 = vld [vmem:[%s3 + $0x5b0] sm:$0xff]
      %v504 = vld [vmem:[%s3 + $0x5b8] sm:$0xff]
      %v505 = vld [vmem:[%s3 + $0x5c0] sm:$0xf]
      %v506 = vld [vmem:[%s3 + $0x5c4] sm:$0xff]
      %v507 = vld [vmem:[%s3 + $0x5cc] sm:$0xff]
      %v508 = vld [vmem:[%s3 + $0x5d4] sm:$0xff]
      %v509 = vld [vmem:[%s3 + $0x5dc] sm:$0xff]
      %v510 = vld [vmem:[%s3 + $0x5e4] sm:$0xf]
      %v511 = vld [vmem:[%s3 + $0x5e8] sm:$0xff]
      %v512 = vld [vmem:[%s3 + $0x5f0] sm:$0xff]
      %v513 = vld [vmem:[%s3 + $0x5f8] sm:$0xff]
      %v514 = vld [vmem:[%s3 + $0x600] sm:$0xff]
      %v515 = vld [vmem:[%s3 + $0x608] sm:$0xf]
      %v516 = vld [vmem:[%s3 + $0x60c] sm:$0xff]
      %v517 = vld [vmem:[%s3 + $0x614] sm:$0xff]
      %v518 = vld [vmem:[%s3 + $0x61c] sm:$0xff]
      %v519 = vld [vmem:[%s3 + $0x624] sm:$0xff]
      %v520 = vld [vmem:[%s3 + $0x62c] sm:$0xf]
      %v521 = vld [vmem:[%s3 + $0x630] sm:$0xff]
      %v522 = vld [vmem:[%s3 + $0x638] sm:$0xff]
      %v523 = vld [vmem:[%s3 + $0x640] sm:$0xff]
      %v524 = vld [vmem:[%s3 + $0x648] sm:$0xff]
      %v525 = vld [vmem:[%s3 + $0x650] sm:$0xf]
      %v526 = vld [vmem:[%s3 + $0x654] sm:$0xff]
      %v527 = vld [vmem:[%s3 + $0x65c] sm:$0xff]
      %v528 = vld [vmem:[%s3 + $0x664] sm:$0xff]
      %v529 = vld [vmem:[%s3 + $0x66c] sm:$0xff]
      %v530 = vld [vmem:[%s3 + $0x674] sm:$0xf]
      %v531 = vld [vmem:[%s3 + $0x678] sm:$0xff]
      %v532 = vld [vmem:[%s3 + $0x680] sm:$0xff]
      %v533 = vld [vmem:[%s3 + $0x688] sm:$0xff]
      %v534 = vld [vmem:[%s3 + $0x690] sm:$0xff]
      %v535 = vld [vmem:[%s3 + $0x698] sm:$0xf]
      %v536 = vld [vmem:[%s3 + $0x69c] sm:$0xff]
      %v537 = vld [vmem:[%s3 + $0x6a4] sm:$0xff]
      %v538 = vld [vmem:[%s3 + $0x6ac] sm:$0xff]
      %v539 = vld [vmem:[%s3 + $0x6b4] sm:$0xff]
      %v540 = vld [vmem:[%s3 + $0x6bc] sm:$0xf]
      %v541 = vld [vmem:[%s4] sm:$0xff]
      %v542 = vld [vmem:[%s4 + $0x8] sm:$0x1]
      %v545 = vlaneseq
      %v546 = vshrl.u32 %v545, 7
      %v547 = vsub.s32 0, %v546
      %v548 = vrot.slane %v541, %v547
      %v549 = vlaneseq
      %v550 = vshrl.u32 %v549, 7
      %v551 = vsub.s32 1, %v550
      %v552 = vrot.slane %v541, %v551
      %v553 = vlaneseq
      %v554 = vshrl.u32 %v553, 7
      %v555 = vsub.s32 2, %v554
      %v556 = vrot.slane %v541, %v555
      %v557 = vlaneseq
      %v558 = vshrl.u32 %v557, 7
      %v559 = vsub.s32 3, %v558
      %v560 = vrot.slane %v541, %v559
      %v561 = vlaneseq
      %v562 = vshrl.u32 %v561, 7
      %v563 = vsub.s32 4, %v562
      %v564 = vrot.slane %v541, %v563
      %v565 = vlaneseq
      %v566 = vshrl.u32 %v565, 7
      %v567 = vsub.s32 5, %v566
      %v568 = vrot.slane %v541, %v567
      %v569 = vlaneseq
      %v570 = vshrl.u32 %v569, 7
      %v571 = vsub.s32 6, %v570
      %v572 = vrot.slane %v541, %v571
      %v573 = vlaneseq
      %v574 = vshrl.u32 %v573, 7
      %v575 = vsub.s32 7, %v574
      %v576 = vrot.slane %v541, %v575
      %v577 = vlaneseq
      %v578 = vshrl.u32 %v577, 7
      %v579 = vsub.s32 0, %v578
      %v580 = vrot.slane %v542, %v579
      %v830 = vunpack.c.l.b16 %v301
      %v831 = vunpack.c.h.b16 %v301
      %v832 = vunpack.c.l.b16 %v302
      %v833 = vunpack.c.h.b16 %v302
      %v834 = vunpack.c.l.b16 %v303
      %v835 = vunpack.c.h.b16 %v303
      %v836 = vunpack.c.l.b16 %v304
      %v837 = vunpack.c.h.b16 %v304
      %v838 = vunpack.c.l.b16 %v305
      %v839 = vunpack.c.l.b16 %v306
      %v840 = vunpack.c.h.b16 %v306
      %v841 = vunpack.c.l.b16 %v307
      %v842 = vunpack.c.h.b16 %v307
      %v843 = vunpack.c.l.b16 %v308
      %v844 = vunpack.c.h.b16 %v308
      %v845 = vunpack.c.l.b16 %v309
      %v846 = vunpack.c.h.b16 %v309
      %v847 = vunpack.c.l.b16 %v310
      %v848 = vunpack.c.l.b16 %v311
      %v849 = vunpack.c.h.b16 %v311
      %v850 = vunpack.c.l.b16 %v312
      %v851 = vunpack.c.h.b16 %v312
      %v852 = vunpack.c.l.b16 %v313
      %v853 = vunpack.c.h.b16 %v313
      %v854 = vunpack.c.l.b16 %v314
      %v855 = vunpack.c.h.b16 %v314
      %v856 = vunpack.c.l.b16 %v315
      %v857 = vunpack.c.l.b16 %v316
      %v858 = vunpack.c.h.b16 %v316
      %v859 = vunpack.c.l.b16 %v317
      %v860 = vunpack.c.h.b16 %v317
      %v861 = vunpack.c.l.b16 %v318
      %v862 = vunpack.c.h.b16 %v318
      %v863 = vunpack.c.l.b16 %v319
      %v864 = vunpack.c.h.b16 %v319
      %v865 = vunpack.c.l.b16 %v320
      %v866 = vunpack.c.l.b16 %v321
      %v867 = vunpack.c.h.b16 %v321
      %v868 = vunpack.c.l.b16 %v322
      %v869 = vunpack.c.h.b16 %v322
      %v870 = vunpack.c.l.b16 %v323
      %v871 = vunpack.c.h.b16 %v323
      %v872 = vunpack.c.l.b16 %v324
      %v873 = vunpack.c.h.b16 %v324
      %v874 = vunpack.c.l.b16 %v325
      %v875 = vunpack.c.l.b16 %v326
      %v876 = vunpack.c.h.b16 %v326
      %v877 = vunpack.c.l.b16 %v327
      %v878 = vunpack.c.h.b16 %v327
      %v879 = vunpack.c.l.b16 %v328
      %v880 = vunpack.c.h.b16 %v328
      %v881 = vunpack.c.l.b16 %v329
      %v882 = vunpack.c.h.b16 %v329
      %v883 = vunpack.c.l.b16 %v330
      %v884 = vunpack.c.l.b16 %v331
      %v885 = vunpack.c.h.b16 %v331
      %v886 = vunpack.c.l.b16 %v332
      %v887 = vunpack.c.h.b16 %v332
      %v888 = vunpack.c.l.b16 %v333
      %v889 = vunpack.c.h.b16 %v333
      %v890 = vunpack.c.l.b16 %v334
      %v891 = vunpack.c.h.b16 %v334
      %v892 = vunpack.c.l.b16 %v335
      %v893 = vunpack.c.l.b16 %v336
      %v894 = vunpack.c.h.b16 %v336
      %v895 = vunpack.c.l.b16 %v337
      %v896 = vunpack.c.h.b16 %v337
      %v897 = vunpack.c.l.b16 %v338
      %v898 = vunpack.c.h.b16 %v338
      %v899 = vunpack.c.l.b16 %v339
      %v900 = vunpack.c.h.b16 %v339
      %v901 = vunpack.c.l.b16 %v340
      %v902 = vunpack.c.l.b16 %v341
      %v903 = vunpack.c.h.b16 %v341
      %v904 = vunpack.c.l.b16 %v342
      %v905 = vunpack.c.h.b16 %v342
      %v906 = vunpack.c.l.b16 %v343
      %v907 = vunpack.c.h.b16 %v343
      %v908 = vunpack.c.l.b16 %v344
      %v909 = vunpack.c.h.b16 %v344
      %v910 = vunpack.c.l.b16 %v345
      %v911 = vunpack.c.l.b16 %v346
      %v912 = vunpack.c.h.b16 %v346
      %v913 = vunpack.c.l.b16 %v347
      %v914 = vunpack.c.h.b16 %v347
      %v915 = vunpack.c.l.b16 %v348
      %v916 = vunpack.c.h.b16 %v348
      %v917 = vunpack.c.l.b16 %v349
      %v918 = vunpack.c.h.b16 %v349
      %v919 = vunpack.c.l.b16 %v350
      %v920 = vunpack.c.l.b16 %v351
      %v921 = vunpack.c.h.b16 %v351
      %v922 = vunpack.c.l.b16 %v352
      %v923 = vunpack.c.h.b16 %v352
      %v924 = vunpack.c.l.b16 %v353
      %v925 = vunpack.c.h.b16 %v353
      %v926 = vunpack.c.l.b16 %v354
      %v927 = vunpack.c.h.b16 %v354
      %v928 = vunpack.c.l.b16 %v355
      %v929 = vunpack.c.l.b16 %v356
      %v930 = vunpack.c.h.b16 %v356
      %v931 = vunpack.c.l.b16 %v357
      %v932 = vunpack.c.h.b16 %v357
      %v933 = vunpack.c.l.b16 %v358
      %v934 = vunpack.c.h.b16 %v358
      %v935 = vunpack.c.l.b16 %v359
      %v936 = vunpack.c.h.b16 %v359
      %v937 = vunpack.c.l.b16 %v360
      %v938 = vunpack.c.l.b16 %v361
      %v939 = vunpack.c.h.b16 %v361
      %v940 = vunpack.c.l.b16 %v362
      %v941 = vunpack.c.h.b16 %v362
      %v942 = vunpack.c.l.b16 %v363
      %v943 = vunpack.c.h.b16 %v363
      %v944 = vunpack.c.l.b16 %v364
      %v945 = vunpack.c.h.b16 %v364
      %v946 = vunpack.c.l.b16 %v365
      %v947 = vunpack.c.l.b16 %v366
      %v948 = vunpack.c.h.b16 %v366
      %v949 = vunpack.c.l.b16 %v367
      %v950 = vunpack.c.h.b16 %v367
      %v951 = vunpack.c.l.b16 %v368
      %v952 = vunpack.c.h.b16 %v368
      %v953 = vunpack.c.l.b16 %v369
      %v954 = vunpack.c.h.b16 %v369
      %v955 = vunpack.c.l.b16 %v370
      %v956 = vunpack.c.l.b16 %v371
      %v957 = vunpack.c.h.b16 %v371
      %v958 = vunpack.c.l.b16 %v372
      %v959 = vunpack.c.h.b16 %v372
      %v960 = vunpack.c.l.b16 %v373
      %v961 = vunpack.c.h.b16 %v373
      %v962 = vunpack.c.l.b16 %v374
      %v963 = vunpack.c.h.b16 %v374
      %v964 = vunpack.c.l.b16 %v375
      %v965 = vunpack.c.l.b16 %v376
      %v966 = vunpack.c.h.b16 %v376
      %v967 = vunpack.c.l.b16 %v377
      %v968 = vunpack.c.h.b16 %v377
      %v969 = vunpack.c.l.b16 %v378
      %v970 = vunpack.c.h.b16 %v378
      %v971 = vunpack.c.l.b16 %v379
      %v972 = vunpack.c.h.b16 %v379
      %v973 = vunpack.c.l.b16 %v380
      %v974 = vunpack.c.l.b16 %v381
      %v975 = vunpack.c.h.b16 %v381
      %v976 = vunpack.c.l.b16 %v382
      %v977 = vunpack.c.h.b16 %v382
      %v978 = vunpack.c.l.b16 %v383
      %v979 = vunpack.c.h.b16 %v383
      %v980 = vunpack.c.l.b16 %v384
      %v981 = vunpack.c.h.b16 %v384
      %v982 = vunpack.c.l.b16 %v385
      %v983 = vunpack.c.l.b16 %v386
      %v984 = vunpack.c.h.b16 %v386
      %v985 = vunpack.c.l.b16 %v387
      %v986 = vunpack.c.h.b16 %v387
      %v987 = vunpack.c.l.b16 %v388
      %v988 = vunpack.c.h.b16 %v388
      %v989 = vunpack.c.l.b16 %v389
      %v990 = vunpack.c.h.b16 %v389
      %v991 = vunpack.c.l.b16 %v390
      %v992 = vunpack.c.l.b16 %v391
      %v993 = vunpack.c.h.b16 %v391
      %v994 = vunpack.c.l.b16 %v392
      %v995 = vunpack.c.h.b16 %v392
      %v996 = vunpack.c.l.b16 %v393
      %v997 = vunpack.c.h.b16 %v393
      %v998 = vunpack.c.l.b16 %v394
      %v999 = vunpack.c.h.b16 %v394
      %v1000 = vunpack.c.l.b16 %v395
      %v1001 = vunpack.c.l.b16 %v396
      %v1002 = vunpack.c.h.b16 %v396
      %v1003 = vunpack.c.l.b16 %v397
      %v1004 = vunpack.c.h.b16 %v397
      %v1005 = vunpack.c.l.b16 %v398
      %v1006 = vunpack.c.h.b16 %v398
      %v1007 = vunpack.c.l.b16 %v399
      %v1008 = vunpack.c.h.b16 %v399
      %v1009 = vunpack.c.l.b16 %v400
      %v1010 = vunpack.c.l.b16 %v401
      %v1011 = vunpack.c.h.b16 %v401
      %v1012 = vunpack.c.l.b16 %v402
      %v1013 = vunpack.c.h.b16 %v402
      %v1014 = vunpack.c.l.b16 %v403
      %v1015 = vunpack.c.h.b16 %v403
      %v1016 = vunpack.c.l.b16 %v404
      %v1017 = vunpack.c.h.b16 %v404
      %v1018 = vunpack.c.l.b16 %v405
      %v1019 = vunpack.c.l.b16 %v406
      %v1020 = vunpack.c.h.b16 %v406
      %v1021 = vunpack.c.l.b16 %v407
      %v1022 = vunpack.c.h.b16 %v407
      %v1023 = vunpack.c.l.b16 %v408
      %v1024 = vunpack.c.h.b16 %v408
      %v1025 = vunpack.c.l.b16 %v409
      %v1026 = vunpack.c.h.b16 %v409
      %v1027 = vunpack.c.l.b16 %v410
      %v1028 = vunpack.c.l.b16 %v411
      %v1029 = vunpack.c.h.b16 %v411
      %v1030 = vunpack.c.l.b16 %v412
      %v1031 = vunpack.c.h.b16 %v412
      %v1032 = vunpack.c.l.b16 %v413
      %v1033 = vunpack.c.h.b16 %v413
      %v1034 = vunpack.c.l.b16 %v414
      %v1035 = vunpack.c.h.b16 %v414
      %v1036 = vunpack.c.l.b16 %v415
      %v1037 = vunpack.c.l.b16 %v416
      %v1038 = vunpack.c.h.b16 %v416
      %v1039 = vunpack.c.l.b16 %v417
      %v1040 = vunpack.c.h.b16 %v417
      %v1041 = vunpack.c.l.b16 %v418
      %v1042 = vunpack.c.h.b16 %v418
      %v1043 = vunpack.c.l.b16 %v419
      %v1044 = vunpack.c.h.b16 %v419
      %v1045 = vunpack.c.l.b16 %v420
      %v1046 = vunpack.c.l.b16 %v421
      %v1047 = vunpack.c.h.b16 %v421
      %v1048 = vunpack.c.l.b16 %v422
      %v1049 = vunpack.c.h.b16 %v422
      %v1050 = vunpack.c.l.b16 %v423
      %v1051 = vunpack.c.h.b16 %v423
      %v1052 = vunpack.c.l.b16 %v424
      %v1053 = vunpack.c.h.b16 %v424
      %v1054 = vunpack.c.l.b16 %v425
      %v1055 = vunpack.c.l.b16 %v426
      %v1056 = vunpack.c.h.b16 %v426
      %v1057 = vunpack.c.l.b16 %v427
      %v1058 = vunpack.c.h.b16 %v427
      %v1059 = vunpack.c.l.b16 %v428
      %v1060 = vunpack.c.h.b16 %v428
      %v1061 = vunpack.c.l.b16 %v429
      %v1062 = vunpack.c.h.b16 %v429
      %v1063 = vunpack.c.l.b16 %v430
      %v1064 = vunpack.c.l.b16 %v431
      %v1065 = vunpack.c.h.b16 %v431
      %v1066 = vunpack.c.l.b16 %v432
      %v1067 = vunpack.c.h.b16 %v432
      %v1068 = vunpack.c.l.b16 %v433
      %v1069 = vunpack.c.h.b16 %v433
      %v1070 = vunpack.c.l.b16 %v434
      %v1071 = vunpack.c.h.b16 %v434
      %v1072 = vunpack.c.l.b16 %v435
      %v1073 = vunpack.c.l.b16 %v436
      %v1074 = vunpack.c.h.b16 %v436
      %v1075 = vunpack.c.l.b16 %v437
      %v1076 = vunpack.c.h.b16 %v437
      %v1077 = vunpack.c.l.b16 %v438
      %v1078 = vunpack.c.h.b16 %v438
      %v1079 = vunpack.c.l.b16 %v439
      %v1080 = vunpack.c.h.b16 %v439
      %v1081 = vunpack.c.l.b16 %v440
      %v1082 = vunpack.c.l.b16 %v441
      %v1083 = vunpack.c.h.b16 %v441
      %v1084 = vunpack.c.l.b16 %v442
      %v1085 = vunpack.c.h.b16 %v442
      %v1086 = vunpack.c.l.b16 %v443
      %v1087 = vunpack.c.h.b16 %v443
      %v1088 = vunpack.c.l.b16 %v444
      %v1089 = vunpack.c.h.b16 %v444
      %v1090 = vunpack.c.l.b16 %v445
      %v1091 = vunpack.c.l.b16 %v446
      %v1092 = vunpack.c.h.b16 %v446
      %v1093 = vunpack.c.l.b16 %v447
      %v1094 = vunpack.c.h.b16 %v447
      %v1095 = vunpack.c.l.b16 %v448
      %v1096 = vunpack.c.h.b16 %v448
      %v1097 = vunpack.c.l.b16 %v449
      %v1098 = vunpack.c.h.b16 %v449
      %v1099 = vunpack.c.l.b16 %v450
      %v1100 = vunpack.c.l.b16 %v451
      %v1101 = vunpack.c.h.b16 %v451
      %v1102 = vunpack.c.l.b16 %v452
      %v1103 = vunpack.c.h.b16 %v452
      %v1104 = vunpack.c.l.b16 %v453
      %v1105 = vunpack.c.h.b16 %v453
      %v1106 = vunpack.c.l.b16 %v454
      %v1107 = vunpack.c.h.b16 %v454
      %v1108 = vunpack.c.l.b16 %v455
      %v1109 = vunpack.c.l.b16 %v456
      %v1110 = vunpack.c.h.b16 %v456
      %v1111 = vunpack.c.l.b16 %v457
      %v1112 = vunpack.c.h.b16 %v457
      %v1113 = vunpack.c.l.b16 %v458
      %v1114 = vunpack.c.h.b16 %v458
      %v1115 = vunpack.c.l.b16 %v459
      %v1116 = vunpack.c.h.b16 %v459
      %v1117 = vunpack.c.l.b16 %v460
      %v1118 = vunpack.c.l.b16 %v461
      %v1119 = vunpack.c.h.b16 %v461
      %v1120 = vunpack.c.l.b16 %v462
      %v1121 = vunpack.c.h.b16 %v462
      %v1122 = vunpack.c.l.b16 %v463
      %v1123 = vunpack.c.h.b16 %v463
      %v1124 = vunpack.c.l.b16 %v464
      %v1125 = vunpack.c.h.b16 %v464
      %v1126 = vunpack.c.l.b16 %v465
      %v1127 = vunpack.c.l.b16 %v466
      %v1128 = vunpack.c.h.b16 %v466
      %v1129 = vunpack.c.l.b16 %v467
      %v1130 = vunpack.c.h.b16 %v467
      %v1131 = vunpack.c.l.b16 %v468
      %v1132 = vunpack.c.h.b16 %v468
      %v1133 = vunpack.c.l.b16 %v469
      %v1134 = vunpack.c.h.b16 %v469
      %v1135 = vunpack.c.l.b16 %v470
      %v1136 = vunpack.c.l.b16 %v471
      %v1137 = vunpack.c.h.b16 %v471
      %v1138 = vunpack.c.l.b16 %v472
      %v1139 = vunpack.c.h.b16 %v472
      %v1140 = vunpack.c.l.b16 %v473
      %v1141 = vunpack.c.h.b16 %v473
      %v1142 = vunpack.c.l.b16 %v474
      %v1143 = vunpack.c.h.b16 %v474
      %v1144 = vunpack.c.l.b16 %v475
      %v1145 = vunpack.c.l.b16 %v476
      %v1146 = vunpack.c.h.b16 %v476
      %v1147 = vunpack.c.l.b16 %v477
      %v1148 = vunpack.c.h.b16 %v477
      %v1149 = vunpack.c.l.b16 %v478
      %v1150 = vunpack.c.h.b16 %v478
      %v1151 = vunpack.c.l.b16 %v479
      %v1152 = vunpack.c.h.b16 %v479
      %v1153 = vunpack.c.l.b16 %v480
      %v1154 = vunpack.c.l.b16 %v481
      %v1155 = vunpack.c.h.b16 %v481
      %v1156 = vunpack.c.l.b16 %v482
      %v1157 = vunpack.c.h.b16 %v482
      %v1158 = vunpack.c.l.b16 %v483
      %v1159 = vunpack.c.h.b16 %v483
      %v1160 = vunpack.c.l.b16 %v484
      %v1161 = vunpack.c.h.b16 %v484
      %v1162 = vunpack.c.l.b16 %v485
      %v1163 = vunpack.c.l.b16 %v486
      %v1164 = vunpack.c.h.b16 %v486
      %v1165 = vunpack.c.l.b16 %v487
      %v1166 = vunpack.c.h.b16 %v487
      %v1167 = vunpack.c.l.b16 %v488
      %v1168 = vunpack.c.h.b16 %v488
      %v1169 = vunpack.c.l.b16 %v489
      %v1170 = vunpack.c.h.b16 %v489
      %v1171 = vunpack.c.l.b16 %v490
      %v1172 = vunpack.c.l.b16 %v491
      %v1173 = vunpack.c.h.b16 %v491
      %v1174 = vunpack.c.l.b16 %v492
      %v1175 = vunpack.c.h.b16 %v492
      %v1176 = vunpack.c.l.b16 %v493
      %v1177 = vunpack.c.h.b16 %v493
      %v1178 = vunpack.c.l.b16 %v494
      %v1179 = vunpack.c.h.b16 %v494
      %v1180 = vunpack.c.l.b16 %v495
      %v1181 = vunpack.c.l.b16 %v496
      %v1182 = vunpack.c.h.b16 %v496
      %v1183 = vunpack.c.l.b16 %v497
      %v1184 = vunpack.c.h.b16 %v497
      %v1185 = vunpack.c.l.b16 %v498
      %v1186 = vunpack.c.h.b16 %v498
      %v1187 = vunpack.c.l.b16 %v499
      %v1188 = vunpack.c.h.b16 %v499
      %v1189 = vunpack.c.l.b16 %v500
      %v1190 = vunpack.c.l.b16 %v501
      %v1191 = vunpack.c.h.b16 %v501
      %v1192 = vunpack.c.l.b16 %v502
      %v1193 = vunpack.c.h.b16 %v502
      %v1194 = vunpack.c.l.b16 %v503
      %v1195 = vunpack.c.h.b16 %v503
      %v1196 = vunpack.c.l.b16 %v504
      %v1197 = vunpack.c.h.b16 %v504
      %v1198 = vunpack.c.l.b16 %v505
      %v1199 = vunpack.c.l.b16 %v506
      %v1200 = vunpack.c.h.b16 %v506
      %v1201 = vunpack.c.l.b16 %v507
      %v1202 = vunpack.c.h.b16 %v507
      %v1203 = vunpack.c.l.b16 %v508
      %v1204 = vunpack.c.h.b16 %v508
      %v1205 = vunpack.c.l.b16 %v509
      %v1206 = vunpack.c.h.b16 %v509
      %v1207 = vunpack.c.l.b16 %v510
      %v1208 = vunpack.c.l.b16 %v511
      %v1209 = vunpack.c.h.b16 %v511
      %v1210 = vunpack.c.l.b16 %v512
      %v1211 = vunpack.c.h.b16 %v512
      %v1212 = vunpack.c.l.b16 %v513
      %v1213 = vunpack.c.h.b16 %v513
      %v1214 = vunpack.c.l.b16 %v514
      %v1215 = vunpack.c.h.b16 %v514
      %v1216 = vunpack.c.l.b16 %v515
      %v1217 = vunpack.c.l.b16 %v516
      %v1218 = vunpack.c.h.b16 %v516
      %v1219 = vunpack.c.l.b16 %v517
      %v1220 = vunpack.c.h.b16 %v517
      %v1221 = vunpack.c.l.b16 %v518
      %v1222 = vunpack.c.h.b16 %v518
      %v1223 = vunpack.c.l.b16 %v519
      %v1224 = vunpack.c.h.b16 %v519
      %v1225 = vunpack.c.l.b16 %v520
      %v1226 = vunpack.c.l.b16 %v521
      %v1227 = vunpack.c.h.b16 %v521
      %v1228 = vunpack.c.l.b16 %v522
      %v1229 = vunpack.c.h.b16 %v522
      %v1230 = vunpack.c.l.b16 %v523
      %v1231 = vunpack.c.h.b16 %v523
      %v1232 = vunpack.c.l.b16 %v524
      %v1233 = vunpack.c.h.b16 %v524
      %v1234 = vunpack.c.l.b16 %v525
      %v1235 = vunpack.c.l.b16 %v526
      %v1236 = vunpack.c.h.b16 %v526
      %v1237 = vunpack.c.l.b16 %v527
      %v1238 = vunpack.c.h.b16 %v527
      %v1239 = vunpack.c.l.b16 %v528
      %v1240 = vunpack.c.h.b16 %v528
      %v1241 = vunpack.c.l.b16 %v529
      %v1242 = vunpack.c.h.b16 %v529
      %v1243 = vunpack.c.l.b16 %v530
      %v1244 = vunpack.c.l.b16 %v531
      %v1245 = vunpack.c.h.b16 %v531
      %v1246 = vunpack.c.l.b16 %v532
      %v1247 = vunpack.c.h.b16 %v532
      %v1248 = vunpack.c.l.b16 %v533
      %v1249 = vunpack.c.h.b16 %v533
      %v1250 = vunpack.c.l.b16 %v534
      %v1251 = vunpack.c.h.b16 %v534
      %v1252 = vunpack.c.l.b16 %v535
      %v1253 = vunpack.c.l.b16 %v536
      %v1254 = vunpack.c.h.b16 %v536
      %v1255 = vunpack.c.l.b16 %v537
      %v1256 = vunpack.c.h.b16 %v537
      %v1257 = vunpack.c.l.b16 %v538
      %v1258 = vunpack.c.h.b16 %v538
      %v1259 = vunpack.c.l.b16 %v539
      %v1260 = vunpack.c.h.b16 %v539
      %v1261 = vunpack.c.l.b16 %v540
      %v1262 = vpack.c.b16 %v839, %v830
      %v1263 = vpack.c.b16 %v840, %v831
      %v1264 = vpack.c.b16 %v841, %v832
      %v1265 = vpack.c.b16 %v842, %v833
      %v1266 = vpack.c.b16 %v843, %v834
      %v1267 = vpack.c.b16 %v844, %v835
      %v1268 = vpack.c.b16 %v845, %v836
      %v1269 = vpack.c.b16 %v846, %v837
      %v1270 = vpack.c.b16 %v847, %v838
      %v1271 = vpack.c.b16 %v857, %v848
      %v1272 = vpack.c.b16 %v858, %v849
      %v1273 = vpack.c.b16 %v859, %v850
      %v1274 = vpack.c.b16 %v860, %v851
      %v1275 = vpack.c.b16 %v861, %v852
      %v1276 = vpack.c.b16 %v862, %v853
      %v1277 = vpack.c.b16 %v863, %v854
      %v1278 = vpack.c.b16 %v864, %v855
      %v1279 = vpack.c.b16 %v865, %v856
      %v1280 = vpack.c.b16 %v875, %v866
      %v1281 = vpack.c.b16 %v876, %v867
      %v1282 = vpack.c.b16 %v877, %v868
      %v1283 = vpack.c.b16 %v878, %v869
      %v1284 = vpack.c.b16 %v879, %v870
      %v1285 = vpack.c.b16 %v880, %v871
      %v1286 = vpack.c.b16 %v881, %v872
      %v1287 = vpack.c.b16 %v882, %v873
      %v1288 = vpack.c.b16 %v883, %v874
      %v1289 = vpack.c.b16 %v893, %v884
      %v1290 = vpack.c.b16 %v894, %v885
      %v1291 = vpack.c.b16 %v895, %v886
      %v1292 = vpack.c.b16 %v896, %v887
      %v1293 = vpack.c.b16 %v897, %v888
      %v1294 = vpack.c.b16 %v898, %v889
      %v1295 = vpack.c.b16 %v899, %v890
      %v1296 = vpack.c.b16 %v900, %v891
      %v1297 = vpack.c.b16 %v901, %v892
      %v1298 = vpack.c.b16 %v911, %v902
      %v1299 = vpack.c.b16 %v912, %v903
      %v1300 = vpack.c.b16 %v913, %v904
      %v1301 = vpack.c.b16 %v914, %v905
      %v1302 = vpack.c.b16 %v915, %v906
      %v1303 = vpack.c.b16 %v916, %v907
      %v1304 = vpack.c.b16 %v917, %v908
      %v1305 = vpack.c.b16 %v918, %v909
      %v1306 = vpack.c.b16 %v919, %v910
      %v1307 = vpack.c.b16 %v929, %v920
      %v1308 = vpack.c.b16 %v930, %v921
      %v1309 = vpack.c.b16 %v931, %v922
      %v1310 = vpack.c.b16 %v932, %v923
      %v1311 = vpack.c.b16 %v933, %v924
      %v1312 = vpack.c.b16 %v934, %v925
      %v1313 = vpack.c.b16 %v935, %v926
      %v1314 = vpack.c.b16 %v936, %v927
      %v1315 = vpack.c.b16 %v937, %v928
      %v1316 = vpack.c.b16 %v947, %v938
      %v1317 = vpack.c.b16 %v948, %v939
      %v1318 = vpack.c.b16 %v949, %v940
      %v1319 = vpack.c.b16 %v950, %v941
      %v1320 = vpack.c.b16 %v951, %v942
      %v1321 = vpack.c.b16 %v952, %v943
      %v1322 = vpack.c.b16 %v953, %v944
      %v1323 = vpack.c.b16 %v954, %v945
      %v1324 = vpack.c.b16 %v955, %v946
      %v1325 = vpack.c.b16 %v965, %v956
      %v1326 = vpack.c.b16 %v966, %v957
      %v1327 = vpack.c.b16 %v967, %v958
      %v1328 = vpack.c.b16 %v968, %v959
      %v1329 = vpack.c.b16 %v969, %v960
      %v1330 = vpack.c.b16 %v970, %v961
      %v1331 = vpack.c.b16 %v971, %v962
      %v1332 = vpack.c.b16 %v972, %v963
      %v1333 = vpack.c.b16 %v973, %v964
      %v1334 = vpack.c.b16 %v983, %v974
      %v1335 = vpack.c.b16 %v984, %v975
      %v1336 = vpack.c.b16 %v985, %v976
      %v1337 = vpack.c.b16 %v986, %v977
      %v1338 = vpack.c.b16 %v987, %v978
      %v1339 = vpack.c.b16 %v988, %v979
      %v1340 = vpack.c.b16 %v989, %v980
      %v1341 = vpack.c.b16 %v990, %v981
      %v1342 = vpack.c.b16 %v991, %v982
      %v1343 = vpack.c.b16 %v1001, %v992
      %v1344 = vpack.c.b16 %v1002, %v993
      %v1345 = vpack.c.b16 %v1003, %v994
      %v1346 = vpack.c.b16 %v1004, %v995
      %v1347 = vpack.c.b16 %v1005, %v996
      %v1348 = vpack.c.b16 %v1006, %v997
      %v1349 = vpack.c.b16 %v1007, %v998
      %v1350 = vpack.c.b16 %v1008, %v999
      %v1351 = vpack.c.b16 %v1009, %v1000
      %v1352 = vpack.c.b16 %v1019, %v1010
      %v1353 = vpack.c.b16 %v1020, %v1011
      %v1354 = vpack.c.b16 %v1021, %v1012
      %v1355 = vpack.c.b16 %v1022, %v1013
      %v1356 = vpack.c.b16 %v1023, %v1014
      %v1357 = vpack.c.b16 %v1024, %v1015
      %v1358 = vpack.c.b16 %v1025, %v1016
      %v1359 = vpack.c.b16 %v1026, %v1017
      %v1360 = vpack.c.b16 %v1027, %v1018
      %v1361 = vpack.c.b16 %v1037, %v1028
      %v1362 = vpack.c.b16 %v1038, %v1029
      %v1363 = vpack.c.b16 %v1039, %v1030
      %v1364 = vpack.c.b16 %v1040, %v1031
      %v1365 = vpack.c.b16 %v1041, %v1032
      %v1366 = vpack.c.b16 %v1042, %v1033
      %v1367 = vpack.c.b16 %v1043, %v1034
      %v1368 = vpack.c.b16 %v1044, %v1035
      %v1369 = vpack.c.b16 %v1045, %v1036
      %v1370 = vpack.c.b16 %v1055, %v1046
      %v1371 = vpack.c.b16 %v1056, %v1047
      %v1372 = vpack.c.b16 %v1057, %v1048
      %v1373 = vpack.c.b16 %v1058, %v1049
      %v1374 = vpack.c.b16 %v1059, %v1050
      %v1375 = vpack.c.b16 %v1060, %v1051
      %v1376 = vpack.c.b16 %v1061, %v1052
      %v1377 = vpack.c.b16 %v1062, %v1053
      %v1378 = vpack.c.b16 %v1063, %v1054
      %v1379 = vpack.c.b16 %v1073, %v1064
      %v1380 = vpack.c.b16 %v1074, %v1065
      %v1381 = vpack.c.b16 %v1075, %v1066
      %v1382 = vpack.c.b16 %v1076, %v1067
      %v1383 = vpack.c.b16 %v1077, %v1068
      %v1384 = vpack.c.b16 %v1078, %v1069
      %v1385 = vpack.c.b16 %v1079, %v1070
      %v1386 = vpack.c.b16 %v1080, %v1071
      %v1387 = vpack.c.b16 %v1081, %v1072
      %v1388 = vpack.c.b16 %v1091, %v1082
      %v1389 = vpack.c.b16 %v1092, %v1083
      %v1390 = vpack.c.b16 %v1093, %v1084
      %v1391 = vpack.c.b16 %v1094, %v1085
      %v1392 = vpack.c.b16 %v1095, %v1086
      %v1393 = vpack.c.b16 %v1096, %v1087
      %v1394 = vpack.c.b16 %v1097, %v1088
      %v1395 = vpack.c.b16 %v1098, %v1089
      %v1396 = vpack.c.b16 %v1099, %v1090
      %v1397 = vpack.c.b16 %v1109, %v1100
      %v1398 = vpack.c.b16 %v1110, %v1101
      %v1399 = vpack.c.b16 %v1111, %v1102
      %v1400 = vpack.c.b16 %v1112, %v1103
      %v1401 = vpack.c.b16 %v1113, %v1104
      %v1402 = vpack.c.b16 %v1114, %v1105
      %v1403 = vpack.c.b16 %v1115, %v1106
      %v1404 = vpack.c.b16 %v1116, %v1107
      %v1405 = vpack.c.b16 %v1117, %v1108
      %v1406 = vpack.c.b16 %v1127, %v1118
      %v1407 = vpack.c.b16 %v1128, %v1119
      %v1408 = vpack.c.b16 %v1129, %v1120
      %v1409 = vpack.c.b16 %v1130, %v1121
      %v1410 = vpack.c.b16 %v1131, %v1122
      %v1411 = vpack.c.b16 %v1132, %v1123
      %v1412 = vpack.c.b16 %v1133, %v1124
      %v1413 = vpack.c.b16 %v1134, %v1125
      %v1414 = vpack.c.b16 %v1135, %v1126
      %v1415 = vpack.c.b16 %v1145, %v1136
      %v1416 = vpack.c.b16 %v1146, %v1137
      %v1417 = vpack.c.b16 %v1147, %v1138
      %v1418 = vpack.c.b16 %v1148, %v1139
      %v1419 = vpack.c.b16 %v1149, %v1140
      %v1420 = vpack.c.b16 %v1150, %v1141
      %v1421 = vpack.c.b16 %v1151, %v1142
      %v1422 = vpack.c.b16 %v1152, %v1143
      %v1423 = vpack.c.b16 %v1153, %v1144
      %v1424 = vpack.c.b16 %v1163, %v1154
      %v1425 = vpack.c.b16 %v1164, %v1155
      %v1426 = vpack.c.b16 %v1165, %v1156
      %v1427 = vpack.c.b16 %v1166, %v1157
      %v1428 = vpack.c.b16 %v1167, %v1158
      %v1429 = vpack.c.b16 %v1168, %v1159
      %v1430 = vpack.c.b16 %v1169, %v1160
      %v1431 = vpack.c.b16 %v1170, %v1161
      %v1432 = vpack.c.b16 %v1171, %v1162
      %v1433 = vpack.c.b16 %v1181, %v1172
      %v1434 = vpack.c.b16 %v1182, %v1173
      %v1435 = vpack.c.b16 %v1183, %v1174
      %v1436 = vpack.c.b16 %v1184, %v1175
      %v1437 = vpack.c.b16 %v1185, %v1176
      %v1438 = vpack.c.b16 %v1186, %v1177
      %v1439 = vpack.c.b16 %v1187, %v1178
      %v1440 = vpack.c.b16 %v1188, %v1179
      %v1441 = vpack.c.b16 %v1189, %v1180
      %v1442 = vpack.c.b16 %v1199, %v1190
      %v1443 = vpack.c.b16 %v1200, %v1191
      %v1444 = vpack.c.b16 %v1201, %v1192
      %v1445 = vpack.c.b16 %v1202, %v1193
      %v1446 = vpack.c.b16 %v1203, %v1194
      %v1447 = vpack.c.b16 %v1204, %v1195
      %v1448 = vpack.c.b16 %v1205, %v1196
      %v1449 = vpack.c.b16 %v1206, %v1197
      %v1450 = vpack.c.b16 %v1207, %v1198
      %v1451 = vpack.c.b16 %v1217, %v1208
      %v1452 = vpack.c.b16 %v1218, %v1209
      %v1453 = vpack.c.b16 %v1219, %v1210
      %v1454 = vpack.c.b16 %v1220, %v1211
      %v1455 = vpack.c.b16 %v1221, %v1212
      %v1456 = vpack.c.b16 %v1222, %v1213
      %v1457 = vpack.c.b16 %v1223, %v1214
      %v1458 = vpack.c.b16 %v1224, %v1215
      %v1459 = vpack.c.b16 %v1225, %v1216
      %v1460 = vpack.c.b16 %v1235, %v1226
      %v1461 = vpack.c.b16 %v1236, %v1227
      %v1462 = vpack.c.b16 %v1237, %v1228
      %v1463 = vpack.c.b16 %v1238, %v1229
      %v1464 = vpack.c.b16 %v1239, %v1230
      %v1465 = vpack.c.b16 %v1240, %v1231
      %v1466 = vpack.c.b16 %v1241, %v1232
      %v1467 = vpack.c.b16 %v1242, %v1233
      %v1468 = vpack.c.b16 %v1243, %v1234
      %v1469 = vpack.c.b16 %v1253, %v1244
      %v1470 = vpack.c.b16 %v1254, %v1245
      %v1471 = vpack.c.b16 %v1255, %v1246
      %v1472 = vpack.c.b16 %v1256, %v1247
      %v1473 = vpack.c.b16 %v1257, %v1248
      %v1474 = vpack.c.b16 %v1258, %v1249
      %v1475 = vpack.c.b16 %v1259, %v1250
      %v1476 = vpack.c.b16 %v1260, %v1251
      %v1477 = vpack.c.b16 %v1261, %v1252
      %1694 = vmatprep.subr.bf16.mxu0 %v1326
      %1695 = vmatpush1.bf16.msra.mxu0 %v1325
      %1696 = vmatprep.subr.bf16.mxu0 %v1317
      %1697 = vmatpush1.bf16.msra.mxu0 %v1316
      %1698 = vmatprep.subr.bf16.mxu0 %v1308
      %1699 = vmatpush1.bf16.msra.mxu0 %v1307
      %1700 = vmatprep.subr.bf16.mxu0 %v1299
      %1701 = vmatpush1.bf16.msra.mxu0 %v1298
      %1702 = vmatprep.subr.bf16.mxu0 %v1290
      %1703 = vmatpush1.bf16.msra.mxu0 %v1289
      %1704 = vmatprep.subr.bf16.mxu0 %v1281
      %1705 = vmatpush1.bf16.msra.mxu0 %v1280
      %1706 = vmatprep.subr.bf16.mxu0 %v1272
      %1707 = vmatpush1.bf16.msra.mxu0 %v1271
      %1708 = vmatprep.subr.bf16.mxu0 %v1263
      %1709 = vmatpush1.bf16.msra.mxu0 %v1262
      %1710 = vmatprep.subr.bf16.mxu0 %v1398
      %1711 = vmatpush2.bf16.msra.mxu0 %v1397
      %1712 = vmatprep.subr.bf16.mxu0 %v1389
      %1713 = vmatpush2.bf16.msra.mxu0 %v1388
      %1714 = vmatprep.subr.bf16.mxu0 %v1380
      %1715 = vmatpush2.bf16.msra.mxu0 %v1379
      %1716 = vmatprep.subr.bf16.mxu0 %v1371
      %1717 = vmatpush2.bf16.msra.mxu0 %v1370
      %1718 = vmatprep.subr.bf16.mxu0 %v1362
      %1719 = vmatpush2.bf16.msra.mxu0 %v1361
      %1720 = vmatprep.subr.bf16.mxu0 %v1353
      %1721 = vmatpush2.bf16.msra.mxu0 %v1352
      %1722 = vmatprep.subr.bf16.mxu0 %v1344
      %1723 = vmatpush2.bf16.msra.mxu0 %v1343
      %1724 = vmatprep.subr.bf16.mxu0 %v1335
      %1725 = vmatpush2.bf16.msra.mxu0 %v1334
      %1726 = vmatprep.mubr.bf16.mxu0 %v299
      %1727 = vmatmul.mubr.bf16.gmra.mxu0 %v298
      %v1728 = vpop.f32.mrf.mxu0
      %v1729 = vadd.f32 %v548, %v1728
      %v1730 = vpop.f32.mrf.mxu0
      %v1731 = vadd.f32 %v552, %v1730
      %v1732 = vpop.f32.mrf.mxu0
      %v1733 = vpop.f32.mrf.mxu0
      %1734 = vdwg.mxu0
      %1735 = vmatprep.subr.bf16.mxu0 %v1470
      %1736 = vmatpush1.bf16.msra.mxu0 %v1469
      %1737 = vmatprep.subr.bf16.mxu0 %v1461
      %1738 = vmatpush1.bf16.msra.mxu0 %v1460
      %1739 = vmatprep.subr.bf16.mxu0 %v1452
      %1740 = vmatpush1.bf16.msra.mxu0 %v1451
      %1741 = vmatprep.subr.bf16.mxu0 %v1443
      %1742 = vmatpush1.bf16.msra.mxu0 %v1442
      %1743 = vmatprep.subr.bf16.mxu0 %v1434
      %1744 = vmatpush1.bf16.msra.mxu0 %v1433
      %1745 = vmatprep.subr.bf16.mxu0 %v1425
      %1746 = vmatpush1.bf16.msra.mxu0 %v1424
      %1747 = vmatprep.subr.bf16.mxu0 %v1416
      %1748 = vmatpush1.bf16.msra.mxu0 %v1415
      %1749 = vmatprep.subr.bf16.mxu0 %v1407
      %1750 = vmatpush1.bf16.msra.mxu0 %v1406
      %1751 = vmatprep.subr.bf16.mxu0 0
      %1752 = vmatpush2.bf16.msra.mxu0 0
      %1753 = vmatprep.subr.bf16.mxu0 0
      %1754 = vmatpush2.bf16.msra.mxu0 0
      %1755 = vmatprep.subr.bf16.mxu0 0
      %1756 = vmatpush2.bf16.msra.mxu0 0
      %1757 = vmatprep.subr.bf16.mxu0 0
      %1758 = vmatpush2.bf16.msra.mxu0 0
      %1759 = vmatprep.subr.bf16.mxu0 0
      %1760 = vmatpush2.bf16.msra.mxu0 0
      %1761 = vmatprep.subr.bf16.mxu0 0
      %1762 = vmatpush2.bf16.msra.mxu0 0
      %1763 = vmatprep.subr.bf16.mxu0 0
      %1764 = vmatpush2.bf16.msra.mxu0 0
      %1765 = vmatprep.subr.bf16.mxu0 0
      %1766 = vmatpush2.bf16.msra.mxu0 0
      %1767 = vmatprep.mubr.bf16.mxu0 0
      %1768 = vmatmul.mubr.bf16.gmra.mxu0 %v300
      %v1769 = vpop.f32.mrf.mxu0
      %v1770 = vadd.f32 %v1729, %v1769
      %v1771 = vpop.f32.mrf.mxu0
      %v1772 = vadd.f32 %v1731, %v1771
      %v1773 = vpop.f32.mrf.mxu0
      %v1774 = vpop.f32.mrf.mxu0
      %1775 = vdwg.mxu0
      %1776 = vmatprep.subr.bf16.mxu0 %v1328
      %1777 = vmatpush1.bf16.msra.mxu0 %v1327
      %1778 = vmatprep.subr.bf16.mxu0 %v1319
      %1779 = vmatpush1.bf16.msra.mxu0 %v1318
      %1780 = vmatprep.subr.bf16.mxu0 %v1310
      %1781 = vmatpush1.bf16.msra.mxu0 %v1309
      %1782 = vmatprep.subr.bf16.mxu0 %v1301
      %1783 = vmatpush1.bf16.msra.mxu0 %v1300
      %1784 = vmatprep.subr.bf16.mxu0 %v1292
      %1785 = vmatpush1.bf16.msra.mxu0 %v1291
      %1786 = vmatprep.subr.bf16.mxu0 %v1283
      %1787 = vmatpush1.bf16.msra.mxu0 %v1282
      %1788 = vmatprep.subr.bf16.mxu0 %v1274
      %1789 = vmatpush1.bf16.msra.mxu0 %v1273
      %1790 = vmatprep.subr.bf16.mxu0 %v1265
      %1791 = vmatpush1.bf16.msra.mxu0 %v1264
      %1792 = vmatprep.subr.bf16.mxu0 %v1400
      %1793 = vmatpush2.bf16.msra.mxu0 %v1399
      %1794 = vmatprep.subr.bf16.mxu0 %v1391
      %1795 = vmatpush2.bf16.msra.mxu0 %v1390
      %1796 = vmatprep.subr.bf16.mxu0 %v1382
      %1797 = vmatpush2.bf16.msra.mxu0 %v1381
      %1798 = vmatprep.subr.bf16.mxu0 %v1373
      %1799 = vmatpush2.bf16.msra.mxu0 %v1372
      %1800 = vmatprep.subr.bf16.mxu0 %v1364
      %1801 = vmatpush2.bf16.msra.mxu0 %v1363
      %1802 = vmatprep.subr.bf16.mxu0 %v1355
      %1803 = vmatpush2.bf16.msra.mxu0 %v1354
      %1804 = vmatprep.subr.bf16.mxu0 %v1346
      %1805 = vmatpush2.bf16.msra.mxu0 %v1345
      %1806 = vmatprep.subr.bf16.mxu0 %v1337
      %1807 = vmatpush2.bf16.msra.mxu0 %v1336
      %1808 = vmatprep.mubr.bf16.mxu0 %v299
      %1809 = vmatmul.mubr.bf16.gmra.mxu0 %v298
      %v1810 = vpop.f32.mrf.mxu0
      %v1811 = vadd.f32 %v556, %v1810
      %v1812 = vpop.f32.mrf.mxu0
      %v1813 = vadd.f32 %v560, %v1812
      %v1814 = vpop.f32.mrf.mxu0
      %v1815 = vpop.f32.mrf.mxu0
      %1816 = vdwg.mxu0
      %1817 = vmatprep.subr.bf16.mxu0 %v1472
      %1818 = vmatpush1.bf16.msra.mxu0 %v1471
      %1819 = vmatprep.subr.bf16.mxu0 %v1463
      %1820 = vmatpush1.bf16.msra.mxu0 %v1462
      %1821 = vmatprep.subr.bf16.mxu0 %v1454
      %1822 = vmatpush1.bf16.msra.mxu0 %v1453
      %1823 = vmatprep.subr.bf16.mxu0 %v1445
      %1824 = vmatpush1.bf16.msra.mxu0 %v1444
      %1825 = vmatprep.subr.bf16.mxu0 %v1436
      %1826 = vmatpush1.bf16.msra.mxu0 %v1435
      %1827 = vmatprep.subr.bf16.mxu0 %v1427
      %1828 = vmatpush1.bf16.msra.mxu0 %v1426
      %1829 = vmatprep.subr.bf16.mxu0 %v1418
      %1830 = vmatpush1.bf16.msra.mxu0 %v1417
      %1831 = vmatprep.subr.bf16.mxu0 %v1409
      %1832 = vmatpush1.bf16.msra.mxu0 %v1408
      %1833 = vmatprep.subr.bf16.mxu0 0
      %1834 = vmatpush2.bf16.msra.mxu0 0
      %1835 = vmatprep.subr.bf16.mxu0 0
      %1836 = vmatpush2.bf16.msra.mxu0 0
      %1837 = vmatprep.subr.bf16.mxu0 0
      %1838 = vmatpush2.bf16.msra.mxu0 0
      %1839 = vmatprep.subr.bf16.mxu0 0
      %1840 = vmatpush2.bf16.msra.mxu0 0
      %1841 = vmatprep.subr.bf16.mxu0 0
      %1842 = vmatpush2.bf16.msra.mxu0 0
      %1843 = vmatprep.subr.bf16.mxu0 0
      %1844 = vmatpush2.bf16.msra.mxu0 0
      %1845 = vmatprep.subr.bf16.mxu0 0
      %1846 = vmatpush2.bf16.msra.mxu0 0
      %1847 = vmatprep.subr.bf16.mxu0 0
      %1848 = vmatpush2.bf16.msra.mxu0 0
      %1849 = vmatprep.mubr.bf16.mxu0 0
      %1850 = vmatmul.mubr.bf16.gmra.mxu0 %v300
      %v1851 = vpop.f32.mrf.mxu0
      %v1852 = vadd.f32 %v1811, %v1851
      %v1853 = vpop.f32.mrf.mxu0
      %v1854 = vadd.f32 %v1813, %v1853
      %v1855 = vpop.f32.mrf.mxu0
      %v1856 = vpop.f32.mrf.mxu0
      %1857 = vdwg.mxu0
      %1858 = vmatprep.subr.bf16.mxu0 %v1330
      %1859 = vmatpush1.bf16.msra.mxu0 %v1329
      %1860 = vmatprep.subr.bf16.mxu0 %v1321
      %1861 = vmatpush1.bf16.msra.mxu0 %v1320
      %1862 = vmatprep.subr.bf16.mxu0 %v1312
      %1863 = vmatpush1.bf16.msra.mxu0 %v1311
      %1864 = vmatprep.subr.bf16.mxu0 %v1303
      %1865 = vmatpush1.bf16.msra.mxu0 %v1302
      %1866 = vmatprep.subr.bf16.mxu0 %v1294
      %1867 = vmatpush1.bf16.msra.mxu0 %v1293
      %1868 = vmatprep.subr.bf16.mxu0 %v1285
      %1869 = vmatpush1.bf16.msra.mxu0 %v1284
      %1870 = vmatprep.subr.bf16.mxu0 %v1276
      %1871 = vmatpush1.bf16.msra.mxu0 %v1275
      %1872 = vmatprep.subr.bf16.mxu0 %v1267
      %1873 = vmatpush1.bf16.msra.mxu0 %v1266
      %1874 = vmatprep.subr.bf16.mxu0 %v1402
      %1875 = vmatpush2.bf16.msra.mxu0 %v1401
      %1876 = vmatprep.subr.bf16.mxu0 %v1393
      %1877 = vmatpush2.bf16.msra.mxu0 %v1392
      %1878 = vmatprep.subr.bf16.mxu0 %v1384
      %1879 = vmatpush2.bf16.msra.mxu0 %v1383
      %1880 = vmatprep.subr.bf16.mxu0 %v1375
      %1881 = vmatpush2.bf16.msra.mxu0 %v1374
      %1882 = vmatprep.subr.bf16.mxu0 %v1366
      %1883 = vmatpush2.bf16.msra.mxu0 %v1365
      %1884 = vmatprep.subr.bf16.mxu0 %v1357
      %1885 = vmatpush2.bf16.msra.mxu0 %v1356
      %1886 = vmatprep.subr.bf16.mxu0 %v1348
      %1887 = vmatpush2.bf16.msra.mxu0 %v1347
      %1888 = vmatprep.subr.bf16.mxu0 %v1339
      %1889 = vmatpush2.bf16.msra.mxu0 %v1338
      %1890 = vmatprep.mubr.bf16.mxu0 %v299
      %1891 = vmatmul.mubr.bf16.gmra.mxu0 %v298
      %v1892 = vpop.f32.mrf.mxu0
      %v1893 = vadd.f32 %v564, %v1892
      %v1894 = vpop.f32.mrf.mxu0
      %v1895 = vadd.f32 %v568, %v1894
      %v1896 = vpop.f32.mrf.mxu0
      %v1897 = vpop.f32.mrf.mxu0
      %1898 = vdwg.mxu0
      %1899 = vmatprep.subr.bf16.mxu0 %v1474
      %1900 = vmatpush1.bf16.msra.mxu0 %v1473
      %1901 = vmatprep.subr.bf16.mxu0 %v1465
      %1902 = vmatpush1.bf16.msra.mxu0 %v1464
      %1903 = vmatprep.subr.bf16.mxu0 %v1456
      %1904 = vmatpush1.bf16.msra.mxu0 %v1455
      %1905 = vmatprep.subr.bf16.mxu0 %v1447
      %1906 = vmatpush1.bf16.msra.mxu0 %v1446
      %1907 = vmatprep.subr.bf16.mxu0 %v1438
      %1908 = vmatpush1.bf16.msra.mxu0 %v1437
      %1909 = vmatprep.subr.bf16.mxu0 %v1429
      %1910 = vmatpush1.bf16.msra.mxu0 %v1428
      %1911 = vmatprep.subr.bf16.mxu0 %v1420
      %1912 = vmatpush1.bf16.msra.mxu0 %v1419
      %1913 = vmatprep.subr.bf16.mxu0 %v1411
      %1914 = vmatpush1.bf16.msra.mxu0 %v1410
      %1915 = vmatprep.subr.bf16.mxu0 0
      %1916 = vmatpush2.bf16.msra.mxu0 0
      %1917 = vmatprep.subr.bf16.mxu0 0
      %1918 = vmatpush2.bf16.msra.mxu0 0
      %1919 = vmatprep.subr.bf16.mxu0 0
      %1920 = vmatpush2.bf16.msra.mxu0 0
      %1921 = vmatprep.subr.bf16.mxu0 0
      %1922 = vmatpush2.bf16.msra.mxu0 0
      %1923 = vmatprep.subr.bf16.mxu0 0
      %1924 = vmatpush2.bf16.msra.mxu0 0
      %1925 = vmatprep.subr.bf16.mxu0 0
      %1926 = vmatpush2.bf16.msra.mxu0 0
      %1927 = vmatprep.subr.bf16.mxu0 0
      %1928 = vmatpush2.bf16.msra.mxu0 0
      %1929 = vmatprep.subr.bf16.mxu0 0
      %1930 = vmatpush2.bf16.msra.mxu0 0
      %1931 = vmatprep.mubr.bf16.mxu0 0
      %1932 = vmatmul.mubr.bf16.gmra.mxu0 %v300
      %v1933 = vpop.f32.mrf.mxu0
      %v1934 = vadd.f32 %v1893, %v1933
      %v1935 = vpop.f32.mrf.mxu0
      %v1936 = vadd.f32 %v1895, %v1935
      %v1937 = vpop.f32.mrf.mxu0
      %v1938 = vpop.f32.mrf.mxu0
      %1939 = vdwg.mxu0
      %1940 = vmatprep.subr.bf16.mxu0 %v1332
      %1941 = vmatpush1.bf16.msra.mxu0 %v1331
      %1942 = vmatprep.subr.bf16.mxu0 %v1323
      %1943 = vmatpush1.bf16.msra.mxu0 %v1322
      %1944 = vmatprep.subr.bf16.mxu0 %v1314
      %1945 = vmatpush1.bf16.msra.mxu0 %v1313
      %1946 = vmatprep.subr.bf16.mxu0 %v1305
      %1947 = vmatpush1.bf16.msra.mxu0 %v1304
      %1948 = vmatprep.subr.bf16.mxu0 %v1296
      %1949 = vmatpush1.bf16.msra.mxu0 %v1295
      %1950 = vmatprep.subr.bf16.mxu0 %v1287
      %1951 = vmatpush1.bf16.msra.mxu0 %v1286
      %1952 = vmatprep.subr.bf16.mxu0 %v1278
      %1953 = vmatpush1.bf16.msra.mxu0 %v1277
      %1954 = vmatprep.subr.bf16.mxu0 %v1269
      %1955 = vmatpush1.bf16.msra.mxu0 %v1268
      %1956 = vmatprep.subr.bf16.mxu0 %v1404
      %1957 = vmatpush2.bf16.msra.mxu0 %v1403
      %1958 = vmatprep.subr.bf16.mxu0 %v1395
      %1959 = vmatpush2.bf16.msra.mxu0 %v1394
      %1960 = vmatprep.subr.bf16.mxu0 %v1386
      %1961 = vmatpush2.bf16.msra.mxu0 %v1385
      %1962 = vmatprep.subr.bf16.mxu0 %v1377
      %1963 = vmatpush2.bf16.msra.mxu0 %v1376
      %1964 = vmatprep.subr.bf16.mxu0 %v1368
      %1965 = vmatpush2.bf16.msra.mxu0 %v1367
      %1966 = vmatprep.subr.bf16.mxu0 %v1359
      %1967 = vmatpush2.bf16.msra.mxu0 %v1358
      %1968 = vmatprep.subr.bf16.mxu0 %v1350
      %1969 = vmatpush2.bf16.msra.mxu0 %v1349
      %1970 = vmatprep.subr.bf16.mxu0 %v1341
      %1971 = vmatpush2.bf16.msra.mxu0 %v1340
      %1972 = vmatprep.mubr.bf16.mxu0 %v299
      %1973 = vmatmul.mubr.bf16.gmra.mxu0 %v298
      %v1974 = vpop.f32.mrf.mxu0
      %v1975 = vadd.f32 %v572, %v1974
      %v1976 = vpop.f32.mrf.mxu0
      %v1977 = vadd.f32 %v576, %v1976
      %v1978 = vpop.f32.mrf.mxu0
      %v1979 = vpop.f32.mrf.mxu0
      %1980 = vdwg.mxu0
      %1981 = vmatprep.subr.bf16.mxu0 %v1476
      %1982 = vmatpush1.bf16.msra.mxu0 %v1475
      %1983 = vmatprep.subr.bf16.mxu0 %v1467
      %1984 = vmatpush1.bf16.msra.mxu0 %v1466
      %1985 = vmatprep.subr.bf16.mxu0 %v1458
      %1986 = vmatpush1.bf16.msra.mxu0 %v1457
      %1987 = vmatprep.subr.bf16.mxu0 %v1449
      %1988 = vmatpush1.bf16.msra.mxu0 %v1448
      %1989 = vmatprep.subr.bf16.mxu0 %v1440
      %1990 = vmatpush1.bf16.msra.mxu0 %v1439
      %1991 = vmatprep.subr.bf16.mxu0 %v1431
      %1992 = vmatpush1.bf16.msra.mxu0 %v1430
      %1993 = vmatprep.subr.bf16.mxu0 %v1422
      %1994 = vmatpush1.bf16.msra.mxu0 %v1421
      %1995 = vmatprep.subr.bf16.mxu0 %v1413
      %1996 = vmatpush1.bf16.msra.mxu0 %v1412
      %1997 = vmatprep.subr.bf16.mxu0 0
      %1998 = vmatpush2.bf16.msra.mxu0 0
      %1999 = vmatprep.subr.bf16.mxu0 0
      %2000 = vmatpush2.bf16.msra.mxu0 0
      %2001 = vmatprep.subr.bf16.mxu0 0
      %2002 = vmatpush2.bf16.msra.mxu0 0
      %2003 = vmatprep.subr.bf16.mxu0 0
      %2004 = vmatpush2.bf16.msra.mxu0 0
      %2005 = vmatprep.subr.bf16.mxu0 0
      %2006 = vmatpush2.bf16.msra.mxu0 0
      %2007 = vmatprep.subr.bf16.mxu0 0
      %2008 = vmatpush2.bf16.msra.mxu0 0
      %2009 = vmatprep.subr.bf16.mxu0 0
      %2010 = vmatpush2.bf16.msra.mxu0 0
      %2011 = vmatprep.subr.bf16.mxu0 0
      %2012 = vmatpush2.bf16.msra.mxu0 0
      %2013 = vmatprep.mubr.bf16.mxu0 0
      %2014 = vmatmul.mubr.bf16.gmra.mxu0 %v300
      %v2015 = vpop.f32.mrf.mxu0
      %v2016 = vadd.f32 %v1975, %v2015
      %v2017 = vpop.f32.mrf.mxu0
      %v2018 = vadd.f32 %v1977, %v2017
      %v2019 = vpop.f32.mrf.mxu0
      %v2020 = vpop.f32.mrf.mxu0
      %2021 = vdwg.mxu0
      %2022 = vmatprep.subr.bf16.mxu0 0
      %2023 = vmatpush1.bf16.msra.mxu0 %v1333
      %2024 = vmatprep.subr.bf16.mxu0 0
      %2025 = vmatpush1.bf16.msra.mxu0 %v1324
      %2026 = vmatprep.subr.bf16.mxu0 0
      %2027 = vmatpush1.bf16.msra.mxu0 %v1315
      %2028 = vmatprep.subr.bf16.mxu0 0
      %2029 = vmatpush1.bf16.msra.mxu0 %v1306
      %2030 = vmatprep.subr.bf16.mxu0 0
      %2031 = vmatpush1.bf16.msra.mxu0 %v1297
      %2032 = vmatprep.subr.bf16.mxu0 0
      %2033 = vmatpush1.bf16.msra.mxu0 %v1288
      %2034 = vmatprep.subr.bf16.mxu0 0
      %2035 = vmatpush1.bf16.msra.mxu0 %v1279
      %2036 = vmatprep.subr.bf16.mxu0 0
      %2037 = vmatpush1.bf16.msra.mxu0 %v1270
      %2038 = vmatprep.subr.bf16.mxu0 0
      %2039 = vmatpush2.bf16.msra.mxu0 %v1405
      %2040 = vmatprep.subr.bf16.mxu0 0
      %2041 = vmatpush2.bf16.msra.mxu0 %v1396
      %2042 = vmatprep.subr.bf16.mxu0 0
      %2043 = vmatpush2.bf16.msra.mxu0 %v1387
      %2044 = vmatprep.subr.bf16.mxu0 0
      %2045 = vmatpush2.bf16.msra.mxu0 %v1378
      %2046 = vmatprep.subr.bf16.mxu0 0
      %2047 = vmatpush2.bf16.msra.mxu0 %v1369
      %2048 = vmatprep.subr.bf16.mxu0 0
      %2049 = vmatpush2.bf16.msra.mxu0 %v1360
      %2050 = vmatprep.subr.bf16.mxu0 0
      %2051 = vmatpush2.bf16.msra.mxu0 %v1351
      %2052 = vmatprep.subr.bf16.mxu0 0
      %2053 = vmatpush2.bf16.msra.mxu0 %v1342
      %2054 = vmatprep.mubr.bf16.mxu0 %v299
      %2055 = vmatmul.mubr.bf16.gmra.mxu0 %v298
      %v2056 = vpop.f32.mrf.mxu0
      %v2057 = vadd.f32 %v580, %v2056
      %v2058 = vpop.f32.mrf.mxu0
      %v2059 = vpop.f32.mrf.mxu0
      %v2060 = vpop.f32.mrf.mxu0
      %2061 = vdwg.mxu0
      %2062 = vmatprep.subr.bf16.mxu0 0
      %2063 = vmatpush1.bf16.msra.mxu0 %v1477
      %2064 = vmatprep.subr.bf16.mxu0 0
      %2065 = vmatpush1.bf16.msra.mxu0 %v1468
      %2066 = vmatprep.subr.bf16.mxu0 0
      %2067 = vmatpush1.bf16.msra.mxu0 %v1459
      %2068 = vmatprep.subr.bf16.mxu0 0
      %2069 = vmatpush1.bf16.msra.mxu0 %v1450
      %2070 = vmatprep.subr.bf16.mxu0 0
      %2071 = vmatpush1.bf16.msra.mxu0 %v1441
      %2072 = vmatprep.subr.bf16.mxu0 0
      %2073 = vmatpush1.bf16.msra.mxu0 %v1432
      %2074 = vmatprep.subr.bf16.mxu0 0
      %2075 = vmatpush1.bf16.msra.mxu0 %v1423
      %2076 = vmatprep.subr.bf16.mxu0 0
      %2077 = vmatpush1.bf16.msra.mxu0 %v1414
      %2078 = vmatprep.subr.bf16.mxu0 0
      %2079 = vmatpush2.bf16.msra.mxu0 0
      %2080 = vmatprep.subr.bf16.mxu0 0
      %2081 = vmatpush2.bf16.msra.mxu0 0
      %2082 = vmatprep.subr.bf16.mxu0 0
      %2083 = vmatpush2.bf16.msra.mxu0 0
      %2084 = vmatprep.subr.bf16.mxu0 0
      %2085 = vmatpush2.bf16.msra.mxu0 0
      %2086 = vmatprep.subr.bf16.mxu0 0
      %2087 = vmatpush2.bf16.msra.mxu0 0
      %2088 = vmatprep.subr.bf16.mxu0 0
      %2089 = vmatpush2.bf16.msra.mxu0 0
      %2090 = vmatprep.subr.bf16.mxu0 0
      %2091 = vmatpush2.bf16.msra.mxu0 0
      %2092 = vmatprep.subr.bf16.mxu0 0
      %2093 = vmatpush2.bf16.msra.mxu0 0
      %2094 = vmatprep.mubr.bf16.mxu0 0
      %2095 = vmatmul.mubr.bf16.gmra.mxu0 %v300
      %v2096 = vpop.f32.mrf.mxu0
      %v2097 = vadd.f32 %v2057, %v2096
      %v2098 = vpop.f32.mrf.mxu0
      %v2099 = vpop.f32.mrf.mxu0
      %v2100 = vpop.f32.mrf.mxu0
      %2101 = vdwg.mxu0
      %2102 = vst [vmem:[%s224] sm:$0x1f] %v1770
      %2103 = vst [vmem:[%s224 + $0x8] sm:$0x1f] %v1772
      %2104 = vst [vmem:[%s224 + $0x10] sm:$0x1f] %v1852
      %2105 = vst [vmem:[%s224 + $0x18] sm:$0x1f] %v1854
      %2106 = vst [vmem:[%s224 + $0x20] sm:$0x1f] %v1934
      %2107 = vst [vmem:[%s224 + $0x28] sm:$0x1f] %v1936
      %2108 = vst [vmem:[%s224 + $0x30] sm:$0x1f] %v2016
      %2109 = vst [vmem:[%s224 + $0x38] sm:$0x1f] %v2018
      %2110 = vst [vmem:[%s224 + $0x40] sm:$0x1f] %v2097
      %p2111 = scmp.lt.s32.totalorder %s16, 1
      %s2112 = scalar_select %p2111, %s16, 1
      %s2113 = smul.addr %s2112, 9
      %s2114 = smul.addr %s2113, 8
      %s2115 = scalar_lea.vmem %s5, %s2114
      // Predicated region
      $region41: #{closed_call.10} parent=39 // pred_check
        %p2116 = pneg %p144
      $region42: #{closed_call.10} parent=39 // pred_check_branch
        %2118 = sbr.rel (%p2116) target = $region44
      $region43: #{closed_call.10} parent=39 // pred_region
        _
      $region44: #{closed_call.10} parent=39 // pred_fallthru
        _
    $region40: #{closed_call.10} parent=5 // pred_fallthru
      _
    %p2119 = scmp.le.s32.totalorder 2, %s11
    // Predicated region
    $region45: #{closed_call.10} parent=5 // pred_check
      %p2120 = pneg %p2119
    $region46: #{closed_call.10} parent=5 // pred_check_branch
      %2122 = sbr.rel (%p2120) target = $region48
    $region47: #{closed_call.10} parent=5 // pred_region
      %s2123 = ssub.s32 %s11, 2
      // Predicated region
      $region49: #{closed_call.10} parent=47 // pred_check
        %p2124 = pneg %p150
      $region50: #{closed_call.10} parent=47 // pred_check_branch
        %2126 = sbr.rel (%p2124) target = $region52
      $region51: #{closed_call.10} parent=47 // pred_region
        %p2127 = scmp.lt.s32.totalorder %s17, 1
        %s2128 = scalar_select %p2127, %s17, 1
        %s2129 = smul.addr %s2128, 9
        %s2130 = smul.addr %s2129, 8
        %s2131 = scalar_lea.vmem %s5, %s2130
      $region52: #{closed_call.10} parent=47 // pred_fallthru
        _
    $region48: #{closed_call.10} parent=5 // pred_fallthru
      _
  $region6: #{closed_call.10} parent=0 // loop_footer
    %s15 = sadd.s32 1, %s11
  $region7: #{closed_call.10} parent=0 // loop_footer_branch
    %10 = sbr.rel target = $region3
  $region8: #{closed_call.10} parent=0 // loop_exit
    _

// kernel: forward.3
$region0: #{forward.3}
  #allocation0 [shape = 'u32[]', space=smem, size = 0x4, offset = 0x4, fixed_abs, tag = 'smem constant byte address 0x4 - core index']
  #allocation1 [shape = 'u32[144,128]{1,0:T(1,128)}', space=vmem, size = 0x12000, scoped, tag = 'internal scratch']
  %s0 = inlined_call_operand.vmem [shape: f32[2,384], index: 0, kind: input, shape index: {}]
  %s1 = inlined_call_operand.vmem [shape: f32[1,384], index: 1, kind: input, shape index: {}]
  %s2 = inlined_call_operand.vmem [shape: f32[1,384], index: 2, kind: input, shape index: {}]
  %s3 = inlined_call_operand.vmem [shape: bf16[384,256], index: 3, kind: input, shape index: {}]
  %s4 = inlined_call_operand.vmem [shape: f32[1,256], index: 4, kind: input, shape index: {}]
  %s5 = inlined_call_operand.vmem [shape: bf16[256,10], index: 5, kind: input, shape index: {}]
  %s6 = inlined_call_operand.vmem [shape: f32[1,10], index: 6, kind: input, shape index: {}]
  %s7 = inlined_call_operand.hbm [shape: f32[2,10], index: 7, kind: output, shape index: {}]
  %s8 = sld [smem:[#allocation0]]
  $region38: #{forward.3} parent=0
    _
  %s10 = ssub.s32 1, %s8
  %s11 = scalar_select 0, %s10, %s8
  $region1: #{forward.3} parent=0
    #allocation2 [shape = 'u8[1024]{0}', space=vmem, size = 0x400, scoped, tag = 'output window, operand 0, single buffered']
    #allocation3 [shape = 's32[1]{0}', space=sflag, size = 0x4, scoped, tag = 'scoped memory for forward.3']
    %12 = vsyncpa [#allocation3], 0
    // Predicated region
    $region2: #{forward.3} parent=1 // pred_check
      _
    $region3: #{forward.3} parent=1 // pred_check_branch
      %14 = sbr.rel (0) target = $region5
    $region4: #{forward.3} parent=1 // pred_region
      _
    $region5: #{forward.3} parent=1 // pred_fallthru
      _
    // Predicated region
    $region6: #{forward.3} parent=1 // pred_check
      _
    $region7: #{forward.3} parent=1 // pred_check_branch
      %16 = sbr.rel (0) target = $region9
    $region8: #{forward.3} parent=1 // pred_region
      _
    $region9: #{forward.3} parent=1 // pred_fallthru
      _
    // Predicated region
    $region10: #{forward.3} parent=1 // pred_check
      _
    $region11: #{forward.3} parent=1 // pred_check_branch
      %18 = sbr.rel (0) target = $region13
    $region12: #{forward.3} parent=1 // pred_region
      _
    $region13: #{forward.3} parent=1 // pred_fallthru
      _
    // Predicated region
    $region14: #{forward.3} parent=1 // pred_check
      _
    $region15: #{forward.3} parent=1 // pred_check_branch
      %20 = sbr.rel (0) target = $region17
    $region16: #{forward.3} parent=1 // pred_region
      _
    $region17: #{forward.3} parent=1 // pred_fallthru
      _
    // Predicated region
    $region18: #{forward.3} parent=1 // pred_check
      _
    $region19: #{forward.3} parent=1 // pred_check_branch
      %22 = sbr.rel (0) target = $region21
    $region20: #{forward.3} parent=1 // pred_region
      _
    $region21: #{forward.3} parent=1 // pred_fallthru
      _
    // Predicated region
    $region22: #{forward.3} parent=1 // pred_check
      _
    $region23: #{forward.3} parent=1 // pred_check_branch
      %24 = sbr.rel (0) target = $region25
    $region24: #{forward.3} parent=1 // pred_region
      _
    $region25: #{forward.3} parent=1 // pred_fallthru
      _
    // Predicated region
    $region26: #{forward.3} parent=1 // pred_check
      _
    $region27: #{forward.3} parent=1 // pred_check_branch
      %26 = sbr.rel (0) target = $region29
    $region28: #{forward.3} parent=1 // pred_region
      _
    $region29: #{forward.3} parent=1 // pred_fallthru
      _
    %v28 = vld [vmem:[%s0] sm:$0x3f]
    %v29 = vld [vmem:[%s1] sm:$0x7]
    %v30 = vld [vmem:[%s2] sm:$0x7]
    %v32 = vcombine.high %v28, %v28
    %v34 = vunpack.c.l.s4 1983009808
    %v35 = vunpack.c.0.s8 %v34
    %v36 = vlaneseq
    %v37 = vshrl.u32 %v36, 7
    %v38 = vsub.s32 %v35, %v37
    %v39 = vrot.slane %v28, %v38
    %v41 = vunpack.c.l.s4 1983009808
    %v42 = vunpack.c.0.s8 %v41
    %v43 = vlaneseq
    %v44 = vshrl.u32 %v43, 7
    %v45 = vsub.s32 %v42, %v44
    %v46 = vrot.slane %v32, %v45
    %v47 = vcombine.high %v39, %v39
    %vm51 = vcmask 1041408
    %v52 = vsel %vm51, %v39, 0.0
    %v53 = vsel %vm51, %v47, 0.0
    %v54 = vadd.f32 %v52, %v53
    %v55 = vsel %vm51, %v46, 0.0
    %v56 = vadd.f32 %v54, %v55
    %57 = vadd.xlane.f32.xlu0 %v56
    %v58 = vpop.xlane.xlu0 %57
    %v59 = vrcp.pop 384.0
    %v60 = vmul.f32 %v58, %v59
    %v63 = vunpack.c.l.s4 269488144
    %v64 = vunpack.c.0.s8 %v63
    %v65 = vlaneseq
    %v66 = vshrl.u32 %v65, 7
    %v67 = vsub.s32 %v64, %v66
    %v68 = vrot.slane %v60, %v67
    %v70 = vsub.f32 %v28, %v68
    %v71 = vmul.f32 %v70, %v70
    %v73 = vcombine.high %v71, %v71
    %v75 = vunpack.c.l.s4 1983009808
    %v76 = vunpack.c.0.s8 %v75
    %v77 = vlaneseq
    %v78 = vshrl.u32 %v77, 7
    %v79 = vsub.s32 %v76, %v78
    %v80 = vrot.slane %v71, %v79
    %v82 = vunpack.c.l.s4 1983009808
    %v83 = vunpack.c.0.s8 %v82
    %v84 = vlaneseq
    %v85 = vshrl.u32 %v84, 7
    %v86 = vsub.s32 %v83, %v85
    %v87 = vrot.slane %v73, %v86
    %v88 = vcombine.high %v80, %v80
    %v92 = vsel %vm51, %v80, 0.0
    %v93 = vsel %vm51, %v88, 0.0
    %v94 = vadd.f32 %v92, %v93
    %v95 = vsel %vm51, %v87, 0.0
    %v96 = vadd.f32 %v94, %v95
    %97 = vadd.xlane.f32.xlu0 %v96
    %v98 = vpop.xlane.xlu0 %97
    %v99 = vmul.f32 %v98, %v59
    %v100 = vadd.f32 %v99, 1e-06
    %v101 = vrsqrt.pop %v100
    %v104 = vunpack.c.l.s4 269488144
    %v105 = vunpack.c.0.s8 %v104
    %v106 = vlaneseq
    %v107 = vshrl.u32 %v106, 7
    %v108 = vsub.s32 %v105, %v107
    %v109 = vrot.slane %v101, %v108
    %v111 = vmul.f32 %v70, %v109
    %v113 = vlaneseq
    %v114 = vshrl.u32 %v113, 7
    %v115 = vsub.s32 0, %v114
    %v116 = vrot.slane %v29, %v115
    %v117 = vlaneseq
    %v118 = vshrl.u32 %v117, 7
    %v119 = vsub.s32 1, %v118
    %v120 = vrot.slane %v29, %v119
    %v121 = vlaneseq
    %v122 = vshrl.u32 %v121, 7
    %v123 = vsub.s32 2, %v122
    %v124 = vrot.slane %v29, %v123
    %v125 = vcombine.low %v116, %v120
    %v127 = vunpack.c.l.s4 1983009808
    %v128 = vunpack.c.0.s8 %v127
    %v129 = vlaneseq
    %v130 = vshrl.u32 %v129, 7
    %v131 = vsub.s32 %v128, %v130
    %v132 = vrot.slane %v125, %v131
    %v134 = vunpack.c.l.s4 1983009808
    %v135 = vunpack.c.0.s8 %v134
    %v136 = vlaneseq
    %v137 = vshrl.u32 %v136, 7
    %v138 = vsub.s32 %v135, %v137
    %v139 = vrot.slane %v124, %v138
    %v140 = vcombine.low %v132, %v139
    %v142 = vmul.f32 %v111, %v140
    %v144 = vlaneseq
    %v145 = vshrl.u32 %v144, 7
    %v146 = vsub.s32 0, %v145
    %v147 = vrot.slane %v30, %v146
    %v148 = vlaneseq
    %v149 = vshrl.u32 %v148, 7
    %v150 = vsub.s32 1, %v149
    %v151 = vrot.slane %v30, %v150
    %v152 = vlaneseq
    %v153 = vshrl.u32 %v152, 7
    %v154 = vsub.s32 2, %v153
    %v155 = vrot.slane %v30, %v154
    %v156 = vcombine.low %v147, %v151
    %v158 = vunpack.c.l.s4 1983009808
    %v159 = vunpack.c.0.s8 %v158
    %v160 = vlaneseq
    %v161 = vshrl.u32 %v160, 7
    %v162 = vsub.s32 %v159, %v161
    %v163 = vrot.slane %v156, %v162
    %v165 = vunpack.c.l.s4 1983009808
    %v166 = vunpack.c.0.s8 %v165
    %v167 = vlaneseq
    %v168 = vshrl.u32 %v167, 7
    %v169 = vsub.s32 %v166, %v168
    %v170 = vrot.slane %v155, %v169
    %v171 = vcombine.low %v163, %v170
    %v173 = vadd.f32 %v142, %v171
    %v175 = vcombine.high %v173, %v173
    %v177 = vunpack.c.l.s4 1983009808
    %v178 = vunpack.c.0.s8 %v177
    %v179 = vlaneseq
    %v180 = vshrl.u32 %v179, 7
    %v181 = vsub.s32 %v178, %v180
    %v182 = vrot.slane %v173, %v181
    %v184 = vunpack.c.l.s4 1983009808
    %v185 = vunpack.c.0.s8 %v184
    %v186 = vlaneseq
    %v187 = vshrl.u32 %v186, 7
    %v188 = vsub.s32 %v185, %v187
    %v189 = vrot.slane %v175, %v188
    %v190 = vcombine.high %v182, %v182
    %v194 = vsel %vm51, %v182, 0.0
    %v195 = vsel %vm51, %v190, 0.0
    %v196 = vadd.f32 %v194, %v195
    %v197 = vsel %vm51, %v189, 0.0
    %v198 = vadd.f32 %v196, %v197
    %199 = vadd.xlane.f32.xlu0 %v198
    %v200 = vpop.xlane.xlu0 %199
    %v201 = vmul.f32 %v200, %v59
    %v204 = vunpack.c.l.s4 269488144
    %v205 = vunpack.c.0.s8 %v204
    %v206 = vlaneseq
    %v207 = vshrl.u32 %v206, 7
    %v208 = vsub.s32 %v205, %v207
    %v209 = vrot.slane %v201, %v208
    %v211 = vsub.f32 %v173, %v209
    %v212 = vmul.f32 %v211, %v211
    %v214 = vcombine.high %v212, %v212
    %v216 = vunpack.c.l.s4 1983009808
    %v217 = vunpack.c.0.s8 %v216
    %v218 = vlaneseq
    %v219 = vshrl.u32 %v218, 7
    %v220 = vsub.s32 %v217, %v219
    %v221 = vrot.slane %v212, %v220
    %v223 = vunpack.c.l.s4 1983009808
    %v224 = vunpack.c.0.s8 %v223
    %v225 = vlaneseq
    %v226 = vshrl.u32 %v225, 7
    %v227 = vsub.s32 %v224, %v226
    %v228 = vrot.slane %v214, %v227
    %v229 = vcombine.high %v221, %v221
    %v233 = vsel %vm51, %v221, 0.0
    %v234 = vsel %vm51, %v229, 0.0
    %v235 = vadd.f32 %v233, %v234
    %v236 = vsel %vm51, %v228, 0.0
    %v237 = vadd.f32 %v235, %v236
    %238 = vadd.xlane.f32.xlu0 %v237
    %v239 = vpop.xlane.xlu0 %238
    %v240 = vmul.f32 %v239, %v59
    %v241 = vadd.f32 %v240, 1e-06
    %v242 = vrsqrt.pop %v241
    %v245 = vunpack.c.l.s4 269488144
    %v246 = vunpack.c.0.s8 %v245
    %v247 = vlaneseq
    %v248 = vshrl.u32 %v247, 7
    %v249 = vsub.s32 %v246, %v248
    %v250 = vrot.slane %v242, %v249
    %v252 = vmul.f32 %v211, %v250
    %v253 = vmul.f32 %v252, %v140
    %v254 = vadd.f32 %v253, %v171
    %v256 = vcombine.high %v254, %v254
    %v258 = vunpack.c.l.s4 1983009808
    %v259 = vunpack.c.0.s8 %v258
    %v260 = vlaneseq
    %v261 = vshrl.u32 %v260, 7
    %v262 = vsub.s32 %v259, %v261
    %v263 = vrot.slane %v254, %v262
    %v265 = vunpack.c.l.s4 1983009808
    %v266 = vunpack.c.0.s8 %v265
    %v267 = vlaneseq
    %v268 = vshrl.u32 %v267, 7
    %v269 = vsub.s32 %v266, %v268
    %v270 = vrot.slane %v256, %v269
    %v271 = vcombine.high %v263, %v263
    %v275 = vpack.c.bf16 %v263, %v263
    %v276 = vpack.c.bf16 %v271, %v271
    %v277 = vpack.c.bf16 %v270, %v270
    %v278 = vld [vmem:[%s3] sm:$0xff]
    %v279 = vld [vmem:[%s3 + $0x8] sm:$0xff]
    %v280 = vld [vmem:[%s3 + $0x10] sm:$0xff]
    %v281 = vld [vmem:[%s3 + $0x18] sm:$0xff]
    %v282 = vld [vmem:[%s3 + $0x20] sm:$0xff]
    %v283 = vld [vmem:[%s3 + $0x28] sm:$0xff]
    %v284 = vld [vmem:[%s3 + $0x30] sm:$0xff]
    %v285 = vld [vmem:[%s3 + $0x38] sm:$0xff]
    %v286 = vld [vmem:[%s3 + $0x40] sm:$0xff]
    %v287 = vld [vmem:[%s3 + $0x48] sm:$0xff]
    %v288 = vld [vmem:[%s3 + $0x50] sm:$0xff]
    %v289 = vld [vmem:[%s3 + $0x58] sm:$0xff]
    %v290 = vld [vmem:[%s3 + $0x60] sm:$0xff]
    %v291 = vld [vmem:[%s3 + $0x68] sm:$0xff]
    %v292 = vld [vmem:[%s3 + $0x70] sm:$0xff]
    %v293 = vld [vmem:[%s3 + $0x78] sm:$0xff]
    %v294 = vld [vmem:[%s3 + $0x80] sm:$0xff]
    %v295 = vld [vmem:[%s3 + $0x88] sm:$0xff]
    %v296 = vld [vmem:[%s3 + $0x90] sm:$0xff]
    %v297 = vld [vmem:[%s3 + $0x98] sm:$0xff]
    %v298 = vld [vmem:[%s3 + $0xa0] sm:$0xff]
    %v299 = vld [vmem:[%s3 + $0xa8] sm:$0xff]
    %v300 = vld [vmem:[%s3 + $0xb0] sm:$0xff]
    %v301 = vld [vmem:[%s3 + $0xb8] sm:$0xff]
    %v302 = vld [vmem:[%s3 + $0xc0] sm:$0xff]
    %v303 = vld [vmem:[%s3 + $0xc8] sm:$0xff]
    %v304 = vld [vmem:[%s3 + $0xd0] sm:$0xff]
    %v305 = vld [vmem:[%s3 + $0xd8] sm:$0xff]
    %v306 = vld [vmem:[%s3 + $0xe0] sm:$0xff]
    %v307 = vld [vmem:[%s3 + $0xe8] sm:$0xff]
    %v308 = vld [vmem:[%s3 + $0xf0] sm:$0xff]
    %v309 = vld [vmem:[%s3 + $0xf8] sm:$0xff]
    %v310 = vld [vmem:[%s3 + $0x100] sm:$0xff]
    %v311 = vld [vmem:[%s3 + $0x108] sm:$0xff]
    %v312 = vld [vmem:[%s3 + $0x110] sm:$0xff]
    %v313 = vld [vmem:[%s3 + $0x118] sm:$0xff]
    %v314 = vld [vmem:[%s3 + $0x120] sm:$0xff]
    %v315 = vld [vmem:[%s3 + $0x128] sm:$0xff]
    %v316 = vld [vmem:[%s3 + $0x130] sm:$0xff]
    %v317 = vld [vmem:[%s3 + $0x138] sm:$0xff]
    %v318 = vld [vmem:[%s3 + $0x140] sm:$0xff]
    %v319 = vld [vmem:[%s3 + $0x148] sm:$0xff]
    %v320 = vld [vmem:[%s3 + $0x150] sm:$0xff]
    %v321 = vld [vmem:[%s3 + $0x158] sm:$0xff]
    %v322 = vld [vmem:[%s3 + $0x160] sm:$0xff]
    %v323 = vld [vmem:[%s3 + $0x168] sm:$0xff]
    %v324 = vld [vmem:[%s3 + $0x170] sm:$0xff]
    %v325 = vld [vmem:[%s3 + $0x178] sm:$0xff]
    %v326 = vld [vmem:[%s4] sm:$0x3]
    %v328 = vlaneseq
    %v329 = vshrl.u32 %v328, 7
    %v330 = vsub.s32 0, %v329
    %v331 = vrot.slane %v326, %v330
    %v332 = vlaneseq
    %v333 = vshrl.u32 %v332, 7
    %v334 = vsub.s32 1, %v333
    %v335 = vrot.slane %v326, %v334
    %v386 = vunpack.c.l.b16 %v278
    %v387 = vunpack.c.h.b16 %v278
    %v388 = vunpack.c.l.b16 %v279
    %v389 = vunpack.c.h.b16 %v279
    %v390 = vunpack.c.l.b16 %v280
    %v391 = vunpack.c.h.b16 %v280
    %v392 = vunpack.c.l.b16 %v281
    %v393 = vunpack.c.h.b16 %v281
    %v394 = vunpack.c.l.b16 %v282
    %v395 = vunpack.c.h.b16 %v282
    %v396 = vunpack.c.l.b16 %v283
    %v397 = vunpack.c.h.b16 %v283
    %v398 = vunpack.c.l.b16 %v284
    %v399 = vunpack.c.h.b16 %v284
    %v400 = vunpack.c.l.b16 %v285
    %v401 = vunpack.c.h.b16 %v285
    %v402 = vunpack.c.l.b16 %v286
    %v403 = vunpack.c.h.b16 %v286
    %v404 = vunpack.c.l.b16 %v287
    %v405 = vunpack.c.h.b16 %v287
    %v406 = vunpack.c.l.b16 %v288
    %v407 = vunpack.c.h.b16 %v288
    %v408 = vunpack.c.l.b16 %v289
    %v409 = vunpack.c.h.b16 %v289
    %v410 = vunpack.c.l.b16 %v290
    %v411 = vunpack.c.h.b16 %v290
    %v412 = vunpack.c.l.b16 %v291
    %v413 = vunpack.c.h.b16 %v291
    %v414 = vunpack.c.l.b16 %v292
    %v415 = vunpack.c.h.b16 %v292
    %v416 = vunpack.c.l.b16 %v293
    %v417 = vunpack.c.h.b16 %v293
    %v418 = vunpack.c.l.b16 %v294
    %v419 = vunpack.c.h.b16 %v294
    %v420 = vunpack.c.l.b16 %v295
    %v421 = vunpack.c.h.b16 %v295
    %v422 = vunpack.c.l.b16 %v296
    %v423 = vunpack.c.h.b16 %v296
    %v424 = vunpack.c.l.b16 %v297
    %v425 = vunpack.c.h.b16 %v297
    %v426 = vunpack.c.l.b16 %v298
    %v427 = vunpack.c.h.b16 %v298
    %v428 = vunpack.c.l.b16 %v299
    %v429 = vunpack.c.h.b16 %v299
    %v430 = vunpack.c.l.b16 %v300
    %v431 = vunpack.c.h.b16 %v300
    %v432 = vunpack.c.l.b16 %v301
    %v433 = vunpack.c.h.b16 %v301
    %v434 = vunpack.c.l.b16 %v302
    %v435 = vunpack.c.h.b16 %v302
    %v436 = vunpack.c.l.b16 %v303
    %v437 = vunpack.c.h.b16 %v303
    %v438 = vunpack.c.l.b16 %v304
    %v439 = vunpack.c.h.b16 %v304
    %v440 = vunpack.c.l.b16 %v305
    %v441 = vunpack.c.h.b16 %v305
    %v442 = vunpack.c.l.b16 %v306
    %v443 = vunpack.c.h.b16 %v306
    %v444 = vunpack.c.l.b16 %v307
    %v445 = vunpack.c.h.b16 %v307
    %v446 = vunpack.c.l.b16 %v308
    %v447 = vunpack.c.h.b16 %v308
    %v448 = vunpack.c.l.b16 %v309
    %v449 = vunpack.c.h.b16 %v309
    %v450 = vunpack.c.l.b16 %v310
    %v451 = vunpack.c.h.b16 %v310
    %v452 = vunpack.c.l.b16 %v311
    %v453 = vunpack.c.h.b16 %v311
    %v454 = vunpack.c.l.b16 %v312
    %v455 = vunpack.c.h.b16 %v312
    %v456 = vunpack.c.l.b16 %v313
    %v457 = vunpack.c.h.b16 %v313
    %v458 = vunpack.c.l.b16 %v314
    %v459 = vunpack.c.h.b16 %v314
    %v460 = vunpack.c.l.b16 %v315
    %v461 = vunpack.c.h.b16 %v315
    %v462 = vunpack.c.l.b16 %v316
    %v463 = vunpack.c.h.b16 %v316
    %v464 = vunpack.c.l.b16 %v317
    %v465 = vunpack.c.h.b16 %v317
    %v466 = vunpack.c.l.b16 %v318
    %v467 = vunpack.c.h.b16 %v318
    %v468 = vunpack.c.l.b16 %v319
    %v469 = vunpack.c.h.b16 %v319
    %v470 = vunpack.c.l.b16 %v320
    %v471 = vunpack.c.h.b16 %v320
    %v472 = vunpack.c.l.b16 %v321
    %v473 = vunpack.c.h.b16 %v321
    %v474 = vunpack.c.l.b16 %v322
    %v475 = vunpack.c.h.b16 %v322
    %v476 = vunpack.c.l.b16 %v323
    %v477 = vunpack.c.h.b16 %v323
    %v478 = vunpack.c.l.b16 %v324
    %v479 = vunpack.c.h.b16 %v324
    %v480 = vunpack.c.l.b16 %v325
    %v481 = vunpack.c.h.b16 %v325
    %v482 = vpack.c.b16 %v388, %v386
    %v483 = vpack.c.b16 %v389, %v387
    %v484 = vpack.c.b16 %v392, %v390
    %v485 = vpack.c.b16 %v393, %v391
    %v486 = vpack.c.b16 %v396, %v394
    %v487 = vpack.c.b16 %v397, %v395
    %v488 = vpack.c.b16 %v400, %v398
    %v489 = vpack.c.b16 %v401, %v399
    %v490 = vpack.c.b16 %v404, %v402
    %v491 = vpack.c.b16 %v405, %v403
    %v492 = vpack.c.b16 %v408, %v406
    %v493 = vpack.c.b16 %v409, %v407
    %v494 = vpack.c.b16 %v412, %v410
    %v495 = vpack.c.b16 %v413, %v411
    %v496 = vpack.c.b16 %v416, %v414
    %v497 = vpack.c.b16 %v417, %v415
    %v498 = vpack.c.b16 %v420, %v418
    %v499 = vpack.c.b16 %v421, %v419
    %v500 = vpack.c.b16 %v424, %v422
    %v501 = vpack.c.b16 %v425, %v423
    %v502 = vpack.c.b16 %v428, %v426
    %v503 = vpack.c.b16 %v429, %v427
    %v504 = vpack.c.b16 %v432, %v430
    %v505 = vpack.c.b16 %v433, %v431
    %v506 = vpack.c.b16 %v436, %v434
    %v507 = vpack.c.b16 %v437, %v435
    %v508 = vpack.c.b16 %v440, %v438
    %v509 = vpack.c.b16 %v441, %v439
    %v510 = vpack.c.b16 %v444, %v442
    %v511 = vpack.c.b16 %v445, %v443
    %v512 = vpack.c.b16 %v448, %v446
    %v513 = vpack.c.b16 %v449, %v447
    %v514 = vpack.c.b16 %v452, %v450
    %v515 = vpack.c.b16 %v453, %v451
    %v516 = vpack.c.b16 %v456, %v454
    %v517 = vpack.c.b16 %v457, %v455
    %v518 = vpack.c.b16 %v460, %v458
    %v519 = vpack.c.b16 %v461, %v459
    %v520 = vpack.c.b16 %v464, %v462
    %v521 = vpack.c.b16 %v465, %v463
    %v522 = vpack.c.b16 %v468, %v466
    %v523 = vpack.c.b16 %v469, %v467
    %v524 = vpack.c.b16 %v472, %v470
    %v525 = vpack.c.b16 %v473, %v471
    %v526 = vpack.c.b16 %v476, %v474
    %v527 = vpack.c.b16 %v477, %v475
    %v528 = vpack.c.b16 %v480, %v478
    %v529 = vpack.c.b16 %v481, %v479
    %578 = vmatprep.subr.bf16.mxu0 %v497
    %579 = vmatpush1.bf16.msra.mxu0 %v496
    %580 = vmatprep.subr.bf16.mxu0 %v495
    %581 = vmatpush1.bf16.msra.mxu0 %v494
    %582 = vmatprep.subr.bf16.mxu0 %v493
    %583 = vmatpush1.bf16.msra.mxu0 %v492
    %584 = vmatprep.subr.bf16.mxu0 %v491
    %585 = vmatpush1.bf16.msra.mxu0 %v490
    %586 = vmatprep.subr.bf16.mxu0 %v489
    %587 = vmatpush1.bf16.msra.mxu0 %v488
    %588 = vmatprep.subr.bf16.mxu0 %v487
    %589 = vmatpush1.bf16.msra.mxu0 %v486
    %590 = vmatprep.subr.bf16.mxu0 %v485
    %591 = vmatpush1.bf16.msra.mxu0 %v484
    %592 = vmatprep.subr.bf16.mxu0 %v483
    %593 = vmatpush1.bf16.msra.mxu0 %v482
    %594 = vmatprep.subr.bf16.mxu0 %v513
    %595 = vmatpush2.bf16.msra.mxu0 %v512
    %596 = vmatprep.subr.bf16.mxu0 %v511
    %597 = vmatpush2.bf16.msra.mxu0 %v510
    %598 = vmatprep.subr.bf16.mxu0 %v509
    %599 = vmatpush2.bf16.msra.mxu0 %v508
    %600 = vmatprep.subr.bf16.mxu0 %v507
    %601 = vmatpush2.bf16.msra.mxu0 %v506
    %602 = vmatprep.subr.bf16.mxu0 %v505
    %603 = vmatpush2.bf16.msra.mxu0 %v504
    %604 = vmatprep.subr.bf16.mxu0 %v503
    %605 = vmatpush2.bf16.msra.mxu0 %v502
    %606 = vmatprep.subr.bf16.mxu0 %v501
    %607 = vmatpush2.bf16.msra.mxu0 %v500
    %608 = vmatprep.subr.bf16.mxu0 %v499
    %609 = vmatpush2.bf16.msra.mxu0 %v498
    %610 = vmatprep.mubr.bf16.mxu0 %v276
    %611 = vmatmul.mubr.bf16.gmra.mxu0 %v275
    %v612 = vpop.f32.mrf.mxu0
    %v613 = vadd.f32 %v331, %v612
    %v614 = vpop.f32.mrf.mxu0
    %v615 = vadd.f32 %v335, %v614
    %v616 = vpop.f32.mrf.mxu0
    %v617 = vpop.f32.mrf.mxu0
    %618 = vdwg.mxu0
    %619 = vmatprep.subr.bf16.mxu0 %v529
    %620 = vmatpush1.bf16.msra.mxu0 %v528
    %621 = vmatprep.subr.bf16.mxu0 %v527
    %622 = vmatpush1.bf16.msra.mxu0 %v526
    %623 = vmatprep.subr.bf16.mxu0 %v525
    %624 = vmatpush1.bf16.msra.mxu0 %v524
    %625 = vmatprep.subr.bf16.mxu0 %v523
    %626 = vmatpush1.bf16.msra.mxu0 %v522
    %627 = vmatprep.subr.bf16.mxu0 %v521
    %628 = vmatpush1.bf16.msra.mxu0 %v520
    %629 = vmatprep.subr.bf16.mxu0 %v519
    %630 = vmatpush1.bf16.msra.mxu0 %v518
    %631 = vmatprep.subr.bf16.mxu0 %v517
    %632 = vmatpush1.bf16.msra.mxu0 %v516
    %633 = vmatprep.subr.bf16.mxu0 %v515
    %634 = vmatpush1.bf16.msra.mxu0 %v514
    %635 = vmatprep.subr.bf16.mxu0 0
    %636 = vmatpush2.bf16.msra.mxu0 0
    %637 = vmatprep.subr.bf16.mxu0 0
    %638 = vmatpush2.bf16.msra.mxu0 0
    %639 = vmatprep.subr.bf16.mxu0 0
    %640 = vmatpush2.bf16.msra.mxu0 0
    %641 = vmatprep.subr.bf16.mxu0 0
    %642 = vmatpush2.bf16.msra.mxu0 0
    %643 = vmatprep.subr.bf16.mxu0 0
    %644 = vmatpush2.bf16.msra.mxu0 0
    %645 = vmatprep.subr.bf16.mxu0 0
    %646 = vmatpush2.bf16.msra.mxu0 0
    %647 = vmatprep.subr.bf16.mxu0 0
    %648 = vmatpush2.bf16.msra.mxu0 0
    %649 = vmatprep.subr.bf16.mxu0 0
    %650 = vmatpush2.bf16.msra.mxu0 0
    %651 = vmatprep.mubr.bf16.mxu0 0
    %652 = vmatmul.mubr.bf16.gmra.mxu0 %v277
    %v653 = vpop.f32.mrf.mxu0
    %v654 = vadd.f32 %v613, %v653
    %v655 = vpop.f32.mrf.mxu0
    %v656 = vadd.f32 %v615, %v655
    %v657 = vpop.f32.mrf.mxu0
    %v658 = vpop.f32.mrf.mxu0
    %659 = vdwg.mxu0
    %v660 = vmax.f32 %v654, 0.0
    %v661 = vmax.f32 %v656, 0.0
    %v662 = vpack.c.bf16 %v660, %v660
    %v663 = vpack.c.bf16 %v661, %v661
    %v664 = vld [vmem:[%s5] sm:$0xf]
    %v665 = vld [vmem:[%s5 + $0x4] sm:$0xf]
    %v666 = vld [vmem:[%s5 + $0x8] sm:$0xf]
    %v667 = vld [vmem:[%s5 + $0xc] sm:$0xf]
    %v668 = vld [vmem:[%s5 + $0x10] sm:$0xf]
    %v669 = vld [vmem:[%s5 + $0x14] sm:$0xf]
    %v670 = vld [vmem:[%s5 + $0x18] sm:$0xf]
    %v671 = vld [vmem:[%s5 + $0x1c] sm:$0xf]
    %v672 = vld [vmem:[%s5 + $0x20] sm:$0xf]
    %v673 = vld [vmem:[%s5 + $0x24] sm:$0xf]
    %v674 = vld [vmem:[%s5 + $0x28] sm:$0xf]
    %v675 = vld [vmem:[%s5 + $0x2c] sm:$0xf]
    %v676 = vld [vmem:[%s5 + $0x30] sm:$0xf]
    %v677 = vld [vmem:[%s5 + $0x34] sm:$0xf]
    %v678 = vld [vmem:[%s5 + $0x38] sm:$0xf]
    %v679 = vld [vmem:[%s5 + $0x3c] sm:$0xf]
    %v680 = vld [vmem:[%s5 + $0x40] sm:$0xf]
    %v681 = vld [vmem:[%s5 + $0x44] sm:$0xf]
    %v682 = vld [vmem:[%s5 + $0x48] sm:$0xf]
    %v683 = vld [vmem:[%s5 + $0x4c] sm:$0xf]
    %v684 = vld [vmem:[%s5 + $0x50] sm:$0xf]
    %v685 = vld [vmem:[%s5 + $0x54] sm:$0xf]
    %v686 = vld [vmem:[%s5 + $0x58] sm:$0xf]
    %v687 = vld [vmem:[%s5 + $0x5c] sm:$0xf]
    %v688 = vld [vmem:[%s5 + $0x60] sm:$0xf]
    %v689 = vld [vmem:[%s5 + $0x64] sm:$0xf]
    %v690 = vld [vmem:[%s5 + $0x68] sm:$0xf]
    %v691 = vld [vmem:[%s5 + $0x6c] sm:$0xf]
    %v692 = vld [vmem:[%s5 + $0x70] sm:$0xf]
    %v693 = vld [vmem:[%s5 + $0x74] sm:$0xf]
    %v694 = vld [vmem:[%s5 + $0x78] sm:$0xf]
    %v695 = vld [vmem:[%s5 + $0x7c] sm:$0xf]
    %v696 = vld [vmem:[%s6] sm:$0x1]
    %v698 = vlaneseq
    %v699 = vshrl.u32 %v698, 7
    %v700 = vsub.s32 0, %v699
    %v701 = vrot.slane %v696, %v700
    %v735 = vunpack.c.l.b16 %v664
    %v736 = vunpack.c.l.b16 %v665
    %v737 = vunpack.c.l.b16 %v666
    %v738 = vunpack.c.l.b16 %v667
    %v739 = vunpack.c.l.b16 %v668
    %v740 = vunpack.c.l.b16 %v669
    %v741 = vunpack.c.l.b16 %v670
    %v742 = vunpack.c.l.b16 %v671
    %v743 = vunpack.c.l.b16 %v672
    %v744 = vunpack.c.l.b16 %v673
    %v745 = vunpack.c.l.b16 %v674
    %v746 = vunpack.c.l.b16 %v675
    %v747 = vunpack.c.l.b16 %v676
    %v748 = vunpack.c.l.b16 %v677
    %v749 = vunpack.c.l.b16 %v678
    %v750 = vunpack.c.l.b16 %v679
    %v751 = vunpack.c.l.b16 %v680
    %v752 = vunpack.c.l.b16 %v681
    %v753 = vunpack.c.l.b16 %v682
    %v754 = vunpack.c.l.b16 %v683
    %v755 = vunpack.c.l.b16 %v684
    %v756 = vunpack.c.l.b16 %v685
    %v757 = vunpack.c.l.b16 %v686
    %v758 = vunpack.c.l.b16 %v687
    %v759 = vunpack.c.l.b16 %v688
    %v760 = vunpack.c.l.b16 %v689
    %v761 = vunpack.c.l.b16 %v690
    %v762 = vunpack.c.l.b16 %v691
    %v763 = vunpack.c.l.b16 %v692
    %v764 = vunpack.c.l.b16 %v693
    %v765 = vunpack.c.l.b16 %v694
    %v766 = vunpack.c.l.b16 %v695
    %v767 = vpack.c.b16 %v736, %v735
    %v768 = vpack.c.b16 %v738, %v737
    %v769 = vpack.c.b16 %v740, %v739
    %v770 = vpack.c.b16 %v742, %v741
    %v771 = vpack.c.b16 %v744, %v743
    %v772 = vpack.c.b16 %v746, %v745
    %v773 = vpack.c.b16 %v748, %v747
    %v774 = vpack.c.b16 %v750, %v749
    %v775 = vpack.c.b16 %v752, %v751
    %v776 = vpack.c.b16 %v754, %v753
    %v777 = vpack.c.b16 %v756, %v755
    %v778 = vpack.c.b16 %v758, %v757
    %v779 = vpack.c.b16 %v760, %v759
    %v780 = vpack.c.b16 %v762, %v761
    %v781 = vpack.c.b16 %v764, %v763
    %v782 = vpack.c.b16 %v766, %v765
    %799 = vmatprep.subr.bf16.mxu0 0
    %800 = vmatpush1.bf16.msra.mxu0 %v774
    %801 = vmatprep.subr.bf16.mxu0 0
    %802 = vmatpush1.bf16.msra.mxu0 %v773
    %803 = vmatprep.subr.bf16.mxu0 0
    %804 = vmatpush1.bf16.msra.mxu0 %v772
    %805 = vmatprep.subr.bf16.mxu0 0
    %806 = vmatpush1.bf16.msra.mxu0 %v771
    %807 = vmatprep.subr.bf16.mxu0 0
    %808 = vmatpush1.bf16.msra.mxu0 %v770
    %809 = vmatprep.subr.bf16.mxu0 0
    %810 = vmatpush1.bf16.msra.mxu0 %v769
    %811 = vmatprep.subr.bf16.mxu0 0
    %812 = vmatpush1.bf16.msra.mxu0 %v768
    %813 = vmatprep.subr.bf16.mxu0 0
    %814 = vmatpush1.bf16.msra.mxu0 %v767
    %815 = vmatprep.subr.bf16.mxu0 0
    %816 = vmatpush2.bf16.msra.mxu0 %v782
    %817 = vmatprep.subr.bf16.mxu0 0
    %818 = vmatpush2.bf16.msra.mxu0 %v781
    %819 = vmatprep.subr.bf16.mxu0 0
    %820 = vmatpush2.bf16.msra.mxu0 %v780
    %821 = vmatprep.subr.bf16.mxu0 0
    %822 = vmatpush2.bf16.msra.mxu0 %v779
    %823 = vmatprep.subr.bf16.mxu0 0
    %824 = vmatpush2.bf16.msra.mxu0 %v778
    %825 = vmatprep.subr.bf16.mxu0 0
    %826 = vmatpush2.bf16.msra.mxu0 %v777
    %827 = vmatprep.subr.bf16.mxu0 0
    %828 = vmatpush2.bf16.msra.mxu0 %v776
    %829 = vmatprep.subr.bf16.mxu0 0
    %830 = vmatpush2.bf16.msra.mxu0 %v775
    %831 = vmatprep.mubr.bf16.mxu0 %v663
    %832 = vmatmul.mubr.bf16.gmra.mxu0 %v662
    %v833 = vpop.f32.mrf.mxu0
    %v834 = vadd.f32 %v701, %v833
    %v835 = vpop.f32.mrf.mxu0
    %v836 = vpop.f32.mrf.mxu0
    %v837 = vpop.f32.mrf.mxu0
    %838 = vdwg.mxu0
    %vm839 = vcmask 74752
    %840 = vst.msk [vmem:[#allocation2] sm:$0x3] %vm839, %v834
    // Predicated region
    $region30: #{forward.3} parent=1 // pred_check
      _
    $region31: #{forward.3} parent=1 // pred_check_branch
      %842 = sbr.rel (0) target = $region33
    $region32: #{forward.3} parent=1 // pred_region
      %s844 = ssub.s32 32, 32
      %845 = vsyncadd [#allocation3], %s844
      %s847 = sshll.u32 [#allocation2], 4
      %s848 = int_to_ptr.vmem [resolvable:$true] %s847
      %850 = dma.vmem_to_hbm [thread:$0]  %s848, 32, %s7, [#allocation3]
    $region33: #{forward.3} parent=1 // pred_fallthru
      _
    // Predicated region
    $region34: #{forward.3} parent=1 // pred_check
      _
    $region35: #{forward.3} parent=1 // pred_check_branch
      %852 = sbr.rel (0) target = $region37
    $region36: #{forward.3} parent=1 // pred_region
      %853 = dma.done [#allocation3], 32
    $region37: #{forward.3} parent=1 // pred_fallthru
      _
    %854 = vsyncpa [#allocation3], 1

// kernel: closed_call.12
$region0: #{closed_call.12}
  #allocation0 [shape = 'u32[]', space=smem, size = 0x4, offset = 0x4, fixed_abs, tag = 'smem constant byte address 0x4 - core index']
  #allocation1 [shape = 'u32[144,128]{1,0:T(1,128)}', space=vmem, size = 0x12000, scoped, tag = 'internal scratch']
  %s0 = inlined_call_operand.vmem [shape: f32[2,5,384], index: 0, kind: input, shape index: {}, may-alias: {0,8}]
  %s1 = inlined_call_operand.vmem [shape: f32[1,384], index: 1, kind: input, shape index: {}]
  %s2 = inlined_call_operand.vmem [shape: f32[1,384], index: 2, kind: input, shape index: {}]
  %s3 = inlined_call_operand.vmem [shape: bf16[384,1536], index: 3, kind: input, shape index: {}]
  %s4 = inlined_call_operand.vmem [shape: f32[1,1536], index: 4, kind: input, shape index: {}]
  %s5 = inlined_call_operand.vmem [shape: bf16[1536,384], index: 5, kind: input, shape index: {}]
  %s6 = inlined_call_operand.vmem [shape: f32[1,384], index: 6, kind: input, shape index: {}]
  %s7 = inlined_call_operand.vmem [shape: f32[1,384], index: 7, kind: input, shape index: {}]
  %s8 = inlined_call_operand.vmem [shape: f32[2,5,384], index: 8, kind: output, shape index: {}, may-alias: {0,8}]
  %s9 = sld [smem:[#allocation0]]
  $region65: #{closed_call.12} parent=0
    _
  %s11 = ssub.s32 1, %s9
  %s12 = scalar_select 0, %s11, %s9
  loop: start=0, step=1, limit=4
  $region2: #{closed_call.12} parent=0 // loop_pre_header
    _
  $region3: #{closed_call.12} parent=0 // loop_header
    %s14 = sphi 0, %s18
    %p15 = scmp.ge.s32.totalorder %s14, 4
    %s24 = sphi 0, %s26
    %s27 = sphi 0, %s24
    %s28 = sphi 0, %s27
    %s44 = sphi 0, %s28
    %s48 = sphi 0, %s48
    %s50 = sphi 0, %s48
    %s51 = sphi 0, %s50
    %s65 = sphi 0, %s51
    %s69 = sphi 0, %s69
    %s71 = sphi 0, %s69
    %s72 = sphi 0, %s71
    %s86 = sphi 0, %s72
    %s90 = sphi 0, %s90
    %s92 = sphi 0, %s90
    %s93 = sphi 0, %s92
    %s107 = sphi 0, %s93
    %s111 = sphi 0, %s111
    %s113 = sphi 0, %s111
    %s114 = sphi 0, %s113
    %s128 = sphi 0, %s114
    %s132 = sphi 0, %s132
    %s134 = sphi 0, %s132
    %s135 = sphi 0, %s134
    %s149 = sphi 0, %s135
    %s153 = sphi 0, %s153
    %s155 = sphi 0, %s153
    %s156 = sphi 0, %s155
    %s170 = sphi 0, %s156
    %s174 = sphi 0, %s174
    %s176 = sphi 0, %s174
    %s177 = sphi 0, %s176
    %s191 = sphi 0, %s177
    %s197 = sphi 0, %s199
    %s200 = sphi 0, %s197
    %s201 = sphi 0, %s200
    %s217 = sphi 0, %s201
  $region4: #{closed_call.12} parent=0 // loop_header_branch
    %17 = sbr.rel (%p15) target = $region8
  $region5: #{closed_call.12} parent=0 // loop_body
    %s19 = ssub.s32 %s14, 1
    %s20 = ssub.s32 %s14, 2
    %s21 = sadd.s32 %s14, 1
    %s22 = ssub.s32 %s14, %s21
    %p23 = scmp.eq.s32.totalorder %s22, 0
    %s25 = sadd.s32 %s24, 1
    %s26 = scalar_select %p23, %s24, %s25
    %p29 = pneg %p23
    %p30 = scmp.eq.s32.totalorder %s14, 1
    %p31 = por %p29, %p30
    %p32 = scmp.ne.s32.totalorder %s24, %s27
    %p33 = scmp.eq.s32.totalorder %s14, 0
    %p34 = por %p32, %p33
    %p35 = scmp.ne.s32.totalorder %s24, %s27
    %p36 = scmp.eq.s32.totalorder %s19, 1
    %p37 = por %p35, %p36
    %p38 = scmp.ne.s32.totalorder %s27, %s28
    %p39 = scmp.eq.s32.totalorder %s19, 0
    %p40 = por %p38, %p39
    %p41 = scmp.ne.s32.totalorder %s27, %s28
    %p42 = scmp.eq.s32.totalorder %s20, 1
    %p43 = por %p41, %p42
    %p45 = scmp.ne.s32.totalorder %s28, %s44
    %p46 = scmp.eq.s32.totalorder %s20, 0
    %p47 = por %p45, %p46
    %s49 = sadd.s32 %s48, 1
    %p52 = scmp.eq.s32.totalorder %s14, 1
    %p53 = scmp.ne.s32.totalorder %s48, %s50
    %p54 = scmp.eq.s32.totalorder %s14, 0
    %p55 = por %p53, %p54
    %p56 = scmp.ne.s32.totalorder %s48, %s50
    %p57 = scmp.eq.s32.totalorder %s19, 1
    %p58 = por %p56, %p57
    %p59 = scmp.ne.s32.totalorder %s50, %s51
    %p60 = scmp.eq.s32.totalorder %s19, 0
    %p61 = por %p59, %p60
    %p62 = scmp.ne.s32.totalorder %s50, %s51
    %p63 = scmp.eq.s32.totalorder %s20, 1
    %p64 = por %p62, %p63
    %p66 = scmp.ne.s32.totalorder %s51, %s65
    %p67 = scmp.eq.s32.totalorder %s20, 0
    %p68 = por %p66, %p67
    %s70 = sadd.s32 %s69, 1
    %p73 = scmp.eq.s32.totalorder %s14, 1
    %p74 = scmp.ne.s32.totalorder %s69, %s71
    %p75 = scmp.eq.s32.totalorder %s14, 0
    %p76 = por %p74, %p75
    %p77 = scmp.ne.s32.totalorder %s69, %s71
    %p78 = scmp.eq.s32.totalorder %s19, 1
    %p79 = por %p77, %p78
    %p80 = scmp.ne.s32.totalorder %s71, %s72
    %p81 = scmp.eq.s32.totalorder %s19, 0
    %p82 = por %p80, %p81
    %p83 = scmp.ne.s32.totalorder %s71, %s72
    %p84 = scmp.eq.s32.totalorder %s20, 1
    %p85 = por %p83, %p84
    %p87 = scmp.ne.s32.totalorder %s72, %s86
    %p88 = scmp.eq.s32.totalorder %s20, 0
    %p89 = por %p87, %p88
    %s91 = sadd.s32 %s90, 1
    %p94 = scmp.eq.s32.totalorder %s14, 1
    %p95 = scmp.ne.s32.totalorder %s90, %s92
    %p96 = scmp.eq.s32.totalorder %s14, 0
    %p97 = por %p95, %p96
    %p98 = scmp.ne.s32.totalorder %s90, %s92
    %p99 = scmp.eq.s32.totalorder %s19, 1
    %p100 = por %p98, %p99
    %p101 = scmp.ne.s32.totalorder %s92, %s93
    %p102 = scmp.eq.s32.totalorder %s19, 0
    %p103 = por %p101, %p102
    %p104 = scmp.ne.s32.totalorder %s92, %s93
    %p105 = scmp.eq.s32.totalorder %s20, 1
    %p106 = por %p104, %p105
    %p108 = scmp.ne.s32.totalorder %s93, %s107
    %p109 = scmp.eq.s32.totalorder %s20, 0
    %p110 = por %p108, %p109
    %s112 = sadd.s32 %s111, 1
    %p115 = scmp.eq.s32.totalorder %s14, 1
    %p116 = scmp.ne.s32.totalorder %s111, %s113
    %p117 = scmp.eq.s32.totalorder %s14, 0
    %p118 = por %p116, %p117
    %p119 = scmp.ne.s32.totalorder %s111, %s113
    %p120 = scmp.eq.s32.totalorder %s19, 1
    %p121 = por %p119, %p120
    %p122 = scmp.ne.s32.totalorder %s113, %s114
    %p123 = scmp.eq.s32.totalorder %s19, 0
    %p124 = por %p122, %p123
    %p125 = scmp.ne.s32.totalorder %s113, %s114
    %p126 = scmp.eq.s32.totalorder %s20, 1
    %p127 = por %p125, %p126
    %p129 = scmp.ne.s32.totalorder %s114, %s128
    %p130 = scmp.eq.s32.totalorder %s20, 0
    %p131 = por %p129, %p130
    %s133 = sadd.s32 %s132, 1
    %p136 = scmp.eq.s32.totalorder %s14, 1
    %p137 = scmp.ne.s32.totalorder %s132, %s134
    %p138 = scmp.eq.s32.totalorder %s14, 0
    %p139 = por %p137, %p138
    %p140 = scmp.ne.s32.totalorder %s132, %s134
    %p141 = scmp.eq.s32.totalorder %s19, 1
    %p142 = por %p140, %p141
    %p143 = scmp.ne.s32.totalorder %s134, %s135
    %p144 = scmp.eq.s32.totalorder %s19, 0
    %p145 = por %p143, %p144
    %p146 = scmp.ne.s32.totalorder %s134, %s135
    %p147 = scmp.eq.s32.totalorder %s20, 1
    %p148 = por %p146, %p147
    %p150 = scmp.ne.s32.totalorder %s135, %s149
    %p151 = scmp.eq.s32.totalorder %s20, 0
    %p152 = por %p150, %p151
    %s154 = sadd.s32 %s153, 1
    %p157 = scmp.eq.s32.totalorder %s14, 1
    %p158 = scmp.ne.s32.totalorder %s153, %s155
    %p159 = scmp.eq.s32.totalorder %s14, 0
    %p160 = por %p158, %p159
    %p161 = scmp.ne.s32.totalorder %s153, %s155
    %p162 = scmp.eq.s32.totalorder %s19, 1
    %p163 = por %p161, %p162
    %p164 = scmp.ne.s32.totalorder %s155, %s156
    %p165 = scmp.eq.s32.totalorder %s19, 0
    %p166 = por %p164, %p165
    %p167 = scmp.ne.s32.totalorder %s155, %s156
    %p168 = scmp.eq.s32.totalorder %s20, 1
    %p169 = por %p167, %p168
    %p171 = scmp.ne.s32.totalorder %s156, %s170
    %p172 = scmp.eq.s32.totalorder %s20, 0
    %p173 = por %p171, %p172
    %s175 = sadd.s32 %s174, 1
    %p178 = scmp.eq.s32.totalorder %s14, 1
    %p179 = scmp.ne.s32.totalorder %s174, %s176
    %p180 = scmp.eq.s32.totalorder %s14, 0
    %p181 = por %p179, %p180
    %p182 = scmp.ne.s32.totalorder %s174, %s176
    %p183 = scmp.eq.s32.totalorder %s19, 1
    %p184 = por %p182, %p183
    %p185 = scmp.ne.s32.totalorder %s176, %s177
    %p186 = scmp.eq.s32.totalorder %s19, 0
    %p187 = por %p185, %p186
    %p188 = scmp.ne.s32.totalorder %s176, %s177
    %p189 = scmp.eq.s32.totalorder %s20, 1
    %p190 = por %p188, %p189
    %p192 = scmp.ne.s32.totalorder %s177, %s191
    %p193 = scmp.eq.s32.totalorder %s20, 0
    %p194 = por %p192, %p193
    %s195 = ssub.s32 %s14, %s21
    %p196 = scmp.eq.s32.totalorder %s195, 0
    %s198 = sadd.s32 %s197, 1
    %s199 = scalar_select %p196, %s197, %s198
    %p202 = pneg %p196
    %p203 = scmp.eq.s32.totalorder %s14, 1
    %p204 = por %p202, %p203
    %p205 = scmp.ne.s32.totalorder %s197, %s200
    %p206 = scmp.eq.s32.totalorder %s14, 0
    %p207 = por %p205, %p206
    %p208 = scmp.ne.s32.totalorder %s197, %s200
    %p209 = scmp.eq.s32.totalorder %s19, 1
    %p210 = por %p208, %p209
    %p211 = scmp.ne.s32.totalorder %s200, %s201
    %p212 = scmp.eq.s32.totalorder %s19, 0
    %p213 = por %p211, %p212
    %p214 = scmp.ne.s32.totalorder %s200, %s201
    %p215 = scmp.eq.s32.totalorder %s20, 1
    %p216 = por %p214, %p215
    %p218 = scmp.ne.s32.totalorder %s201, %s217
    %p219 = scmp.eq.s32.totalorder %s20, 0
    %p220 = por %p218, %p219
    %p221 = scmp.le.s32.totalorder 1, %s14
    %p222 = scmp.lt.s32.totalorder %s14, 3
    %p223 = pnand %p221, %p222
    %p224 = pneg %p223
    // Predicated region
    $region9: #{closed_call.12} parent=5 // pred_check
      _
    $region10: #{closed_call.12} parent=5 // pred_check_branch
      %226 = sbr.rel (%p223) target = $region12
    $region11: #{closed_call.12} parent=5 // pred_region
      %s227 = ssub.s32 %s14, 1
      // Predicated region
      $region13: #{closed_call.12} parent=11 // pred_check
        %p228 = pneg %p61
      $region14: #{closed_call.12} parent=11 // pred_check_branch
        %230 = sbr.rel (%p228) target = $region16
      $region15: #{closed_call.12} parent=11 // pred_region
        _
      $region16: #{closed_call.12} parent=11 // pred_fallthru
        _
      // Predicated region
      $region17: #{closed_call.12} parent=11 // pred_check
        %p231 = pneg %p82
      $region18: #{closed_call.12} parent=11 // pred_check_branch
        %233 = sbr.rel (%p231) target = $region20
      $region19: #{closed_call.12} parent=11 // pred_region
        _
      $region20: #{closed_call.12} parent=11 // pred_fallthru
        _
      // Predicated region
      $region21: #{closed_call.12} parent=11 // pred_check
        %p234 = pneg %p103
      $region22: #{closed_call.12} parent=11 // pred_check_branch
        %236 = sbr.rel (%p234) target = $region24
      $region23: #{closed_call.12} parent=11 // pred_region
        _
      $region24: #{closed_call.12} parent=11 // pred_fallthru
        _
      // Predicated region
      $region25: #{closed_call.12} parent=11 // pred_check
        %p237 = pneg %p124
      $region26: #{closed_call.12} parent=11 // pred_check_branch
        %239 = sbr.rel (%p237) target = $region28
      $region27: #{closed_call.12} parent=11 // pred_region
        _
      $region28: #{closed_call.12} parent=11 // pred_fallthru
        _
      // Predicated region
      $region29: #{closed_call.12} parent=11 // pred_check
        %p240 = pneg %p145
      $region30: #{closed_call.12} parent=11 // pred_check_branch
        %242 = sbr.rel (%p240) target = $region32
      $region31: #{closed_call.12} parent=11 // pred_region
        _
      $region32: #{closed_call.12} parent=11 // pred_fallthru
        _
      // Predicated region
      $region33: #{closed_call.12} parent=11 // pred_check
        %p243 = pneg %p166
      $region34: #{closed_call.12} parent=11 // pred_check_branch
        %245 = sbr.rel (%p243) target = $region36
      $region35: #{closed_call.12} parent=11 // pred_region
        _
      $region36: #{closed_call.12} parent=11 // pred_fallthru
        _
      // Predicated region
      $region37: #{closed_call.12} parent=11 // pred_check
        %p246 = pneg %p187
      $region38: #{closed_call.12} parent=11 // pred_check_branch
        %248 = sbr.rel (%p246) target = $region40
      $region39: #{closed_call.12} parent=11 // pred_region
        _
      $region40: #{closed_call.12} parent=11 // pred_fallthru
        _
    $region12: #{closed_call.12} parent=5 // pred_fallthru
      _
    %p249 = scmp.lt.s32.totalorder %s14, 2
    // Predicated region
    $region41: #{closed_call.12} parent=5 // pred_check
      %p250 = pneg %p249
    $region42: #{closed_call.12} parent=5 // pred_check_branch
      %252 = sbr.rel (%p250) target = $region44
    $region43: #{closed_call.12} parent=5 // pred_region
      // Predicated region
      $region45: #{closed_call.12} parent=43 // pred_check
        %p253 = pneg %p34
      $region46: #{closed_call.12} parent=43 // pred_check_branch
        %255 = sbr.rel (%p253) target = $region48
      $region47: #{closed_call.12} parent=43 // pred_region
        %p256 = scmp.lt.s32.totalorder %s14, 1
        %s257 = scalar_select %p256, %s14, 1
        %s258 = smul.addr %s257, 3
        %s259 = smul.addr %s258, 8
        %s260 = scalar_lea.vmem %s0, %s259
      $region48: #{closed_call.12} parent=43 // pred_fallthru
        _
    $region44: #{closed_call.12} parent=5 // pred_fallthru
      _
    %p261 = scmp.le.s32.totalorder 1, %s14
    %p262 = scmp.lt.s32.totalorder %s14, 3
    %p263 = pnand %p261, %p262
    %p264 = pneg %p263
    // Predicated region
    $region49: #{closed_call.12} parent=5 // pred_check
      _
    $region50: #{closed_call.12} parent=5 // pred_check_branch
      %266 = sbr.rel (%p263) target = $region52
    $region51: #{closed_call.12} parent=5 // pred_region
      %s267 = ssub.s32 %s14, 1
      %p268 = scmp.lt.s32.totalorder %s19, 1
      %s269 = scalar_select %p268, %s19, 1
      %s270 = smul.addr %s269, 3
      %s271 = smul.addr %s270, 8
      %s272 = scalar_lea.vmem %s0, %s271
      %p273 = pneg %p40
      %p274 = pneg %p37
      %p275 = pneg %p61
      %p276 = pneg %p58
      %p277 = pneg %p82
      %p278 = pneg %p79
      %p279 = pneg %p103
      %p280 = pneg %p100
      %p281 = pneg %p124
      %p282 = pneg %p121
      %p283 = pneg %p145
      %p284 = pneg %p142
      %p285 = pneg %p166
      %p286 = pneg %p163
      %p287 = pneg %p187
      %p288 = pneg %p184
      %p289 = pneg %p213
      %p290 = pneg %p210
      %p291 = scmp.lt.s32.totalorder %s19, 1
      %s292 = scalar_select %p291, %s19, 1
      %s293 = smul.addr %s292, 3
      %s294 = smul.addr %s293, 8
      %s295 = scalar_lea.vmem %s8, %s294
      %p296 = scmp.lt.s32.totalorder %s19, 1
      %s297 = scalar_select %p296, %s19, 1
      %s298 = smul.addr %s297, 3
      %s299 = smul.addr %s298, 8
      %s300 = scalar_lea.vmem %s0, %s299
      %p301 = scmp.lt.s32.totalorder %s19, 1
      %s302 = scalar_select %p301, %s19, 1
      %s303 = smul.addr %s302, 3
      %s304 = smul.addr %s303, 8
      %s305 = scalar_lea.vmem %s8, %s304
      %v307 = vld [vmem:[%s300] sm:$0x1f]
      %v308 = vld [vmem:[%s300 + $0x8] sm:$0x1f]
      %v309 = vld [vmem:[%s300 + $0x10] sm:$0x1f]
      %v310 = vld [vmem:[%s1] sm:$0x7]
      %v311 = vld [vmem:[%s2] sm:$0x7]
      %vm312 = vcmask 1044480
      %v313 = vsel %vm312, %v307, 0.0
      %v314 = vsel %vm312, %v308, 0.0
      %v315 = vadd.f32 %v313, %v314
      %v316 = vsel %vm312, %v309, 0.0
      %v317 = vadd.f32 %v315, %v316
      %318 = vadd.xlane.f32.xlu0 %v317
      %v319 = vpop.xlane.xlu0 %318
      %v320 = vrcp.pop 384.0
      %v321 = vmul.f32 %v319, %v320
      %v322 = vsub.f32 %v307, %v321
      %v323 = vsub.f32 %v308, %v321
      %v324 = vsub.f32 %v309, %v321
      %v325 = vmul.f32 %v322, %v322
      %v326 = vmul.f32 %v323, %v323
      %v327 = vmul.f32 %v324, %v324
      %v328 = vsel %vm312, %v325, 0.0
      %v329 = vsel %vm312, %v326, 0.0
      %v330 = vadd.f32 %v328, %v329
      %v331 = vsel %vm312, %v327, 0.0
      %v332 = vadd.f32 %v330, %v331
      %333 = vadd.xlane.f32.xlu0 %v332
      %v334 = vpop.xlane.xlu0 %333
      %v335 = vmul.f32 %v334, %v320
      %v336 = vadd.f32 %v335, 1e-06
      %v337 = vrsqrt.pop %v336
      %v338 = vmul.f32 %v322, %v337
      %v339 = vmul.f32 %v323, %v337
      %v340 = vmul.f32 %v324, %v337
      %v342 = vlaneseq
      %v343 = vshrl.u32 %v342, 7
      %v344 = vsub.s32 0, %v343
      %v345 = vrot.slane %v310, %v344
      %v346 = vlaneseq
      %v347 = vshrl.u32 %v346, 7
      %v348 = vsub.s32 1, %v347
      %v349 = vrot.slane %v310, %v348
      %v350 = vlaneseq
      %v351 = vshrl.u32 %v350, 7
      %v352 = vsub.s32 2, %v351
      %v353 = vrot.slane %v310, %v352
      %v357 = vmul.f32 %v338, %v345
      %v358 = vmul.f32 %v339, %v349
      %v359 = vmul.f32 %v340, %v353
      %v361 = vlaneseq
      %v362 = vshrl.u32 %v361, 7
      %v363 = vsub.s32 0, %v362
      %v364 = vrot.slane %v311, %v363
      %v365 = vlaneseq
      %v366 = vshrl.u32 %v365, 7
      %v367 = vsub.s32 1, %v366
      %v368 = vrot.slane %v311, %v367
      %v369 = vlaneseq
      %v370 = vshrl.u32 %v369, 7
      %v371 = vsub.s32 2, %v370
      %v372 = vrot.slane %v311, %v371
      %v376 = vadd.f32 %v357, %v364
      %v377 = vadd.f32 %v358, %v368
      %v378 = vadd.f32 %v359, %v372
      %v379 = vpack.c.bf16 %v376, %v376
      %v380 = vpack.c.bf16 %v377, %v377
      %v381 = vpack.c.bf16 %v378, %v378
      %v382 = vld [vmem:[%s3] sm:$0xff]
      %v383 = vld [vmem:[%s3 + $0x8] sm:$0xff]
      %v384 = vld [vmem:[%s3 + $0x10] sm:$0xff]
      %v385 = vld [vmem:[%s3 + $0x18] sm:$0xff]
      %v386 = vld [vmem:[%s3 + $0x20] sm:$0xff]
      %v387 = vld [vmem:[%s3 + $0x28] sm:$0xff]
      %v388 = vld [vmem:[%s3 + $0x30] sm:$0xff]
      %v389 = vld [vmem:[%s3 + $0x38] sm:$0xff]
      %v390 = vld [vmem:[%s3 + $0x40] sm:$0xff]
      %v391 = vld [vmem:[%s3 + $0x48] sm:$0xff]
      %v392 = vld [vmem:[%s3 + $0x50] sm:$0xff]
      %v393 = vld [vmem:[%s3 + $0x58] sm:$0xff]
      %v394 = vld [vmem:[%s3 + $0x60] sm:$0xff]
      %v395 = vld [vmem:[%s3 + $0x68] sm:$0xff]
      %v396 = vld [vmem:[%s3 + $0x70] sm:$0xff]
      %v397 = vld [vmem:[%s3 + $0x78] sm:$0xff]
      %v398 = vld [vmem:[%s3 + $0x80] sm:$0xff]
      %v399 = vld [vmem:[%s3 + $0x88] sm:$0xff]
      %v400 = vld [vmem:[%s3 + $0x90] sm:$0xff]
      %v401 = vld [vmem:[%s3 + $0x98] sm:$0xff]
      %v402 = vld [vmem:[%s3 + $0xa0] sm:$0xff]
      %v403 = vld [vmem:[%s3 + $0xa8] sm:$0xff]
      %v404 = vld [vmem:[%s3 + $0xb0] sm:$0xff]
      %v405 = vld [vmem:[%s3 + $0xb8] sm:$0xff]
      %v406 = vld [vmem:[%s3 + $0xc0] sm:$0xff]
      %v407 = vld [vmem:[%s3 + $0xc8] sm:$0xff]
      %v408 = vld [vmem:[%s3 + $0xd0] sm:$0xff]
      %v409 = vld [vmem:[%s3 + $0xd8] sm:$0xff]
      %v410 = vld [vmem:[%s3 + $0xe0] sm:$0xff]
      %v411 = vld [vmem:[%s3 + $0xe8] sm:$0xff]
      %v412 = vld [vmem:[%s3 + $0xf0] sm:$0xff]
      %v413 = vld [vmem:[%s3 + $0xf8] sm:$0xff]
      %v414 = vld [vmem:[%s3 + $0x100] sm:$0xff]
      %v415 = vld [vmem:[%s3 + $0x108] sm:$0xff]
      %v416 = vld [vmem:[%s3 + $0x110] sm:$0xff]
      %v417 = vld [vmem:[%s3 + $0x118] sm:$0xff]
      %v418 = vld [vmem:[%s3 + $0x120] sm:$0xff]
      %v419 = vld [vmem:[%s3 + $0x128] sm:$0xff]
      %v420 = vld [vmem:[%s3 + $0x130] sm:$0xff]
      %v421 = vld [vmem:[%s3 + $0x138] sm:$0xff]
      %v422 = vld [vmem:[%s3 + $0x140] sm:$0xff]
      %v423 = vld [vmem:[%s3 + $0x148] sm:$0xff]
      %v424 = vld [vmem:[%s3 + $0x150] sm:$0xff]
      %v425 = vld [vmem:[%s3 + $0x158] sm:$0xff]
      %v426 = vld [vmem:[%s3 + $0x160] sm:$0xff]
      %v427 = vld [vmem:[%s3 + $0x168] sm:$0xff]
      %v428 = vld [vmem:[%s3 + $0x170] sm:$0xff]
      %v429 = vld [vmem:[%s3 + $0x178] sm:$0xff]
      %v430 = vld [vmem:[%s3 + $0x180] sm:$0xff]
      %v431 = vld [vmem:[%s3 + $0x188] sm:$0xff]
      %v432 = vld [vmem:[%s3 + $0x190] sm:$0xff]
      %v433 = vld [vmem:[%s3 + $0x198] sm:$0xff]
      %v434 = vld [vmem:[%s3 + $0x1a0] sm:$0xff]
      %v435 = vld [vmem:[%s3 + $0x1a8] sm:$0xff]
      %v436 = vld [vmem:[%s3 + $0x1b0] sm:$0xff]
      %v437 = vld [vmem:[%s3 + $0x1b8] sm:$0xff]
      %v438 = vld [vmem:[%s3 + $0x1c0] sm:$0xff]
      %v439 = vld [vmem:[%s3 + $0x1c8] sm:$0xff]
      %v440 = vld [vmem:[%s3 + $0x1d0] sm:$0xff]
      %v441 = vld [vmem:[%s3 + $0x1d8] sm:$0xff]
      %v442 = vld [vmem:[%s3 + $0x1e0] sm:$0xff]
      %v443 = vld [vmem:[%s3 + $0x1e8] sm:$0xff]
      %v444 = vld [vmem:[%s3 + $0x1f0] sm:$0xff]
      %v445 = vld [vmem:[%s3 + $0x1f8] sm:$0xff]
      %v446 = vld [vmem:[%s3 + $0x200] sm:$0xff]
      %v447 = vld [vmem:[%s3 + $0x208] sm:$0xff]
      %v448 = vld [vmem:[%s3 + $0x210] sm:$0xff]
      %v449 = vld [vmem:[%s3 + $0x218] sm:$0xff]
      %v450 = vld [vmem:[%s3 + $0x220] sm:$0xff]
      %v451 = vld [vmem:[%s3 + $0x228] sm:$0xff]
      %v452 = vld [vmem:[%s3 + $0x230] sm:$0xff]
      %v453 = vld [vmem:[%s3 + $0x238] sm:$0xff]
      %v454 = vld [vmem:[%s3 + $0x240] sm:$0xff]
      %v455 = vld [vmem:[%s3 + $0x248] sm:$0xff]
      %v456 = vld [vmem:[%s3 + $0x250] sm:$0xff]
      %v457 = vld [vmem:[%s3 + $0x258] sm:$0xff]
      %v458 = vld [vmem:[%s3 + $0x260] sm:$0xff]
      %v459 = vld [vmem:[%s3 + $0x268] sm:$0xff]
      %v460 = vld [vmem:[%s3 + $0x270] sm:$0xff]
      %v461 = vld [vmem:[%s3 + $0x278] sm:$0xff]
      %v462 = vld [vmem:[%s3 + $0x280] sm:$0xff]
      %v463 = vld [vmem:[%s3 + $0x288] sm:$0xff]
      %v464 = vld [vmem:[%s3 + $0x290] sm:$0xff]
      %v465 = vld [vmem:[%s3 + $0x298] sm:$0xff]
      %v466 = vld [vmem:[%s3 + $0x2a0] sm:$0xff]
      %v467 = vld [vmem:[%s3 + $0x2a8] sm:$0xff]
      %v468 = vld [vmem:[%s3 + $0x2b0] sm:$0xff]
      %v469 = vld [vmem:[%s3 + $0x2b8] sm:$0xff]
      %v470 = vld [vmem:[%s3 + $0x2c0] sm:$0xff]
      %v471 = vld [vmem:[%s3 + $0x2c8] sm:$0xff]
      %v472 = vld [vmem:[%s3 + $0x2d0] sm:$0xff]
      %v473 = vld [vmem:[%s3 + $0x2d8] sm:$0xff]
      %v474 = vld [vmem:[%s3 + $0x2e0] sm:$0xff]
      %v475 = vld [vmem:[%s3 + $0x2e8] sm:$0xff]
      %v476 = vld [vmem:[%s3 + $0x2f0] sm:$0xff]
      %v477 = vld [vmem:[%s3 + $0x2f8] sm:$0xff]
      %v478 = vld [vmem:[%s3 + $0x300] sm:$0xff]
      %v479 = vld [vmem:[%s3 + $0x308] sm:$0xff]
      %v480 = vld [vmem:[%s3 + $0x310] sm:$0xff]
      %v481 = vld [vmem:[%s3 + $0x318] sm:$0xff]
      %v482 = vld [vmem:[%s3 + $0x320] sm:$0xff]
      %v483 = vld [vmem:[%s3 + $0x328] sm:$0xff]
      %v484 = vld [vmem:[%s3 + $0x330] sm:$0xff]
      %v485 = vld [vmem:[%s3 + $0x338] sm:$0xff]
      %v486 = vld [vmem:[%s3 + $0x340] sm:$0xff]
      %v487 = vld [vmem:[%s3 + $0x348] sm:$0xff]
      %v488 = vld [vmem:[%s3 + $0x350] sm:$0xff]
      %v489 = vld [vmem:[%s3 + $0x358] sm:$0xff]
      %v490 = vld [vmem:[%s3 + $0x360] sm:$0xff]
      %v491 = vld [vmem:[%s3 + $0x368] sm:$0xff]
      %v492 = vld [vmem:[%s3 + $0x370] sm:$0xff]
      %v493 = vld [vmem:[%s3 + $0x378] sm:$0xff]
      %v494 = vld [vmem:[%s3 + $0x380] sm:$0xff]
      %v495 = vld [vmem:[%s3 + $0x388] sm:$0xff]
      %v496 = vld [vmem:[%s3 + $0x390] sm:$0xff]
      %v497 = vld [vmem:[%s3 + $0x398] sm:$0xff]
      %v498 = vld [vmem:[%s3 + $0x3a0] sm:$0xff]
      %v499 = vld [vmem:[%s3 + $0x3a8] sm:$0xff]
      %v500 = vld [vmem:[%s3 + $0x3b0] sm:$0xff]
      %v501 = vld [vmem:[%s3 + $0x3b8] sm:$0xff]
      %v502 = vld [vmem:[%s3 + $0x3c0] sm:$0xff]
      %v503 = vld [vmem:[%s3 + $0x3c8] sm:$0xff]
      %v504 = vld [vmem:[%s3 + $0x3d0] sm:$0xff]
      %v505 = vld [vmem:[%s3 + $0x3d8] sm:$0xff]
      %v506 = vld [vmem:[%s3 + $0x3e0] sm:$0xff]
      %v507 = vld [vmem:[%s3 + $0x3e8] sm:$0xff]
      %v508 = vld [vmem:[%s3 + $0x3f0] sm:$0xff]
      %v509 = vld [vmem:[%s3 + $0x3f8] sm:$0xff]
      %v510 = vld [vmem:[%s3 + $0x400] sm:$0xff]
      %v511 = vld [vmem:[%s3 + $0x408] sm:$0xff]
      %v512 = vld [vmem:[%s3 + $0x410] sm:$0xff]
      %v513 = vld [vmem:[%s3 + $0x418] sm:$0xff]
      %v514 = vld [vmem:[%s3 + $0x420] sm:$0xff]
      %v515 = vld [vmem:[%s3 + $0x428] sm:$0xff]
      %v516 = vld [vmem:[%s3 + $0x430] sm:$0xff]
      %v517 = vld [vmem:[%s3 + $0x438] sm:$0xff]
      %v518 = vld [vmem:[%s3 + $0x440] sm:$0xff]
      %v519 = vld [vmem:[%s3 + $0x448] sm:$0xff]
      %v520 = vld [vmem:[%s3 + $0x450] sm:$0xff]
      %v521 = vld [vmem:[%s3 + $0x458] sm:$0xff]
      %v522 = vld [vmem:[%s3 + $0x460] sm:$0xff]
      %v523 = vld [vmem:[%s3 + $0x468] sm:$0xff]
      %v524 = vld [vmem:[%s3 + $0x470] sm:$0xff]
      %v525 = vld [vmem:[%s3 + $0x478] sm:$0xff]
      %v526 = vld [vmem:[%s3 + $0x480] sm:$0xff]
      %v527 = vld [vmem:[%s3 + $0x488] sm:$0xff]
      %v528 = vld [vmem:[%s3 + $0x490] sm:$0xff]
      %v529 = vld [vmem:[%s3 + $0x498] sm:$0xff]
      %v530 = vld [vmem:[%s3 + $0x4a0] sm:$0xff]
      %v531 = vld [vmem:[%s3 + $0x4a8] sm:$0xff]
      %v532 = vld [vmem:[%s3 + $0x4b0] sm:$0xff]
      %v533 = vld [vmem:[%s3 + $0x4b8] sm:$0xff]
      %v534 = vld [vmem:[%s3 + $0x4c0] sm:$0xff]
      %v535 = vld [vmem:[%s3 + $0x4c8] sm:$0xff]
      %v536 = vld [vmem:[%s3 + $0x4d0] sm:$0xff]
      %v537 = vld [vmem:[%s3 + $0x4d8] sm:$0xff]
      %v538 = vld [vmem:[%s3 + $0x4e0] sm:$0xff]
      %v539 = vld [vmem:[%s3 + $0x4e8] sm:$0xff]
      %v540 = vld [vmem:[%s3 + $0x4f0] sm:$0xff]
      %v541 = vld [vmem:[%s3 + $0x4f8] sm:$0xff]
      %v542 = vld [vmem:[%s3 + $0x500] sm:$0xff]
      %v543 = vld [vmem:[%s3 + $0x508] sm:$0xff]
      %v544 = vld [vmem:[%s3 + $0x510] sm:$0xff]
      %v545 = vld [vmem:[%s3 + $0x518] sm:$0xff]
      %v546 = vld [vmem:[%s3 + $0x520] sm:$0xff]
      %v547 = vld [vmem:[%s3 + $0x528] sm:$0xff]
      %v548 = vld [vmem:[%s3 + $0x530] sm:$0xff]
      %v549 = vld [vmem:[%s3 + $0x538] sm:$0xff]
      %v550 = vld [vmem:[%s3 + $0x540] sm:$0xff]
      %v551 = vld [vmem:[%s3 + $0x548] sm:$0xff]
      %v552 = vld [vmem:[%s3 + $0x550] sm:$0xff]
      %v553 = vld [vmem:[%s3 + $0x558] sm:$0xff]
      %v554 = vld [vmem:[%s3 + $0x560] sm:$0xff]
      %v555 = vld [vmem:[%s3 + $0x568] sm:$0xff]
      %v556 = vld [vmem:[%s3 + $0x570] sm:$0xff]
      %v557 = vld [vmem:[%s3 + $0x578] sm:$0xff]
      %v558 = vld [vmem:[%s3 + $0x580] sm:$0xff]
      %v559 = vld [vmem:[%s3 + $0x588] sm:$0xff]
      %v560 = vld [vmem:[%s3 + $0x590] sm:$0xff]
      %v561 = vld [vmem:[%s3 + $0x598] sm:$0xff]
      %v562 = vld [vmem:[%s3 + $0x5a0] sm:$0xff]
      %v563 = vld [vmem:[%s3 + $0x5a8] sm:$0xff]
      %v564 = vld [vmem:[%s3 + $0x5b0] sm:$0xff]
      %v565 = vld [vmem:[%s3 + $0x5b8] sm:$0xff]
      %v566 = vld [vmem:[%s3 + $0x5c0] sm:$0xff]
      %v567 = vld [vmem:[%s3 + $0x5c8] sm:$0xff]
      %v568 = vld [vmem:[%s3 + $0x5d0] sm:$0xff]
      %v569 = vld [vmem:[%s3 + $0x5d8] sm:$0xff]
      %v570 = vld [vmem:[%s3 + $0x5e0] sm:$0xff]
      %v571 = vld [vmem:[%s3 + $0x5e8] sm:$0xff]
      %v572 = vld [vmem:[%s3 + $0x5f0] sm:$0xff]
      %v573 = vld [vmem:[%s3 + $0x5f8] sm:$0xff]
      %v574 = vld [vmem:[%s3 + $0x600] sm:$0xff]
      %v575 = vld [vmem:[%s3 + $0x608] sm:$0xff]
      %v576 = vld [vmem:[%s3 + $0x610] sm:$0xff]
      %v577 = vld [vmem:[%s3 + $0x618] sm:$0xff]
      %v578 = vld [vmem:[%s3 + $0x620] sm:$0xff]
      %v579 = vld [vmem:[%s3 + $0x628] sm:$0xff]
      %v580 = vld [vmem:[%s3 + $0x630] sm:$0xff]
      %v581 = vld [vmem:[%s3 + $0x638] sm:$0xff]
      %v582 = vld [vmem:[%s3 + $0x640] sm:$0xff]
      %v583 = vld [vmem:[%s3 + $0x648] sm:$0xff]
      %v584 = vld [vmem:[%s3 + $0x650] sm:$0xff]
      %v585 = vld [vmem:[%s3 + $0x658] sm:$0xff]
      %v586 = vld [vmem:[%s3 + $0x660] sm:$0xff]
      %v587 = vld [vmem:[%s3 + $0x668] sm:$0xff]
      %v588 = vld [vmem:[%s3 + $0x670] sm:$0xff]
      %v589 = vld [vmem:[%s3 + $0x678] sm:$0xff]
      %v590 = vld [vmem:[%s3 + $0x680] sm:$0xff]
      %v591 = vld [vmem:[%s3 + $0x688] sm:$0xff]
      %v592 = vld [vmem:[%s3 + $0x690] sm:$0xff]
      %v593 = vld [vmem:[%s3 + $0x698] sm:$0xff]
      %v594 = vld [vmem:[%s3 + $0x6a0] sm:$0xff]
      %v595 = vld [vmem:[%s3 + $0x6a8] sm:$0xff]
      %v596 = vld [vmem:[%s3 + $0x6b0] sm:$0xff]
      %v597 = vld [vmem:[%s3 + $0x6b8] sm:$0xff]
      %v598 = vld [vmem:[%s3 + $0x6c0] sm:$0xff]
      %v599 = vld [vmem:[%s3 + $0x6c8] sm:$0xff]
      %v600 = vld [vmem:[%s3 + $0x6d0] sm:$0xff]
      %v601 = vld [vmem:[%s3 + $0x6d8] sm:$0xff]
      %v602 = vld [vmem:[%s3 + $0x6e0] sm:$0xff]
      %v603 = vld [vmem:[%s3 + $0x6e8] sm:$0xff]
      %v604 = vld [vmem:[%s3 + $0x6f0] sm:$0xff]
      %v605 = vld [vmem:[%s3 + $0x6f8] sm:$0xff]
      %v606 = vld [vmem:[%s3 + $0x700] sm:$0xff]
      %v607 = vld [vmem:[%s3 + $0x708] sm:$0xff]
      %v608 = vld [vmem:[%s3 + $0x710] sm:$0xff]
      %v609 = vld [vmem:[%s3 + $0x718] sm:$0xff]
      %v610 = vld [vmem:[%s3 + $0x720] sm:$0xff]
      %v611 = vld [vmem:[%s3 + $0x728] sm:$0xff]
      %v612 = vld [vmem:[%s3 + $0x730] sm:$0xff]
      %v613 = vld [vmem:[%s3 + $0x738] sm:$0xff]
      %v614 = vld [vmem:[%s3 + $0x740] sm:$0xff]
      %v615 = vld [vmem:[%s3 + $0x748] sm:$0xff]
      %v616 = vld [vmem:[%s3 + $0x750] sm:$0xff]
      %v617 = vld [vmem:[%s3 + $0x758] sm:$0xff]
      %v618 = vld [vmem:[%s3 + $0x760] sm:$0xff]
      %v619 = vld [vmem:[%s3 + $0x768] sm:$0xff]
      %v620 = vld [vmem:[%s3 + $0x770] sm:$0xff]
      %v621 = vld [vmem:[%s3 + $0x778] sm:$0xff]
      %v622 = vld [vmem:[%s3 + $0x780] sm:$0xff]
      %v623 = vld [vmem:[%s3 + $0x788] sm:$0xff]
      %v624 = vld [vmem:[%s3 + $0x790] sm:$0xff]
      %v625 = vld [vmem:[%s3 + $0x798] sm:$0xff]
      %v626 = vld [vmem:[%s3 + $0x7a0] sm:$0xff]
      %v627 = vld [vmem:[%s3 + $0x7a8] sm:$0xff]
      %v628 = vld [vmem:[%s3 + $0x7b0] sm:$0xff]
      %v629 = vld [vmem:[%s3 + $0x7b8] sm:$0xff]
      %v630 = vld [vmem:[%s3 + $0x7c0] sm:$0xff]
      %v631 = vld [vmem:[%s3 + $0x7c8] sm:$0xff]
      %v632 = vld [vmem:[%s3 + $0x7d0] sm:$0xff]
      %v633 = vld [vmem:[%s3 + $0x7d8] sm:$0xff]
      %v634 = vld [vmem:[%s3 + $0x7e0] sm:$0xff]
      %v635 = vld [vmem:[%s3 + $0x7e8] sm:$0xff]
      %v636 = vld [vmem:[%s3 + $0x7f0] sm:$0xff]
      %v637 = vld [vmem:[%s3 + $0x7f8] sm:$0xff]
      %v638 = vld [vmem:[%s3 + $0x800] sm:$0xff]
      %v639 = vld [vmem:[%s3 + $0x808] sm:$0xff]
      %v640 = vld [vmem:[%s3 + $0x810] sm:$0xff]
      %v641 = vld [vmem:[%s3 + $0x818] sm:$0xff]
      %v642 = vld [vmem:[%s3 + $0x820] sm:$0xff]
      %v643 = vld [vmem:[%s3 + $0x828] sm:$0xff]
      %v644 = vld [vmem:[%s3 + $0x830] sm:$0xff]
      %v645 = vld [vmem:[%s3 + $0x838] sm:$0xff]
      %v646 = vld [vmem:[%s3 + $0x840] sm:$0xff]
      %v647 = vld [vmem:[%s3 + $0x848] sm:$0xff]
      %v648 = vld [vmem:[%s3 + $0x850] sm:$0xff]
      %v649 = vld [vmem:[%s3 + $0x858] sm:$0xff]
      %v650 = vld [vmem:[%s3 + $0x860] sm:$0xff]
      %v651 = vld [vmem:[%s3 + $0x868] sm:$0xff]
      %v652 = vld [vmem:[%s3 + $0x870] sm:$0xff]
      %v653 = vld [vmem:[%s3 + $0x878] sm:$0xff]
      %v654 = vld [vmem:[%s3 + $0x880] sm:$0xff]
      %v655 = vld [vmem:[%s3 + $0x888] sm:$0xff]
      %v656 = vld [vmem:[%s3 + $0x890] sm:$0xff]
      %v657 = vld [vmem:[%s3 + $0x898] sm:$0xff]
      %v658 = vld [vmem:[%s3 + $0x8a0] sm:$0xff]
      %v659 = vld [vmem:[%s3 + $0x8a8] sm:$0xff]
      %v660 = vld [vmem:[%s3 + $0x8b0] sm:$0xff]
      %v661 = vld [vmem:[%s3 + $0x8b8] sm:$0xff]
      %v662 = vld [vmem:[%s3 + $0x8c0] sm:$0xff]
      %v663 = vld [vmem:[%s3 + $0x8c8] sm:$0xff]
      %v664 = vld [vmem:[%s3 + $0x8d0] sm:$0xff]
      %v665 = vld [vmem:[%s3 + $0x8d8] sm:$0xff]
      %v666 = vld [vmem:[%s3 + $0x8e0] sm:$0xff]
      %v667 = vld [vmem:[%s3 + $0x8e8] sm:$0xff]
      %v668 = vld [vmem:[%s3 + $0x8f0] sm:$0xff]
      %v669 = vld [vmem:[%s3 + $0x8f8] sm:$0xff]
      %v670 = vld [vmem:[%s4] sm:$0xff]
      %v671 = vld [vmem:[%s4 + $0x8] sm:$0xf]
      %v674 = vlaneseq
      %v675 = vshrl.u32 %v674, 7
      %v676 = vsub.s32 0, %v675
      %v677 = vrot.slane %v670, %v676
      %v678 = vlaneseq
      %v679 = vshrl.u32 %v678, 7
      %v680 = vsub.s32 1, %v679
      %v681 = vrot.slane %v670, %v680
      %v682 = vlaneseq
      %v683 = vshrl.u32 %v682, 7
      %v684 = vsub.s32 2, %v683
      %v685 = vrot.slane %v670, %v684
      %v686 = vlaneseq
      %v687 = vshrl.u32 %v686, 7
      %v688 = vsub.s32 3, %v687
      %v689 = vrot.slane %v670, %v688
      %v690 = vlaneseq
      %v691 = vshrl.u32 %v690, 7
      %v692 = vsub.s32 4, %v691
      %v693 = vrot.slane %v670, %v692
      %v694 = vlaneseq
      %v695 = vshrl.u32 %v694, 7
      %v696 = vsub.s32 5, %v695
      %v697 = vrot.slane %v670, %v696
      %v698 = vlaneseq
      %v699 = vshrl.u32 %v698, 7
      %v700 = vsub.s32 6, %v699
      %v701 = vrot.slane %v670, %v700
      %v702 = vlaneseq
      %v703 = vshrl.u32 %v702, 7
      %v704 = vsub.s32 7, %v703
      %v705 = vrot.slane %v670, %v704
      %v706 = vlaneseq
      %v707 = vshrl.u32 %v706, 7
      %v708 = vsub.s32 0, %v707
      %v709 = vrot.slane %v671, %v708
      %v710 = vlaneseq
      %v711 = vshrl.u32 %v710, 7
      %v712 = vsub.s32 1, %v711
      %v713 = vrot.slane %v671, %v712
      %v714 = vlaneseq
      %v715 = vshrl.u32 %v714, 7
      %v716 = vsub.s32 2, %v715
      %v717 = vrot.slane %v671, %v716
      %v718 = vlaneseq
      %v719 = vshrl.u32 %v718, 7
      %v720 = vsub.s32 3, %v719
      %v721 = vrot.slane %v671, %v720
      %v1022 = vunpack.c.l.b16 %v382
      %v1023 = vunpack.c.h.b16 %v382
      %v1024 = vunpack.c.l.b16 %v383
      %v1025 = vunpack.c.h.b16 %v383
      %v1026 = vunpack.c.l.b16 %v384
      %v1027 = vunpack.c.h.b16 %v384
      %v1028 = vunpack.c.l.b16 %v385
      %v1029 = vunpack.c.h.b16 %v385
      %v1030 = vunpack.c.l.b16 %v386
      %v1031 = vunpack.c.h.b16 %v386
      %v1032 = vunpack.c.l.b16 %v387
      %v1033 = vunpack.c.h.b16 %v387
      %v1034 = vunpack.c.l.b16 %v388
      %v1035 = vunpack.c.h.b16 %v388
      %v1036 = vunpack.c.l.b16 %v389
      %v1037 = vunpack.c.h.b16 %v389
      %v1038 = vunpack.c.l.b16 %v390
      %v1039 = vunpack.c.h.b16 %v390
      %v1040 = vunpack.c.l.b16 %v391
      %v1041 = vunpack.c.h.b16 %v391
      %v1042 = vunpack.c.l.b16 %v392
      %v1043 = vunpack.c.h.b16 %v392
      %v1044 = vunpack.c.l.b16 %v393
      %v1045 = vunpack.c.h.b16 %v393
      %v1046 = vunpack.c.l.b16 %v394
      %v1047 = vunpack.c.h.b16 %v394
      %v1048 = vunpack.c.l.b16 %v395
      %v1049 = vunpack.c.h.b16 %v395
      %v1050 = vunpack.c.l.b16 %v396
      %v1051 = vunpack.c.h.b16 %v396
      %v1052 = vunpack.c.l.b16 %v397
      %v1053 = vunpack.c.h.b16 %v397
      %v1054 = vunpack.c.l.b16 %v398
      %v1055 = vunpack.c.h.b16 %v398
      %v1056 = vunpack.c.l.b16 %v399
      %v1057 = vunpack.c.h.b16 %v399
      %v1058 = vunpack.c.l.b16 %v400
      %v1059 = vunpack.c.h.b16 %v400
      %v1060 = vunpack.c.l.b16 %v401
      %v1061 = vunpack.c.h.b16 %v401
      %v1062 = vunpack.c.l.b16 %v402
      %v1063 = vunpack.c.h.b16 %v402
      %v1064 = vunpack.c.l.b16 %v403
      %v1065 = vunpack.c.h.b16 %v403
      %v1066 = vunpack.c.l.b16 %v404
      %v1067 = vunpack.c.h.b16 %v404
      %v1068 = vunpack.c.l.b16 %v405
      %v1069 = vunpack.c.h.b16 %v405
      %v1070 = vunpack.c.l.b16 %v406
      %v1071 = vunpack.c.h.b16 %v406
      %v1072 = vunpack.c.l.b16 %v407
      %v1073 = vunpack.c.h.b16 %v407
      %v1074 = vunpack.c.l.b16 %v408
      %v1075 = vunpack.c.h.b16 %v408
      %v1076 = vunpack.c.l.b16 %v409
      %v1077 = vunpack.c.h.b16 %v409
      %v1078 = vunpack.c.l.b16 %v410
      %v1079 = vunpack.c.h.b16 %v410
      %v1080 = vunpack.c.l.b16 %v411
      %v1081 = vunpack.c.h.b16 %v411
      %v1082 = vunpack.c.l.b16 %v412
      %v1083 = vunpack.c.h.b16 %v412
      %v1084 = vunpack.c.l.b16 %v413
      %v1085 = vunpack.c.h.b16 %v413
      %v1086 = vunpack.c.l.b16 %v414
      %v1087 = vunpack.c.h.b16 %v414
      %v1088 = vunpack.c.l.b16 %v415
      %v1089 = vunpack.c.h.b16 %v415
      %v1090 = vunpack.c.l.b16 %v416
      %v1091 = vunpack.c.h.b16 %v416
      %v1092 = vunpack.c.l.b16 %v417
      %v1093 = vunpack.c.h.b16 %v417
      %v1094 = vunpack.c.l.b16 %v418
      %v1095 = vunpack.c.h.b16 %v418
      %v1096 = vunpack.c.l.b16 %v419
      %v1097 = vunpack.c.h.b16 %v419
      %v1098 = vunpack.c.l.b16 %v420
      %v1099 = vunpack.c.h.b16 %v420
      %v1100 = vunpack.c.l.b16 %v421
      %v1101 = vunpack.c.h.b16 %v421
      %v1102 = vunpack.c.l.b16 %v422
      %v1103 = vunpack.c.h.b16 %v422
      %v1104 = vunpack.c.l.b16 %v423
      %v1105 = vunpack.c.h.b16 %v423
      %v1106 = vunpack.c.l.b16 %v424
      %v1107 = vunpack.c.h.b16 %v424
      %v1108 = vunpack.c.l.b16 %v425
      %v1109 = vunpack.c.h.b16 %v425
      %v1110 = vunpack.c.l.b16 %v426
      %v1111 = vunpack.c.h.b16 %v426
      %v1112 = vunpack.c.l.b16 %v427
      %v1113 = vunpack.c.h.b16 %v427
      %v1114 = vunpack.c.l.b16 %v428
      %v1115 = vunpack.c.h.b16 %v428
      %v1116 = vunpack.c.l.b16 %v429
      %v1117 = vunpack.c.h.b16 %v429
      %v1118 = vunpack.c.l.b16 %v430
      %v1119 = vunpack.c.h.b16 %v430
      %v1120 = vunpack.c.l.b16 %v431
      %v1121 = vunpack.c.h.b16 %v431
      %v1122 = vunpack.c.l.b16 %v432
      %v1123 = vunpack.c.h.b16 %v432
      %v1124 = vunpack.c.l.b16 %v433
      %v1125 = vunpack.c.h.b16 %v433
      %v1126 = vunpack.c.l.b16 %v434
      %v1127 = vunpack.c.h.b16 %v434
      %v1128 = vunpack.c.l.b16 %v435
      %v1129 = vunpack.c.h.b16 %v435
      %v1130 = vunpack.c.l.b16 %v436
      %v1131 = vunpack.c.h.b16 %v436
      %v1132 = vunpack.c.l.b16 %v437
      %v1133 = vunpack.c.h.b16 %v437
      %v1134 = vunpack.c.l.b16 %v438
      %v1135 = vunpack.c.h.b16 %v438
      %v1136 = vunpack.c.l.b16 %v439
      %v1137 = vunpack.c.h.b16 %v439
      %v1138 = vunpack.c.l.b16 %v440
      %v1139 = vunpack.c.h.b16 %v440
      %v1140 = vunpack.c.l.b16 %v441
      %v1141 = vunpack.c.h.b16 %v441
      %v1142 = vunpack.c.l.b16 %v442
      %v1143 = vunpack.c.h.b16 %v442
      %v1144 = vunpack.c.l.b16 %v443
      %v1145 = vunpack.c.h.b16 %v443
      %v1146 = vunpack.c.l.b16 %v444
      %v1147 = vunpack.c.h.b16 %v444
      %v1148 = vunpack.c.l.b16 %v445
      %v1149 = vunpack.c.h.b16 %v445
      %v1150 = vunpack.c.l.b16 %v446
      %v1151 = vunpack.c.h.b16 %v446
      %v1152 = vunpack.c.l.b16 %v447
      %v1153 = vunpack.c.h.b16 %v447
      %v1154 = vunpack.c.l.b16 %v448
      %v1155 = vunpack.c.h.b16 %v448
      %v1156 = vunpack.c.l.b16 %v449
      %v1157 = vunpack.c.h.b16 %v449
      %v1158 = vunpack.c.l.b16 %v450
      %v1159 = vunpack.c.h.b16 %v450
      %v1160 = vunpack.c.l.b16 %v451
      %v1161 = vunpack.c.h.b16 %v451
      %v1162 = vunpack.c.l.b16 %v452
      %v1163 = vunpack.c.h.b16 %v452
      %v1164 = vunpack.c.l.b16 %v453
      %v1165 = vunpack.c.h.b16 %v453
      %v1166 = vunpack.c.l.b16 %v454
      %v1167 = vunpack.c.h.b16 %v454
      %v1168 = vunpack.c.l.b16 %v455
      %v1169 = vunpack.c.h.b16 %v455
      %v1170 = vunpack.c.l.b16 %v456
      %v1171 = vunpack.c.h.b16 %v456
      %v1172 = vunpack.c.l.b16 %v457
      %v1173 = vunpack.c.h.b16 %v457
      %v1174 = vunpack.c.l.b16 %v458
      %v1175 = vunpack.c.h.b16 %v458
      %v1176 = vunpack.c.l.b16 %v459
      %v1177 = vunpack.c.h.b16 %v459
      %v1178 = vunpack.c.l.b16 %v460
      %v1179 = vunpack.c.h.b16 %v460
      %v1180 = vunpack.c.l.b16 %v461
      %v1181 = vunpack.c.h.b16 %v461
      %v1182 = vunpack.c.l.b16 %v462
      %v1183 = vunpack.c.h.b16 %v462
      %v1184 = vunpack.c.l.b16 %v463
      %v1185 = vunpack.c.h.b16 %v463
      %v1186 = vunpack.c.l.b16 %v464
      %v1187 = vunpack.c.h.b16 %v464
      %v1188 = vunpack.c.l.b16 %v465
      %v1189 = vunpack.c.h.b16 %v465
      %v1190 = vunpack.c.l.b16 %v466
      %v1191 = vunpack.c.h.b16 %v466
      %v1192 = vunpack.c.l.b16 %v467
      %v1193 = vunpack.c.h.b16 %v467
      %v1194 = vunpack.c.l.b16 %v468
      %v1195 = vunpack.c.h.b16 %v468
      %v1196 = vunpack.c.l.b16 %v469
      %v1197 = vunpack.c.h.b16 %v469
      %v1198 = vunpack.c.l.b16 %v470
      %v1199 = vunpack.c.h.b16 %v470
      %v1200 = vunpack.c.l.b16 %v471
      %v1201 = vunpack.c.h.b16 %v471
      %v1202 = vunpack.c.l.b16 %v472
      %v1203 = vunpack.c.h.b16 %v472
      %v1204 = vunpack.c.l.b16 %v473
      %v1205 = vunpack.c.h.b16 %v473
      %v1206 = vunpack.c.l.b16 %v474
      %v1207 = vunpack.c.h.b16 %v474
      %v1208 = vunpack.c.l.b16 %v475
      %v1209 = vunpack.c.h.b16 %v475
      %v1210 = vunpack.c.l.b16 %v476
      %v1211 = vunpack.c.h.b16 %v476
      %v1212 = vunpack.c.l.b16 %v477
      %v1213 = vunpack.c.h.b16 %v477
      %v1214 = vunpack.c.l.b16 %v478
      %v1215 = vunpack.c.h.b16 %v478
      %v1216 = vunpack.c.l.b16 %v479
      %v1217 = vunpack.c.h.b16 %v479
      %v1218 = vunpack.c.l.b16 %v480
      %v1219 = vunpack.c.h.b16 %v480
      %v1220 = vunpack.c.l.b16 %v481
      %v1221 = vunpack.c.h.b16 %v481
      %v1222 = vunpack.c.l.b16 %v482
      %v1223 = vunpack.c.h.b16 %v482
      %v1224 = vunpack.c.l.b16 %v483
      %v1225 = vunpack.c.h.b16 %v483
      %v1226 = vunpack.c.l.b16 %v484
      %v1227 = vunpack.c.h.b16 %v484
      %v1228 = vunpack.c.l.b16 %v485
      %v1229 = vunpack.c.h.b16 %v485
      %v1230 = vunpack.c.l.b16 %v486
      %v1231 = vunpack.c.h.b16 %v486
      %v1232 = vunpack.c.l.b16 %v487
      %v1233 = vunpack.c.h.b16 %v487
      %v1234 = vunpack.c.l.b16 %v488
      %v1235 = vunpack.c.h.b16 %v488
      %v1236 = vunpack.c.l.b16 %v489
      %v1237 = vunpack.c.h.b16 %v489
      %v1238 = vunpack.c.l.b16 %v490
      %v1239 = vunpack.c.h.b16 %v490
      %v1240 = vunpack.c.l.b16 %v491
      %v1241 = vunpack.c.h.b16 %v491
      %v1242 = vunpack.c.l.b16 %v492
      %v1243 = vunpack.c.h.b16 %v492
      %v1244 = vunpack.c.l.b16 %v493
      %v1245 = vunpack.c.h.b16 %v493
      %v1246 = vunpack.c.l.b16 %v494
      %v1247 = vunpack.c.h.b16 %v494
      %v1248 = vunpack.c.l.b16 %v495
      %v1249 = vunpack.c.h.b16 %v495
      %v1250 = vunpack.c.l.b16 %v496
      %v1251 = vunpack.c.h.b16 %v496
      %v1252 = vunpack.c.l.b16 %v497
      %v1253 = vunpack.c.h.b16 %v497
      %v1254 = vunpack.c.l.b16 %v498
      %v1255 = vunpack.c.h.b16 %v498
      %v1256 = vunpack.c.l.b16 %v499
      %v1257 = vunpack.c.h.b16 %v499
      %v1258 = vunpack.c.l.b16 %v500
      %v1259 = vunpack.c.h.b16 %v500
      %v1260 = vunpack.c.l.b16 %v501
      %v1261 = vunpack.c.h.b16 %v501
      %v1262 = vunpack.c.l.b16 %v502
      %v1263 = vunpack.c.h.b16 %v502
      %v1264 = vunpack.c.l.b16 %v503
      %v1265 = vunpack.c.h.b16 %v503
      %v1266 = vunpack.c.l.b16 %v504
      %v1267 = vunpack.c.h.b16 %v504
      %v1268 = vunpack.c.l.b16 %v505
      %v1269 = vunpack.c.h.b16 %v505
      %v1270 = vunpack.c.l.b16 %v506
      %v1271 = vunpack.c.h.b16 %v506
      %v1272 = vunpack.c.l.b16 %v507
      %v1273 = vunpack.c.h.b16 %v507
      %v1274 = vunpack.c.l.b16 %v508
      %v1275 = vunpack.c.h.b16 %v508
      %v1276 = vunpack.c.l.b16 %v509
      %v1277 = vunpack.c.h.b16 %v509
      %v1278 = vunpack.c.l.b16 %v510
      %v1279 = vunpack.c.h.b16 %v510
      %v1280 = vunpack.c.l.b16 %v511
      %v1281 = vunpack.c.h.b16 %v511
      %v1282 = vunpack.c.l.b16 %v512
      %v1283 = vunpack.c.h.b16 %v512
      %v1284 = vunpack.c.l.b16 %v513
      %v1285 = vunpack.c.h.b16 %v513
      %v1286 = vunpack.c.l.b16 %v514
      %v1287 = vunpack.c.h.b16 %v514
      %v1288 = vunpack.c.l.b16 %v515
      %v1289 = vunpack.c.h.b16 %v515
      %v1290 = vunpack.c.l.b16 %v516
      %v1291 = vunpack.c.h.b16 %v516
      %v1292 = vunpack.c.l.b16 %v517
      %v1293 = vunpack.c.h.b16 %v517
      %v1294 = vunpack.c.l.b16 %v518
      %v1295 = vunpack.c.h.b16 %v518
      %v1296 = vunpack.c.l.b16 %v519
      %v1297 = vunpack.c.h.b16 %v519
      %v1298 = vunpack.c.l.b16 %v520
      %v1299 = vunpack.c.h.b16 %v520
      %v1300 = vunpack.c.l.b16 %v521
      %v1301 = vunpack.c.h.b16 %v521
      %v1302 = vunpack.c.l.b16 %v522
      %v1303 = vunpack.c.h.b16 %v522
      %v1304 = vunpack.c.l.b16 %v523
      %v1305 = vunpack.c.h.b16 %v523
      %v1306 = vunpack.c.l.b16 %v524
      %v1307 = vunpack.c.h.b16 %v524
      %v1308 = vunpack.c.l.b16 %v525
      %v1309 = vunpack.c.h.b16 %v525
      %v1310 = vunpack.c.l.b16 %v526
      %v1311 = vunpack.c.h.b16 %v526
      %v1312 = vunpack.c.l.b16 %v527
      %v1313 = vunpack.c.h.b16 %v527
      %v1314 = vunpack.c.l.b16 %v528
      %v1315 = vunpack.c.h.b16 %v528
      %v1316 = vunpack.c.l.b16 %v529
      %v1317 = vunpack.c.h.b16 %v529
      %v1318 = vunpack.c.l.b16 %v530
      %v1319 = vunpack.c.h.b16 %v530
      %v1320 = vunpack.c.l.b16 %v531
      %v1321 = vunpack.c.h.b16 %v531
      %v1322 = vunpack.c.l.b16 %v532
      %v1323 = vunpack.c.h.b16 %v532
      %v1324 = vunpack.c.l.b16 %v533
      %v1325 = vunpack.c.h.b16 %v533
      %v1326 = vunpack.c.l.b16 %v534
      %v1327 = vunpack.c.h.b16 %v534
      %v1328 = vunpack.c.l.b16 %v535
      %v1329 = vunpack.c.h.b16 %v535
      %v1330 = vunpack.c.l.b16 %v536
      %v1331 = vunpack.c.h.b16 %v536
      %v1332 = vunpack.c.l.b16 %v537
      %v1333 = vunpack.c.h.b16 %v537
      %v1334 = vunpack.c.l.b16 %v538
      %v1335 = vunpack.c.h.b16 %v538
      %v1336 = vunpack.c.l.b16 %v539
      %v1337 = vunpack.c.h.b16 %v539
      %v1338 = vunpack.c.l.b16 %v540
      %v1339 = vunpack.c.h.b16 %v540
      %v1340 = vunpack.c.l.b16 %v541
      %v1341 = vunpack.c.h.b16 %v541
      %v1342 = vunpack.c.l.b16 %v542
      %v1343 = vunpack.c.h.b16 %v542
      %v1344 = vunpack.c.l.b16 %v543
      %v1345 = vunpack.c.h.b16 %v543
      %v1346 = vunpack.c.l.b16 %v544
      %v1347 = vunpack.c.h.b16 %v544
      %v1348 = vunpack.c.l.b16 %v545
      %v1349 = vunpack.c.h.b16 %v545
      %v1350 = vunpack.c.l.b16 %v546
      %v1351 = vunpack.c.h.b16 %v546
      %v1352 = vunpack.c.l.b16 %v547
      %v1353 = vunpack.c.h.b16 %v547
      %v1354 = vunpack.c.l.b16 %v548
      %v1355 = vunpack.c.h.b16 %v548
      %v1356 = vunpack.c.l.b16 %v549
      %v1357 = vunpack.c.h.b16 %v549
      %v1358 = vunpack.c.l.b16 %v550
      %v1359 = vunpack.c.h.b16 %v550
      %v1360 = vunpack.c.l.b16 %v551
      %v1361 = vunpack.c.h.b16 %v551
      %v1362 = vunpack.c.l.b16 %v552
      %v1363 = vunpack.c.h.b16 %v552
      %v1364 = vunpack.c.l.b16 %v553
      %v1365 = vunpack.c.h.b16 %v553
      %v1366 = vunpack.c.l.b16 %v554
      %v1367 = vunpack.c.h.b16 %v554
      %v1368 = vunpack.c.l.b16 %v555
      %v1369 = vunpack.c.h.b16 %v555
      %v1370 = vunpack.c.l.b16 %v556
      %v1371 = vunpack.c.h.b16 %v556
      %v1372 = vunpack.c.l.b16 %v557
      %v1373 = vunpack.c.h.b16 %v557
      %v1374 = vunpack.c.l.b16 %v558
      %v1375 = vunpack.c.h.b16 %v558
      %v1376 = vunpack.c.l.b16 %v559
      %v1377 = vunpack.c.h.b16 %v559
      %v1378 = vunpack.c.l.b16 %v560
      %v1379 = vunpack.c.h.b16 %v560
      %v1380 = vunpack.c.l.b16 %v561
      %v1381 = vunpack.c.h.b16 %v561
      %v1382 = vunpack.c.l.b16 %v562
      %v1383 = vunpack.c.h.b16 %v562
      %v1384 = vunpack.c.l.b16 %v563
      %v1385 = vunpack.c.h.b16 %v563
      %v1386 = vunpack.c.l.b16 %v564
      %v1387 = vunpack.c.h.b16 %v564
      %v1388 = vunpack.c.l.b16 %v565
      %v1389 = vunpack.c.h.b16 %v565
      %v1390 = vunpack.c.l.b16 %v566
      %v1391 = vunpack.c.h.b16 %v566
      %v1392 = vunpack.c.l.b16 %v567
      %v1393 = vunpack.c.h.b16 %v567
      %v1394 = vunpack.c.l.b16 %v568
      %v1395 = vunpack.c.h.b16 %v568
      %v1396 = vunpack.c.l.b16 %v569
      %v1397 = vunpack.c.h.b16 %v569
      %v1398 = vunpack.c.l.b16 %v570
      %v1399 = vunpack.c.h.b16 %v570
      %v1400 = vunpack.c.l.b16 %v571
      %v1401 = vunpack.c.h.b16 %v571
      %v1402 = vunpack.c.l.b16 %v572
      %v1403 = vunpack.c.h.b16 %v572
      %v1404 = vunpack.c.l.b16 %v573
      %v1405 = vunpack.c.h.b16 %v573
      %v1406 = vunpack.c.l.b16 %v574
      %v1407 = vunpack.c.h.b16 %v574
      %v1408 = vunpack.c.l.b16 %v575
      %v1409 = vunpack.c.h.b16 %v575
      %v1410 = vunpack.c.l.b16 %v576
      %v1411 = vunpack.c.h.b16 %v576
      %v1412 = vunpack.c.l.b16 %v577
      %v1413 = vunpack.c.h.b16 %v577
      %v1414 = vunpack.c.l.b16 %v578
      %v1415 = vunpack.c.h.b16 %v578
      %v1416 = vunpack.c.l.b16 %v579
      %v1417 = vunpack.c.h.b16 %v579
      %v1418 = vunpack.c.l.b16 %v580
      %v1419 = vunpack.c.h.b16 %v580
      %v1420 = vunpack.c.l.b16 %v581
      %v1421 = vunpack.c.h.b16 %v581
      %v1422 = vunpack.c.l.b16 %v582
      %v1423 = vunpack.c.h.b16 %v582
      %v1424 = vunpack.c.l.b16 %v583
      %v1425 = vunpack.c.h.b16 %v583
      %v1426 = vunpack.c.l.b16 %v584
      %v1427 = vunpack.c.h.b16 %v584
      %v1428 = vunpack.c.l.b16 %v585
      %v1429 = vunpack.c.h.b16 %v585
      %v1430 = vunpack.c.l.b16 %v586
      %v1431 = vunpack.c.h.b16 %v586
      %v1432 = vunpack.c.l.b16 %v587
      %v1433 = vunpack.c.h.b16 %v587
      %v1434 = vunpack.c.l.b16 %v588
      %v1435 = vunpack.c.h.b16 %v588
      %v1436 = vunpack.c.l.b16 %v589
      %v1437 = vunpack.c.h.b16 %v589
      %v1438 = vunpack.c.l.b16 %v590
      %v1439 = vunpack.c.h.b16 %v590
      %v1440 = vunpack.c.l.b16 %v591
      %v1441 = vunpack.c.h.b16 %v591
      %v1442 = vunpack.c.l.b16 %v592
      %v1443 = vunpack.c.h.b16 %v592
      %v1444 = vunpack.c.l.b16 %v593
      %v1445 = vunpack.c.h.b16 %v593
      %v1446 = vunpack.c.l.b16 %v594
      %v1447 = vunpack.c.h.b16 %v594
      %v1448 = vunpack.c.l.b16 %v595
      %v1449 = vunpack.c.h.b16 %v595
      %v1450 = vunpack.c.l.b16 %v596
      %v1451 = vunpack.c.h.b16 %v596
      %v1452 = vunpack.c.l.b16 %v597
      %v1453 = vunpack.c.h.b16 %v597
      %v1454 = vunpack.c.l.b16 %v598
      %v1455 = vunpack.c.h.b16 %v598
      %v1456 = vunpack.c.l.b16 %v599
      %v1457 = vunpack.c.h.b16 %v599
      %v1458 = vunpack.c.l.b16 %v600
      %v1459 = vunpack.c.h.b16 %v600
      %v1460 = vunpack.c.l.b16 %v601
      %v1461 = vunpack.c.h.b16 %v601
      %v1462 = vunpack.c.l.b16 %v602
      %v1463 = vunpack.c.h.b16 %v602
      %v1464 = vunpack.c.l.b16 %v603
      %v1465 = vunpack.c.h.b16 %v603
      %v1466 = vunpack.c.l.b16 %v604
      %v1467 = vunpack.c.h.b16 %v604
      %v1468 = vunpack.c.l.b16 %v605
      %v1469 = vunpack.c.h.b16 %v605
      %v1470 = vunpack.c.l.b16 %v606
      %v1471 = vunpack.c.h.b16 %v606
      %v1472 = vunpack.c.l.b16 %v607
      %v1473 = vunpack.c.h.b16 %v607
      %v1474 = vunpack.c.l.b16 %v608
      %v1475 = vunpack.c.h.b16 %v608
      %v1476 = vunpack.c.l.b16 %v609
      %v1477 = vunpack.c.h.b16 %v609
      %v1478 = vunpack.c.l.b16 %v610
      %v1479 = vunpack.c.h.b16 %v610
      %v1480 = vunpack.c.l.b16 %v611
      %v1481 = vunpack.c.h.b16 %v611
      %v1482 = vunpack.c.l.b16 %v612
      %v1483 = vunpack.c.h.b16 %v612
      %v1484 = vunpack.c.l.b16 %v613
      %v1485 = vunpack.c.h.b16 %v613
      %v1486 = vunpack.c.l.b16 %v614
      %v1487 = vunpack.c.h.b16 %v614
      %v1488 = vunpack.c.l.b16 %v615
      %v1489 = vunpack.c.h.b16 %v615
      %v1490 = vunpack.c.l.b16 %v616
      %v1491 = vunpack.c.h.b16 %v616
      %v1492 = vunpack.c.l.b16 %v617
      %v1493 = vunpack.c.h.b16 %v617
      %v1494 = vunpack.c.l.b16 %v618
      %v1495 = vunpack.c.h.b16 %v618
      %v1496 = vunpack.c.l.b16 %v619
      %v1497 = vunpack.c.h.b16 %v619
      %v1498 = vunpack.c.l.b16 %v620
      %v1499 = vunpack.c.h.b16 %v620
      %v1500 = vunpack.c.l.b16 %v621
      %v1501 = vunpack.c.h.b16 %v621
      %v1502 = vunpack.c.l.b16 %v622
      %v1503 = vunpack.c.h.b16 %v622
      %v1504 = vunpack.c.l.b16 %v623
      %v1505 = vunpack.c.h.b16 %v623
      %v1506 = vunpack.c.l.b16 %v624
      %v1507 = vunpack.c.h.b16 %v624
      %v1508 = vunpack.c.l.b16 %v625
      %v1509 = vunpack.c.h.b16 %v625
      %v1510 = vunpack.c.l.b16 %v626
      %v1511 = vunpack.c.h.b16 %v626
      %v1512 = vunpack.c.l.b16 %v627
      %v1513 = vunpack.c.h.b16 %v627
      %v1514 = vunpack.c.l.b16 %v628
      %v1515 = vunpack.c.h.b16 %v628
      %v1516 = vunpack.c.l.b16 %v629
      %v1517 = vunpack.c.h.b16 %v629
      %v1518 = vunpack.c.l.b16 %v630
      %v1519 = vunpack.c.h.b16 %v630
      %v1520 = vunpack.c.l.b16 %v631
      %v1521 = vunpack.c.h.b16 %v631
      %v1522 = vunpack.c.l.b16 %v632
      %v1523 = vunpack.c.h.b16 %v632
      %v1524 = vunpack.c.l.b16 %v633
      %v1525 = vunpack.c.h.b16 %v633
      %v1526 = vunpack.c.l.b16 %v634
      %v1527 = vunpack.c.h.b16 %v634
      %v1528 = vunpack.c.l.b16 %v635
      %v1529 = vunpack.c.h.b16 %v635
      %v1530 = vunpack.c.l.b16 %v636
      %v1531 = vunpack.c.h.b16 %v636
      %v1532 = vunpack.c.l.b16 %v637
      %v1533 = vunpack.c.h.b16 %v637
      %v1534 = vunpack.c.l.b16 %v638
      %v1535 = vunpack.c.h.b16 %v638
      %v1536 = vunpack.c.l.b16 %v639
      %v1537 = vunpack.c.h.b16 %v639
      %v1538 = vunpack.c.l.b16 %v640
      %v1539 = vunpack.c.h.b16 %v640
      %v1540 = vunpack.c.l.b16 %v641
      %v1541 = vunpack.c.h.b16 %v641
      %v1542 = vunpack.c.l.b16 %v642
      %v1543 = vunpack.c.h.b16 %v642
      %v1544 = vunpack.c.l.b16 %v643
      %v1545 = vunpack.c.h.b16 %v643
      %v1546 = vunpack.c.l.b16 %v644
      %v1547 = vunpack.c.h.b16 %v644
      %v1548 = vunpack.c.l.b16 %v645
      %v1549 = vunpack.c.h.b16 %v645
      %v1550 = vunpack.c.l.b16 %v646
      %v1551 = vunpack.c.h.b16 %v646
      %v1552 = vunpack.c.l.b16 %v647
      %v1553 = vunpack.c.h.b16 %v647
      %v1554 = vunpack.c.l.b16 %v648
      %v1555 = vunpack.c.h.b16 %v648
      %v1556 = vunpack.c.l.b16 %v649
      %v1557 = vunpack.c.h.b16 %v649
      %v1558 = vunpack.c.l.b16 %v650
      %v1559 = vunpack.c.h.b16 %v650
      %v1560 = vunpack.c.l.b16 %v651
      %v1561 = vunpack.c.h.b16 %v651
      %v1562 = vunpack.c.l.b16 %v652
      %v1563 = vunpack.c.h.b16 %v652
      %v1564 = vunpack.c.l.b16 %v653
      %v1565 = vunpack.c.h.b16 %v653
      %v1566 = vunpack.c.l.b16 %v654
      %v1567 = vunpack.c.h.b16 %v654
      %v1568 = vunpack.c.l.b16 %v655
      %v1569 = vunpack.c.h.b16 %v655
      %v1570 = vunpack.c.l.b16 %v656
      %v1571 = vunpack.c.h.b16 %v656
      %v1572 = vunpack.c.l.b16 %v657
      %v1573 = vunpack.c.h.b16 %v657
      %v1574 = vunpack.c.l.b16 %v658
      %v1575 = vunpack.c.h.b16 %v658
      %v1576 = vunpack.c.l.b16 %v659
      %v1577 = vunpack.c.h.b16 %v659
      %v1578 = vunpack.c.l.b16 %v660
      %v1579 = vunpack.c.h.b16 %v660
      %v1580 = vunpack.c.l.b16 %v661
      %v1581 = vunpack.c.h.b16 %v661
      %v1582 = vunpack.c.l.b16 %v662
      %v1583 = vunpack.c.h.b16 %v662
      %v1584 = vunpack.c.l.b16 %v663
      %v1585 = vunpack.c.h.b16 %v663
      %v1586 = vunpack.c.l.b16 %v664
      %v1587 = vunpack.c.h.b16 %v664
      %v1588 = vunpack.c.l.b16 %v665
      %v1589 = vunpack.c.h.b16 %v665
      %v1590 = vunpack.c.l.b16 %v666
      %v1591 = vunpack.c.h.b16 %v666
      %v1592 = vunpack.c.l.b16 %v667
      %v1593 = vunpack.c.h.b16 %v667
      %v1594 = vunpack.c.l.b16 %v668
      %v1595 = vunpack.c.h.b16 %v668
      %v1596 = vunpack.c.l.b16 %v669
      %v1597 = vunpack.c.h.b16 %v669
      %v1598 = vpack.c.b16 %v1034, %v1022
      %v1599 = vpack.c.b16 %v1035, %v1023
      %v1600 = vpack.c.b16 %v1036, %v1024
      %v1601 = vpack.c.b16 %v1037, %v1025
      %v1602 = vpack.c.b16 %v1038, %v1026
      %v1603 = vpack.c.b16 %v1039, %v1027
      %v1604 = vpack.c.b16 %v1040, %v1028
      %v1605 = vpack.c.b16 %v1041, %v1029
      %v1606 = vpack.c.b16 %v1042, %v1030
      %v1607 = vpack.c.b16 %v1043, %v1031
      %v1608 = vpack.c.b16 %v1044, %v1032
      %v1609 = vpack.c.b16 %v1045, %v1033
      %v1610 = vpack.c.b16 %v1058, %v1046
      %v1611 = vpack.c.b16 %v1059, %v1047
      %v1612 = vpack.c.b16 %v1060, %v1048
      %v1613 = vpack.c.b16 %v1061, %v1049
      %v1614 = vpack.c.b16 %v1062, %v1050
      %v1615 = vpack.c.b16 %v1063, %v1051
      %v1616 = vpack.c.b16 %v1064, %v1052
      %v1617 = vpack.c.b16 %v1065, %v1053
      %v1618 = vpack.c.b16 %v1066, %v1054
      %v1619 = vpack.c.b16 %v1067, %v1055
      %v1620 = vpack.c.b16 %v1068, %v1056
      %v1621 = vpack.c.b16 %v1069, %v1057
      %v1622 = vpack.c.b16 %v1082, %v1070
      %v1623 = vpack.c.b16 %v1083, %v1071
      %v1624 = vpack.c.b16 %v1084, %v1072
      %v1625 = vpack.c.b16 %v1085, %v1073
      %v1626 = vpack.c.b16 %v1086, %v1074
      %v1627 = vpack.c.b16 %v1087, %v1075
      %v1628 = vpack.c.b16 %v1088, %v1076
      %v1629 = vpack.c.b16 %v1089, %v1077
      %v1630 = vpack.c.b16 %v1090, %v1078
      %v1631 = vpack.c.b16 %v1091, %v1079
      %v1632 = vpack.c.b16 %v1092, %v1080
      %v1633 = vpack.c.b16 %v1093, %v1081
      %v1634 = vpack.c.b16 %v1106, %v1094
      %v1635 = vpack.c.b16 %v1107, %v1095
      %v1636 = vpack.c.b16 %v1108, %v1096
      %v1637 = vpack.c.b16 %v1109, %v1097
      %v1638 = vpack.c.b16 %v1110, %v1098
      %v1639 = vpack.c.b16 %v1111, %v1099
      %v1640 = vpack.c.b16 %v1112, %v1100
      %v1641 = vpack.c.b16 %v1113, %v1101
      %v1642 = vpack.c.b16 %v1114, %v1102
      %v1643 = vpack.c.b16 %v1115, %v1103
      %v1644 = vpack.c.b16 %v1116, %v1104
      %v1645 = vpack.c.b16 %v1117, %v1105
      %v1646 = vpack.c.b16 %v1130, %v1118
      %v1647 = vpack.c.b16 %v1131, %v1119
      %v1648 = vpack.c.b16 %v1132, %v1120
      %v1649 = vpack.c.b16 %v1133, %v1121
      %v1650 = vpack.c.b16 %v1134, %v1122
      %v1651 = vpack.c.b16 %v1135, %v1123
      %v1652 = vpack.c.b16 %v1136, %v1124
      %v1653 = vpack.c.b16 %v1137, %v1125
      %v1654 = vpack.c.b16 %v1138, %v1126
      %v1655 = vpack.c.b16 %v1139, %v1127
      %v1656 = vpack.c.b16 %v1140, %v1128
      %v1657 = vpack.c.b16 %v1141, %v1129
      %v1658 = vpack.c.b16 %v1154, %v1142
      %v1659 = vpack.c.b16 %v1155, %v1143
      %v1660 = vpack.c.b16 %v1156, %v1144
      %v1661 = vpack.c.b16 %v1157, %v1145
      %v1662 = vpack.c.b16 %v1158, %v1146
      %v1663 = vpack.c.b16 %v1159, %v1147
      %v1664 = vpack.c.b16 %v1160, %v1148
      %v1665 = vpack.c.b16 %v1161, %v1149
      %v1666 = vpack.c.b16 %v1162, %v1150
      %v1667 = vpack.c.b16 %v1163, %v1151
      %v1668 = vpack.c.b16 %v1164, %v1152
      %v1669 = vpack.c.b16 %v1165, %v1153
      %v1670 = vpack.c.b16 %v1178, %v1166
      %v1671 = vpack.c.b16 %v1179, %v1167
      %v1672 = vpack.c.b16 %v1180, %v1168
      %v1673 = vpack.c.b16 %v1181, %v1169
      %v1674 = vpack.c.b16 %v1182, %v1170
      %v1675 = vpack.c.b16 %v1183, %v1171
      %v1676 = vpack.c.b16 %v1184, %v1172
      %v1677 = vpack.c.b16 %v1185, %v1173
      %v1678 = vpack.c.b16 %v1186, %v1174
      %v1679 = vpack.c.b16 %v1187, %v1175
      %v1680 = vpack.c.b16 %v1188, %v1176
      %v1681 = vpack.c.b16 %v1189, %v1177
      %v1682 = vpack.c.b16 %v1202, %v1190
      %v1683 = vpack.c.b16 %v1203, %v1191
      %v1684 = vpack.c.b16 %v1204, %v1192
      %v1685 = vpack.c.b16 %v1205, %v1193
      %v1686 = vpack.c.b16 %v1206, %v1194
      %v1687 = vpack.c.b16 %v1207, %v1195
      %v1688 = vpack.c.b16 %v1208, %v1196
      %v1689 = vpack.c.b16 %v1209, %v1197
      %v1690 = vpack.c.b16 %v1210, %v1198
      %v1691 = vpack.c.b16 %v1211, %v1199
      %v1692 = vpack.c.b16 %v1212, %v1200
      %v1693 = vpack.c.b16 %v1213, %v1201
      %v1694 = vpack.c.b16 %v1226, %v1214
      %v1695 = vpack.c.b16 %v1227, %v1215
      %v1696 = vpack.c.b16 %v1228, %v1216
      %v1697 = vpack.c.b16 %v1229, %v1217
      %v1698 = vpack.c.b16 %v1230, %v1218
      %v1699 = vpack.c.b16 %v1231, %v1219
      %v1700 = vpack.c.b16 %v1232, %v1220
      %v1701 = vpack.c.b16 %v1233, %v1221
      %v1702 = vpack.c.b16 %v1234, %v1222
      %v1703 = vpack.c.b16 %v1235, %v1223
      %v1704 = vpack.c.b16 %v1236, %v1224
      %v1705 = vpack.c.b16 %v1237, %v1225
      %v1706 = vpack.c.b16 %v1250, %v1238
      %v1707 = vpack.c.b16 %v1251, %v1239
      %v1708 = vpack.c.b16 %v1252, %v1240
      %v1709 = vpack.c.b16 %v1253, %v1241
      %v1710 = vpack.c.b16 %v1254, %v1242
      %v1711 = vpack.c.b16 %v1255, %v1243
      %v1712 = vpack.c.b16 %v1256, %v1244
      %v1713 = vpack.c.b16 %v1257, %v1245
      %v1714 = vpack.c.b16 %v1258, %v1246
      %v1715 = vpack.c.b16 %v1259, %v1247
      %v1716 = vpack.c.b16 %v1260, %v1248
      %v1717 = vpack.c.b16 %v1261, %v1249
      %v1718 = vpack.c.b16 %v1274, %v1262
      %v1719 = vpack.c.b16 %v1275, %v1263
      %v1720 = vpack.c.b16 %v1276, %v1264
      %v1721 = vpack.c.b16 %v1277, %v1265
      %v1722 = vpack.c.b16 %v1278, %v1266
      %v1723 = vpack.c.b16 %v1279, %v1267
      %v1724 = vpack.c.b16 %v1280, %v1268
      %v1725 = vpack.c.b16 %v1281, %v1269
      %v1726 = vpack.c.b16 %v1282, %v1270
      %v1727 = vpack.c.b16 %v1283, %v1271
      %v1728 = vpack.c.b16 %v1284, %v1272
      %v1729 = vpack.c.b16 %v1285, %v1273
      %v1730 = vpack.c.b16 %v1298, %v1286
      %v1731 = vpack.c.b16 %v1299, %v1287
      %v1732 = vpack.c.b16 %v1300, %v1288
      %v1733 = vpack.c.b16 %v1301, %v1289
      %v1734 = vpack.c.b16 %v1302, %v1290
      %v1735 = vpack.c.b16 %v1303, %v1291
      %v1736 = vpack.c.b16 %v1304, %v1292
      %v1737 = vpack.c.b16 %v1305, %v1293
      %v1738 = vpack.c.b16 %v1306, %v1294
      %v1739 = vpack.c.b16 %v1307, %v1295
      %v1740 = vpack.c.b16 %v1308, %v1296
      %v1741 = vpack.c.b16 %v1309, %v1297
      %v1742 = vpack.c.b16 %v1322, %v1310
      %v1743 = vpack.c.b16 %v1323, %v1311
      %v1744 = vpack.c.b16 %v1324, %v1312
      %v1745 = vpack.c.b16 %v1325, %v1313
      %v1746 = vpack.c.b16 %v1326, %v1314
      %v1747 = vpack.c.b16 %v1327, %v1315
      %v1748 = vpack.c.b16 %v1328, %v1316
      %v1749 = vpack.c.b16 %v1329, %v1317
      %v1750 = vpack.c.b16 %v1330, %v1318
      %v1751 = vpack.c.b16 %v1331, %v1319
      %v1752 = vpack.c.b16 %v1332, %v1320
      %v1753 = vpack.c.b16 %v1333, %v1321
      %v1754 = vpack.c.b16 %v1346, %v1334
      %v1755 = vpack.c.b16 %v1347, %v1335
      %v1756 = vpack.c.b16 %v1348, %v1336
      %v1757 = vpack.c.b16 %v1349, %v1337
      %v1758 = vpack.c.b16 %v1350, %v1338
      %v1759 = vpack.c.b16 %v1351, %v1339
      %v1760 = vpack.c.b16 %v1352, %v1340
      %v1761 = vpack.c.b16 %v1353, %v1341
      %v1762 = vpack.c.b16 %v1354, %v1342
      %v1763 = vpack.c.b16 %v1355, %v1343
      %v1764 = vpack.c.b16 %v1356, %v1344
      %v1765 = vpack.c.b16 %v1357, %v1345
      %v1766 = vpack.c.b16 %v1370, %v1358
      %v1767 = vpack.c.b16 %v1371, %v1359
      %v1768 = vpack.c.b16 %v1372, %v1360
      %v1769 = vpack.c.b16 %v1373, %v1361
      %v1770 = vpack.c.b16 %v1374, %v1362
      %v1771 = vpack.c.b16 %v1375, %v1363
      %v1772 = vpack.c.b16 %v1376, %v1364
      %v1773 = vpack.c.b16 %v1377, %v1365
      %v1774 = vpack.c.b16 %v1378, %v1366
      %v1775 = vpack.c.b16 %v1379, %v1367
      %v1776 = vpack.c.b16 %v1380, %v1368
      %v1777 = vpack.c.b16 %v1381, %v1369
      %v1778 = vpack.c.b16 %v1394, %v1382
      %v1779 = vpack.c.b16 %v1395, %v1383
      %v1780 = vpack.c.b16 %v1396, %v1384
      %v1781 = vpack.c.b16 %v1397, %v1385
      %v1782 = vpack.c.b16 %v1398, %v1386
      %v1783 = vpack.c.b16 %v1399, %v1387
      %v1784 = vpack.c.b16 %v1400, %v1388
      %v1785 = vpack.c.b16 %v1401, %v1389
      %v1786 = vpack.c.b16 %v1402, %v1390
      %v1787 = vpack.c.b16 %v1403, %v1391
      %v1788 = vpack.c.b16 %v1404, %v1392
      %v1789 = vpack.c.b16 %v1405, %v1393
      %v1790 = vpack.c.b16 %v1418, %v1406
      %v1791 = vpack.c.b16 %v1419, %v1407
      %v1792 = vpack.c.b16 %v1420, %v1408
      %v1793 = vpack.c.b16 %v1421, %v1409
      %v1794 = vpack.c.b16 %v1422, %v1410
      %v1795 = vpack.c.b16 %v1423, %v1411
      %v1796 = vpack.c.b16 %v1424, %v1412
      %v1797 = vpack.c.b16 %v1425, %v1413
      %v1798 = vpack.c.b16 %v1426, %v1414
      %v1799 = vpack.c.b16 %v1427, %v1415
      %v1800 = vpack.c.b16 %v1428, %v1416
      %v1801 = vpack.c.b16 %v1429, %v1417
      %v1802 = vpack.c.b16 %v1442, %v1430
      %v1803 = vpack.c.b16 %v1443, %v1431
      %v1804 = vpack.c.b16 %v1444, %v1432
      %v1805 = vpack.c.b16 %v1445, %v1433
      %v1806 = vpack.c.b16 %v1446, %v1434
      %v1807 = vpack.c.b16 %v1447, %v1435
      %v1808 = vpack.c.b16 %v1448, %v1436
      %v1809 = vpack.c.b16 %v1449, %v1437
      %v1810 = vpack.c.b16 %v1450, %v1438
      %v1811 = vpack.c.b16 %v1451, %v1439
      %v1812 = vpack.c.b16 %v1452, %v1440
      %v1813 = vpack.c.b16 %v1453, %v1441
      %v1814 = vpack.c.b16 %v1466, %v1454
      %v1815 = vpack.c.b16 %v1467, %v1455
      %v1816 = vpack.c.b16 %v1468, %v1456
      %v1817 = vpack.c.b16 %v1469, %v1457
      %v1818 = vpack.c.b16 %v1470, %v1458
      %v1819 = vpack.c.b16 %v1471, %v1459
      %v1820 = vpack.c.b16 %v1472, %v1460
      %v1821 = vpack.c.b16 %v1473, %v1461
      %v1822 = vpack.c.b16 %v1474, %v1462
      %v1823 = vpack.c.b16 %v1475, %v1463
      %v1824 = vpack.c.b16 %v1476, %v1464
      %v1825 = vpack.c.b16 %v1477, %v1465
      %v1826 = vpack.c.b16 %v1490, %v1478
      %v1827 = vpack.c.b16 %v1491, %v1479
      %v1828 = vpack.c.b16 %v1492, %v1480
      %v1829 = vpack.c.b16 %v1493, %v1481
      %v1830 = vpack.c.b16 %v1494, %v1482
      %v1831 = vpack.c.b16 %v1495, %v1483
      %v1832 = vpack.c.b16 %v1496, %v1484
      %v1833 = vpack.c.b16 %v1497, %v1485
      %v1834 = vpack.c.b16 %v1498, %v1486
      %v1835 = vpack.c.b16 %v1499, %v1487
      %v1836 = vpack.c.b16 %v1500, %v1488
      %v1837 = vpack.c.b16 %v1501, %v1489
      %v1838 = vpack.c.b16 %v1514, %v1502
      %v1839 = vpack.c.b16 %v1515, %v1503
      %v1840 = vpack.c.b16 %v1516, %v1504
      %v1841 = vpack.c.b16 %v1517, %v1505
      %v1842 = vpack.c.b16 %v1518, %v1506
      %v1843 = vpack.c.b16 %v1519, %v1507
      %v1844 = vpack.c.b16 %v1520, %v1508
      %v1845 = vpack.c.b16 %v1521, %v1509
      %v1846 = vpack.c.b16 %v1522, %v1510
      %v1847 = vpack.c.b16 %v1523, %v1511
      %v1848 = vpack.c.b16 %v1524, %v1512
      %v1849 = vpack.c.b16 %v1525, %v1513
      %v1850 = vpack.c.b16 %v1538, %v1526
      %v1851 = vpack.c.b16 %v1539, %v1527
      %v1852 = vpack.c.b16 %v1540, %v1528
      %v1853 = vpack.c.b16 %v1541, %v1529
      %v1854 = vpack.c.b16 %v1542, %v1530
      %v1855 = vpack.c.b16 %v1543, %v1531
      %v1856 = vpack.c.b16 %v1544, %v1532
      %v1857 = vpack.c.b16 %v1545, %v1533
      %v1858 = vpack.c.b16 %v1546, %v1534
      %v1859 = vpack.c.b16 %v1547, %v1535
      %v1860 = vpack.c.b16 %v1548, %v1536
      %v1861 = vpack.c.b16 %v1549, %v1537
      %v1862 = vpack.c.b16 %v1562, %v1550
      %v1863 = vpack.c.b16 %v1563, %v1551
      %v1864 = vpack.c.b16 %v1564, %v1552
      %v1865 = vpack.c.b16 %v1565, %v1553
      %v1866 = vpack.c.b16 %v1566, %v1554
      %v1867 = vpack.c.b16 %v1567, %v1555
      %v1868 = vpack.c.b16 %v1568, %v1556
      %v1869 = vpack.c.b16 %v1569, %v1557
      %v1870 = vpack.c.b16 %v1570, %v1558
      %v1871 = vpack.c.b16 %v1571, %v1559
      %v1872 = vpack.c.b16 %v1572, %v1560
      %v1873 = vpack.c.b16 %v1573, %v1561
      %v1874 = vpack.c.b16 %v1586, %v1574
      %v1875 = vpack.c.b16 %v1587, %v1575
      %v1876 = vpack.c.b16 %v1588, %v1576
      %v1877 = vpack.c.b16 %v1589, %v1577
      %v1878 = vpack.c.b16 %v1590, %v1578
      %v1879 = vpack.c.b16 %v1591, %v1579
      %v1880 = vpack.c.b16 %v1592, %v1580
      %v1881 = vpack.c.b16 %v1593, %v1581
      %v1882 = vpack.c.b16 %v1594, %v1582
      %v1883 = vpack.c.b16 %v1595, %v1583
      %v1884 = vpack.c.b16 %v1596, %v1584
      %v1885 = vpack.c.b16 %v1597, %v1585
      %2174 = vmatprep.subr.bf16.mxu0 %v1683
      %2175 = vmatpush1.bf16.msra.mxu0 %v1682
      %2176 = vmatprep.subr.bf16.mxu0 %v1671
      %2177 = vmatpush1.bf16.msra.mxu0 %v1670
      %2178 = vmatprep.subr.bf16.mxu0 %v1659
      %2179 = vmatpush1.bf16.msra.mxu0 %v1658
      %2180 = vmatprep.subr.bf16.mxu0 %v1647
      %2181 = vmatpush1.bf16.msra.mxu0 %v1646
      %2182 = vmatprep.subr.bf16.mxu0 %v1635
      %2183 = vmatpush1.bf16.msra.mxu0 %v1634
      %2184 = vmatprep.subr.bf16.mxu0 %v1623
      %2185 = vmatpush1.bf16.msra.mxu0 %v1622
      %2186 = vmatprep.subr.bf16.mxu0 %v1611
      %2187 = vmatpush1.bf16.msra.mxu0 %v1610
      %2188 = vmatprep.subr.bf16.mxu0 %v1599
      %2189 = vmatpush1.bf16.msra.mxu0 %v1598
      %2190 = vmatprep.subr.bf16.mxu0 %v1779
      %2191 = vmatpush2.bf16.msra.mxu0 %v1778
      %2192 = vmatprep.subr.bf16.mxu0 %v1767
      %2193 = vmatpush2.bf16.msra.mxu0 %v1766
      %2194 = vmatprep.subr.bf16.mxu0 %v1755
      %2195 = vmatpush2.bf16.msra.mxu0 %v1754
      %2196 = vmatprep.subr.bf16.mxu0 %v1743
      %2197 = vmatpush2.bf16.msra.mxu0 %v1742
      %2198 = vmatprep.subr.bf16.mxu0 %v1731
      %2199 = vmatpush2.bf16.msra.mxu0 %v1730
      %2200 = vmatprep.subr.bf16.mxu0 %v1719
      %2201 = vmatpush2.bf16.msra.mxu0 %v1718
      %2202 = vmatprep.subr.bf16.mxu0 %v1707
      %2203 = vmatpush2.bf16.msra.mxu0 %v1706
      %2204 = vmatprep.subr.bf16.mxu0 %v1695
      %2205 = vmatpush2.bf16.msra.mxu0 %v1694
      %2206 = vmatprep.mubr.bf16.mxu0 %v380
      %2207 = vmatmul.mubr.bf16.gmra.mxu0 %v379
      %v2208 = vpop.f32.mrf.mxu0
      %v2209 = vadd.f32 %v677, %v2208
      %v2210 = vpop.f32.mrf.mxu0
      %v2211 = vadd.f32 %v681, %v2210
      %v2212 = vpop.f32.mrf.mxu0
      %v2213 = vpop.f32.mrf.mxu0
      %2214 = vdwg.mxu0
      %2215 = vmatprep.subr.bf16.mxu0 %v1875
      %2216 = vmatpush1.bf16.msra.mxu0 %v1874
      %2217 = vmatprep.subr.bf16.mxu0 %v1863
      %2218 = vmatpush1.bf16.msra.mxu0 %v1862
      %2219 = vmatprep.subr.bf16.mxu0 %v1851
      %2220 = vmatpush1.bf16.msra.mxu0 %v1850
      %2221 = vmatprep.subr.bf16.mxu0 %v1839
      %2222 = vmatpush1.bf16.msra.mxu0 %v1838
      %2223 = vmatprep.subr.bf16.mxu0 %v1827
      %2224 = vmatpush1.bf16.msra.mxu0 %v1826
      %2225 = vmatprep.subr.bf16.mxu0 %v1815
      %2226 = vmatpush1.bf16.msra.mxu0 %v1814
      %2227 = vmatprep.subr.bf16.mxu0 %v1803
      %2228 = vmatpush1.bf16.msra.mxu0 %v1802
      %2229 = vmatprep.subr.bf16.mxu0 %v1791
      %2230 = vmatpush1.bf16.msra.mxu0 %v1790
      %2231 = vmatprep.subr.bf16.mxu0 0
      %2232 = vmatpush2.bf16.msra.mxu0 0
      %2233 = vmatprep.subr.bf16.mxu0 0
      %2234 = vmatpush2.bf16.msra.mxu0 0
      %2235 = vmatprep.subr.bf16.mxu0 0
      %2236 = vmatpush2.bf16.msra.mxu0 0
      %2237 = vmatprep.subr.bf16.mxu0 0
      %2238 = vmatpush2.bf16.msra.mxu0 0
      %2239 = vmatprep.subr.bf16.mxu0 0
      %2240 = vmatpush2.bf16.msra.mxu0 0
      %2241 = vmatprep.subr.bf16.mxu0 0
      %2242 = vmatpush2.bf16.msra.mxu0 0
      %2243 = vmatprep.subr.bf16.mxu0 0
      %2244 = vmatpush2.bf16.msra.mxu0 0
      %2245 = vmatprep.subr.bf16.mxu0 0
      %2246 = vmatpush2.bf16.msra.mxu0 0
      %2247 = vmatprep.mubr.bf16.mxu0 0
      %2248 = vmatmul.mubr.bf16.gmra.mxu0 %v381
      %v2249 = vpop.f32.mrf.mxu0
      %v2250 = vadd.f32 %v2209, %v2249
      %v2251 = vpop.f32.mrf.mxu0
      %v2252 = vadd.f32 %v2211, %v2251
      %v2253 = vpop.f32.mrf.mxu0
      %v2254 = vpop.f32.mrf.mxu0
      %2255 = vdwg.mxu0
      %2256 = vmatprep.subr.bf16.mxu0 %v1685
      %2257 = vmatpush1.bf16.msra.mxu0 %v1684
      %2258 = vmatprep.subr.bf16.mxu0 %v1673
      %2259 = vmatpush1.bf16.msra.mxu0 %v1672
      %2260 = vmatprep.subr.bf16.mxu0 %v1661
      %2261 = vmatpush1.bf16.msra.mxu0 %v1660
      %2262 = vmatprep.subr.bf16.mxu0 %v1649
      %2263 = vmatpush1.bf16.msra.mxu0 %v1648
      %2264 = vmatprep.subr.bf16.mxu0 %v1637
      %2265 = vmatpush1.bf16.msra.mxu0 %v1636
      %2266 = vmatprep.subr.bf16.mxu0 %v1625
      %2267 = vmatpush1.bf16.msra.mxu0 %v1624
      %2268 = vmatprep.subr.bf16.mxu0 %v1613
      %2269 = vmatpush1.bf16.msra.mxu0 %v1612
      %2270 = vmatprep.subr.bf16.mxu0 %v1601
      %2271 = vmatpush1.bf16.msra.mxu0 %v1600
      %2272 = vmatprep.subr.bf16.mxu0 %v1781
      %2273 = vmatpush2.bf16.msra.mxu0 %v1780
      %2274 = vmatprep.subr.bf16.mxu0 %v1769
      %2275 = vmatpush2.bf16.msra.mxu0 %v1768
      %2276 = vmatprep.subr.bf16.mxu0 %v1757
      %2277 = vmatpush2.bf16.msra.mxu0 %v1756
      %2278 = vmatprep.subr.bf16.mxu0 %v1745
      %2279 = vmatpush2.bf16.msra.mxu0 %v1744
      %2280 = vmatprep.subr.bf16.mxu0 %v1733
      %2281 = vmatpush2.bf16.msra.mxu0 %v1732
      %2282 = vmatprep.subr.bf16.mxu0 %v1721
      %2283 = vmatpush2.bf16.msra.mxu0 %v1720
      %2284 = vmatprep.subr.bf16.mxu0 %v1709
      %2285 = vmatpush2.bf16.msra.mxu0 %v1708
      %2286 = vmatprep.subr.bf16.mxu0 %v1697
      %2287 = vmatpush2.bf16.msra.mxu0 %v1696
      %2288 = vmatprep.mubr.bf16.mxu0 %v380
      %2289 = vmatmul.mubr.bf16.gmra.mxu0 %v379
      %v2290 = vpop.f32.mrf.mxu0
      %v2291 = vadd.f32 %v685, %v2290
      %v2292 = vpop.f32.mrf.mxu0
      %v2293 = vadd.f32 %v689, %v2292
      %v2294 = vpop.f32.mrf.mxu0
      %v2295 = vpop.f32.mrf.mxu0
      %2296 = vdwg.mxu0
      %2297 = vmatprep.subr.bf16.mxu0 %v1877
      %2298 = vmatpush1.bf16.msra.mxu0 %v1876
      %2299 = vmatprep.subr.bf16.mxu0 %v1865
      %2300 = vmatpush1.bf16.msra.mxu0 %v1864
      %2301 = vmatprep.subr.bf16.mxu0 %v1853
      %2302 = vmatpush1.bf16.msra.mxu0 %v1852
      %2303 = vmatprep.subr.bf16.mxu0 %v1841
      %2304 = vmatpush1.bf16.msra.mxu0 %v1840
      %2305 = vmatprep.subr.bf16.mxu0 %v1829
      %2306 = vmatpush1.bf16.msra.mxu0 %v1828
      %2307 = vmatprep.subr.bf16.mxu0 %v1817
      %2308 = vmatpush1.bf16.msra.mxu0 %v1816
      %2309 = vmatprep.subr.bf16.mxu0 %v1805
      %2310 = vmatpush1.bf16.msra.mxu0 %v1804
      %2311 = vmatprep.subr.bf16.mxu0 %v1793
      %2312 = vmatpush1.bf16.msra.mxu0 %v1792
      %2313 = vmatprep.subr.bf16.mxu0 0
      %2314 = vmatpush2.bf16.msra.mxu0 0
      %2315 = vmatprep.subr.bf16.mxu0 0
      %2316 = vmatpush2.bf16.msra.mxu0 0
      %2317 = vmatprep.subr.bf16.mxu0 0
      %2318 = vmatpush2.bf16.msra.mxu0 0
      %2319 = vmatprep.subr.bf16.mxu0 0
      %2320 = vmatpush2.bf16.msra.mxu0 0
      %2321 = vmatprep.subr.bf16.mxu0 0
      %2322 = vmatpush2.bf16.msra.mxu0 0
      %2323 = vmatprep.subr.bf16.mxu0 0
      %2324 = vmatpush2.bf16.msra.mxu0 0
      %2325 = vmatprep.subr.bf16.mxu0 0
      %2326 = vmatpush2.bf16.msra.mxu0 0
      %2327 = vmatprep.subr.bf16.mxu0 0
      %2328 = vmatpush2.bf16.msra.mxu0 0
      %2329 = vmatprep.mubr.bf16.mxu0 0
      %2330 = vmatmul.mubr.bf16.gmra.mxu0 %v381
      %v2331 = vpop.f32.mrf.mxu0
      %v2332 = vadd.f32 %v2291, %v2331
      %v2333 = vpop.f32.mrf.mxu0
      %v2334 = vadd.f32 %v2293, %v2333
      %v2335 = vpop.f32.mrf.mxu0
      %v2336 = vpop.f32.mrf.mxu0
      %2337 = vdwg.mxu0
      %2338 = vmatprep.subr.bf16.mxu0 %v1687
      %2339 = vmatpush1.bf16.msra.mxu0 %v1686
      %2340 = vmatprep.subr.bf16.mxu0 %v1675
      %2341 = vmatpush1.bf16.msra.mxu0 %v1674
      %2342 = vmatprep.subr.bf16.mxu0 %v1663
      %2343 = vmatpush1.bf16.msra.mxu0 %v1662
      %2344 = vmatprep.subr.bf16.mxu0 %v1651
      %2345 = vmatpush1.bf16.msra.mxu0 %v1650
      %2346 = vmatprep.subr.bf16.mxu0 %v1639
      %2347 = vmatpush1.bf16.msra.mxu0 %v1638
      %2348 = vmatprep.subr.bf16.mxu0 %v1627
      %2349 = vmatpush1.bf16.msra.mxu0 %v1626
      %2350 = vmatprep.subr.bf16.mxu0 %v1615
      %2351 = vmatpush1.bf16.msra.mxu0 %v1614
      %2352 = vmatprep.subr.bf16.mxu0 %v1603
      %2353 = vmatpush1.bf16.msra.mxu0 %v1602
      %2354 = vmatprep.subr.bf16.mxu0 %v1783
      %2355 = vmatpush2.bf16.msra.mxu0 %v1782
      %2356 = vmatprep.subr.bf16.mxu0 %v1771
      %2357 = vmatpush2.bf16.msra.mxu0 %v1770
      %2358 = vmatprep.subr.bf16.mxu0 %v1759
      %2359 = vmatpush2.bf16.msra.mxu0 %v1758
      %2360 = vmatprep.subr.bf16.mxu0 %v1747
      %2361 = vmatpush2.bf16.msra.mxu0 %v1746
      %2362 = vmatprep.subr.bf16.mxu0 %v1735
      %2363 = vmatpush2.bf16.msra.mxu0 %v1734
      %2364 = vmatprep.subr.bf16.mxu0 %v1723
      %2365 = vmatpush2.bf16.msra.mxu0 %v1722
      %2366 = vmatprep.subr.bf16.mxu0 %v1711
      %2367 = vmatpush2.bf16.msra.mxu0 %v1710
      %2368 = vmatprep.subr.bf16.mxu0 %v1699
      %2369 = vmatpush2.bf16.msra.mxu0 %v1698
      %2370 = vmatprep.mubr.bf16.mxu0 %v380
      %2371 = vmatmul.mubr.bf16.gmra.mxu0 %v379
      %v2372 = vpop.f32.mrf.mxu0
      %v2373 = vadd.f32 %v693, %v2372
      %v2374 = vpop.f32.mrf.mxu0
      %v2375 = vadd.f32 %v697, %v2374
      %v2376 = vpop.f32.mrf.mxu0
      %v2377 = vpop.f32.mrf.mxu0
      %2378 = vdwg.mxu0
      %2379 = vmatprep.subr.bf16.mxu0 %v1879
      %2380 = vmatpush1.bf16.msra.mxu0 %v1878
      %2381 = vmatprep.subr.bf16.mxu0 %v1867
      %2382 = vmatpush1.bf16.msra.mxu0 %v1866
      %2383 = vmatprep.subr.bf16.mxu0 %v1855
      %2384 = vmatpush1.bf16.msra.mxu0 %v1854
      %2385 = vmatprep.subr.bf16.mxu0 %v1843
      %2386 = vmatpush1.bf16.msra.mxu0 %v1842
      %2387 = vmatprep.subr.bf16.mxu0 %v1831
      %2388 = vmatpush1.bf16.msra.mxu0 %v1830
      %2389 = vmatprep.subr.bf16.mxu0 %v1819
      %2390 = vmatpush1.bf16.msra.mxu0 %v1818
      %2391 = vmatprep.subr.bf16.mxu0 %v1807
      %2392 = vmatpush1.bf16.msra.mxu0 %v1806
      %2393 = vmatprep.subr.bf16.mxu0 %v1795
      %2394 = vmatpush1.bf16.msra.mxu0 %v1794
      %2395 = vmatprep.subr.bf16.mxu0 0
      %2396 = vmatpush2.bf16.msra.mxu0 0
      %2397 = vmatprep.subr.bf16.mxu0 0
      %2398 = vmatpush2.bf16.msra.mxu0 0
      %2399 = vmatprep.subr.bf16.mxu0 0
      %2400 = vmatpush2.bf16.msra.mxu0 0
      %2401 = vmatprep.subr.bf16.mxu0 0
      %2402 = vmatpush2.bf16.msra.mxu0 0
      %2403 = vmatprep.subr.bf16.mxu0 0
      %2404 = vmatpush2.bf16.msra.mxu0 0
      %2405 = vmatprep.subr.bf16.mxu0 0
      %2406 = vmatpush2.bf16.msra.mxu0 0
      %2407 = vmatprep.subr.bf16.mxu0 0
      %2408 = vmatpush2.bf16.msra.mxu0 0
      %2409 = vmatprep.subr.bf16.mxu0 0
      %2410 = vmatpush2.bf16.msra.mxu0 0
      %2411 = vmatprep.mubr.bf16.mxu0 0
      %2412 = vmatmul.mubr.bf16.gmra.mxu0 %v381
      %v2413 = vpop.f32.mrf.mxu0
      %v2414 = vadd.f32 %v2373, %v2413
      %v2415 = vpop.f32.mrf.mxu0
      %v2416 = vadd.f32 %v2375, %v2415
      %v2417 = vpop.f32.mrf.mxu0
      %v2418 = vpop.f32.mrf.mxu0
      %2419 = vdwg.mxu0
      %2420 = vmatprep.subr.bf16.mxu0 %v1689
      %2421 = vmatpush1.bf16.msra.mxu0 %v1688
      %2422 = vmatprep.subr.bf16.mxu0 %v1677
      %2423 = vmatpush1.bf16.msra.mxu0 %v1676
      %2424 = vmatprep.subr.bf16.mxu0 %v1665
      %2425 = vmatpush1.bf16.msra.mxu0 %v1664
      %2426 = vmatprep.subr.bf16.mxu0 %v1653
      %2427 = vmatpush1.bf16.msra.mxu0 %v1652
      %2428 = vmatprep.subr.bf16.mxu0 %v1641
      %2429 = vmatpush1.bf16.msra.mxu0 %v1640
      %2430 = vmatprep.subr.bf16.mxu0 %v1629
      %2431 = vmatpush1.bf16.msra.mxu0 %v1628
      %2432 = vmatprep.subr.bf16.mxu0 %v1617
      %2433 = vmatpush1.bf16.msra.mxu0 %v1616
      %2434 = vmatprep.subr.bf16.mxu0 %v1605
      %2435 = vmatpush1.bf16.msra.mxu0 %v1604
      %2436 = vmatprep.subr.bf16.mxu0 %v1785
      %2437 = vmatpush2.bf16.msra.mxu0 %v1784
      %2438 = vmatprep.subr.bf16.mxu0 %v1773
      %2439 = vmatpush2.bf16.msra.mxu0 %v1772
      %2440 = vmatprep.subr.bf16.mxu0 %v1761
      %2441 = vmatpush2.bf16.msra.mxu0 %v1760
      %2442 = vmatprep.subr.bf16.mxu0 %v1749
      %2443 = vmatpush2.bf16.msra.mxu0 %v1748
      %2444 = vmatprep.subr.bf16.mxu0 %v1737
      %2445 = vmatpush2.bf16.msra.mxu0 %v1736
      %2446 = vmatprep.subr.bf16.mxu0 %v1725
      %2447 = vmatpush2.bf16.msra.mxu0 %v1724
      %2448 = vmatprep.subr.bf16.mxu0 %v1713
      %2449 = vmatpush2.bf16.msra.mxu0 %v1712
      %2450 = vmatprep.subr.bf16.mxu0 %v1701
      %2451 = vmatpush2.bf16.msra.mxu0 %v1700
      %2452 = vmatprep.mubr.bf16.mxu0 %v380
      %2453 = vmatmul.mubr.bf16.gmra.mxu0 %v379
      %v2454 = vpop.f32.mrf.mxu0
      %v2455 = vadd.f32 %v701, %v2454
      %v2456 = vpop.f32.mrf.mxu0
      %v2457 = vadd.f32 %v705, %v2456
      %v2458 = vpop.f32.mrf.mxu0
      %v2459 = vpop.f32.mrf.mxu0
      %2460 = vdwg.mxu0
      %2461 = vmatprep.subr.bf16.mxu0 %v1881
      %2462 = vmatpush1.bf16.msra.mxu0 %v1880
      %2463 = vmatprep.subr.bf16.mxu0 %v1869
      %2464 = vmatpush1.bf16.msra.mxu0 %v1868
      %2465 = vmatprep.subr.bf16.mxu0 %v1857
      %2466 = vmatpush1.bf16.msra.mxu0 %v1856
      %2467 = vmatprep.subr.bf16.mxu0 %v1845
      %2468 = vmatpush1.bf16.msra.mxu0 %v1844
      %2469 = vmatprep.subr.bf16.mxu0 %v1833
      %2470 = vmatpush1.bf16.msra.mxu0 %v1832
      %2471 = vmatprep.subr.bf16.mxu0 %v1821
      %2472 = vmatpush1.bf16.msra.mxu0 %v1820
      %2473 = vmatprep.subr.bf16.mxu0 %v1809
      %2474 = vmatpush1.bf16.msra.mxu0 %v1808
      %2475 = vmatprep.subr.bf16.mxu0 %v1797
      %2476 = vmatpush1.bf16.msra.mxu0 %v1796
      %2477 = vmatprep.subr.bf16.mxu0 0
      %2478 = vmatpush2.bf16.msra.mxu0 0
      %2479 = vmatprep.subr.bf16.mxu0 0
      %2480 = vmatpush2.bf16.msra.mxu0 0
      %2481 = vmatprep.subr.bf16.mxu0 0
      %2482 = vmatpush2.bf16.msra.mxu0 0
      %2483 = vmatprep.subr.bf16.mxu0 0
      %2484 = vmatpush2.bf16.msra.mxu0 0
      %2485 = vmatprep.subr.bf16.mxu0 0
      %2486 = vmatpush2.bf16.msra.mxu0 0
      %2487 = vmatprep.subr.bf16.mxu0 0
      %2488 = vmatpush2.bf16.msra.mxu0 0
      %2489 = vmatprep.subr.bf16.mxu0 0
      %2490 = vmatpush2.bf16.msra.mxu0 0
      %2491 = vmatprep.subr.bf16.mxu0 0
      %2492 = vmatpush2.bf16.msra.mxu0 0
      %2493 = vmatprep.mubr.bf16.mxu0 0
      %2494 = vmatmul.mubr.bf16.gmra.mxu0 %v381
      %v2495 = vpop.f32.mrf.mxu0
      %v2496 = vadd.f32 %v2455, %v2495
      %v2497 = vpop.f32.mrf.mxu0
      %v2498 = vadd.f32 %v2457, %v2497
      %v2499 = vpop.f32.mrf.mxu0
      %v2500 = vpop.f32.mrf.mxu0
      %2501 = vdwg.mxu0
      %2502 = vmatprep.subr.bf16.mxu0 %v1691
      %2503 = vmatpush1.bf16.msra.mxu0 %v1690
      %2504 = vmatprep.subr.bf16.mxu0 %v1679
      %2505 = vmatpush1.bf16.msra.mxu0 %v1678
      %2506 = vmatprep.subr.bf16.mxu0 %v1667
      %2507 = vmatpush1.bf16.msra.mxu0 %v1666
      %2508 = vmatprep.subr.bf16.mxu0 %v1655
      %2509 = vmatpush1.bf16.msra.mxu0 %v1654
      %2510 = vmatprep.subr.bf16.mxu0 %v1643
      %2511 = vmatpush1.bf16.msra.mxu0 %v1642
      %2512 = vmatprep.subr.bf16.mxu0 %v1631
      %2513 = vmatpush1.bf16.msra.mxu0 %v1630
      %2514 = vmatprep.subr.bf16.mxu0 %v1619
      %2515 = vmatpush1.bf16.msra.mxu0 %v1618
      %2516 = vmatprep.subr.bf16.mxu0 %v1607
      %2517 = vmatpush1.bf16.msra.mxu0 %v1606
      %2518 = vmatprep.subr.bf16.mxu0 %v1787
      %2519 = vmatpush2.bf16.msra.mxu0 %v1786
      %2520 = vmatprep.subr.bf16.mxu0 %v1775
      %2521 = vmatpush2.bf16.msra.mxu0 %v1774
      %2522 = vmatprep.subr.bf16.mxu0 %v1763
      %2523 = vmatpush2.bf16.msra.mxu0 %v1762
      %2524 = vmatprep.subr.bf16.mxu0 %v1751
      %2525 = vmatpush2.bf16.msra.mxu0 %v1750
      %2526 = vmatprep.subr.bf16.mxu0 %v1739
      %2527 = vmatpush2.bf16.msra.mxu0 %v1738
      %2528 = vmatprep.subr.bf16.mxu0 %v1727
      %2529 = vmatpush2.bf16.msra.mxu0 %v1726
      %2530 = vmatprep.subr.bf16.mxu0 %v1715
      %2531 = vmatpush2.bf16.msra.mxu0 %v1714
      %2532 = vmatprep.subr.bf16.mxu0 %v1703
      %2533 = vmatpush2.bf16.msra.mxu0 %v1702
      %2534 = vmatprep.mubr.bf16.mxu0 %v380
      %2535 = vmatmul.mubr.bf16.gmra.mxu0 %v379
      %v2536 = vpop.f32.mrf.mxu0
      %v2537 = vadd.f32 %v709, %v2536
      %v2538 = vpop.f32.mrf.mxu0
      %v2539 = vadd.f32 %v713, %v2538
      %v2540 = vpop.f32.mrf.mxu0
      %v2541 = vpop.f32.mrf.mxu0
      %2542 = vdwg.mxu0
      %2543 = vmatprep.subr.bf16.mxu0 %v1883
      %2544 = vmatpush1.bf16.msra.mxu0 %v1882
      %2545 = vmatprep.subr.bf16.mxu0 %v1871
      %2546 = vmatpush1.bf16.msra.mxu0 %v1870
      %2547 = vmatprep.subr.bf16.mxu0 %v1859
      %2548 = vmatpush1.bf16.msra.mxu0 %v1858
      %2549 = vmatprep.subr.bf16.mxu0 %v1847
      %2550 = vmatpush1.bf16.msra.mxu0 %v1846
      %2551 = vmatprep.subr.bf16.mxu0 %v1835
      %2552 = vmatpush1.bf16.msra.mxu0 %v1834
      %2553 = vmatprep.subr.bf16.mxu0 %v1823
      %2554 = vmatpush1.bf16.msra.mxu0 %v1822
      %2555 = vmatprep.subr.bf16.mxu0 %v1811
      %2556 = vmatpush1.bf16.msra.mxu0 %v1810
      %2557 = vmatprep.subr.bf16.mxu0 %v1799
      %2558 = vmatpush1.bf16.msra.mxu0 %v1798
      %2559 = vmatprep.subr.bf16.mxu0 0
      %2560 = vmatpush2.bf16.msra.mxu0 0
      %2561 = vmatprep.subr.bf16.mxu0 0
      %2562 = vmatpush2.bf16.msra.mxu0 0
      %2563 = vmatprep.subr.bf16.mxu0 0
      %2564 = vmatpush2.bf16.msra.mxu0 0
      %2565 = vmatprep.subr.bf16.mxu0 0
      %2566 = vmatpush2.bf16.msra.mxu0 0
      %2567 = vmatprep.subr.bf16.mxu0 0
      %2568 = vmatpush2.bf16.msra.mxu0 0
      %2569 = vmatprep.subr.bf16.mxu0 0
      %2570 = vmatpush2.bf16.msra.mxu0 0
      %2571 = vmatprep.subr.bf16.mxu0 0
      %2572 = vmatpush2.bf16.msra.mxu0 0
      %2573 = vmatprep.subr.bf16.mxu0 0
      %2574 = vmatpush2.bf16.msra.mxu0 0
      %2575 = vmatprep.mubr.bf16.mxu0 0
      %2576 = vmatmul.mubr.bf16.gmra.mxu0 %v381
      %v2577 = vpop.f32.mrf.mxu0
      %v2578 = vadd.f32 %v2537, %v2577
      %v2579 = vpop.f32.mrf.mxu0
      %v2580 = vadd.f32 %v2539, %v2579
      %v2581 = vpop.f32.mrf.mxu0
      %v2582 = vpop.f32.mrf.mxu0
      %2583 = vdwg.mxu0
      %2584 = vmatprep.subr.bf16.mxu0 %v1693
      %2585 = vmatpush1.bf16.msra.mxu0 %v1692
      %2586 = vmatprep.subr.bf16.mxu0 %v1681
      %2587 = vmatpush1.bf16.msra.mxu0 %v1680
      %2588 = vmatprep.subr.bf16.mxu0 %v1669
      %2589 = vmatpush1.bf16.msra.mxu0 %v1668
      %2590 = vmatprep.subr.bf16.mxu0 %v1657
      %2591 = vmatpush1.bf16.msra.mxu0 %v1656
      %2592 = vmatprep.subr.bf16.mxu0 %v1645
      %2593 = vmatpush1.bf16.msra.mxu0 %v1644
      %2594 = vmatprep.subr.bf16.mxu0 %v1633
      %2595 = vmatpush1.bf16.msra.mxu0 %v1632
      %2596 = vmatprep.subr.bf16.mxu0 %v1621
      %2597 = vmatpush1.bf16.msra.mxu0 %v1620
      %2598 = vmatprep.subr.bf16.mxu0 %v1609
      %2599 = vmatpush1.bf16.msra.mxu0 %v1608
      %2600 = vmatprep.subr.bf16.mxu0 %v1789
      %2601 = vmatpush2.bf16.msra.mxu0 %v1788
      %2602 = vmatprep.subr.bf16.mxu0 %v1777
      %2603 = vmatpush2.bf16.msra.mxu0 %v1776
      %2604 = vmatprep.subr.bf16.mxu0 %v1765
      %2605 = vmatpush2.bf16.msra.mxu0 %v1764
      %2606 = vmatprep.subr.bf16.mxu0 %v1753
      %2607 = vmatpush2.bf16.msra.mxu0 %v1752
      %2608 = vmatprep.subr.bf16.mxu0 %v1741
      %2609 = vmatpush2.bf16.msra.mxu0 %v1740
      %2610 = vmatprep.subr.bf16.mxu0 %v1729
      %2611 = vmatpush2.bf16.msra.mxu0 %v1728
      %2612 = vmatprep.subr.bf16.mxu0 %v1717
      %2613 = vmatpush2.bf16.msra.mxu0 %v1716
      %2614 = vmatprep.subr.bf16.mxu0 %v1705
      %2615 = vmatpush2.bf16.msra.mxu0 %v1704
      %2616 = vmatprep.mubr.bf16.mxu0 %v380
      %2617 = vmatmul.mubr.bf16.gmra.mxu0 %v379
      %v2618 = vpop.f32.mrf.mxu0
      %v2619 = vadd.f32 %v717, %v2618
      %v2620 = vpop.f32.mrf.mxu0
      %v2621 = vadd.f32 %v721, %v2620
      %v2622 = vpop.f32.mrf.mxu0
      %v2623 = vpop.f32.mrf.mxu0
      %2624 = vdwg.mxu0
      %2625 = vmatprep.subr.bf16.mxu0 %v1885
      %2626 = vmatpush1.bf16.msra.mxu0 %v1884
      %2627 = vmatprep.subr.bf16.mxu0 %v1873
      %2628 = vmatpush1.bf16.msra.mxu0 %v1872
      %2629 = vmatprep.subr.bf16.mxu0 %v1861
      %2630 = vmatpush1.bf16.msra.mxu0 %v1860
      %2631 = vmatprep.subr.bf16.mxu0 %v1849
      %2632 = vmatpush1.bf16.msra.mxu0 %v1848
      %2633 = vmatprep.subr.bf16.mxu0 %v1837
      %2634 = vmatpush1.bf16.msra.mxu0 %v1836
      %2635 = vmatprep.subr.bf16.mxu0 %v1825
      %2636 = vmatpush1.bf16.msra.mxu0 %v1824
      %2637 = vmatprep.subr.bf16.mxu0 %v1813
      %2638 = vmatpush1.bf16.msra.mxu0 %v1812
      %2639 = vmatprep.subr.bf16.mxu0 %v1801
      %2640 = vmatpush1.bf16.msra.mxu0 %v1800
      %2641 = vmatprep.subr.bf16.mxu0 0
      %2642 = vmatpush2.bf16.msra.mxu0 0
      %2643 = vmatprep.subr.bf16.mxu0 0
      %2644 = vmatpush2.bf16.msra.mxu0 0
      %2645 = vmatprep.subr.bf16.mxu0 0
      %2646 = vmatpush2.bf16.msra.mxu0 0
      %2647 = vmatprep.subr.bf16.mxu0 0
      %2648 = vmatpush2.bf16.msra.mxu0 0
      %2649 = vmatprep.subr.bf16.mxu0 0
      %2650 = vmatpush2.bf16.msra.mxu0 0
      %2651 = vmatprep.subr.bf16.mxu0 0
      %2652 = vmatpush2.bf16.msra.mxu0 0
      %2653 = vmatprep.subr.bf16.mxu0 0
      %2654 = vmatpush2.bf16.msra.mxu0 0
      %2655 = vmatprep.subr.bf16.mxu0 0
      %2656 = vmatpush2.bf16.msra.mxu0 0
      %2657 = vmatprep.mubr.bf16.mxu0 0
      %2658 = vmatmul.mubr.bf16.gmra.mxu0 %v381
      %v2659 = vpop.f32.mrf.mxu0
      %v2660 = vadd.f32 %v2619, %v2659
      %v2661 = vpop.f32.mrf.mxu0
      %v2662 = vadd.f32 %v2621, %v2661
      %v2663 = vpop.f32.mrf.mxu0
      %v2664 = vpop.f32.mrf.mxu0
      %2665 = vdwg.mxu0
      %v2666 = vmul.f32 %v2250, 0.5
      %v2667 = vmul.f32 %v2252, 0.5
      %v2668 = vmul.f32 %v2332, 0.5
      %v2669 = vmul.f32 %v2334, 0.5
      %v2670 = vmul.f32 %v2414, 0.5
      %v2671 = vmul.f32 %v2416, 0.5
      %v2672 = vmul.f32 %v2496, 0.5
      %v2673 = vmul.f32 %v2498, 0.5
      %v2674 = vmul.f32 %v2578, 0.5
      %v2675 = vmul.f32 %v2580, 0.5
      %v2676 = vmul.f32 %v2660, 0.5
      %v2677 = vmul.f32 %v2662, 0.5
      %v2678 = vmul.f32 %v2250, 0.70710677
      %v2679 = vmul.f32 %v2252, 0.70710677
      %v2680 = vmul.f32 %v2332, 0.70710677
      %v2681 = vmul.f32 %v2334, 0.70710677
      %v2682 = vmul.f32 %v2414, 0.70710677
      %v2683 = vmul.f32 %v2416, 0.70710677
      %v2684 = vmul.f32 %v2496, 0.70710677
      %v2685 = vmul.f32 %v2498, 0.70710677
      %v2686 = vmul.f32 %v2578, 0.70710677
      %v2687 = vmul.f32 %v2580, 0.70710677
      %v2688 = vmul.f32 %v2660, 0.70710677
      %v2689 = vmul.f32 %v2662, 0.70710677
      %vm2690 = vcmp.ge.f32.partialorder %v2678, 0.0
      %vm2691 = vcmp.ge.f32.partialorder %v2679, 0.0
      %vm2692 = vcmp.ge.f32.partialorder %v2680, 0.0
      %vm2693 = vcmp.ge.f32.partialorder %v2681, 0.0
      %vm2694 = vcmp.ge.f32.partialorder %v2682, 0.0
      %vm2695 = vcmp.ge.f32.partialorder %v2683, 0.0
      %vm2696 = vcmp.ge.f32.partialorder %v2684, 0.0
      %vm2697 = vcmp.ge.f32.partialorder %v2685, 0.0
      %vm2698 = vcmp.ge.f32.partialorder %v2686, 0.0
      %vm2699 = vcmp.ge.f32.partialorder %v2687, 0.0
      %vm2700 = vcmp.ge.f32.partialorder %v2688, 0.0
      %vm2701 = vcmp.ge.f32.partialorder %v2689, 0.0
      %v2702 = vsub.f32 0.0, %v2678
      %v2703 = vsub.f32 0.0, %v2679
      %v2704 = vsub.f32 0.0, %v2680
      %v2705 = vsub.f32 0.0, %v2681
      %v2706 = vsub.f32 0.0, %v2682
      %v2707 = vsub.f32 0.0, %v2683
      %v2708 = vsub.f32 0.0, %v2684
      %v2709 = vsub.f32 0.0, %v2685
      %v2710 = vsub.f32 0.0, %v2686
      %v2711 = vsub.f32 0.0, %v2687
      %v2712 = vsub.f32 0.0, %v2688
      %v2713 = vsub.f32 0.0, %v2689
      %v2714 = vsel %vm2690, %v2678, %v2702
      %v2715 = vsel %vm2691, %v2679, %v2703
      %v2716 = vsel %vm2692, %v2680, %v2704
      %v2717 = vsel %vm2693, %v2681, %v2705
      %v2718 = vsel %vm2694, %v2682, %v2706
      %v2719 = vsel %vm2695, %v2683, %v2707
      %v2720 = vsel %vm2696, %v2684, %v2708
      %v2721 = vsel %vm2697, %v2685, %v2709
      %v2722 = vsel %vm2698, %v2686, %v2710
      %v2723 = vsel %vm2699, %v2687, %v2711
      %v2724 = vsel %vm2700, %v2688, %v2712
      %v2725 = vsel %vm2701, %v2689, %v2713
      %v2726 = vmul.f32 %v2714, 0.3275911
      %v2727 = vmul.f32 %v2715, 0.3275911
      %v2728 = vmul.f32 %v2716, 0.3275911
      %v2729 = vmul.f32 %v2717, 0.3275911
      %v2730 = vmul.f32 %v2718, 0.3275911
      %v2731 = vmul.f32 %v2719, 0.3275911
      %v2732 = vmul.f32 %v2720, 0.3275911
      %v2733 = vmul.f32 %v2721, 0.3275911
      %v2734 = vmul.f32 %v2722, 0.3275911
      %v2735 = vmul.f32 %v2723, 0.3275911
      %v2736 = vmul.f32 %v2724, 0.3275911
      %v2737 = vmul.f32 %v2725, 0.3275911
      %v2738 = vadd.f32 %v2726, 1.0
      %v2739 = vadd.f32 %v2727, 1.0
      %v2740 = vadd.f32 %v2728, 1.0
      %v2741 = vadd.f32 %v2729, 1.0
      %v2742 = vadd.f32 %v2730, 1.0
      %v2743 = vadd.f32 %v2731, 1.0
      %v2744 = vadd.f32 %v2732, 1.0
      %v2745 = vadd.f32 %v2733, 1.0
      %v2746 = vadd.f32 %v2734, 1.0
      %v2747 = vadd.f32 %v2735, 1.0
      %v2748 = vadd.f32 %v2736, 1.0
      %v2749 = vadd.f32 %v2737, 1.0
      %v2750 = vrcp.pop %v2738
      %v2751 = vmul.f32 1.0, %v2750
      %v2752 = vrcp.pop %v2739
      %v2753 = vmul.f32 1.0, %v2752
      %v2754 = vrcp.pop %v2740
      %v2755 = vmul.f32 1.0, %v2754
      %v2756 = vrcp.pop %v2741
      %v2757 = vmul.f32 1.0, %v2756
      %v2758 = vrcp.pop %v2742
      %v2759 = vmul.f32 1.0, %v2758
      %v2760 = vrcp.pop %v2743
      %v2761 = vmul.f32 1.0, %v2760
      %v2762 = vrcp.pop %v2744
      %v2763 = vmul.f32 1.0, %v2762
      %v2764 = vrcp.pop %v2745
      %v2765 = vmul.f32 1.0, %v2764
      %v2766 = vrcp.pop %v2746
      %v2767 = vmul.f32 1.0, %v2766
      %v2768 = vrcp.pop %v2747
      %v2769 = vmul.f32 1.0, %v2768
      %v2770 = vrcp.pop %v2748
      %v2771 = vmul.f32 1.0, %v2770
      %v2772 = vrcp.pop %v2749
      %v2773 = vmul.f32 1.0, %v2772
      %v2774 = vmul.f32 %v2751, 1.0614054
      %v2775 = vmul.f32 %v2753, 1.0614054
      %v2776 = vmul.f32 %v2755, 1.0614054
      %v2777 = vmul.f32 %v2757, 1.0614054
      %v2778 = vmul.f32 %v2759, 1.0614054
      %v2779 = vmul.f32 %v2761, 1.0614054
      %v2780 = vmul.f32 %v2763, 1.0614054
      %v2781 = vmul.f32 %v2765, 1.0614054
      %v2782 = vmul.f32 %v2767, 1.0614054
      %v2783 = vmul.f32 %v2769, 1.0614054
      %v2784 = vmul.f32 %v2771, 1.0614054
      %v2785 = vmul.f32 %v2773, 1.0614054
      %v2786 = vadd.f32 %v2774, -1.4531521
      %v2787 = vadd.f32 %v2775, -1.4531521
      %v2788 = vadd.f32 %v2776, -1.4531521
      %v2789 = vadd.f32 %v2777, -1.4531521
      %v2790 = vadd.f32 %v2778, -1.4531521
      %v2791 = vadd.f32 %v2779, -1.4531521
      %v2792 = vadd.f32 %v2780, -1.4531521
      %v2793 = vadd.f32 %v2781, -1.4531521
      %v2794 = vadd.f32 %v2782, -1.4531521
      %v2795 = vadd.f32 %v2783, -1.4531521
      %v2796 = vadd.f32 %v2784, -1.4531521
      %v2797 = vadd.f32 %v2785, -1.4531521
      %v2798 = vmul.f32 %v2786, %v2751
      %v2799 = vmul.f32 %v2787, %v2753
      %v2800 = vmul.f32 %v2788, %v2755
      %v2801 = vmul.f32 %v2789, %v2757
      %v2802 = vmul.f32 %v2790, %v2759
      %v2803 = vmul.f32 %v2791, %v2761
      %v2804 = vmul.f32 %v2792, %v2763
      %v2805 = vmul.f32 %v2793, %v2765
      %v2806 = vmul.f32 %v2794, %v2767
      %v2807 = vmul.f32 %v2795, %v2769
      %v2808 = vmul.f32 %v2796, %v2771
      %v2809 = vmul.f32 %v2797, %v2773
      %v2810 = vadd.f32 %v2798, 1.4214138
      %v2811 = vadd.f32 %v2799, 1.4214138
      %v2812 = vadd.f32 %v2800, 1.4214138
      %v2813 = vadd.f32 %v2801, 1.4214138
      %v2814 = vadd.f32 %v2802, 1.4214138
      %v2815 = vadd.f32 %v2803, 1.4214138
      %v2816 = vadd.f32 %v2804, 1.4214138
      %v2817 = vadd.f32 %v2805, 1.4214138
      %v2818 = vadd.f32 %v2806, 1.4214138
      %v2819 = vadd.f32 %v2807, 1.4214138
      %v2820 = vadd.f32 %v2808, 1.4214138
      %v2821 = vadd.f32 %v2809, 1.4214138
      %v2822 = vmul.f32 %v2810, %v2751
      %v2823 = vmul.f32 %v2811, %v2753
      %v2824 = vmul.f32 %v2812, %v2755
      %v2825 = vmul.f32 %v2813, %v2757
      %v2826 = vmul.f32 %v2814, %v2759
      %v2827 = vmul.f32 %v2815, %v2761
      %v2828 = vmul.f32 %v2816, %v2763
      %v2829 = vmul.f32 %v2817, %v2765
      %v2830 = vmul.f32 %v2818, %v2767
      %v2831 = vmul.f32 %v2819, %v2769
      %v2832 = vmul.f32 %v2820, %v2771
      %v2833 = vmul.f32 %v2821, %v2773
      %v2834 = vadd.f32 %v2822, -0.28449672
      %v2835 = vadd.f32 %v2823, -0.28449672
      %v2836 = vadd.f32 %v2824, -0.28449672
      %v2837 = vadd.f32 %v2825, -0.28449672
      %v2838 = vadd.f32 %v2826, -0.28449672
      %v2839 = vadd.f32 %v2827, -0.28449672
      %v2840 = vadd.f32 %v2828, -0.28449672
      %v2841 = vadd.f32 %v2829, -0.28449672
      %v2842 = vadd.f32 %v2830, -0.28449672
      %v2843 = vadd.f32 %v2831, -0.28449672
      %v2844 = vadd.f32 %v2832, -0.28449672
      %v2845 = vadd.f32 %v2833, -0.28449672
      %v2846 = vmul.f32 %v2834, %v2751
      %v2847 = vmul.f32 %v2835, %v2753
      %v2848 = vmul.f32 %v2836, %v2755
      %v2849 = vmul.f32 %v2837, %v2757
      %v2850 = vmul.f32 %v2838, %v2759
      %v2851 = vmul.f32 %v2839, %v2761
      %v2852 = vmul.f32 %v2840, %v2763
      %v2853 = vmul.f32 %v2841, %v2765
      %v2854 = vmul.f32 %v2842, %v2767
      %v2855 = vmul.f32 %v2843, %v2769
      %v2856 = vmul.f32 %v2844, %v2771
      %v2857 = vmul.f32 %v2845, %v2773
      %v2858 = vadd.f32 %v2846, 0.2548296
      %v2859 = vadd.f32 %v2847, 0.2548296
      %v2860 = vadd.f32 %v2848, 0.2548296
      %v2861 = vadd.f32 %v2849, 0.2548296
      %v2862 = vadd.f32 %v2850, 0.2548296
      %v2863 = vadd.f32 %v2851, 0.2548296
      %v2864 = vadd.f32 %v2852, 0.2548296
      %v2865 = vadd.f32 %v2853, 0.2548296
      %v2866 = vadd.f32 %v2854, 0.2548296
      %v2867 = vadd.f32 %v2855, 0.2548296
      %v2868 = vadd.f32 %v2856, 0.2548296
      %v2869 = vadd.f32 %v2857, 0.2548296
      %v2870 = vmul.f32 %v2858, %v2751
      %v2871 = vmul.f32 %v2859, %v2753
      %v2872 = vmul.f32 %v2860, %v2755
      %v2873 = vmul.f32 %v2861, %v2757
      %v2874 = vmul.f32 %v2862, %v2759
      %v2875 = vmul.f32 %v2863, %v2761
      %v2876 = vmul.f32 %v2864, %v2763
      %v2877 = vmul.f32 %v2865, %v2765
      %v2878 = vmul.f32 %v2866, %v2767
      %v2879 = vmul.f32 %v2867, %v2769
      %v2880 = vmul.f32 %v2868, %v2771
      %v2881 = vmul.f32 %v2869, %v2773
      %v2882 = vsub.f32 0.0, %v2714
      %v2883 = vsub.f32 0.0, %v2715
      %v2884 = vsub.f32 0.0, %v2716
      %v2885 = vsub.f32 0.0, %v2717
      %v2886 = vsub.f32 0.0, %v2718
      %v2887 = vsub.f32 0.0, %v2719
      %v2888 = vsub.f32 0.0, %v2720
      %v2889 = vsub.f32 0.0, %v2721
      %v2890 = vsub.f32 0.0, %v2722
      %v2891 = vsub.f32 0.0, %v2723
      %v2892 = vsub.f32 0.0, %v2724
      %v2893 = vsub.f32 0.0, %v2725
      %v2894 = vmul.f32 %v2882, %v2714
      %v2895 = vmul.f32 %v2883, %v2715
      %v2896 = vmul.f32 %v2884, %v2716
      %v2897 = vmul.f32 %v2885, %v2717
      %v2898 = vmul.f32 %v2886, %v2718
      %v2899 = vmul.f32 %v2887, %v2719
      %v2900 = vmul.f32 %v2888, %v2720
      %v2901 = vmul.f32 %v2889, %v2721
      %v2902 = vmul.f32 %v2890, %v2722
      %v2903 = vmul.f32 %v2891, %v2723
      %v2904 = vmul.f32 %v2892, %v2724
      %v2905 = vmul.f32 %v2893, %v2725
      %v2906 = vmul.f32 %v2894, 1.442695
      %v2907 = vpow.pop %v2906
      %v2908 = vmul.f32 %v2895, 1.442695
      %v2909 = vpow.pop %v2908
      %v2910 = vmul.f32 %v2896, 1.442695
      %v2911 = vpow.pop %v2910
      %v2912 = vmul.f32 %v2897, 1.442695
      %v2913 = vpow.pop %v2912
      %v2914 = vmul.f32 %v2898, 1.442695
      %v2915 = vpow.pop %v2914
      %v2916 = vmul.f32 %v2899, 1.442695
      %v2917 = vpow.pop %v2916
      %v2918 = vmul.f32 %v2900, 1.442695
      %v2919 = vpow.pop %v2918
      %v2920 = vmul.f32 %v2901, 1.442695
      %v2921 = vpow.pop %v2920
      %v2922 = vmul.f32 %v2902, 1.442695
      %v2923 = vpow.pop %v2922
      %v2924 = vmul.f32 %v2903, 1.442695
      %v2925 = vpow.pop %v2924
      %v2926 = vmul.f32 %v2904, 1.442695
      %v2927 = vpow.pop %v2926
      %v2928 = vmul.f32 %v2905, 1.442695
      %v2929 = vpow.pop %v2928
      %v2930 = vmul.f32 %v2870, %v2907
      %v2931 = vmul.f32 %v2871, %v2909
      %v2932 = vmul.f32 %v2872, %v2911
      %v2933 = vmul.f32 %v2873, %v2913
      %v2934 = vmul.f32 %v2874, %v2915
      %v2935 = vmul.f32 %v2875, %v2917
      %v2936 = vmul.f32 %v2876, %v2919
      %v2937 = vmul.f32 %v2877, %v2921
      %v2938 = vmul.f32 %v2878, %v2923
      %v2939 = vmul.f32 %v2879, %v2925
      %v2940 = vmul.f32 %v2880, %v2927
      %v2941 = vmul.f32 %v2881, %v2929
      %v2942 = vsub.f32 1.0, %v2930
      %v2943 = vsub.f32 1.0, %v2931
      %v2944 = vsub.f32 1.0, %v2932
      %v2945 = vsub.f32 1.0, %v2933
      %v2946 = vsub.f32 1.0, %v2934
      %v2947 = vsub.f32 1.0, %v2935
      %v2948 = vsub.f32 1.0, %v2936
      %v2949 = vsub.f32 1.0, %v2937
      %v2950 = vsub.f32 1.0, %v2938
      %v2951 = vsub.f32 1.0, %v2939
      %v2952 = vsub.f32 1.0, %v2940
      %v2953 = vsub.f32 1.0, %v2941
      %v2954 = vsub.f32 0.0, %v2942
      %v2955 = vsub.f32 0.0, %v2943
      %v2956 = vsub.f32 0.0, %v2944
      %v2957 = vsub.f32 0.0, %v2945
      %v2958 = vsub.f32 0.0, %v2946
      %v2959 = vsub.f32 0.0, %v2947
      %v2960 = vsub.f32 0.0, %v2948
      %v2961 = vsub.f32 0.0, %v2949
      %v2962 = vsub.f32 0.0, %v2950
      %v2963 = vsub.f32 0.0, %v2951
      %v2964 = vsub.f32 0.0, %v2952
      %v2965 = vsub.f32 0.0, %v2953
      %v2966 = vsel %vm2690, %v2942, %v2954
      %v2967 = vsel %vm2691, %v2943, %v2955
      %v2968 = vsel %vm2692, %v2944, %v2956
      %v2969 = vsel %vm2693, %v2945, %v2957
      %v2970 = vsel %vm2694, %v2946, %v2958
      %v2971 = vsel %vm2695, %v2947, %v2959
      %v2972 = vsel %vm2696, %v2948, %v2960
      %v2973 = vsel %vm2697, %v2949, %v2961
      %v2974 = vsel %vm2698, %v2950, %v2962
      %v2975 = vsel %vm2699, %v2951, %v2963
      %v2976 = vsel %vm2700, %v2952, %v2964
      %v2977 = vsel %vm2701, %v2953, %v2965
      %v2978 = vadd.f32 %v2966, 1.0
      %v2979 = vadd.f32 %v2967, 1.0
      %v2980 = vadd.f32 %v2968, 1.0
      %v2981 = vadd.f32 %v2969, 1.0
      %v2982 = vadd.f32 %v2970, 1.0
      %v2983 = vadd.f32 %v2971, 1.0
      %v2984 = vadd.f32 %v2972, 1.0
      %v2985 = vadd.f32 %v2973, 1.0
      %v2986 = vadd.f32 %v2974, 1.0
      %v2987 = vadd.f32 %v2975, 1.0
      %v2988 = vadd.f32 %v2976, 1.0
      %v2989 = vadd.f32 %v2977, 1.0
      %v2990 = vmul.f32 %v2666, %v2978
      %v2991 = vmul.f32 %v2667, %v2979
      %v2992 = vmul.f32 %v2668, %v2980
      %v2993 = vmul.f32 %v2669, %v2981
      %v2994 = vmul.f32 %v2670, %v2982
      %v2995 = vmul.f32 %v2671, %v2983
      %v2996 = vmul.f32 %v2672, %v2984
      %v2997 = vmul.f32 %v2673, %v2985
      %v2998 = vmul.f32 %v2674, %v2986
      %v2999 = vmul.f32 %v2675, %v2987
      %v3000 = vmul.f32 %v2676, %v2988
      %v3001 = vmul.f32 %v2677, %v2989
      %v3002 = vpack.c.bf16 %v2990, %v2990
      %v3003 = vpack.c.bf16 %v2991, %v2991
      %v3004 = vpack.c.bf16 %v2992, %v2992
      %v3005 = vpack.c.bf16 %v2993, %v2993
      %v3006 = vpack.c.bf16 %v2994, %v2994
      %v3007 = vpack.c.bf16 %v2995, %v2995
      %v3008 = vpack.c.bf16 %v2996, %v2996
      %v3009 = vpack.c.bf16 %v2997, %v2997
      %v3010 = vpack.c.bf16 %v2998, %v2998
      %v3011 = vpack.c.bf16 %v2999, %v2999
      %v3012 = vpack.c.bf16 %v3000, %v3000
      %v3013 = vpack.c.bf16 %v3001, %v3001
      %v3014 = vld [vmem:[%s5] sm:$0xff]
      %v3015 = vld [vmem:[%s5 + $0x8] sm:$0xf]
      %v3016 = vld [vmem:[%s5 + $0xc] sm:$0xff]
      %v3017 = vld [vmem:[%s5 + $0x14] sm:$0xf]
      %v3018 = vld [vmem:[%s5 + $0x18] sm:$0xff]
      %v3019 = vld [vmem:[%s5 + $0x20] sm:$0xf]
      %v3020 = vld [vmem:[%s5 + $0x24] sm:$0xff]
      %v3021 = vld [vmem:[%s5 + $0x2c] sm:$0xf]
      %v3022 = vld [vmem:[%s5 + $0x30] sm:$0xff]
      %v3023 = vld [vmem:[%s5 + $0x38] sm:$0xf]
      %v3024 = vld [vmem:[%s5 + $0x3c] sm:$0xff]
      %v3025 = vld [vmem:[%s5 + $0x44] sm:$0xf]
      %v3026 = vld [vmem:[%s5 + $0x48] sm:$0xff]
      %v3027 = vld [vmem:[%s5 + $0x50] sm:$0xf]
      %v3028 = vld [vmem:[%s5 + $0x54] sm:$0xff]
      %v3029 = vld [vmem:[%s5 + $0x5c] sm:$0xf]
      %v3030 = vld [vmem:[%s5 + $0x60] sm:$0xff]
      %v3031 = vld [vmem:[%s5 + $0x68] sm:$0xf]
      %v3032 = vld [vmem:[%s5 + $0x6c] sm:$0xff]
      %v3033 = vld [vmem:[%s5 + $0x74] sm:$0xf]
      %v3034 = vld [vmem:[%s5 + $0x78] sm:$0xff]
      %v3035 = vld [vmem:[%s5 + $0x80] sm:$0xf]
      %v3036 = vld [vmem:[%s5 + $0x84] sm:$0xff]
      %v3037 = vld [vmem:[%s5 + $0x8c] sm:$0xf]
      %v3038 = vld [vmem:[%s5 + $0x90] sm:$0xff]
      %v3039 = vld [vmem:[%s5 + $0x98] sm:$0xf]
      %v3040 = vld [vmem:[%s5 + $0x9c] sm:$0xff]
      %v3041 = vld [vmem:[%s5 + $0xa4] sm:$0xf]
      %v3042 = vld [vmem:[%s5 + $0xa8] sm:$0xff]
      %v3043 = vld [vmem:[%s5 + $0xb0] sm:$0xf]
      %v3044 = vld [vmem:[%s5 + $0xb4] sm:$0xff]
      %v3045 = vld [vmem:[%s5 + $0xbc] sm:$0xf]
      %v3046 = vld [vmem:[%s5 + $0xc0] sm:$0xff]
      %v3047 = vld [vmem:[%s5 + $0xc8] sm:$0xf]
      %v3048 = vld [vmem:[%s5 + $0xcc] sm:$0xff]
      %v3049 = vld [vmem:[%s5 + $0xd4] sm:$0xf]
      %v3050 = vld [vmem:[%s5 + $0xd8] sm:$0xff]
      %v3051 = vld [vmem:[%s5 + $0xe0] sm:$0xf]
      %v3052 = vld [vmem:[%s5 + $0xe4] sm:$0xff]
      %v3053 = vld [vmem:[%s5 + $0xec] sm:$0xf]
      %v3054 = vld [vmem:[%s5 + $0xf0] sm:$0xff]
      %v3055 = vld [vmem:[%s5 + $0xf8] sm:$0xf]
      %v3056 = vld [vmem:[%s5 + $0xfc] sm:$0xff]
      %v3057 = vld [vmem:[%s5 + $0x104] sm:$0xf]
      %v3058 = vld [vmem:[%s5 + $0x108] sm:$0xff]
      %v3059 = vld [vmem:[%s5 + $0x110] sm:$0xf]
      %v3060 = vld [vmem:[%s5 + $0x114] sm:$0xff]
      %v3061 = vld [vmem:[%s5 + $0x11c] sm:$0xf]
      %v3062 = vld [vmem:[%s5 + $0x120] sm:$0xff]
      %v3063 = vld [vmem:[%s5 + $0x128] sm:$0xf]
      %v3064 = vld [vmem:[%s5 + $0x12c] sm:$0xff]
      %v3065 = vld [vmem:[%s5 + $0x134] sm:$0xf]
      %v3066 = vld [vmem:[%s5 + $0x138] sm:$0xff]
      %v3067 = vld [vmem:[%s5 + $0x140] sm:$0xf]
      %v3068 = vld [vmem:[%s5 + $0x144] sm:$0xff]
      %v3069 = vld [vmem:[%s5 + $0x14c] sm:$0xf]
      %v3070 = vld [vmem:[%s5 + $0x150] sm:$0xff]
      %v3071 = vld [vmem:[%s5 + $0x158] sm:$0xf]
      %v3072 = vld [vmem:[%s5 + $0x15c] sm:$0xff]
      %v3073 = vld [vmem:[%s5 + $0x164] sm:$0xf]
      %v3074 = vld [vmem:[%s5 + $0x168] sm:$0xff]
      %v3075 = vld [vmem:[%s5 + $0x170] sm:$0xf]
      %v3076 = vld [vmem:[%s5 + $0x174] sm:$0xff]
      %v3077 = vld [vmem:[%s5 + $0x17c] sm:$0xf]
      %v3078 = vld [vmem:[%s5 + $0x180] sm:$0xff]
      %v3079 = vld [vmem:[%s5 + $0x188] sm:$0xf]
      %v3080 = vld [vmem:[%s5 + $0x18c] sm:$0xff]
      %v3081 = vld [vmem:[%s5 + $0x194] sm:$0xf]
      %v3082 = vld [vmem:[%s5 + $0x198] sm:$0xff]
      %v3083 = vld [vmem:[%s5 + $0x1a0] sm:$0xf]
      %v3084 = vld [vmem:[%s5 + $0x1a4] sm:$0xff]
      %v3085 = vld [vmem:[%s5 + $0x1ac] sm:$0xf]
      %v3086 = vld [vmem:[%s5 + $0x1b0] sm:$0xff]
      %v3087 = vld [vmem:[%s5 + $0x1b8] sm:$0xf]
      %v3088 = vld [vmem:[%s5 + $0x1bc] sm:$0xff]
      %v3089 = vld [vmem:[%s5 + $0x1c4] sm:$0xf]
      %v3090 = vld [vmem:[%s5 + $0x1c8] sm:$0xff]
      %v3091 = vld [vmem:[%s5 + $0x1d0] sm:$0xf]
      %v3092 = vld [vmem:[%s5 + $0x1d4] sm:$0xff]
      %v3093 = vld [vmem:[%s5 + $0x1dc] sm:$0xf]
      %v3094 = vld [vmem:[%s5 + $0x1e0] sm:$0xff]
      %v3095 = vld [vmem:[%s5 + $0x1e8] sm:$0xf]
      %v3096 = vld [vmem:[%s5 + $0x1ec] sm:$0xff]
      %v3097 = vld [vmem:[%s5 + $0x1f4] sm:$0xf]
      %v3098 = vld [vmem:[%s5 + $0x1f8] sm:$0xff]
      %v3099 = vld [vmem:[%s5 + $0x200] sm:$0xf]
      %v3100 = vld [vmem:[%s5 + $0x204] sm:$0xff]
      %v3101 = vld [vmem:[%s5 + $0x20c] sm:$0xf]
      %v3102 = vld [vmem:[%s5 + $0x210] sm:$0xff]
      %v3103 = vld [vmem:[%s5 + $0x218] sm:$0xf]
      %v3104 = vld [vmem:[%s5 + $0x21c] sm:$0xff]
      %v3105 = vld [vmem:[%s5 + $0x224] sm:$0xf]
      %v3106 = vld [vmem:[%s5 + $0x228] sm:$0xff]
      %v3107 = vld [vmem:[%s5 + $0x230] sm:$0xf]
      %v3108 = vld [vmem:[%s5 + $0x234] sm:$0xff]
      %v3109 = vld [vmem:[%s5 + $0x23c] sm:$0xf]
      %v3110 = vld [vmem:[%s5 + $0x240] sm:$0xff]
      %v3111 = vld [vmem:[%s5 + $0x248] sm:$0xf]
      %v3112 = vld [vmem:[%s5 + $0x24c] sm:$0xff]
      %v3113 = vld [vmem:[%s5 + $0x254] sm:$0xf]
      %v3114 = vld [vmem:[%s5 + $0x258] sm:$0xff]
      %v3115 = vld [vmem:[%s5 + $0x260] sm:$0xf]
      %v3116 = vld [vmem:[%s5 + $0x264] sm:$0xff]
      %v3117 = vld [vmem:[%s5 + $0x26c] sm:$0xf]
      %v3118 = vld [vmem:[%s5 + $0x270] sm:$0xff]
      %v3119 = vld [vmem:[%s5 + $0x278] sm:$0xf]
      %v3120 = vld [vmem:[%s5 + $0x27c] sm:$0xff]
      %v3121 = vld [vmem:[%s5 + $0x284] sm:$0xf]
      %v3122 = vld [vmem:[%s5 + $0x288] sm:$0xff]
      %v3123 = vld [vmem:[%s5 + $0x290] sm:$0xf]
      %v3124 = vld [vmem:[%s5 + $0x294] sm:$0xff]
      %v3125 = vld [vmem:[%s5 + $0x29c] sm:$0xf]
      %v3126 = vld [vmem:[%s5 + $0x2a0] sm:$0xff]
      %v3127 = vld [vmem:[%s5 + $0x2a8] sm:$0xf]
      %v3128 = vld [vmem:[%s5 + $0x2ac] sm:$0xff]
      %v3129 = vld [vmem:[%s5 + $0x2b4] sm:$0xf]
      %v3130 = vld [vmem:[%s5 + $0x2b8] sm:$0xff]
      %v3131 = vld [vmem:[%s5 + $0x2c0] sm:$0xf]
      %v3132 = vld [vmem:[%s5 + $0x2c4] sm:$0xff]
      %v3133 = vld [vmem:[%s5 + $0x2cc] sm:$0xf]
      %v3134 = vld [vmem:[%s5 + $0x2d0] sm:$0xff]
      %v3135 = vld [vmem:[%s5 + $0x2d8] sm:$0xf]
      %v3136 = vld [vmem:[%s5 + $0x2dc] sm:$0xff]
      %v3137 = vld [vmem:[%s5 + $0x2e4] sm:$0xf]
      %v3138 = vld [vmem:[%s5 + $0x2e8] sm:$0xff]
      %v3139 = vld [vmem:[%s5 + $0x2f0] sm:$0xf]
      %v3140 = vld [vmem:[%s5 + $0x2f4] sm:$0xff]
      %v3141 = vld [vmem:[%s5 + $0x2fc] sm:$0xf]
      %v3142 = vld [vmem:[%s5 + $0x300] sm:$0xff]
      %v3143 = vld [vmem:[%s5 + $0x308] sm:$0xf]
      %v3144 = vld [vmem:[%s5 + $0x30c] sm:$0xff]
      %v3145 = vld [vmem:[%s5 + $0x314] sm:$0xf]
      %v3146 = vld [vmem:[%s5 + $0x318] sm:$0xff]
      %v3147 = vld [vmem:[%s5 + $0x320] sm:$0xf]
      %v3148 = vld [vmem:[%s5 + $0x324] sm:$0xff]
      %v3149 = vld [vmem:[%s5 + $0x32c] sm:$0xf]
      %v3150 = vld [vmem:[%s5 + $0x330] sm:$0xff]
      %v3151 = vld [vmem:[%s5 + $0x338] sm:$0xf]
      %v3152 = vld [vmem:[%s5 + $0x33c] sm:$0xff]
      %v3153 = vld [vmem:[%s5 + $0x344] sm:$0xf]
      %v3154 = vld [vmem:[%s5 + $0x348] sm:$0xff]
      %v3155 = vld [vmem:[%s5 + $0x350] sm:$0xf]
      %v3156 = vld [vmem:[%s5 + $0x354] sm:$0xff]
      %v3157 = vld [vmem:[%s5 + $0x35c] sm:$0xf]
      %v3158 = vld [vmem:[%s5 + $0x360] sm:$0xff]
      %v3159 = vld [vmem:[%s5 + $0x368] sm:$0xf]
      %v3160 = vld [vmem:[%s5 + $0x36c] sm:$0xff]
      %v3161 = vld [vmem:[%s5 + $0x374] sm:$0xf]
      %v3162 = vld [vmem:[%s5 + $0x378] sm:$0xff]
      %v3163 = vld [vmem:[%s5 + $0x380] sm:$0xf]
      %v3164 = vld [vmem:[%s5 + $0x384] sm:$0xff]
      %v3165 = vld [vmem:[%s5 + $0x38c] sm:$0xf]
      %v3166 = vld [vmem:[%s5 + $0x390] sm:$0xff]
      %v3167 = vld [vmem:[%s5 + $0x398] sm:$0xf]
      %v3168 = vld [vmem:[%s5 + $0x39c] sm:$0xff]
      %v3169 = vld [vmem:[%s5 + $0x3a4] sm:$0xf]
      %v3170 = vld [vmem:[%s5 + $0x3a8] sm:$0xff]
      %v3171 = vld [vmem:[%s5 + $0x3b0] sm:$0xf]
      %v3172 = vld [vmem:[%s5 + $0x3b4] sm:$0xff]
      %v3173 = vld [vmem:[%s5 + $0x3bc] sm:$0xf]
      %v3174 = vld [vmem:[%s5 + $0x3c0] sm:$0xff]
      %v3175 = vld [vmem:[%s5 + $0x3c8] sm:$0xf]
      %v3176 = vld [vmem:[%s5 + $0x3cc] sm:$0xff]
      %v3177 = vld [vmem:[%s5 + $0x3d4] sm:$0xf]
      %v3178 = vld [vmem:[%s5 + $0x3d8] sm:$0xff]
      %v3179 = vld [vmem:[%s5 + $0x3e0] sm:$0xf]
      %v3180 = vld [vmem:[%s5 + $0x3e4] sm:$0xff]
      %v3181 = vld [vmem:[%s5 + $0x3ec] sm:$0xf]
      %v3182 = vld [vmem:[%s5 + $0x3f0] sm:$0xff]
      %v3183 = vld [vmem:[%s5 + $0x3f8] sm:$0xf]
      %v3184 = vld [vmem:[%s5 + $0x3fc] sm:$0xff]
      %v3185 = vld [vmem:[%s5 + $0x404] sm:$0xf]
      %v3186 = vld [vmem:[%s5 + $0x408] sm:$0xff]
      %v3187 = vld [vmem:[%s5 + $0x410] sm:$0xf]
      %v3188 = vld [vmem:[%s5 + $0x414] sm:$0xff]
      %v3189 = vld [vmem:[%s5 + $0x41c] sm:$0xf]
      %v3190 = vld [vmem:[%s5 + $0x420] sm:$0xff]
      %v3191 = vld [vmem:[%s5 + $0x428] sm:$0xf]
      %v3192 = vld [vmem:[%s5 + $0x42c] sm:$0xff]
      %v3193 = vld [vmem:[%s5 + $0x434] sm:$0xf]
      %v3194 = vld [vmem:[%s5 + $0x438] sm:$0xff]
      %v3195 = vld [vmem:[%s5 + $0x440] sm:$0xf]
      %v3196 = vld [vmem:[%s5 + $0x444] sm:$0xff]
      %v3197 = vld [vmem:[%s5 + $0x44c] sm:$0xf]
      %v3198 = vld [vmem:[%s5 + $0x450] sm:$0xff]
      %v3199 = vld [vmem:[%s5 + $0x458] sm:$0xf]
      %v3200 = vld [vmem:[%s5 + $0x45c] sm:$0xff]
      %v3201 = vld [vmem:[%s5 + $0x464] sm:$0xf]
      %v3202 = vld [vmem:[%s5 + $0x468] sm:$0xff]
      %v3203 = vld [vmem:[%s5 + $0x470] sm:$0xf]
      %v3204 = vld [vmem:[%s5 + $0x474] sm:$0xff]
      %v3205 = vld [vmem:[%s5 + $0x47c] sm:$0xf]
      %v3206 = vld [vmem:[%s5 + $0x480] sm:$0xff]
      %v3207 = vld [vmem:[%s5 + $0x488] sm:$0xf]
      %v3208 = vld [vmem:[%s5 + $0x48c] sm:$0xff]
      %v3209 = vld [vmem:[%s5 + $0x494] sm:$0xf]
      %v3210 = vld [vmem:[%s5 + $0x498] sm:$0xff]
      %v3211 = vld [vmem:[%s5 + $0x4a0] sm:$0xf]
      %v3212 = vld [vmem:[%s5 + $0x4a4] sm:$0xff]
      %v3213 = vld [vmem:[%s5 + $0x4ac] sm:$0xf]
      %v3214 = vld [vmem:[%s5 + $0x4b0] sm:$0xff]
      %v3215 = vld [vmem:[%s5 + $0x4b8] sm:$0xf]
      %v3216 = vld [vmem:[%s5 + $0x4bc] sm:$0xff]
      %v3217 = vld [vmem:[%s5 + $0x4c4] sm:$0xf]
      %v3218 = vld [vmem:[%s5 + $0x4c8] sm:$0xff]
      %v3219 = vld [vmem:[%s5 + $0x4d0] sm:$0xf]
      %v3220 = vld [vmem:[%s5 + $0x4d4] sm:$0xff]
      %v3221 = vld [vmem:[%s5 + $0x4dc] sm:$0xf]
      %v3222 = vld [vmem:[%s5 + $0x4e0] sm:$0xff]
      %v3223 = vld [vmem:[%s5 + $0x4e8] sm:$0xf]
      %v3224 = vld [vmem:[%s5 + $0x4ec] sm:$0xff]
      %v3225 = vld [vmem:[%s5 + $0x4f4] sm:$0xf]
      %v3226 = vld [vmem:[%s5 + $0x4f8] sm:$0xff]
      %v3227 = vld [vmem:[%s5 + $0x500] sm:$0xf]
      %v3228 = vld [vmem:[%s5 + $0x504] sm:$0xff]
      %v3229 = vld [vmem:[%s5 + $0x50c] sm:$0xf]
      %v3230 = vld [vmem:[%s5 + $0x510] sm:$0xff]
      %v3231 = vld [vmem:[%s5 + $0x518] sm:$0xf]
      %v3232 = vld [vmem:[%s5 + $0x51c] sm:$0xff]
      %v3233 = vld [vmem:[%s5 + $0x524] sm:$0xf]
      %v3234 = vld [vmem:[%s5 + $0x528] sm:$0xff]
      %v3235 = vld [vmem:[%s5 + $0x530] sm:$0xf]
      %v3236 = vld [vmem:[%s5 + $0x534] sm:$0xff]
      %v3237 = vld [vmem:[%s5 + $0x53c] sm:$0xf]
      %v3238 = vld [vmem:[%s5 + $0x540] sm:$0xff]
      %v3239 = vld [vmem:[%s5 + $0x548] sm:$0xf]
      %v3240 = vld [vmem:[%s5 + $0x54c] sm:$0xff]
      %v3241 = vld [vmem:[%s5 + $0x554] sm:$0xf]
      %v3242 = vld [vmem:[%s5 + $0x558] sm:$0xff]
      %v3243 = vld [vmem:[%s5 + $0x560] sm:$0xf]
      %v3244 = vld [vmem:[%s5 + $0x564] sm:$0xff]
      %v3245 = vld [vmem:[%s5 + $0x56c] sm:$0xf]
      %v3246 = vld [vmem:[%s5 + $0x570] sm:$0xff]
      %v3247 = vld [vmem:[%s5 + $0x578] sm:$0xf]
      %v3248 = vld [vmem:[%s5 + $0x57c] sm:$0xff]
      %v3249 = vld [vmem:[%s5 + $0x584] sm:$0xf]
      %v3250 = vld [vmem:[%s5 + $0x588] sm:$0xff]
      %v3251 = vld [vmem:[%s5 + $0x590] sm:$0xf]
      %v3252 = vld [vmem:[%s5 + $0x594] sm:$0xff]
      %v3253 = vld [vmem:[%s5 + $0x59c] sm:$0xf]
      %v3254 = vld [vmem:[%s5 + $0x5a0] sm:$0xff]
      %v3255 = vld [vmem:[%s5 + $0x5a8] sm:$0xf]
      %v3256 = vld [vmem:[%s5 + $0x5ac] sm:$0xff]
      %v3257 = vld [vmem:[%s5 + $0x5b4] sm:$0xf]
      %v3258 = vld [vmem:[%s5 + $0x5b8] sm:$0xff]
      %v3259 = vld [vmem:[%s5 + $0x5c0] sm:$0xf]
      %v3260 = vld [vmem:[%s5 + $0x5c4] sm:$0xff]
      %v3261 = vld [vmem:[%s5 + $0x5cc] sm:$0xf]
      %v3262 = vld [vmem:[%s5 + $0x5d0] sm:$0xff]
      %v3263 = vld [vmem:[%s5 + $0x5d8] sm:$0xf]
      %v3264 = vld [vmem:[%s5 + $0x5dc] sm:$0xff]
      %v3265 = vld [vmem:[%s5 + $0x5e4] sm:$0xf]
      %v3266 = vld [vmem:[%s5 + $0x5e8] sm:$0xff]
      %v3267 = vld [vmem:[%s5 + $0x5f0] sm:$0xf]
      %v3268 = vld [vmem:[%s5 + $0x5f4] sm:$0xff]
      %v3269 = vld [vmem:[%s5 + $0x5fc] sm:$0xf]
      %v3270 = vld [vmem:[%s5 + $0x600] sm:$0xff]
      %v3271 = vld [vmem:[%s5 + $0x608] sm:$0xf]
      %v3272 = vld [vmem:[%s5 + $0x60c] sm:$0xff]
      %v3273 = vld [vmem:[%s5 + $0x614] sm:$0xf]
      %v3274 = vld [vmem:[%s5 + $0x618] sm:$0xff]
      %v3275 = vld [vmem:[%s5 + $0x620] sm:$0xf]
      %v3276 = vld [vmem:[%s5 + $0x624] sm:$0xff]
      %v3277 = vld [vmem:[%s5 + $0x62c] sm:$0xf]
      %v3278 = vld [vmem:[%s5 + $0x630] sm:$0xff]
      %v3279 = vld [vmem:[%s5 + $0x638] sm:$0xf]
      %v3280 = vld [vmem:[%s5 + $0x63c] sm:$0xff]
      %v3281 = vld [vmem:[%s5 + $0x644] sm:$0xf]
      %v3282 = vld [vmem:[%s5 + $0x648] sm:$0xff]
      %v3283 = vld [vmem:[%s5 + $0x650] sm:$0xf]
      %v3284 = vld [vmem:[%s5 + $0x654] sm:$0xff]
      %v3285 = vld [vmem:[%s5 + $0x65c] sm:$0xf]
      %v3286 = vld [vmem:[%s5 + $0x660] sm:$0xff]
      %v3287 = vld [vmem:[%s5 + $0x668] sm:$0xf]
      %v3288 = vld [vmem:[%s5 + $0x66c] sm:$0xff]
      %v3289 = vld [vmem:[%s5 + $0x674] sm:$0xf]
      %v3290 = vld [vmem:[%s5 + $0x678] sm:$0xff]
      %v3291 = vld [vmem:[%s5 + $0x680] sm:$0xf]
      %v3292 = vld [vmem:[%s5 + $0x684] sm:$0xff]
      %v3293 = vld [vmem:[%s5 + $0x68c] sm:$0xf]
      %v3294 = vld [vmem:[%s5 + $0x690] sm:$0xff]
      %v3295 = vld [vmem:[%s5 + $0x698] sm:$0xf]
      %v3296 = vld [vmem:[%s5 + $0x69c] sm:$0xff]
      %v3297 = vld [vmem:[%s5 + $0x6a4] sm:$0xf]
      %v3298 = vld [vmem:[%s5 + $0x6a8] sm:$0xff]
      %v3299 = vld [vmem:[%s5 + $0x6b0] sm:$0xf]
      %v3300 = vld [vmem:[%s5 + $0x6b4] sm:$0xff]
      %v3301 = vld [vmem:[%s5 + $0x6bc] sm:$0xf]
      %v3302 = vld [vmem:[%s5 + $0x6c0] sm:$0xff]
      %v3303 = vld [vmem:[%s5 + $0x6c8] sm:$0xf]
      %v3304 = vld [vmem:[%s5 + $0x6cc] sm:$0xff]
      %v3305 = vld [vmem:[%s5 + $0x6d4] sm:$0xf]
      %v3306 = vld [vmem:[%s5 + $0x6d8] sm:$0xff]
      %v3307 = vld [vmem:[%s5 + $0x6e0] sm:$0xf]
      %v3308 = vld [vmem:[%s5 + $0x6e4] sm:$0xff]
      %v3309 = vld [vmem:[%s5 + $0x6ec] sm:$0xf]
      %v3310 = vld [vmem:[%s5 + $0x6f0] sm:$0xff]
      %v3311 = vld [vmem:[%s5 + $0x6f8] sm:$0xf]
      %v3312 = vld [vmem:[%s5 + $0x6fc] sm:$0xff]
      %v3313 = vld [vmem:[%s5 + $0x704] sm:$0xf]
      %v3314 = vld [vmem:[%s5 + $0x708] sm:$0xff]
      %v3315 = vld [vmem:[%s5 + $0x710] sm:$0xf]
      %v3316 = vld [vmem:[%s5 + $0x714] sm:$0xff]
      %v3317 = vld [vmem:[%s5 + $0x71c] sm:$0xf]
      %v3318 = vld [vmem:[%s5 + $0x720] sm:$0xff]
      %v3319 = vld [vmem:[%s5 + $0x728] sm:$0xf]
      %v3320 = vld [vmem:[%s5 + $0x72c] sm:$0xff]
      %v3321 = vld [vmem:[%s5 + $0x734] sm:$0xf]
      %v3322 = vld [vmem:[%s5 + $0x738] sm:$0xff]
      %v3323 = vld [vmem:[%s5 + $0x740] sm:$0xf]
      %v3324 = vld [vmem:[%s5 + $0x744] sm:$0xff]
      %v3325 = vld [vmem:[%s5 + $0x74c] sm:$0xf]
      %v3326 = vld [vmem:[%s5 + $0x750] sm:$0xff]
      %v3327 = vld [vmem:[%s5 + $0x758] sm:$0xf]
      %v3328 = vld [vmem:[%s5 + $0x75c] sm:$0xff]
      %v3329 = vld [vmem:[%s5 + $0x764] sm:$0xf]
      %v3330 = vld [vmem:[%s5 + $0x768] sm:$0xff]
      %v3331 = vld [vmem:[%s5 + $0x770] sm:$0xf]
      %v3332 = vld [vmem:[%s5 + $0x774] sm:$0xff]
      %v3333 = vld [vmem:[%s5 + $0x77c] sm:$0xf]
      %v3334 = vld [vmem:[%s5 + $0x780] sm:$0xff]
      %v3335 = vld [vmem:[%s5 + $0x788] sm:$0xf]
      %v3336 = vld [vmem:[%s5 + $0x78c] sm:$0xff]
      %v3337 = vld [vmem:[%s5 + $0x794] sm:$0xf]
      %v3338 = vld [vmem:[%s5 + $0x798] sm:$0xff]
      %v3339 = vld [vmem:[%s5 + $0x7a0] sm:$0xf]
      %v3340 = vld [vmem:[%s5 + $0x7a4] sm:$0xff]
      %v3341 = vld [vmem:[%s5 + $0x7ac] sm:$0xf]
      %v3342 = vld [vmem:[%s5 + $0x7b0] sm:$0xff]
      %v3343 = vld [vmem:[%s5 + $0x7b8] sm:$0xf]
      %v3344 = vld [vmem:[%s5 + $0x7bc] sm:$0xff]
      %v3345 = vld [vmem:[%s5 + $0x7c4] sm:$0xf]
      %v3346 = vld [vmem:[%s5 + $0x7c8] sm:$0xff]
      %v3347 = vld [vmem:[%s5 + $0x7d0] sm:$0xf]
      %v3348 = vld [vmem:[%s5 + $0x7d4] sm:$0xff]
      %v3349 = vld [vmem:[%s5 + $0x7dc] sm:$0xf]
      %v3350 = vld [vmem:[%s5 + $0x7e0] sm:$0xff]
      %v3351 = vld [vmem:[%s5 + $0x7e8] sm:$0xf]
      %v3352 = vld [vmem:[%s5 + $0x7ec] sm:$0xff]
      %v3353 = vld [vmem:[%s5 + $0x7f4] sm:$0xf]
      %v3354 = vld [vmem:[%s5 + $0x7f8] sm:$0xff]
      %v3355 = vld [vmem:[%s5 + $0x800] sm:$0xf]
      %v3356 = vld [vmem:[%s5 + $0x804] sm:$0xff]
      %v3357 = vld [vmem:[%s5 + $0x80c] sm:$0xf]
      %v3358 = vld [vmem:[%s5 + $0x810] sm:$0xff]
      %v3359 = vld [vmem:[%s5 + $0x818] sm:$0xf]
      %v3360 = vld [vmem:[%s5 + $0x81c] sm:$0xff]
      %v3361 = vld [vmem:[%s5 + $0x824] sm:$0xf]
      %v3362 = vld [vmem:[%s5 + $0x828] sm:$0xff]
      %v3363 = vld [vmem:[%s5 + $0x830] sm:$0xf]
      %v3364 = vld [vmem:[%s5 + $0x834] sm:$0xff]
      %v3365 = vld [vmem:[%s5 + $0x83c] sm:$0xf]
      %v3366 = vld [vmem:[%s5 + $0x840] sm:$0xff]
      %v3367 = vld [vmem:[%s5 + $0x848] sm:$0xf]
      %v3368 = vld [vmem:[%s5 + $0x84c] sm:$0xff]
      %v3369 = vld [vmem:[%s5 + $0x854] sm:$0xf]
      %v3370 = vld [vmem:[%s5 + $0x858] sm:$0xff]
      %v3371 = vld [vmem:[%s5 + $0x860] sm:$0xf]
      %v3372 = vld [vmem:[%s5 + $0x864] sm:$0xff]
      %v3373 = vld [vmem:[%s5 + $0x86c] sm:$0xf]
      %v3374 = vld [vmem:[%s5 + $0x870] sm:$0xff]
      %v3375 = vld [vmem:[%s5 + $0x878] sm:$0xf]
      %v3376 = vld [vmem:[%s5 + $0x87c] sm:$0xff]
      %v3377 = vld [vmem:[%s5 + $0x884] sm:$0xf]
      %v3378 = vld [vmem:[%s5 + $0x888] sm:$0xff]
      %v3379 = vld [vmem:[%s5 + $0x890] sm:$0xf]
      %v3380 = vld [vmem:[%s5 + $0x894] sm:$0xff]
      %v3381 = vld [vmem:[%s5 + $0x89c] sm:$0xf]
      %v3382 = vld [vmem:[%s5 + $0x8a0] sm:$0xff]
      %v3383 = vld [vmem:[%s5 + $0x8a8] sm:$0xf]
      %v3384 = vld [vmem:[%s5 + $0x8ac] sm:$0xff]
      %v3385 = vld [vmem:[%s5 + $0x8b4] sm:$0xf]
      %v3386 = vld [vmem:[%s5 + $0x8b8] sm:$0xff]
      %v3387 = vld [vmem:[%s5 + $0x8c0] sm:$0xf]
      %v3388 = vld [vmem:[%s5 + $0x8c4] sm:$0xff]
      %v3389 = vld [vmem:[%s5 + $0x8cc] sm:$0xf]
      %v3390 = vld [vmem:[%s5 + $0x8d0] sm:$0xff]
      %v3391 = vld [vmem:[%s5 + $0x8d8] sm:$0xf]
      %v3392 = vld [vmem:[%s5 + $0x8dc] sm:$0xff]
      %v3393 = vld [vmem:[%s5 + $0x8e4] sm:$0xf]
      %v3394 = vld [vmem:[%s5 + $0x8e8] sm:$0xff]
      %v3395 = vld [vmem:[%s5 + $0x8f0] sm:$0xf]
      %v3396 = vld [vmem:[%s5 + $0x8f4] sm:$0xff]
      %v3397 = vld [vmem:[%s5 + $0x8fc] sm:$0xf]
      %v3398 = vld [vmem:[%s6] sm:$0x7]
      %v3400 = vlaneseq
      %v3401 = vshrl.u32 %v3400, 7
      %v3402 = vsub.s32 0, %v3401
      %v3403 = vrot.slane %v3398, %v3402
      %v3404 = vlaneseq
      %v3405 = vshrl.u32 %v3404, 7
      %v3406 = vsub.s32 1, %v3405
      %v3407 = vrot.slane %v3398, %v3406
      %v3408 = vlaneseq
      %v3409 = vshrl.u32 %v3408, 7
      %v3410 = vsub.s32 2, %v3409
      %v3411 = vrot.slane %v3398, %v3410
      %v3799 = vunpack.c.l.b16 %v3014
      %v3800 = vunpack.c.h.b16 %v3014
      %v3801 = vunpack.c.l.b16 %v3015
      %v3802 = vunpack.c.l.b16 %v3016
      %v3803 = vunpack.c.h.b16 %v3016
      %v3804 = vunpack.c.l.b16 %v3017
      %v3805 = vunpack.c.l.b16 %v3018
      %v3806 = vunpack.c.h.b16 %v3018
      %v3807 = vunpack.c.l.b16 %v3019
      %v3808 = vunpack.c.l.b16 %v3020
      %v3809 = vunpack.c.h.b16 %v3020
      %v3810 = vunpack.c.l.b16 %v3021
      %v3811 = vunpack.c.l.b16 %v3022
      %v3812 = vunpack.c.h.b16 %v3022
      %v3813 = vunpack.c.l.b16 %v3023
      %v3814 = vunpack.c.l.b16 %v3024
      %v3815 = vunpack.c.h.b16 %v3024
      %v3816 = vunpack.c.l.b16 %v3025
      %v3817 = vunpack.c.l.b16 %v3026
      %v3818 = vunpack.c.h.b16 %v3026
      %v3819 = vunpack.c.l.b16 %v3027
      %v3820 = vunpack.c.l.b16 %v3028
      %v3821 = vunpack.c.h.b16 %v3028
      %v3822 = vunpack.c.l.b16 %v3029
      %v3823 = vunpack.c.l.b16 %v3030
      %v3824 = vunpack.c.h.b16 %v3030
      %v3825 = vunpack.c.l.b16 %v3031
      %v3826 = vunpack.c.l.b16 %v3032
      %v3827 = vunpack.c.h.b16 %v3032
      %v3828 = vunpack.c.l.b16 %v3033
      %v3829 = vunpack.c.l.b16 %v3034
      %v3830 = vunpack.c.h.b16 %v3034
      %v3831 = vunpack.c.l.b16 %v3035
      %v3832 = vunpack.c.l.b16 %v3036
      %v3833 = vunpack.c.h.b16 %v3036
      %v3834 = vunpack.c.l.b16 %v3037
      %v3835 = vunpack.c.l.b16 %v3038
      %v3836 = vunpack.c.h.b16 %v3038
      %v3837 = vunpack.c.l.b16 %v3039
      %v3838 = vunpack.c.l.b16 %v3040
      %v3839 = vunpack.c.h.b16 %v3040
      %v3840 = vunpack.c.l.b16 %v3041
      %v3841 = vunpack.c.l.b16 %v3042
      %v3842 = vunpack.c.h.b16 %v3042
      %v3843 = vunpack.c.l.b16 %v3043
      %v3844 = vunpack.c.l.b16 %v3044
      %v3845 = vunpack.c.h.b16 %v3044
      %v3846 = vunpack.c.l.b16 %v3045
      %v3847 = vunpack.c.l.b16 %v3046
      %v3848 = vunpack.c.h.b16 %v3046
      %v3849 = vunpack.c.l.b16 %v3047
      %v3850 = vunpack.c.l.b16 %v3048
      %v3851 = vunpack.c.h.b16 %v3048
      %v3852 = vunpack.c.l.b16 %v3049
      %v3853 = vunpack.c.l.b16 %v3050
      %v3854 = vunpack.c.h.b16 %v3050
      %v3855 = vunpack.c.l.b16 %v3051
      %v3856 = vunpack.c.l.b16 %v3052
      %v3857 = vunpack.c.h.b16 %v3052
      %v3858 = vunpack.c.l.b16 %v3053
      %v3859 = vunpack.c.l.b16 %v3054
      %v3860 = vunpack.c.h.b16 %v3054
      %v3861 = vunpack.c.l.b16 %v3055
      %v3862 = vunpack.c.l.b16 %v3056
      %v3863 = vunpack.c.h.b16 %v3056
      %v3864 = vunpack.c.l.b16 %v3057
      %v3865 = vunpack.c.l.b16 %v3058
      %v3866 = vunpack.c.h.b16 %v3058
      %v3867 = vunpack.c.l.b16 %v3059
      %v3868 = vunpack.c.l.b16 %v3060
      %v3869 = vunpack.c.h.b16 %v3060
      %v3870 = vunpack.c.l.b16 %v3061
      %v3871 = vunpack.c.l.b16 %v3062
      %v3872 = vunpack.c.h.b16 %v3062
      %v3873 = vunpack.c.l.b16 %v3063
      %v3874 = vunpack.c.l.b16 %v3064
      %v3875 = vunpack.c.h.b16 %v3064
      %v3876 = vunpack.c.l.b16 %v3065
      %v3877 = vunpack.c.l.b16 %v3066
      %v3878 = vunpack.c.h.b16 %v3066
      %v3879 = vunpack.c.l.b16 %v3067
      %v3880 = vunpack.c.l.b16 %v3068
      %v3881 = vunpack.c.h.b16 %v3068
      %v3882 = vunpack.c.l.b16 %v3069
      %v3883 = vunpack.c.l.b16 %v3070
      %v3884 = vunpack.c.h.b16 %v3070
      %v3885 = vunpack.c.l.b16 %v3071
      %v3886 = vunpack.c.l.b16 %v3072
      %v3887 = vunpack.c.h.b16 %v3072
      %v3888 = vunpack.c.l.b16 %v3073
      %v3889 = vunpack.c.l.b16 %v3074
      %v3890 = vunpack.c.h.b16 %v3074
      %v3891 = vunpack.c.l.b16 %v3075
      %v3892 = vunpack.c.l.b16 %v3076
      %v3893 = vunpack.c.h.b16 %v3076
      %v3894 = vunpack.c.l.b16 %v3077
      %v3895 = vunpack.c.l.b16 %v3078
      %v3896 = vunpack.c.h.b16 %v3078
      %v3897 = vunpack.c.l.b16 %v3079
      %v3898 = vunpack.c.l.b16 %v3080
      %v3899 = vunpack.c.h.b16 %v3080
      %v3900 = vunpack.c.l.b16 %v3081
      %v3901 = vunpack.c.l.b16 %v3082
      %v3902 = vunpack.c.h.b16 %v3082
      %v3903 = vunpack.c.l.b16 %v3083
      %v3904 = vunpack.c.l.b16 %v3084
      %v3905 = vunpack.c.h.b16 %v3084
      %v3906 = vunpack.c.l.b16 %v3085
      %v3907 = vunpack.c.l.b16 %v3086
      %v3908 = vunpack.c.h.b16 %v3086
      %v3909 = vunpack.c.l.b16 %v3087
      %v3910 = vunpack.c.l.b16 %v3088
      %v3911 = vunpack.c.h.b16 %v3088
      %v3912 = vunpack.c.l.b16 %v3089
      %v3913 = vunpack.c.l.b16 %v3090
      %v3914 = vunpack.c.h.b16 %v3090
      %v3915 = vunpack.c.l.b16 %v3091
      %v3916 = vunpack.c.l.b16 %v3092
      %v3917 = vunpack.c.h.b16 %v3092
      %v3918 = vunpack.c.l.b16 %v3093
      %v3919 = vunpack.c.l.b16 %v3094
      %v3920 = vunpack.c.h.b16 %v3094
      %v3921 = vunpack.c.l.b16 %v3095
      %v3922 = vunpack.c.l.b16 %v3096
      %v3923 = vunpack.c.h.b16 %v3096
      %v3924 = vunpack.c.l.b16 %v3097
      %v3925 = vunpack.c.l.b16 %v3098
      %v3926 = vunpack.c.h.b16 %v3098
      %v3927 = vunpack.c.l.b16 %v3099
      %v3928 = vunpack.c.l.b16 %v3100
      %v3929 = vunpack.c.h.b16 %v3100
      %v3930 = vunpack.c.l.b16 %v3101
      %v3931 = vunpack.c.l.b16 %v3102
      %v3932 = vunpack.c.h.b16 %v3102
      %v3933 = vunpack.c.l.b16 %v3103
      %v3934 = vunpack.c.l.b16 %v3104
      %v3935 = vunpack.c.h.b16 %v3104
      %v3936 = vunpack.c.l.b16 %v3105
      %v3937 = vunpack.c.l.b16 %v3106
      %v3938 = vunpack.c.h.b16 %v3106
      %v3939 = vunpack.c.l.b16 %v3107
      %v3940 = vunpack.c.l.b16 %v3108
      %v3941 = vunpack.c.h.b16 %v3108
      %v3942 = vunpack.c.l.b16 %v3109
      %v3943 = vunpack.c.l.b16 %v3110
      %v3944 = vunpack.c.h.b16 %v3110
      %v3945 = vunpack.c.l.b16 %v3111
      %v3946 = vunpack.c.l.b16 %v3112
      %v3947 = vunpack.c.h.b16 %v3112
      %v3948 = vunpack.c.l.b16 %v3113
      %v3949 = vunpack.c.l.b16 %v3114
      %v3950 = vunpack.c.h.b16 %v3114
      %v3951 = vunpack.c.l.b16 %v3115
      %v3952 = vunpack.c.l.b16 %v3116
      %v3953 = vunpack.c.h.b16 %v3116
      %v3954 = vunpack.c.l.b16 %v3117
      %v3955 = vunpack.c.l.b16 %v3118
      %v3956 = vunpack.c.h.b16 %v3118
      %v3957 = vunpack.c.l.b16 %v3119
      %v3958 = vunpack.c.l.b16 %v3120
      %v3959 = vunpack.c.h.b16 %v3120
      %v3960 = vunpack.c.l.b16 %v3121
      %v3961 = vunpack.c.l.b16 %v3122
      %v3962 = vunpack.c.h.b16 %v3122
      %v3963 = vunpack.c.l.b16 %v3123
      %v3964 = vunpack.c.l.b16 %v3124
      %v3965 = vunpack.c.h.b16 %v3124
      %v3966 = vunpack.c.l.b16 %v3125
      %v3967 = vunpack.c.l.b16 %v3126
      %v3968 = vunpack.c.h.b16 %v3126
      %v3969 = vunpack.c.l.b16 %v3127
      %v3970 = vunpack.c.l.b16 %v3128
      %v3971 = vunpack.c.h.b16 %v3128
      %v3972 = vunpack.c.l.b16 %v3129
      %v3973 = vunpack.c.l.b16 %v3130
      %v3974 = vunpack.c.h.b16 %v3130
      %v3975 = vunpack.c.l.b16 %v3131
      %v3976 = vunpack.c.l.b16 %v3132
      %v3977 = vunpack.c.h.b16 %v3132
      %v3978 = vunpack.c.l.b16 %v3133
      %v3979 = vunpack.c.l.b16 %v3134
      %v3980 = vunpack.c.h.b16 %v3134
      %v3981 = vunpack.c.l.b16 %v3135
      %v3982 = vunpack.c.l.b16 %v3136
      %v3983 = vunpack.c.h.b16 %v3136
      %v3984 = vunpack.c.l.b16 %v3137
      %v3985 = vunpack.c.l.b16 %v3138
      %v3986 = vunpack.c.h.b16 %v3138
      %v3987 = vunpack.c.l.b16 %v3139
      %v3988 = vunpack.c.l.b16 %v3140
      %v3989 = vunpack.c.h.b16 %v3140
      %v3990 = vunpack.c.l.b16 %v3141
      %v3991 = vunpack.c.l.b16 %v3142
      %v3992 = vunpack.c.h.b16 %v3142
      %v3993 = vunpack.c.l.b16 %v3143
      %v3994 = vunpack.c.l.b16 %v3144
      %v3995 = vunpack.c.h.b16 %v3144
      %v3996 = vunpack.c.l.b16 %v3145
      %v3997 = vunpack.c.l.b16 %v3146
      %v3998 = vunpack.c.h.b16 %v3146
      %v3999 = vunpack.c.l.b16 %v3147
      %v4000 = vunpack.c.l.b16 %v3148
      %v4001 = vunpack.c.h.b16 %v3148
      %v4002 = vunpack.c.l.b16 %v3149
      %v4003 = vunpack.c.l.b16 %v3150
      %v4004 = vunpack.c.h.b16 %v3150
      %v4005 = vunpack.c.l.b16 %v3151
      %v4006 = vunpack.c.l.b16 %v3152
      %v4007 = vunpack.c.h.b16 %v3152
      %v4008 = vunpack.c.l.b16 %v3153
      %v4009 = vunpack.c.l.b16 %v3154
      %v4010 = vunpack.c.h.b16 %v3154
      %v4011 = vunpack.c.l.b16 %v3155
      %v4012 = vunpack.c.l.b16 %v3156
      %v4013 = vunpack.c.h.b16 %v3156
      %v4014 = vunpack.c.l.b16 %v3157
      %v4015 = vunpack.c.l.b16 %v3158
      %v4016 = vunpack.c.h.b16 %v3158
      %v4017 = vunpack.c.l.b16 %v3159
      %v4018 = vunpack.c.l.b16 %v3160
      %v4019 = vunpack.c.h.b16 %v3160
      %v4020 = vunpack.c.l.b16 %v3161
      %v4021 = vunpack.c.l.b16 %v3162
      %v4022 = vunpack.c.h.b16 %v3162
      %v4023 = vunpack.c.l.b16 %v3163
      %v4024 = vunpack.c.l.b16 %v3164
      %v4025 = vunpack.c.h.b16 %v3164
      %v4026 = vunpack.c.l.b16 %v3165
      %v4027 = vunpack.c.l.b16 %v3166
      %v4028 = vunpack.c.h.b16 %v3166
      %v4029 = vunpack.c.l.b16 %v3167
      %v4030 = vunpack.c.l.b16 %v3168
      %v4031 = vunpack.c.h.b16 %v3168
      %v4032 = vunpack.c.l.b16 %v3169
      %v4033 = vunpack.c.l.b16 %v3170
      %v4034 = vunpack.c.h.b16 %v3170
      %v4035 = vunpack.c.l.b16 %v3171
      %v4036 = vunpack.c.l.b16 %v3172
      %v4037 = vunpack.c.h.b16 %v3172
      %v4038 = vunpack.c.l.b16 %v3173
      %v4039 = vunpack.c.l.b16 %v3174
      %v4040 = vunpack.c.h.b16 %v3174
      %v4041 = vunpack.c.l.b16 %v3175
      %v4042 = vunpack.c.l.b16 %v3176
      %v4043 = vunpack.c.h.b16 %v3176
      %v4044 = vunpack.c.l.b16 %v3177
      %v4045 = vunpack.c.l.b16 %v3178
      %v4046 = vunpack.c.h.b16 %v3178
      %v4047 = vunpack.c.l.b16 %v3179
      %v4048 = vunpack.c.l.b16 %v3180
      %v4049 = vunpack.c.h.b16 %v3180
      %v4050 = vunpack.c.l.b16 %v3181
      %v4051 = vunpack.c.l.b16 %v3182
      %v4052 = vunpack.c.h.b16 %v3182
      %v4053 = vunpack.c.l.b16 %v3183
      %v4054 = vunpack.c.l.b16 %v3184
      %v4055 = vunpack.c.h.b16 %v3184
      %v4056 = vunpack.c.l.b16 %v3185
      %v4057 = vunpack.c.l.b16 %v3186
      %v4058 = vunpack.c.h.b16 %v3186
      %v4059 = vunpack.c.l.b16 %v3187
      %v4060 = vunpack.c.l.b16 %v3188
      %v4061 = vunpack.c.h.b16 %v3188
      %v4062 = vunpack.c.l.b16 %v3189
      %v4063 = vunpack.c.l.b16 %v3190
      %v4064 = vunpack.c.h.b16 %v3190
      %v4065 = vunpack.c.l.b16 %v3191
      %v4066 = vunpack.c.l.b16 %v3192
      %v4067 = vunpack.c.h.b16 %v3192
      %v4068 = vunpack.c.l.b16 %v3193
      %v4069 = vunpack.c.l.b16 %v3194
      %v4070 = vunpack.c.h.b16 %v3194
      %v4071 = vunpack.c.l.b16 %v3195
      %v4072 = vunpack.c.l.b16 %v3196
      %v4073 = vunpack.c.h.b16 %v3196
      %v4074 = vunpack.c.l.b16 %v3197
      %v4075 = vunpack.c.l.b16 %v3198
      %v4076 = vunpack.c.h.b16 %v3198
      %v4077 = vunpack.c.l.b16 %v3199
      %v4078 = vunpack.c.l.b16 %v3200
      %v4079 = vunpack.c.h.b16 %v3200
      %v4080 = vunpack.c.l.b16 %v3201
      %v4081 = vunpack.c.l.b16 %v3202
      %v4082 = vunpack.c.h.b16 %v3202
      %v4083 = vunpack.c.l.b16 %v3203
      %v4084 = vunpack.c.l.b16 %v3204
      %v4085 = vunpack.c.h.b16 %v3204
      %v4086 = vunpack.c.l.b16 %v3205
      %v4087 = vunpack.c.l.b16 %v3206
      %v4088 = vunpack.c.h.b16 %v3206
      %v4089 = vunpack.c.l.b16 %v3207
      %v4090 = vunpack.c.l.b16 %v3208
      %v4091 = vunpack.c.h.b16 %v3208
      %v4092 = vunpack.c.l.b16 %v3209
      %v4093 = vunpack.c.l.b16 %v3210
      %v4094 = vunpack.c.h.b16 %v3210
      %v4095 = vunpack.c.l.b16 %v3211
      %v4096 = vunpack.c.l.b16 %v3212
      %v4097 = vunpack.c.h.b16 %v3212
      %v4098 = vunpack.c.l.b16 %v3213
      %v4099 = vunpack.c.l.b16 %v3214
      %v4100 = vunpack.c.h.b16 %v3214
      %v4101 = vunpack.c.l.b16 %v3215
      %v4102 = vunpack.c.l.b16 %v3216
      %v4103 = vunpack.c.h.b16 %v3216
      %v4104 = vunpack.c.l.b16 %v3217
      %v4105 = vunpack.c.l.b16 %v3218
      %v4106 = vunpack.c.h.b16 %v3218
      %v4107 = vunpack.c.l.b16 %v3219
      %v4108 = vunpack.c.l.b16 %v3220
      %v4109 = vunpack.c.h.b16 %v3220
      %v4110 = vunpack.c.l.b16 %v3221
      %v4111 = vunpack.c.l.b16 %v3222
      %v4112 = vunpack.c.h.b16 %v3222
      %v4113 = vunpack.c.l.b16 %v3223
      %v4114 = vunpack.c.l.b16 %v3224
      %v4115 = vunpack.c.h.b16 %v3224
      %v4116 = vunpack.c.l.b16 %v3225
      %v4117 = vunpack.c.l.b16 %v3226
      %v4118 = vunpack.c.h.b16 %v3226
      %v4119 = vunpack.c.l.b16 %v3227
      %v4120 = vunpack.c.l.b16 %v3228
      %v4121 = vunpack.c.h.b16 %v3228
      %v4122 = vunpack.c.l.b16 %v3229
      %v4123 = vunpack.c.l.b16 %v3230
      %v4124 = vunpack.c.h.b16 %v3230
      %v4125 = vunpack.c.l.b16 %v3231
      %v4126 = vunpack.c.l.b16 %v3232
      %v4127 = vunpack.c.h.b16 %v3232
      %v4128 = vunpack.c.l.b16 %v3233
      %v4129 = vunpack.c.l.b16 %v3234
      %v4130 = vunpack.c.h.b16 %v3234
      %v4131 = vunpack.c.l.b16 %v3235
      %v4132 = vunpack.c.l.b16 %v3236
      %v4133 = vunpack.c.h.b16 %v3236
      %v4134 = vunpack.c.l.b16 %v3237
      %v4135 = vunpack.c.l.b16 %v3238
      %v4136 = vunpack.c.h.b16 %v3238
      %v4137 = vunpack.c.l.b16 %v3239
      %v4138 = vunpack.c.l.b16 %v3240
      %v4139 = vunpack.c.h.b16 %v3240
      %v4140 = vunpack.c.l.b16 %v3241
      %v4141 = vunpack.c.l.b16 %v3242
      %v4142 = vunpack.c.h.b16 %v3242
      %v4143 = vunpack.c.l.b16 %v3243
      %v4144 = vunpack.c.l.b16 %v3244
      %v4145 = vunpack.c.h.b16 %v3244
      %v4146 = vunpack.c.l.b16 %v3245
      %v4147 = vunpack.c.l.b16 %v3246
      %v4148 = vunpack.c.h.b16 %v3246
      %v4149 = vunpack.c.l.b16 %v3247
      %v4150 = vunpack.c.l.b16 %v3248
      %v4151 = vunpack.c.h.b16 %v3248
      %v4152 = vunpack.c.l.b16 %v3249
      %v4153 = vunpack.c.l.b16 %v3250
      %v4154 = vunpack.c.h.b16 %v3250
      %v4155 = vunpack.c.l.b16 %v3251
      %v4156 = vunpack.c.l.b16 %v3252
      %v4157 = vunpack.c.h.b16 %v3252
      %v4158 = vunpack.c.l.b16 %v3253
      %v4159 = vunpack.c.l.b16 %v3254
      %v4160 = vunpack.c.h.b16 %v3254
      %v4161 = vunpack.c.l.b16 %v3255
      %v4162 = vunpack.c.l.b16 %v3256
      %v4163 = vunpack.c.h.b16 %v3256
      %v4164 = vunpack.c.l.b16 %v3257
      %v4165 = vunpack.c.l.b16 %v3258
      %v4166 = vunpack.c.h.b16 %v3258
      %v4167 = vunpack.c.l.b16 %v3259
      %v4168 = vunpack.c.l.b16 %v3260
      %v4169 = vunpack.c.h.b16 %v3260
      %v4170 = vunpack.c.l.b16 %v3261
      %v4171 = vunpack.c.l.b16 %v3262
      %v4172 = vunpack.c.h.b16 %v3262
      %v4173 = vunpack.c.l.b16 %v3263
      %v4174 = vunpack.c.l.b16 %v3264
      %v4175 = vunpack.c.h.b16 %v3264
      %v4176 = vunpack.c.l.b16 %v3265
      %v4177 = vunpack.c.l.b16 %v3266
      %v4178 = vunpack.c.h.b16 %v3266
      %v4179 = vunpack.c.l.b16 %v3267
      %v4180 = vunpack.c.l.b16 %v3268
      %v4181 = vunpack.c.h.b16 %v3268
      %v4182 = vunpack.c.l.b16 %v3269
      %v4183 = vunpack.c.l.b16 %v3270
      %v4184 = vunpack.c.h.b16 %v3270
      %v4185 = vunpack.c.l.b16 %v3271
      %v4186 = vunpack.c.l.b16 %v3272
      %v4187 = vunpack.c.h.b16 %v3272
      %v4188 = vunpack.c.l.b16 %v3273
      %v4189 = vunpack.c.l.b16 %v3274
      %v4190 = vunpack.c.h.b16 %v3274
      %v4191 = vunpack.c.l.b16 %v3275
      %v4192 = vunpack.c.l.b16 %v3276
      %v4193 = vunpack.c.h.b16 %v3276
      %v4194 = vunpack.c.l.b16 %v3277
      %v4195 = vunpack.c.l.b16 %v3278
      %v4196 = vunpack.c.h.b16 %v3278
      %v4197 = vunpack.c.l.b16 %v3279
      %v4198 = vunpack.c.l.b16 %v3280
      %v4199 = vunpack.c.h.b16 %v3280
      %v4200 = vunpack.c.l.b16 %v3281
      %v4201 = vunpack.c.l.b16 %v3282
      %v4202 = vunpack.c.h.b16 %v3282
      %v4203 = vunpack.c.l.b16 %v3283
      %v4204 = vunpack.c.l.b16 %v3284
      %v4205 = vunpack.c.h.b16 %v3284
      %v4206 = vunpack.c.l.b16 %v3285
      %v4207 = vunpack.c.l.b16 %v3286
      %v4208 = vunpack.c.h.b16 %v3286
      %v4209 = vunpack.c.l.b16 %v3287
      %v4210 = vunpack.c.l.b16 %v3288
      %v4211 = vunpack.c.h.b16 %v3288
      %v4212 = vunpack.c.l.b16 %v3289
      %v4213 = vunpack.c.l.b16 %v3290
      %v4214 = vunpack.c.h.b16 %v3290
      %v4215 = vunpack.c.l.b16 %v3291
      %v4216 = vunpack.c.l.b16 %v3292
      %v4217 = vunpack.c.h.b16 %v3292
      %v4218 = vunpack.c.l.b16 %v3293
      %v4219 = vunpack.c.l.b16 %v3294
      %v4220 = vunpack.c.h.b16 %v3294
      %v4221 = vunpack.c.l.b16 %v3295
      %v4222 = vunpack.c.l.b16 %v3296
      %v4223 = vunpack.c.h.b16 %v3296
      %v4224 = vunpack.c.l.b16 %v3297
      %v4225 = vunpack.c.l.b16 %v3298
      %v4226 = vunpack.c.h.b16 %v3298
      %v4227 = vunpack.c.l.b16 %v3299
      %v4228 = vunpack.c.l.b16 %v3300
      %v4229 = vunpack.c.h.b16 %v3300
      %v4230 = vunpack.c.l.b16 %v3301
      %v4231 = vunpack.c.l.b16 %v3302
      %v4232 = vunpack.c.h.b16 %v3302
      %v4233 = vunpack.c.l.b16 %v3303
      %v4234 = vunpack.c.l.b16 %v3304
      %v4235 = vunpack.c.h.b16 %v3304
      %v4236 = vunpack.c.l.b16 %v3305
      %v4237 = vunpack.c.l.b16 %v3306
      %v4238 = vunpack.c.h.b16 %v3306
      %v4239 = vunpack.c.l.b16 %v3307
      %v4240 = vunpack.c.l.b16 %v3308
      %v4241 = vunpack.c.h.b16 %v3308
      %v4242 = vunpack.c.l.b16 %v3309
      %v4243 = vunpack.c.l.b16 %v3310
      %v4244 = vunpack.c.h.b16 %v3310
      %v4245 = vunpack.c.l.b16 %v3311
      %v4246 = vunpack.c.l.b16 %v3312
      %v4247 = vunpack.c.h.b16 %v3312
      %v4248 = vunpack.c.l.b16 %v3313
      %v4249 = vunpack.c.l.b16 %v3314
      %v4250 = vunpack.c.h.b16 %v3314
      %v4251 = vunpack.c.l.b16 %v3315
      %v4252 = vunpack.c.l.b16 %v3316
      %v4253 = vunpack.c.h.b16 %v3316
      %v4254 = vunpack.c.l.b16 %v3317
      %v4255 = vunpack.c.l.b16 %v3318
      %v4256 = vunpack.c.h.b16 %v3318
      %v4257 = vunpack.c.l.b16 %v3319
      %v4258 = vunpack.c.l.b16 %v3320
      %v4259 = vunpack.c.h.b16 %v3320
      %v4260 = vunpack.c.l.b16 %v3321
      %v4261 = vunpack.c.l.b16 %v3322
      %v4262 = vunpack.c.h.b16 %v3322
      %v4263 = vunpack.c.l.b16 %v3323
      %v4264 = vunpack.c.l.b16 %v3324
      %v4265 = vunpack.c.h.b16 %v3324
      %v4266 = vunpack.c.l.b16 %v3325
      %v4267 = vunpack.c.l.b16 %v3326
      %v4268 = vunpack.c.h.b16 %v3326
      %v4269 = vunpack.c.l.b16 %v3327
      %v4270 = vunpack.c.l.b16 %v3328
      %v4271 = vunpack.c.h.b16 %v3328
      %v4272 = vunpack.c.l.b16 %v3329
      %v4273 = vunpack.c.l.b16 %v3330
      %v4274 = vunpack.c.h.b16 %v3330
      %v4275 = vunpack.c.l.b16 %v3331
      %v4276 = vunpack.c.l.b16 %v3332
      %v4277 = vunpack.c.h.b16 %v3332
      %v4278 = vunpack.c.l.b16 %v3333
      %v4279 = vunpack.c.l.b16 %v3334
      %v4280 = vunpack.c.h.b16 %v3334
      %v4281 = vunpack.c.l.b16 %v3335
      %v4282 = vunpack.c.l.b16 %v3336
      %v4283 = vunpack.c.h.b16 %v3336
      %v4284 = vunpack.c.l.b16 %v3337
      %v4285 = vunpack.c.l.b16 %v3338
      %v4286 = vunpack.c.h.b16 %v3338
      %v4287 = vunpack.c.l.b16 %v3339
      %v4288 = vunpack.c.l.b16 %v3340
      %v4289 = vunpack.c.h.b16 %v3340
      %v4290 = vunpack.c.l.b16 %v3341
      %v4291 = vunpack.c.l.b16 %v3342
      %v4292 = vunpack.c.h.b16 %v3342
      %v4293 = vunpack.c.l.b16 %v3343
      %v4294 = vunpack.c.l.b16 %v3344
      %v4295 = vunpack.c.h.b16 %v3344
      %v4296 = vunpack.c.l.b16 %v3345
      %v4297 = vunpack.c.l.b16 %v3346
      %v4298 = vunpack.c.h.b16 %v3346
      %v4299 = vunpack.c.l.b16 %v3347
      %v4300 = vunpack.c.l.b16 %v3348
      %v4301 = vunpack.c.h.b16 %v3348
      %v4302 = vunpack.c.l.b16 %v3349
      %v4303 = vunpack.c.l.b16 %v3350
      %v4304 = vunpack.c.h.b16 %v3350
      %v4305 = vunpack.c.l.b16 %v3351
      %v4306 = vunpack.c.l.b16 %v3352
      %v4307 = vunpack.c.h.b16 %v3352
      %v4308 = vunpack.c.l.b16 %v3353
      %v4309 = vunpack.c.l.b16 %v3354
      %v4310 = vunpack.c.h.b16 %v3354
      %v4311 = vunpack.c.l.b16 %v3355
      %v4312 = vunpack.c.l.b16 %v3356
      %v4313 = vunpack.c.h.b16 %v3356
      %v4314 = vunpack.c.l.b16 %v3357
      %v4315 = vunpack.c.l.b16 %v3358
      %v4316 = vunpack.c.h.b16 %v3358
      %v4317 = vunpack.c.l.b16 %v3359
      %v4318 = vunpack.c.l.b16 %v3360
      %v4319 = vunpack.c.h.b16 %v3360
      %v4320 = vunpack.c.l.b16 %v3361
      %v4321 = vunpack.c.l.b16 %v3362
      %v4322 = vunpack.c.h.b16 %v3362
      %v4323 = vunpack.c.l.b16 %v3363
      %v4324 = vunpack.c.l.b16 %v3364
      %v4325 = vunpack.c.h.b16 %v3364
      %v4326 = vunpack.c.l.b16 %v3365
      %v4327 = vunpack.c.l.b16 %v3366
      %v4328 = vunpack.c.h.b16 %v3366
      %v4329 = vunpack.c.l.b16 %v3367
      %v4330 = vunpack.c.l.b16 %v3368
      %v4331 = vunpack.c.h.b16 %v3368
      %v4332 = vunpack.c.l.b16 %v3369
      %v4333 = vunpack.c.l.b16 %v3370
      %v4334 = vunpack.c.h.b16 %v3370
      %v4335 = vunpack.c.l.b16 %v3371
      %v4336 = vunpack.c.l.b16 %v3372
      %v4337 = vunpack.c.h.b16 %v3372
      %v4338 = vunpack.c.l.b16 %v3373
      %v4339 = vunpack.c.l.b16 %v3374
      %v4340 = vunpack.c.h.b16 %v3374
      %v4341 = vunpack.c.l.b16 %v3375
      %v4342 = vunpack.c.l.b16 %v3376
      %v4343 = vunpack.c.h.b16 %v3376
      %v4344 = vunpack.c.l.b16 %v3377
      %v4345 = vunpack.c.l.b16 %v3378
      %v4346 = vunpack.c.h.b16 %v3378
      %v4347 = vunpack.c.l.b16 %v3379
      %v4348 = vunpack.c.l.b16 %v3380
      %v4349 = vunpack.c.h.b16 %v3380
      %v4350 = vunpack.c.l.b16 %v3381
      %v4351 = vunpack.c.l.b16 %v3382
      %v4352 = vunpack.c.h.b16 %v3382
      %v4353 = vunpack.c.l.b16 %v3383
      %v4354 = vunpack.c.l.b16 %v3384
      %v4355 = vunpack.c.h.b16 %v3384
      %v4356 = vunpack.c.l.b16 %v3385
      %v4357 = vunpack.c.l.b16 %v3386
      %v4358 = vunpack.c.h.b16 %v3386
      %v4359 = vunpack.c.l.b16 %v3387
      %v4360 = vunpack.c.l.b16 %v3388
      %v4361 = vunpack.c.h.b16 %v3388
      %v4362 = vunpack.c.l.b16 %v3389
      %v4363 = vunpack.c.l.b16 %v3390
      %v4364 = vunpack.c.h.b16 %v3390
      %v4365 = vunpack.c.l.b16 %v3391
      %v4366 = vunpack.c.l.b16 %v3392
      %v4367 = vunpack.c.h.b16 %v3392
      %v4368 = vunpack.c.l.b16 %v3393
      %v4369 = vunpack.c.l.b16 %v3394
      %v4370 = vunpack.c.h.b16 %v3394
      %v4371 = vunpack.c.l.b16 %v3395
      %v4372 = vunpack.c.l.b16 %v3396
      %v4373 = vunpack.c.h.b16 %v3396
      %v4374 = vunpack.c.l.b16 %v3397
      %v4375 = vpack.c.b16 %v3802, %v3799
      %v4376 = vpack.c.b16 %v3803, %v3800
      %v4377 = vpack.c.b16 %v3804, %v3801
      %v4378 = vpack.c.b16 %v3808, %v3805
      %v4379 = vpack.c.b16 %v3809, %v3806
      %v4380 = vpack.c.b16 %v3810, %v3807
      %v4381 = vpack.c.b16 %v3814, %v3811
      %v4382 = vpack.c.b16 %v3815, %v3812
      %v4383 = vpack.c.b16 %v3816, %v3813
      %v4384 = vpack.c.b16 %v3820, %v3817
      %v4385 = vpack.c.b16 %v3821, %v3818
      %v4386 = vpack.c.b16 %v3822, %v3819
      %v4387 = vpack.c.b16 %v3826, %v3823
      %v4388 = vpack.c.b16 %v3827, %v3824
      %v4389 = vpack.c.b16 %v3828, %v3825
      %v4390 = vpack.c.b16 %v3832, %v3829
      %v4391 = vpack.c.b16 %v3833, %v3830
      %v4392 = vpack.c.b16 %v3834, %v3831
      %v4393 = vpack.c.b16 %v3838, %v3835
      %v4394 = vpack.c.b16 %v3839, %v3836
      %v4395 = vpack.c.b16 %v3840, %v3837
      %v4396 = vpack.c.b16 %v3844, %v3841
      %v4397 = vpack.c.b16 %v3845, %v3842
      %v4398 = vpack.c.b16 %v3846, %v3843
      %v4399 = vpack.c.b16 %v3850, %v3847
      %v4400 = vpack.c.b16 %v3851, %v3848
      %v4401 = vpack.c.b16 %v3852, %v3849
      %v4402 = vpack.c.b16 %v3856, %v3853
      %v4403 = vpack.c.b16 %v3857, %v3854
      %v4404 = vpack.c.b16 %v3858, %v3855
      %v4405 = vpack.c.b16 %v3862, %v3859
      %v4406 = vpack.c.b16 %v3863, %v3860
      %v4407 = vpack.c.b16 %v3864, %v3861
      %v4408 = vpack.c.b16 %v3868, %v3865
      %v4409 = vpack.c.b16 %v3869, %v3866
      %v4410 = vpack.c.b16 %v3870, %v3867
      %v4411 = vpack.c.b16 %v3874, %v3871
      %v4412 = vpack.c.b16 %v3875, %v3872
      %v4413 = vpack.c.b16 %v3876, %v3873
      %v4414 = vpack.c.b16 %v3880, %v3877
      %v4415 = vpack.c.b16 %v3881, %v3878
      %v4416 = vpack.c.b16 %v3882, %v3879
      %v4417 = vpack.c.b16 %v3886, %v3883
      %v4418 = vpack.c.b16 %v3887, %v3884
      %v4419 = vpack.c.b16 %v3888, %v3885
      %v4420 = vpack.c.b16 %v3892, %v3889
      %v4421 = vpack.c.b16 %v3893, %v3890
      %v4422 = vpack.c.b16 %v3894, %v3891
      %v4423 = vpack.c.b16 %v3898, %v3895
      %v4424 = vpack.c.b16 %v3899, %v3896
      %v4425 = vpack.c.b16 %v3900, %v3897
      %v4426 = vpack.c.b16 %v3904, %v3901
      %v4427 = vpack.c.b16 %v3905, %v3902
      %v4428 = vpack.c.b16 %v3906, %v3903
      %v4429 = vpack.c.b16 %v3910, %v3907
      %v4430 = vpack.c.b16 %v3911, %v3908
      %v4431 = vpack.c.b16 %v3912, %v3909
      %v4432 = vpack.c.b16 %v3916, %v3913
      %v4433 = vpack.c.b16 %v3917, %v3914
      %v4434 = vpack.c.b16 %v3918, %v3915
      %v4435 = vpack.c.b16 %v3922, %v3919
      %v4436 = vpack.c.b16 %v3923, %v3920
      %v4437 = vpack.c.b16 %v3924, %v3921
      %v4438 = vpack.c.b16 %v3928, %v3925
      %v4439 = vpack.c.b16 %v3929, %v3926
      %v4440 = vpack.c.b16 %v3930, %v3927
      %v4441 = vpack.c.b16 %v3934, %v3931
      %v4442 = vpack.c.b16 %v3935, %v3932
      %v4443 = vpack.c.b16 %v3936, %v3933
      %v4444 = vpack.c.b16 %v3940, %v3937
      %v4445 = vpack.c.b16 %v3941, %v3938
      %v4446 = vpack.c.b16 %v3942, %v3939
      %v4447 = vpack.c.b16 %v3946, %v3943
      %v4448 = vpack.c.b16 %v3947, %v3944
      %v4449 = vpack.c.b16 %v3948, %v3945
      %v4450 = vpack.c.b16 %v3952, %v3949
      %v4451 = vpack.c.b16 %v3953, %v3950
      %v4452 = vpack.c.b16 %v3954, %v3951
      %v4453 = vpack.c.b16 %v3958, %v3955
      %v4454 = vpack.c.b16 %v3959, %v3956
      %v4455 = vpack.c.b16 %v3960, %v3957
      %v4456 = vpack.c.b16 %v3964, %v3961
      %v4457 = vpack.c.b16 %v3965, %v3962
      %v4458 = vpack.c.b16 %v3966, %v3963
      %v4459 = vpack.c.b16 %v3970, %v3967
      %v4460 = vpack.c.b16 %v3971, %v3968
      %v4461 = vpack.c.b16 %v3972, %v3969
      %v4462 = vpack.c.b16 %v3976, %v3973
      %v4463 = vpack.c.b16 %v3977, %v3974
      %v4464 = vpack.c.b16 %v3978, %v3975
      %v4465 = vpack.c.b16 %v3982, %v3979
      %v4466 = vpack.c.b16 %v3983, %v3980
      %v4467 = vpack.c.b16 %v3984, %v3981
      %v4468 = vpack.c.b16 %v3988, %v3985
      %v4469 = vpack.c.b16 %v3989, %v3986
      %v4470 = vpack.c.b16 %v3990, %v3987
      %v4471 = vpack.c.b16 %v3994, %v3991
      %v4472 = vpack.c.b16 %v3995, %v3992
      %v4473 = vpack.c.b16 %v3996, %v3993
      %v4474 = vpack.c.b16 %v4000, %v3997
      %v4475 = vpack.c.b16 %v4001, %v3998
      %v4476 = vpack.c.b16 %v4002, %v3999
      %v4477 = vpack.c.b16 %v4006, %v4003
      %v4478 = vpack.c.b16 %v4007, %v4004
      %v4479 = vpack.c.b16 %v4008, %v4005
      %v4480 = vpack.c.b16 %v4012, %v4009
      %v4481 = vpack.c.b16 %v4013, %v4010
      %v4482 = vpack.c.b16 %v4014, %v4011
      %v4483 = vpack.c.b16 %v4018, %v4015
      %v4484 = vpack.c.b16 %v4019, %v4016
      %v4485 = vpack.c.b16 %v4020, %v4017
      %v4486 = vpack.c.b16 %v4024, %v4021
      %v4487 = vpack.c.b16 %v4025, %v4022
      %v4488 = vpack.c.b16 %v4026, %v4023
      %v4489 = vpack.c.b16 %v4030, %v4027
      %v4490 = vpack.c.b16 %v4031, %v4028
      %v4491 = vpack.c.b16 %v4032, %v4029
      %v4492 = vpack.c.b16 %v4036, %v4033
      %v4493 = vpack.c.b16 %v4037, %v4034
      %v4494 = vpack.c.b16 %v4038, %v4035
      %v4495 = vpack.c.b16 %v4042, %v4039
      %v4496 = vpack.c.b16 %v4043, %v4040
      %v4497 = vpack.c.b16 %v4044, %v4041
      %v4498 = vpack.c.b16 %v4048, %v4045
      %v4499 = vpack.c.b16 %v4049, %v4046
      %v4500 = vpack.c.b16 %v4050, %v4047
      %v4501 = vpack.c.b16 %v4054, %v4051
      %v4502 = vpack.c.b16 %v4055, %v4052
      %v4503 = vpack.c.b16 %v4056, %v4053
      %v4504 = vpack.c.b16 %v4060, %v4057
      %v4505 = vpack.c.b16 %v4061, %v4058
      %v4506 = vpack.c.b16 %v4062, %v4059
      %v4507 = vpack.c.b16 %v4066, %v4063
      %v4508 = vpack.c.b16 %v4067, %v4064
      %v4509 = vpack.c.b16 %v4068, %v4065
      %v4510 = vpack.c.b16 %v4072, %v4069
      %v4511 = vpack.c.b16 %v4073, %v4070
      %v4512 = vpack.c.b16 %v4074, %v4071
      %v4513 = vpack.c.b16 %v4078, %v4075
      %v4514 = vpack.c.b16 %v4079, %v4076
      %v4515 = vpack.c.b16 %v4080, %v4077
      %v4516 = vpack.c.b16 %v4084, %v4081
      %v4517 = vpack.c.b16 %v4085, %v4082
      %v4518 = vpack.c.b16 %v4086, %v4083
      %v4519 = vpack.c.b16 %v4090, %v4087
      %v4520 = vpack.c.b16 %v4091, %v4088
      %v4521 = vpack.c.b16 %v4092, %v4089
      %v4522 = vpack.c.b16 %v4096, %v4093
      %v4523 = vpack.c.b16 %v4097, %v4094
      %v4524 = vpack.c.b16 %v4098, %v4095
      %v4525 = vpack.c.b16 %v4102, %v4099
      %v4526 = vpack.c.b16 %v4103, %v4100
      %v4527 = vpack.c.b16 %v4104, %v4101
      %v4528 = vpack.c.b16 %v4108, %v4105
      %v4529 = vpack.c.b16 %v4109, %v4106
      %v4530 = vpack.c.b16 %v4110, %v4107
      %v4531 = vpack.c.b16 %v4114, %v4111
      %v4532 = vpack.c.b16 %v4115, %v4112
      %v4533 = vpack.c.b16 %v4116, %v4113
      %v4534 = vpack.c.b16 %v4120, %v4117
      %v4535 = vpack.c.b16 %v4121, %v4118
      %v4536 = vpack.c.b16 %v4122, %v4119
      %v4537 = vpack.c.b16 %v4126, %v4123
      %v4538 = vpack.c.b16 %v4127, %v4124
      %v4539 = vpack.c.b16 %v4128, %v4125
      %v4540 = vpack.c.b16 %v4132, %v4129
      %v4541 = vpack.c.b16 %v4133, %v4130
      %v4542 = vpack.c.b16 %v4134, %v4131
      %v4543 = vpack.c.b16 %v4138, %v4135
      %v4544 = vpack.c.b16 %v4139, %v4136
      %v4545 = vpack.c.b16 %v4140, %v4137
      %v4546 = vpack.c.b16 %v4144, %v4141
      %v4547 = vpack.c.b16 %v4145, %v4142
      %v4548 = vpack.c.b16 %v4146, %v4143
      %v4549 = vpack.c.b16 %v4150, %v4147
      %v4550 = vpack.c.b16 %v4151, %v4148
      %v4551 = vpack.c.b16 %v4152, %v4149
      %v4552 = vpack.c.b16 %v4156, %v4153
      %v4553 = vpack.c.b16 %v4157, %v4154
      %v4554 = vpack.c.b16 %v4158, %v4155
      %v4555 = vpack.c.b16 %v4162, %v4159
      %v4556 = vpack.c.b16 %v4163, %v4160
      %v4557 = vpack.c.b16 %v4164, %v4161
      %v4558 = vpack.c.b16 %v4168, %v4165
      %v4559 = vpack.c.b16 %v4169, %v4166
      %v4560 = vpack.c.b16 %v4170, %v4167
      %v4561 = vpack.c.b16 %v4174, %v4171
      %v4562 = vpack.c.b16 %v4175, %v4172
      %v4563 = vpack.c.b16 %v4176, %v4173
      %v4564 = vpack.c.b16 %v4180, %v4177
      %v4565 = vpack.c.b16 %v4181, %v4178
      %v4566 = vpack.c.b16 %v4182, %v4179
      %v4567 = vpack.c.b16 %v4186, %v4183
      %v4568 = vpack.c.b16 %v4187, %v4184
      %v4569 = vpack.c.b16 %v4188, %v4185
      %v4570 = vpack.c.b16 %v4192, %v4189
      %v4571 = vpack.c.b16 %v4193, %v4190
      %v4572 = vpack.c.b16 %v4194, %v4191
      %v4573 = vpack.c.b16 %v4198, %v4195
      %v4574 = vpack.c.b16 %v4199, %v4196
      %v4575 = vpack.c.b16 %v4200, %v4197
      %v4576 = vpack.c.b16 %v4204, %v4201
      %v4577 = vpack.c.b16 %v4205, %v4202
      %v4578 = vpack.c.b16 %v4206, %v4203
      %v4579 = vpack.c.b16 %v4210, %v4207
      %v4580 = vpack.c.b16 %v4211, %v4208
      %v4581 = vpack.c.b16 %v4212, %v4209
      %v4582 = vpack.c.b16 %v4216, %v4213
      %v4583 = vpack.c.b16 %v4217, %v4214
      %v4584 = vpack.c.b16 %v4218, %v4215
      %v4585 = vpack.c.b16 %v4222, %v4219
      %v4586 = vpack.c.b16 %v4223, %v4220
      %v4587 = vpack.c.b16 %v4224, %v4221
      %v4588 = vpack.c.b16 %v4228, %v4225
      %v4589 = vpack.c.b16 %v4229, %v4226
      %v4590 = vpack.c.b16 %v4230, %v4227
      %v4591 = vpack.c.b16 %v4234, %v4231
      %v4592 = vpack.c.b16 %v4235, %v4232
      %v4593 = vpack.c.b16 %v4236, %v4233
      %v4594 = vpack.c.b16 %v4240, %v4237
      %v4595 = vpack.c.b16 %v4241, %v4238
      %v4596 = vpack.c.b16 %v4242, %v4239
      %v4597 = vpack.c.b16 %v4246, %v4243
      %v4598 = vpack.c.b16 %v4247, %v4244
      %v4599 = vpack.c.b16 %v4248, %v4245
      %v4600 = vpack.c.b16 %v4252, %v4249
      %v4601 = vpack.c.b16 %v4253, %v4250
      %v4602 = vpack.c.b16 %v4254, %v4251
      %v4603 = vpack.c.b16 %v4258, %v4255
      %v4604 = vpack.c.b16 %v4259, %v4256
      %v4605 = vpack.c.b16 %v4260, %v4257
      %v4606 = vpack.c.b16 %v4264, %v4261
      %v4607 = vpack.c.b16 %v4265, %v4262
      %v4608 = vpack.c.b16 %v4266, %v4263
      %v4609 = vpack.c.b16 %v4270, %v4267
      %v4610 = vpack.c.b16 %v4271, %v4268
      %v4611 = vpack.c.b16 %v4272, %v4269
      %v4612 = vpack.c.b16 %v4276, %v4273
      %v4613 = vpack.c.b16 %v4277, %v4274
      %v4614 = vpack.c.b16 %v4278, %v4275
      %v4615 = vpack.c.b16 %v4282, %v4279
      %v4616 = vpack.c.b16 %v4283, %v4280
      %v4617 = vpack.c.b16 %v4284, %v4281
      %v4618 = vpack.c.b16 %v4288, %v4285
      %v4619 = vpack.c.b16 %v4289, %v4286
      %v4620 = vpack.c.b16 %v4290, %v4287
      %v4621 = vpack.c.b16 %v4294, %v4291
      %v4622 = vpack.c.b16 %v4295, %v4292
      %v4623 = vpack.c.b16 %v4296, %v4293
      %v4624 = vpack.c.b16 %v4300, %v4297
      %v4625 = vpack.c.b16 %v4301, %v4298
      %v4626 = vpack.c.b16 %v4302, %v4299
      %v4627 = vpack.c.b16 %v4306, %v4303
      %v4628 = vpack.c.b16 %v4307, %v4304
      %v4629 = vpack.c.b16 %v4308, %v4305
      %v4630 = vpack.c.b16 %v4312, %v4309
      %v4631 = vpack.c.b16 %v4313, %v4310
      %v4632 = vpack.c.b16 %v4314, %v4311
      %v4633 = vpack.c.b16 %v4318, %v4315
      %v4634 = vpack.c.b16 %v4319, %v4316
      %v4635 = vpack.c.b16 %v4320, %v4317
      %v4636 = vpack.c.b16 %v4324, %v4321
      %v4637 = vpack.c.b16 %v4325, %v4322
      %v4638 = vpack.c.b16 %v4326, %v4323
      %v4639 = vpack.c.b16 %v4330, %v4327
      %v4640 = vpack.c.b16 %v4331, %v4328
      %v4641 = vpack.c.b16 %v4332, %v4329
      %v4642 = vpack.c.b16 %v4336, %v4333
      %v4643 = vpack.c.b16 %v4337, %v4334
      %v4644 = vpack.c.b16 %v4338, %v4335
      %v4645 = vpack.c.b16 %v4342, %v4339
      %v4646 = vpack.c.b16 %v4343, %v4340
      %v4647 = vpack.c.b16 %v4344, %v4341
      %v4648 = vpack.c.b16 %v4348, %v4345
      %v4649 = vpack.c.b16 %v4349, %v4346
      %v4650 = vpack.c.b16 %v4350, %v4347
      %v4651 = vpack.c.b16 %v4354, %v4351
      %v4652 = vpack.c.b16 %v4355, %v4352
      %v4653 = vpack.c.b16 %v4356, %v4353
      %v4654 = vpack.c.b16 %v4360, %v4357
      %v4655 = vpack.c.b16 %v4361, %v4358
      %v4656 = vpack.c.b16 %v4362, %v4359
      %v4657 = vpack.c.b16 %v4366, %v4363
      %v4658 = vpack.c.b16 %v4367, %v4364
      %v4659 = vpack.c.b16 %v4368, %v4365
      %v4660 = vpack.c.b16 %v4372, %v4369
      %v4661 = vpack.c.b16 %v4373, %v4370
      %v4662 = vpack.c.b16 %v4374, %v4371
      %4951 = vmatprep.subr.bf16.mxu0 %v4397
      %4952 = vmatpush1.bf16.msra.mxu0 %v4396
      %4953 = vmatprep.subr.bf16.mxu0 %v4394
      %4954 = vmatpush1.bf16.msra.mxu0 %v4393
      %4955 = vmatprep.subr.bf16.mxu0 %v4391
      %4956 = vmatpush1.bf16.msra.mxu0 %v4390
      %4957 = vmatprep.subr.bf16.mxu0 %v4388
      %4958 = vmatpush1.bf16.msra.mxu0 %v4387
      %4959 = vmatprep.subr.bf16.mxu0 %v4385
      %4960 = vmatpush1.bf16.msra.mxu0 %v4384
      %4961 = vmatprep.subr.bf16.mxu0 %v4382
      %4962 = vmatpush1.bf16.msra.mxu0 %v4381
      %4963 = vmatprep.subr.bf16.mxu0 %v4379
      %4964 = vmatpush1.bf16.msra.mxu0 %v4378
      %4965 = vmatprep.subr.bf16.mxu0 %v4376
      %4966 = vmatpush1.bf16.msra.mxu0 %v4375
      %4967 = vmatprep.subr.bf16.mxu0 %v4421
      %4968 = vmatpush2.bf16.msra.mxu0 %v4420
      %4969 = vmatprep.subr.bf16.mxu0 %v4418
      %4970 = vmatpush2.bf16.msra.mxu0 %v4417
      %4971 = vmatprep.subr.bf16.mxu0 %v4415
      %4972 = vmatpush2.bf16.msra.mxu0 %v4414
      %4973 = vmatprep.subr.bf16.mxu0 %v4412
      %4974 = vmatpush2.bf16.msra.mxu0 %v4411
      %4975 = vmatprep.subr.bf16.mxu0 %v4409
      %4976 = vmatpush2.bf16.msra.mxu0 %v4408
      %4977 = vmatprep.subr.bf16.mxu0 %v4406
      %4978 = vmatpush2.bf16.msra.mxu0 %v4405
      %4979 = vmatprep.subr.bf16.mxu0 %v4403
      %4980 = vmatpush2.bf16.msra.mxu0 %v4402
      %4981 = vmatprep.subr.bf16.mxu0 %v4400
      %4982 = vmatpush2.bf16.msra.mxu0 %v4399
      %4983 = vmatprep.mubr.bf16.mxu0 %v3003
      %4984 = vmatmul.mubr.bf16.gmra.mxu0 %v3002
      %v4985 = vpop.f32.mrf.mxu0
      %v4986 = vadd.f32 %v3403, %v4985
      %v4987 = vpop.f32.mrf.mxu0
      %v4988 = vadd.f32 %v3407, %v4987
      %v4989 = vpop.f32.mrf.mxu0
      %v4990 = vpop.f32.mrf.mxu0
      %4991 = vdwg.mxu0
      %4992 = vmatprep.subr.bf16.mxu0 %v4445
      %4993 = vmatpush1.bf16.msra.mxu0 %v4444
      %4994 = vmatprep.subr.bf16.mxu0 %v4442
      %4995 = vmatpush1.bf16.msra.mxu0 %v4441
      %4996 = vmatprep.subr.bf16.mxu0 %v4439
      %4997 = vmatpush1.bf16.msra.mxu0 %v4438
      %4998 = vmatprep.subr.bf16.mxu0 %v4436
      %4999 = vmatpush1.bf16.msra.mxu0 %v4435
      %5000 = vmatprep.subr.bf16.mxu0 %v4433
      %5001 = vmatpush1.bf16.msra.mxu0 %v4432
      %5002 = vmatprep.subr.bf16.mxu0 %v4430
      %5003 = vmatpush1.bf16.msra.mxu0 %v4429
      %5004 = vmatprep.subr.bf16.mxu0 %v4427
      %5005 = vmatpush1.bf16.msra.mxu0 %v4426
      %5006 = vmatprep.subr.bf16.mxu0 %v4424
      %5007 = vmatpush1.bf16.msra.mxu0 %v4423
      %5008 = vmatprep.subr.bf16.mxu0 %v4469
      %5009 = vmatpush2.bf16.msra.mxu0 %v4468
      %5010 = vmatprep.subr.bf16.mxu0 %v4466
      %5011 = vmatpush2.bf16.msra.mxu0 %v4465
      %5012 = vmatprep.subr.bf16.mxu0 %v4463
      %5013 = vmatpush2.bf16.msra.mxu0 %v4462
      %5014 = vmatprep.subr.bf16.mxu0 %v4460
      %5015 = vmatpush2.bf16.msra.mxu0 %v4459
      %5016 = vmatprep.subr.bf16.mxu0 %v4457
      %5017 = vmatpush2.bf16.msra.mxu0 %v4456
      %5018 = vmatprep.subr.bf16.mxu0 %v4454
      %5019 = vmatpush2.bf16.msra.mxu0 %v4453
      %5020 = vmatprep.subr.bf16.mxu0 %v4451
      %5021 = vmatpush2.bf16.msra.mxu0 %v4450
      %5022 = vmatprep.subr.bf16.mxu0 %v4448
      %5023 = vmatpush2.bf16.msra.mxu0 %v4447
      %5024 = vmatprep.mubr.bf16.mxu0 %v3005
      %5025 = vmatmul.mubr.bf16.gmra.mxu0 %v3004
      %v5026 = vpop.f32.mrf.mxu0
      %v5027 = vadd.f32 %v4986, %v5026
      %v5028 = vpop.f32.mrf.mxu0
      %v5029 = vadd.f32 %v4988, %v5028
      %v5030 = vpop.f32.mrf.mxu0
      %v5031 = vpop.f32.mrf.mxu0
      %5032 = vdwg.mxu0
      %5033 = vmatprep.subr.bf16.mxu0 %v4493
      %5034 = vmatpush1.bf16.msra.mxu0 %v4492
      %5035 = vmatprep.subr.bf16.mxu0 %v4490
      %5036 = vmatpush1.bf16.msra.mxu0 %v4489
      %5037 = vmatprep.subr.bf16.mxu0 %v4487
      %5038 = vmatpush1.bf16.msra.mxu0 %v4486
      %5039 = vmatprep.subr.bf16.mxu0 %v4484
      %5040 = vmatpush1.bf16.msra.mxu0 %v4483
      %5041 = vmatprep.subr.bf16.mxu0 %v4481
      %5042 = vmatpush1.bf16.msra.mxu0 %v4480
      %5043 = vmatprep.subr.bf16.mxu0 %v4478
      %5044 = vmatpush1.bf16.msra.mxu0 %v4477
      %5045 = vmatprep.subr.bf16.mxu0 %v4475
      %5046 = vmatpush1.bf16.msra.mxu0 %v4474
      %5047 = vmatprep.subr.bf16.mxu0 %v4472
      %5048 = vmatpush1.bf16.msra.mxu0 %v4471
      %5049 = vmatprep.subr.bf16.mxu0 %v4517
      %5050 = vmatpush2.bf16.msra.mxu0 %v4516
      %5051 = vmatprep.subr.bf16.mxu0 %v4514
      %5052 = vmatpush2.bf16.msra.mxu0 %v4513
      %5053 = vmatprep.subr.bf16.mxu0 %v4511
      %5054 = vmatpush2.bf16.msra.mxu0 %v4510
      %5055 = vmatprep.subr.bf16.mxu0 %v4508
      %5056 = vmatpush2.bf16.msra.mxu0 %v4507
      %5057 = vmatprep.subr.bf16.mxu0 %v4505
      %5058 = vmatpush2.bf16.msra.mxu0 %v4504
      %5059 = vmatprep.subr.bf16.mxu0 %v4502
      %5060 = vmatpush2.bf16.msra.mxu0 %v4501
      %5061 = vmatprep.subr.bf16.mxu0 %v4499
      %5062 = vmatpush2.bf16.msra.mxu0 %v4498
      %5063 = vmatprep.subr.bf16.mxu0 %v4496
      %5064 = vmatpush2.bf16.msra.mxu0 %v4495
      %5065 = vmatprep.mubr.bf16.mxu0 %v3007
      %5066 = vmatmul.mubr.bf16.gmra.mxu0 %v3006
      %v5067 = vpop.f32.mrf.mxu0
      %v5068 = vadd.f32 %v5027, %v5067
      %v5069 = vpop.f32.mrf.mxu0
      %v5070 = vadd.f32 %v5029, %v5069
      %v5071 = vpop.f32.mrf.mxu0
      %v5072 = vpop.f32.mrf.mxu0
      %5073 = vdwg.mxu0
      %5074 = vmatprep.subr.bf16.mxu0 %v4541
      %5075 = vmatpush1.bf16.msra.mxu0 %v4540
      %5076 = vmatprep.subr.bf16.mxu0 %v4538
      %5077 = vmatpush1.bf16.msra.mxu0 %v4537
      %5078 = vmatprep.subr.bf16.mxu0 %v4535
      %5079 = vmatpush1.bf16.msra.mxu0 %v4534
      %5080 = vmatprep.subr.bf16.mxu0 %v4532
      %5081 = vmatpush1.bf16.msra.mxu0 %v4531
      %5082 = vmatprep.subr.bf16.mxu0 %v4529
      %5083 = vmatpush1.bf16.msra.mxu0 %v4528
      %5084 = vmatprep.subr.bf16.mxu0 %v4526
      %5085 = vmatpush1.bf16.msra.mxu0 %v4525
      %5086 = vmatprep.subr.bf16.mxu0 %v4523
      %5087 = vmatpush1.bf16.msra.mxu0 %v4522
      %5088 = vmatprep.subr.bf16.mxu0 %v4520
      %5089 = vmatpush1.bf16.msra.mxu0 %v4519
      %5090 = vmatprep.subr.bf16.mxu0 %v4565
      %5091 = vmatpush2.bf16.msra.mxu0 %v4564
      %5092 = vmatprep.subr.bf16.mxu0 %v4562
      %5093 = vmatpush2.bf16.msra.mxu0 %v4561
      %5094 = vmatprep.subr.bf16.mxu0 %v4559
      %5095 = vmatpush2.bf16.msra.mxu0 %v4558
      %5096 = vmatprep.subr.bf16.mxu0 %v4556
      %5097 = vmatpush2.bf16.msra.mxu0 %v4555
      %5098 = vmatprep.subr.bf16.mxu0 %v4553
      %5099 = vmatpush2.bf16.msra.mxu0 %v4552
      %5100 = vmatprep.subr.bf16.mxu0 %v4550
      %5101 = vmatpush2.bf16.msra.mxu0 %v4549
      %5102 = vmatprep.subr.bf16.mxu0 %v4547
      %5103 = vmatpush2.bf16.msra.mxu0 %v4546
      %5104 = vmatprep.subr.bf16.mxu0 %v4544
      %5105 = vmatpush2.bf16.msra.mxu0 %v4543
      %5106 = vmatprep.mubr.bf16.mxu0 %v3009
      %5107 = vmatmul.mubr.bf16.gmra.mxu0 %v3008
      %v5108 = vpop.f32.mrf.mxu0
      %v5109 = vadd.f32 %v5068, %v5108
      %v5110 = vpop.f32.mrf.mxu0
      %v5111 = vadd.f32 %v5070, %v5110
      %v5112 = vpop.f32.mrf.mxu0
      %v5113 = vpop.f32.mrf.mxu0
      %5114 = vdwg.mxu0
      %5115 = vmatprep.subr.bf16.mxu0 %v4589
      %5116 = vmatpush1.bf16.msra.mxu0 %v4588
      %5117 = vmatprep.subr.bf16.mxu0 %v4586
      %5118 = vmatpush1.bf16.msra.mxu0 %v4585
      %5119 = vmatprep.subr.bf16.mxu0 %v4583
      %5120 = vmatpush1.bf16.msra.mxu0 %v4582
      %5121 = vmatprep.subr.bf16.mxu0 %v4580
      %5122 = vmatpush1.bf16.msra.mxu0 %v4579
      %5123 = vmatprep.subr.bf16.mxu0 %v4577
      %5124 = vmatpush1.bf16.msra.mxu0 %v4576
      %5125 = vmatprep.subr.bf16.mxu0 %v4574
      %5126 = vmatpush1.bf16.msra.mxu0 %v4573
      %5127 = vmatprep.subr.bf16.mxu0 %v4571
      %5128 = vmatpush1.bf16.msra.mxu0 %v4570
      %5129 = vmatprep.subr.bf16.mxu0 %v4568
      %5130 = vmatpush1.bf16.msra.mxu0 %v4567
      %5131 = vmatprep.subr.bf16.mxu0 %v4613
      %5132 = vmatpush2.bf16.msra.mxu0 %v4612
      %5133 = vmatprep.subr.bf16.mxu0 %v4610
      %5134 = vmatpush2.bf16.msra.mxu0 %v4609
      %5135 = vmatprep.subr.bf16.mxu0 %v4607
      %5136 = vmatpush2.bf16.msra.mxu0 %v4606
      %5137 = vmatprep.subr.bf16.mxu0 %v4604
      %5138 = vmatpush2.bf16.msra.mxu0 %v4603
      %5139 = vmatprep.subr.bf16.mxu0 %v4601
      %5140 = vmatpush2.bf16.msra.mxu0 %v4600
      %5141 = vmatprep.subr.bf16.mxu0 %v4598
      %5142 = vmatpush2.bf16.msra.mxu0 %v4597
      %5143 = vmatprep.subr.bf16.mxu0 %v4595
      %5144 = vmatpush2.bf16.msra.mxu0 %v4594
      %5145 = vmatprep.subr.bf16.mxu0 %v4592
      %5146 = vmatpush2.bf16.msra.mxu0 %v4591
      %5147 = vmatprep.mubr.bf16.mxu0 %v3011
      %5148 = vmatmul.mubr.bf16.gmra.mxu0 %v3010
      %v5149 = vpop.f32.mrf.mxu0
      %v5150 = vadd.f32 %v5109, %v5149
      %v5151 = vpop.f32.mrf.mxu0
      %v5152 = vadd.f32 %v5111, %v5151
      %v5153 = vpop.f32.mrf.mxu0
      %v5154 = vpop.f32.mrf.mxu0
      %5155 = vdwg.mxu0
      %5156 = vmatprep.subr.bf16.mxu0 %v4637
      %5157 = vmatpush1.bf16.msra.mxu0 %v4636
      %5158 = vmatprep.subr.bf16.mxu0 %v4634
      %5159 = vmatpush1.bf16.msra.mxu0 %v4633
      %5160 = vmatprep.subr.bf16.mxu0 %v4631
      %5161 = vmatpush1.bf16.msra.mxu0 %v4630
      %5162 = vmatprep.subr.bf16.mxu0 %v4628
      %5163 = vmatpush1.bf16.msra.mxu0 %v4627
      %5164 = vmatprep.subr.bf16.mxu0 %v4625
      %5165 = vmatpush1.bf16.msra.mxu0 %v4624
      %5166 = vmatprep.subr.bf16.mxu0 %v4622
      %5167 = vmatpush1.bf16.msra.mxu0 %v4621
      %5168 = vmatprep.subr.bf16.mxu0 %v4619
      %5169 = vmatpush1.bf16.msra.mxu0 %v4618
      %5170 = vmatprep.subr.bf16.mxu0 %v4616
      %5171 = vmatpush1.bf16.msra.mxu0 %v4615
      %5172 = vmatprep.subr.bf16.mxu0 %v4661
      %5173 = vmatpush2.bf16.msra.mxu0 %v4660
      %5174 = vmatprep.subr.bf16.mxu0 %v4658
      %5175 = vmatpush2.bf16.msra.mxu0 %v4657
      %5176 = vmatprep.subr.bf16.mxu0 %v4655
      %5177 = vmatpush2.bf16.msra.mxu0 %v4654
      %5178 = vmatprep.subr.bf16.mxu0 %v4652
      %5179 = vmatpush2.bf16.msra.mxu0 %v4651
      %5180 = vmatprep.subr.bf16.mxu0 %v4649
      %5181 = vmatpush2.bf16.msra.mxu0 %v4648
      %5182 = vmatprep.subr.bf16.mxu0 %v4646
      %5183 = vmatpush2.bf16.msra.mxu0 %v4645
      %5184 = vmatprep.subr.bf16.mxu0 %v4643
      %5185 = vmatpush2.bf16.msra.mxu0 %v4642
      %5186 = vmatprep.subr.bf16.mxu0 %v4640
      %5187 = vmatpush2.bf16.msra.mxu0 %v4639
      %5188 = vmatprep.mubr.bf16.mxu0 %v3013
      %5189 = vmatmul.mubr.bf16.gmra.mxu0 %v3012
      %v5190 = vpop.f32.mrf.mxu0
      %v5191 = vadd.f32 %v5150, %v5190
      %v5192 = vpop.f32.mrf.mxu0
      %v5193 = vadd.f32 %v5152, %v5192
      %v5194 = vpop.f32.mrf.mxu0
      %v5195 = vpop.f32.mrf.mxu0
      %5196 = vdwg.mxu0
      %5197 = vmatprep.subr.bf16.mxu0 0
      %5198 = vmatpush1.bf16.msra.mxu0 %v4398
      %5199 = vmatprep.subr.bf16.mxu0 0
      %5200 = vmatpush1.bf16.msra.mxu0 %v4395
      %5201 = vmatprep.subr.bf16.mxu0 0
      %5202 = vmatpush1.bf16.msra.mxu0 %v4392
      %5203 = vmatprep.subr.bf16.mxu0 0
      %5204 = vmatpush1.bf16.msra.mxu0 %v4389
      %5205 = vmatprep.subr.bf16.mxu0 0
      %5206 = vmatpush1.bf16.msra.mxu0 %v4386
      %5207 = vmatprep.subr.bf16.mxu0 0
      %5208 = vmatpush1.bf16.msra.mxu0 %v4383
      %5209 = vmatprep.subr.bf16.mxu0 0
      %5210 = vmatpush1.bf16.msra.mxu0 %v4380
      %5211 = vmatprep.subr.bf16.mxu0 0
      %5212 = vmatpush1.bf16.msra.mxu0 %v4377
      %5213 = vmatprep.subr.bf16.mxu0 0
      %5214 = vmatpush2.bf16.msra.mxu0 %v4422
      %5215 = vmatprep.subr.bf16.mxu0 0
      %5216 = vmatpush2.bf16.msra.mxu0 %v4419
      %5217 = vmatprep.subr.bf16.mxu0 0
      %5218 = vmatpush2.bf16.msra.mxu0 %v4416
      %5219 = vmatprep.subr.bf16.mxu0 0
      %5220 = vmatpush2.bf16.msra.mxu0 %v4413
      %5221 = vmatprep.subr.bf16.mxu0 0
      %5222 = vmatpush2.bf16.msra.mxu0 %v4410
      %5223 = vmatprep.subr.bf16.mxu0 0
      %5224 = vmatpush2.bf16.msra.mxu0 %v4407
      %5225 = vmatprep.subr.bf16.mxu0 0
      %5226 = vmatpush2.bf16.msra.mxu0 %v4404
      %5227 = vmatprep.subr.bf16.mxu0 0
      %5228 = vmatpush2.bf16.msra.mxu0 %v4401
      %5229 = vmatprep.mubr.bf16.mxu0 %v3003
      %5230 = vmatmul.mubr.bf16.gmra.mxu0 %v3002
      %v5231 = vpop.f32.mrf.mxu0
      %v5232 = vadd.f32 %v3411, %v5231
      %v5233 = vpop.f32.mrf.mxu0
      %v5234 = vpop.f32.mrf.mxu0
      %v5235 = vpop.f32.mrf.mxu0
      %5236 = vdwg.mxu0
      %5237 = vmatprep.subr.bf16.mxu0 0
      %5238 = vmatpush1.bf16.msra.mxu0 %v4446
      %5239 = vmatprep.subr.bf16.mxu0 0
      %5240 = vmatpush1.bf16.msra.mxu0 %v4443
      %5241 = vmatprep.subr.bf16.mxu0 0
      %5242 = vmatpush1.bf16.msra.mxu0 %v4440
      %5243 = vmatprep.subr.bf16.mxu0 0
      %5244 = vmatpush1.bf16.msra.mxu0 %v4437
      %5245 = vmatprep.subr.bf16.mxu0 0
      %5246 = vmatpush1.bf16.msra.mxu0 %v4434
      %5247 = vmatprep.subr.bf16.mxu0 0
      %5248 = vmatpush1.bf16.msra.mxu0 %v4431
      %5249 = vmatprep.subr.bf16.mxu0 0
      %5250 = vmatpush1.bf16.msra.mxu0 %v4428
      %5251 = vmatprep.subr.bf16.mxu0 0
      %5252 = vmatpush1.bf16.msra.mxu0 %v4425
      %5253 = vmatprep.subr.bf16.mxu0 0
      %5254 = vmatpush2.bf16.msra.mxu0 %v4470
      %5255 = vmatprep.subr.bf16.mxu0 0
      %5256 = vmatpush2.bf16.msra.mxu0 %v4467
      %5257 = vmatprep.subr.bf16.mxu0 0
      %5258 = vmatpush2.bf16.msra.mxu0 %v4464
      %5259 = vmatprep.subr.bf16.mxu0 0
      %5260 = vmatpush2.bf16.msra.mxu0 %v4461
      %5261 = vmatprep.subr.bf16.mxu0 0
      %5262 = vmatpush2.bf16.msra.mxu0 %v4458
      %5263 = vmatprep.subr.bf16.mxu0 0
      %5264 = vmatpush2.bf16.msra.mxu0 %v4455
      %5265 = vmatprep.subr.bf16.mxu0 0
      %5266 = vmatpush2.bf16.msra.mxu0 %v4452
      %5267 = vmatprep.subr.bf16.mxu0 0
      %5268 = vmatpush2.bf16.msra.mxu0 %v4449
      %5269 = vmatprep.mubr.bf16.mxu0 %v3005
      %5270 = vmatmul.mubr.bf16.gmra.mxu0 %v3004
      %v5271 = vpop.f32.mrf.mxu0
      %v5272 = vadd.f32 %v5232, %v5271
      %v5273 = vpop.f32.mrf.mxu0
      %v5274 = vpop.f32.mrf.mxu0
      %v5275 = vpop.f32.mrf.mxu0
      %5276 = vdwg.mxu0
      %5277 = vmatprep.subr.bf16.mxu0 0
      %5278 = vmatpush1.bf16.msra.mxu0 %v4494
      %5279 = vmatprep.subr.bf16.mxu0 0
      %5280 = vmatpush1.bf16.msra.mxu0 %v4491
      %5281 = vmatprep.subr.bf16.mxu0 0
      %5282 = vmatpush1.bf16.msra.mxu0 %v4488
      %5283 = vmatprep.subr.bf16.mxu0 0
      %5284 = vmatpush1.bf16.msra.mxu0 %v4485
      %5285 = vmatprep.subr.bf16.mxu0 0
      %5286 = vmatpush1.bf16.msra.mxu0 %v4482
      %5287 = vmatprep.subr.bf16.mxu0 0
      %5288 = vmatpush1.bf16.msra.mxu0 %v4479
      %5289 = vmatprep.subr.bf16.mxu0 0
      %5290 = vmatpush1.bf16.msra.mxu0 %v4476
      %5291 = vmatprep.subr.bf16.mxu0 0
      %5292 = vmatpush1.bf16.msra.mxu0 %v4473
      %5293 = vmatprep.subr.bf16.mxu0 0
      %5294 = vmatpush2.bf16.msra.mxu0 %v4518
      %5295 = vmatprep.subr.bf16.mxu0 0
      %5296 = vmatpush2.bf16.msra.mxu0 %v4515
      %5297 = vmatprep.subr.bf16.mxu0 0
      %5298 = vmatpush2.bf16.msra.mxu0 %v4512
      %5299 = vmatprep.subr.bf16.mxu0 0
      %5300 = vmatpush2.bf16.msra.mxu0 %v4509
      %5301 = vmatprep.subr.bf16.mxu0 0
      %5302 = vmatpush2.bf16.msra.mxu0 %v4506
      %5303 = vmatprep.subr.bf16.mxu0 0
      %5304 = vmatpush2.bf16.msra.mxu0 %v4503
      %5305 = vmatprep.subr.bf16.mxu0 0
      %5306 = vmatpush2.bf16.msra.mxu0 %v4500
      %5307 = vmatprep.subr.bf16.mxu0 0
      %5308 = vmatpush2.bf16.msra.mxu0 %v4497
      %5309 = vmatprep.mubr.bf16.mxu0 %v3007
      %5310 = vmatmul.mubr.bf16.gmra.mxu0 %v3006
      %v5311 = vpop.f32.mrf.mxu0
      %v5312 = vadd.f32 %v5272, %v5311
      %v5313 = vpop.f32.mrf.mxu0
      %v5314 = vpop.f32.mrf.mxu0
      %v5315 = vpop.f32.mrf.mxu0
      %5316 = vdwg.mxu0
      %5317 = vmatprep.subr.bf16.mxu0 0
      %5318 = vmatpush1.bf16.msra.mxu0 %v4542
      %5319 = vmatprep.subr.bf16.mxu0 0
      %5320 = vmatpush1.bf16.msra.mxu0 %v4539
      %5321 = vmatprep.subr.bf16.mxu0 0
      %5322 = vmatpush1.bf16.msra.mxu0 %v4536
      %5323 = vmatprep.subr.bf16.mxu0 0
      %5324 = vmatpush1.bf16.msra.mxu0 %v4533
      %5325 = vmatprep.subr.bf16.mxu0 0
      %5326 = vmatpush1.bf16.msra.mxu0 %v4530
      %5327 = vmatprep.subr.bf16.mxu0 0
      %5328 = vmatpush1.bf16.msra.mxu0 %v4527
      %5329 = vmatprep.subr.bf16.mxu0 0
      %5330 = vmatpush1.bf16.msra.mxu0 %v4524
      %5331 = vmatprep.subr.bf16.mxu0 0
      %5332 = vmatpush1.bf16.msra.mxu0 %v4521
      %5333 = vmatprep.subr.bf16.mxu0 0
      %5334 = vmatpush2.bf16.msra.mxu0 %v4566
      %5335 = vmatprep.subr.bf16.mxu0 0
      %5336 = vmatpush2.bf16.msra.mxu0 %v4563
      %5337 = vmatprep.subr.bf16.mxu0 0
      %5338 = vmatpush2.bf16.msra.mxu0 %v4560
      %5339 = vmatprep.subr.bf16.mxu0 0
      %5340 = vmatpush2.bf16.msra.mxu0 %v4557
      %5341 = vmatprep.subr.bf16.mxu0 0
      %5342 = vmatpush2.bf16.msra.mxu0 %v4554
      %5343 = vmatprep.subr.bf16.mxu0 0
      %5344 = vmatpush2.bf16.msra.mxu0 %v4551
      %5345 = vmatprep.subr.bf16.mxu0 0
      %5346 = vmatpush2.bf16.msra.mxu0 %v4548
      %5347 = vmatprep.subr.bf16.mxu0 0
      %5348 = vmatpush2.bf16.msra.mxu0 %v4545
      %5349 = vmatprep.mubr.bf16.mxu0 %v3009
      %5350 = vmatmul.mubr.bf16.gmra.mxu0 %v3008
      %v5351 = vpop.f32.mrf.mxu0
      %v5352 = vadd.f32 %v5312, %v5351
      %v5353 = vpop.f32.mrf.mxu0
      %v5354 = vpop.f32.mrf.mxu0
      %v5355 = vpop.f32.mrf.mxu0
      %5356 = vdwg.mxu0
      %5357 = vmatprep.subr.bf16.mxu0 0
      %5358 = vmatpush1.bf16.msra.mxu0 %v4590
      %5359 = vmatprep.subr.bf16.mxu0 0
      %5360 = vmatpush1.bf16.msra.mxu0 %v4587
      %5361 = vmatprep.subr.bf16.mxu0 0
      %5362 = vmatpush1.bf16.msra.mxu0 %v4584
      %5363 = vmatprep.subr.bf16.mxu0 0
      %5364 = vmatpush1.bf16.msra.mxu0 %v4581
      %5365 = vmatprep.subr.bf16.mxu0 0
      %5366 = vmatpush1.bf16.msra.mxu0 %v4578
      %5367 = vmatprep.subr.bf16.mxu0 0
      %5368 = vmatpush1.bf16.msra.mxu0 %v4575
      %5369 = vmatprep.subr.bf16.mxu0 0
      %5370 = vmatpush1.bf16.msra.mxu0 %v4572
      %5371 = vmatprep.subr.bf16.mxu0 0
      %5372 = vmatpush1.bf16.msra.mxu0 %v4569
      %5373 = vmatprep.subr.bf16.mxu0 0
      %5374 = vmatpush2.bf16.msra.mxu0 %v4614
      %5375 = vmatprep.subr.bf16.mxu0 0
      %5376 = vmatpush2.bf16.msra.mxu0 %v4611
      %5377 = vmatprep.subr.bf16.mxu0 0
      %5378 = vmatpush2.bf16.msra.mxu0 %v4608
      %5379 = vmatprep.subr.bf16.mxu0 0
      %5380 = vmatpush2.bf16.msra.mxu0 %v4605
      %5381 = vmatprep.subr.bf16.mxu0 0
      %5382 = vmatpush2.bf16.msra.mxu0 %v4602
      %5383 = vmatprep.subr.bf16.mxu0 0
      %5384 = vmatpush2.bf16.msra.mxu0 %v4599
      %5385 = vmatprep.subr.bf16.mxu0 0
      %5386 = vmatpush2.bf16.msra.mxu0 %v4596
      %5387 = vmatprep.subr.bf16.mxu0 0
      %5388 = vmatpush2.bf16.msra.mxu0 %v4593
      %5389 = vmatprep.mubr.bf16.mxu0 %v3011
      %5390 = vmatmul.mubr.bf16.gmra.mxu0 %v3010
      %v5391 = vpop.f32.mrf.mxu0
      %v5392 = vadd.f32 %v5352, %v5391
      %v5393 = vpop.f32.mrf.mxu0
      %v5394 = vpop.f32.mrf.mxu0
      %v5395 = vpop.f32.mrf.mxu0
      %5396 = vdwg.mxu0
      %5397 = vmatprep.subr.bf16.mxu0 0
      %5398 = vmatpush1.bf16.msra.mxu0 %v4638
      %5399 = vmatprep.subr.bf16.mxu0 0
      %5400 = vmatpush1.bf16.msra.mxu0 %v4635
      %5401 = vmatprep.subr.bf16.mxu0 0
      %5402 = vmatpush1.bf16.msra.mxu0 %v4632
      %5403 = vmatprep.subr.bf16.mxu0 0
      %5404 = vmatpush1.bf16.msra.mxu0 %v4629
      %5405 = vmatprep.subr.bf16.mxu0 0
      %5406 = vmatpush1.bf16.msra.mxu0 %v4626
      %5407 = vmatprep.subr.bf16.mxu0 0
      %5408 = vmatpush1.bf16.msra.mxu0 %v4623
      %5409 = vmatprep.subr.bf16.mxu0 0
      %5410 = vmatpush1.bf16.msra.mxu0 %v4620
      %5411 = vmatprep.subr.bf16.mxu0 0
      %5412 = vmatpush1.bf16.msra.mxu0 %v4617
      %5413 = vmatprep.subr.bf16.mxu0 0
      %5414 = vmatpush2.bf16.msra.mxu0 %v4662
      %5415 = vmatprep.subr.bf16.mxu0 0
      %5416 = vmatpush2.bf16.msra.mxu0 %v4659
      %5417 = vmatprep.subr.bf16.mxu0 0
      %5418 = vmatpush2.bf16.msra.mxu0 %v4656
      %5419 = vmatprep.subr.bf16.mxu0 0
      %5420 = vmatpush2.bf16.msra.mxu0 %v4653
      %5421 = vmatprep.subr.bf16.mxu0 0
      %5422 = vmatpush2.bf16.msra.mxu0 %v4650
      %5423 = vmatprep.subr.bf16.mxu0 0
      %5424 = vmatpush2.bf16.msra.mxu0 %v4647
      %5425 = vmatprep.subr.bf16.mxu0 0
      %5426 = vmatpush2.bf16.msra.mxu0 %v4644
      %5427 = vmatprep.subr.bf16.mxu0 0
      %5428 = vmatpush2.bf16.msra.mxu0 %v4641
      %5429 = vmatprep.mubr.bf16.mxu0 %v3013
      %5430 = vmatmul.mubr.bf16.gmra.mxu0 %v3012
      %v5431 = vpop.f32.mrf.mxu0
      %v5432 = vadd.f32 %v5392, %v5431
      %v5433 = vpop.f32.mrf.mxu0
      %v5434 = vpop.f32.mrf.mxu0
      %v5435 = vpop.f32.mrf.mxu0
      %5436 = vdwg.mxu0
      %v5437 = vld [vmem:[%s7] sm:$0x7]
      %v5439 = vlaneseq
      %v5440 = vshrl.u32 %v5439, 7
      %v5441 = vsub.s32 0, %v5440
      %v5442 = vrot.slane %v5437, %v5441
      %v5443 = vlaneseq
      %v5444 = vshrl.u32 %v5443, 7
      %v5445 = vsub.s32 1, %v5444
      %v5446 = vrot.slane %v5437, %v5445
      %v5447 = vlaneseq
      %v5448 = vshrl.u32 %v5447, 7
      %v5449 = vsub.s32 2, %v5448
      %v5450 = vrot.slane %v5437, %v5449
      %v5454 = vmul.f32 %v5442, %v5191
      %v5455 = vmul.f32 %v5446, %v5193
      %v5456 = vmul.f32 %v5450, %v5432
      %v5457 = vadd.f32 %v307, %v5454
      %v5458 = vadd.f32 %v308, %v5455
      %v5459 = vadd.f32 %v309, %v5456
      %5460 = vst [vmem:[%s305] sm:$0x1f] %v5457
      %5461 = vst [vmem:[%s305 + $0x8] sm:$0x1f] %v5458
      %5462 = vst [vmem:[%s305 + $0x10] sm:$0x1f] %v5459
      %p5463 = scmp.lt.s32.totalorder %s19, 1
      %s5464 = scalar_select %p5463, %s19, 1
      %s5465 = smul.addr %s5464, 3
      %s5466 = smul.addr %s5465, 8
      %s5467 = scalar_lea.vmem %s8, %s5466
      // Predicated region
      $region53: #{closed_call.12} parent=51 // pred_check
        %p5468 = pneg %p210
      $region54: #{closed_call.12} parent=51 // pred_check_branch
        %5470 = sbr.rel (%p5468) target = $region56
      $region55: #{closed_call.12} parent=51 // pred_region
        _
      $region56: #{closed_call.12} parent=51 // pred_fallthru
        _
    $region52: #{closed_call.12} parent=5 // pred_fallthru
      _
    %p5471 = scmp.le.s32.totalorder 2, %s14
    // Predicated region
    $region57: #{closed_call.12} parent=5 // pred_check
      %p5472 = pneg %p5471
    $region58: #{closed_call.12} parent=5 // pred_check_branch
      %5474 = sbr.rel (%p5472) target = $region60
    $region59: #{closed_call.12} parent=5 // pred_region
      %s5475 = ssub.s32 %s14, 2
      // Predicated region
      $region61: #{closed_call.12} parent=59 // pred_check
        %p5476 = pneg %p216
      $region62: #{closed_call.12} parent=59 // pred_check_branch
        %5478 = sbr.rel (%p5476) target = $region64
      $region63: #{closed_call.12} parent=59 // pred_region
        %p5479 = scmp.lt.s32.totalorder %s20, 1
        %s5480 = scalar_select %p5479, %s20, 1
        %s5481 = smul.addr %s5480, 3
        %s5482 = smul.addr %s5481, 8
        %s5483 = scalar_lea.vmem %s8, %s5482
      $region64: #{closed_call.12} parent=59 // pred_fallthru
        _
    $region60: #{closed_call.12} parent=5 // pred_fallthru
      _
  $region6: #{closed_call.12} parent=0 // loop_footer
    %s18 = sadd.s32 1, %s14
  $region7: #{closed_call.12} parent=0 // loop_footer_branch
    %13 = sbr.rel target = $region3
  $region8: #{closed_call.12} parent=0 // loop_exit
    _

</llo_original>
